<compile_context>
chip_gen: v7x
topology: tpu7x:2x2x1
jax: 0.10.0
libtpu: 0.0.40
codegen_flags: <defaults>
</compile_context>

<pallas_src>
import numpy as np
import jax
import jax.numpy as jnp
from jax import lax
from jax.experimental import pallas as pl
from jax.experimental.pallas import tpu as pltpu

EPS = 1e-5


# ------------------------------ Pallas kernel -------------------------------

def _sigmoid(v):
    return 1.0 / (1.0 + jnp.exp(-v))


def _msga_kernel(x_ref, g_ref, dw_ref, w2_ref, pw_ref, sel_ref, pw2_ref,
                 cbw_ref, vecs_ref, o_ref, xpad_ref, y1pad_ref, patch_ref):
    _, H, W, C = x_ref.shape
    f32 = jnp.float32
    x0 = x_ref[0]                                    # (H, W, C)
    g0 = g_ref[0]

    # ---- stage 1: depthwise 3x3 (pad 1) + BN + ReLU -------------------------
    xpad_ref[...] = jnp.zeros_like(xpad_ref)
    xpad_ref[1:H + 1, 1:W + 1, :] = x0
    xp = xpad_ref[...]                               # (H+2, W+2, C)
    # hoist the 3 sublane (kx) shifts once; ky slicing is on the outer axis
    xcol = [xp[:, kx:kx + W, :] for kx in range(3)]
    acc = xcol[0][0:H] * dw_ref[0, :]                # init from first tap
    for ky in range(3):
        for kx in range(3):
            if ky == 0 and kx == 0:
                continue
            acc = acc + xcol[kx][ky:ky + H] * dw_ref[ky * 3 + kx, :]
    y1 = jnp.maximum(acc * vecs_ref[0, :] + vecs_ref[1, :], 0.0)

    # ---- stage 2: 3x3 dilation-2 conv (pad 2) + BN + ReLU, one matmul -------
    y1pad_ref[...] = jnp.zeros_like(y1pad_ref)
    y1pad_ref[2:H + 2, 2:W + 2, :] = y1
    yp = y1pad_ref[...]                              # (H+4, W+4, C)
    ycol = [yp[:, 2 * kx:2 * kx + W, :] for kx in range(3)]
    for ky in range(3):
        for kx in range(3):
            t = ky * 3 + kx
            patch_ref[:, t * C:(t + 1) * C] = (
                ycol[kx][2 * ky:2 * ky + H].reshape(H * W, C))
    y2 = jnp.dot(patch_ref[...], w2_ref[...],
                 preferred_element_type=f32).reshape(H, W, C)
    y2 = jnp.maximum(y2 * vecs_ref[2, :] + vecs_ref[3, :], 0.0)

    # ---- stage 3: MultiscaleFusion tail (proj conv + global branch) ---------
    # proj BN, global 1x1(2->1)+BN(1) and the fusion BN are pre-folded into
    # vecs rows 4..7 (see wrapper).
    xl = jnp.dot(y2.reshape(H * W, C), pw_ref[...],
                 preferred_element_type=f32).reshape(H, W, C)
    avg = jnp.mean(g0, axis=-1, keepdims=True)       # (H, W, 1)
    mx = jnp.max(g0, axis=-1, keepdims=True)
    multi = (xl * vecs_ref[4, :] + avg * vecs_ref[6, :]
             + mx * vecs_ref[7, :] + vecs_ref[5, :])

    # ---- gated attention -----------------------------------------------------
    # softmax over the 2 selection channels == sigmoid of the logit difference
    d = (jnp.sum(multi * sel_ref[0, :], axis=-1, keepdims=True)
         + sel_ref[1:2, 0:1])                        # (H, W, 1)
    a = _sigmoid(d)                                  # = A ;  B = 1 - a
    x_att = x0 * (1.0 + a)                           # A*x + x
    g_att = g0 * (2.0 - a)                           # B*g + g
    inter = (x_att * g_att) * _sigmoid(x_att) * _sigmoid(g_att)
    pr = jnp.dot(inter.reshape(H * W, C), pw2_ref[...],
                 preferred_element_type=f32).reshape(H, W, C)
    projected = _sigmoid(pr * vecs_ref[8, :] + vecs_ref[9, :])
    weighted = projected * x0
    y = jnp.dot(weighted.reshape(H * W, C), cbw_ref[...],
                preferred_element_type=f32).reshape(H, W, C)
    o_ref[0] = y * vecs_ref[10, :] + vecs_ref[11, :]


# -------------------------------- wrappers -----------------------------------

def _bn_fold(gamma, beta, mean, var, conv_bias=None):
    scale = gamma / jnp.sqrt(var + EPS)
    shift = beta - mean * scale
    if conv_bias is not None:
        shift = shift + conv_bias * scale
    return scale.astype(jnp.float32), shift.astype(jnp.float32)


def multiscale_gated_attn_forward(x_nhwc, g_nhwc, p):
    """Fused MultiScaleGatedAttn forward (inference-mode BN). NHWC layout."""
    N, H, W, C = x_nhwc.shape
    f32 = jnp.float32
    x = x_nhwc.astype(f32)
    g = g_nhwc.astype(f32)

    # ---- fold conv biases + BatchNorms (running stats) into scale/shift -----
    s1, t1 = _bn_fold(p['bn1_g'], p['bn1_b'], p['bn1_m'], p['bn1_v'], p['dw_b'])
    s2, t2 = _bn_fold(p['bn2_g'], p['bn2_b'], p['bn2_m'], p['bn2_v'], p['conv2_b'])
    s3, t3 = _bn_fold(p['bn3_g'], p['bn3_b'], p['bn3_m'], p['bn3_v'], p['proj_b'])
    gs, gt = _bn_fold(p['gbn_g'], p['gbn_b'], p['gbn_m'], p['gbn_v'], p['gproj_b'])
    sF, tF = _bn_fold(p['fbn_g'], p['fbn_b'], p['fbn_m'], p['fbn_v'])
    sp_, tp_ = _bn_fold(p['abn_g'], p['abn_b'], p['abn_m'], p['abn_v'], p['aproj_b'])
    s4, t4 = _bn_fold(p['abn2_g'], p['abn2_b'], p['abn2_m'], p['abn2_v'], p['cb_b'])

    # merge global 1x1(2->1)+BN(1) and the fusion BN into one affine:
    #   multi = (sF*s3)*(y2@pw) + (sF*a)*avg + (sF*m)*max + (sF*t3 + sF*gt + tF)
    a_coef = p['gproj_w'][0, 0, 0, 0] * gs[0]
    m_coef = p['gproj_w'][0, 1, 0, 0] * gs[0]
    s3f = sF * s3
    t3f = sF * t3 + sF * gt[0] + tF
    af = sF * a_coef
    mf = sF * m_coef

    vecs = jnp.stack([s1, t1, s2, t2, s3f, t3f, af, mf, sp_, tp_, s4, t4],
                     axis=0).astype(f32)                              # (12, C)
    dw_w = p['dw_w'].reshape(C, 9).T.astype(f32)                      # (9, C)
    w2 = jnp.transpose(p['conv2_w'], (2, 3, 1, 0)).reshape(9 * C, C).astype(f32)
    pw = p['proj_w'][:, :, 0, 0].T.astype(f32)                        # (Cin, Cout)
    sel_dw = p['sel_w'][0, :, 0, 0] - p['sel_w'][1, :, 0, 0]          # (C,)
    sel_db = p['sel_b'][0] - p['sel_b'][1]
    sel = jnp.stack([sel_dw, jnp.full((C,), sel_db)], axis=0).astype(f32)
    pw2 = p['aproj_w'][:, :, 0, 0].T.astype(f32)
    cbw = p['cb_w'][:, :, 0, 0].T.astype(f32)

    img = pl.BlockSpec((1, H, W, C), lambda n: (n, 0, 0, 0))
    cst = lambda r, c: pl.BlockSpec((r, c), lambda n: (0, 0))

    return pl.pallas_call(
        _msga_kernel,
        out_shape=jax.ShapeDtypeStruct((N, H, W, C), f32),
        grid=(N,),
        in_specs=[img, img,
                  cst(9, C), cst(9 * C, C), cst(C, C), cst(2, C),
                  cst(C, C), cst(C, C), cst(12, C)],
        out_specs=img,
        scratch_shapes=[pltpu.VMEM((H + 2, W + 2, C), f32),     # padded x
                        pltpu.VMEM((H + 4, W + 4, C), f32),     # padded y1
                        pltpu.VMEM((H * W, 9 * C), f32)],       # im2col patch
        compiler_params=pltpu.CompilerParams(
            dimension_semantics=("parallel",)),
    )(x, g, dw_w, w2, pw, sel, pw2, cbw, vecs)


def multiscale_gated_attn_forward_nchw(x_nchw, g_nchw, p):
    """PyTorch-layout convenience wrapper (adds boundary transposes)."""
    out = multiscale_gated_attn_forward(
        jnp.transpose(x_nchw, (0, 2, 3, 1)),
        jnp.transpose(g_nchw, (0, 2, 3, 1)), p)
    return jnp.transpose(out, (0, 3, 1, 2))


# ------------------------ pure-JAX reference (NCHW) ---------------------------

def _bn_ref(y, gmm, bt, mn, vr):
    b = lambda v: v.reshape(1, -1, 1, 1)
    return (y - b(mn)) / jnp.sqrt(b(vr) + EPS) * b(gmm) + b(bt)


def _conv(v, w, pad, dil=(1, 1), groups=1):
    return lax.conv_general_dilated(
        v, w, (1, 1), ((pad, pad), (pad, pad)), rhs_dilation=dil,
        dimension_numbers=('NCHW', 'OIHW', 'NCHW'), feature_group_count=groups)


def ref_forward(x, g, p):
    C = x.shape[1]
    b_ = lambda v: v.reshape(1, -1, 1, 1)
    # MultiscaleFusion
    y = _conv(x, p['dw_w'], 1, groups=C) + b_(p['dw_b'])
    y = jnp.maximum(_bn_ref(y, p['bn1_g'], p['bn1_b'], p['bn1_m'], p['bn1_v']), 0.0)
    y = _conv(y, p['conv2_w'], 2, dil=(2, 2)) + b_(p['conv2_b'])
    y = jnp.maximum(_bn_ref(y, p['bn2_g'], p['bn2_b'], p['bn2_m'], p['bn2_v']), 0.0)
    y = _conv(y, p['proj_w'], 0) + b_(p['proj_b'])
    y = _bn_ref(y, p['bn3_g'], p['bn3_b'], p['bn3_m'], p['bn3_v'])
    avg = jnp.mean(g, axis=1, keepdims=True)
    mx = jnp.max(g, axis=1, keepdims=True)
    gp = _conv(jnp.concatenate([avg, mx], axis=1), p['gproj_w'], 0) + b_(p['gproj_b'])
    gp = _bn_ref(gp, p['gbn_g'], p['gbn_b'], p['gbn_m'], p['gbn_v'])
    multi = _bn_ref(y + gp, p['fbn_g'], p['fbn_b'], p['fbn_m'], p['fbn_v'])
    # Gated attention
    sel = _conv(multi, p['sel_w'], 0) + b_(p['sel_b'])
    att = jax.nn.softmax(sel, axis=1)
    A, B = att[:, 0:1], att[:, 1:2]
    x_att = A * x + x
    g_att = B * g + g
    inter = (jax.nn.sigmoid(g_att) * x_att) * (jax.nn.sigmoid(x_att) * g_att)
    pr = _conv(inter, p['aproj_w'], 0) + b_(p['aproj_b'])
    projected = jax.nn.sigmoid(
        _bn_ref(pr, p['abn_g'], p['abn_b'], p['abn_m'], p['abn_v']))
    weighted = projected * x
    out = _conv(weighted, p['cb_w'], 0) + b_(p['cb_b'])
    return _bn_ref(out, p['abn2_g'], p['abn2_b'], p['abn2_m'], p['abn2_v'])


# -------------------------------- parameters ----------------------------------

def init_params(key, C):
    ks = jax.random.split(key, 21)
    nrm = lambda k, shape, s=0.2: (s * jax.random.normal(k, shape)).astype(jnp.float32)

    def bn(k, n):
        k1, k2, k3, k4 = jax.random.split(k, 4)
        return ((1.0 + 0.1 * jax.random.normal(k1, (n,))).astype(jnp.float32),
                (0.1 * jax.random.normal(k2, (n,))).astype(jnp.float32),
                (0.1 * jax.random.normal(k3, (n,))).astype(jnp.float32),
                (0.5 + jax.random.uniform(k4, (n,))).astype(jnp.float32))

    p = {
        'dw_w': nrm(ks[0], (C, 1, 3, 3)),     'dw_b': nrm(ks[1], (C,)),
        'conv2_w': nrm(ks[2], (C, C, 3, 3)),  'conv2_b': nrm(ks[3], (C,)),
        'proj_w': nrm(ks[4], (C, C, 1, 1)),   'proj_b': nrm(ks[5], (C,)),
        'gproj_w': nrm(ks[6], (1, 2, 1, 1)),  'gproj_b': nrm(ks[7], (1,)),
        'sel_w': nrm(ks[8], (2, C, 1, 1)),    'sel_b': nrm(ks[9], (2,)),
        'aproj_w': nrm(ks[10], (C, C, 1, 1)), 'aproj_b': nrm(ks[11], (C,)),
        'cb_w': nrm(ks[12], (C, C, 1, 1)),    'cb_b': nrm(ks[13], (C,)),
    }
    for name, k, n in [('bn1', ks[14], C), ('bn2', ks[15], C), ('bn3', ks[16], C),
                       ('gbn', ks[17], 1), ('fbn', ks[18], C),
                       ('abn', ks[19], C), ('abn2', ks[20], C)]:
        g_, b_, m_, v_ = bn(k, n)
        p[f'{name}_g'], p[f'{name}_b'], p[f'{name}_m'], p[f'{name}_v'] = g_, b_, m_, v_
    return p


# ----------------------------------- main --------------------------------------

if __name__ == "__main__":
    N, C, H, W = 2, 4, 16, 16
    key = jax.random.PRNGKey(0)
    kx, kg, kp = jax.random.split(key, 3)
    # kernel-native layout is NHWC so no transposes sit in the hot path
    x = jax.random.normal(kx, (N, H, W, C), jnp.float32)
    g = jax.random.normal(kg, (N, H, W, C), jnp.float32)
    params = init_params(kp, C)

    fwd = jax.jit(multiscale_gated_attn_forward)
    out = jax.block_until_ready(fwd(x, g, params))
    assert out.shape == (N, H, W, C)

    # reference runs in NCHW (PyTorch convention); the transposes live only in
    # the test harness, not in the kernel path.
    x_nchw = jnp.transpose(x, (0, 3, 1, 2))
    g_nchw = jnp.transpose(g, (0, 3, 1, 2))
    ref = jnp.transpose(ref_forward(x_nchw, g_nchw, params), (0, 2, 3, 1))
    ref = jax.block_until_ready(ref)

    np.testing.assert_allclose(np.asarray(out), np.asarray(ref),
                               rtol=5e-4, atol=5e-4)
    print("KERNEL_OK")
</pallas_src>

<mosaic_0001>
module attributes {stable_mosaic.version = 11 : i64} {
  func.func @_msga_kernel(%arg0: i32, %arg1: memref<1x16x16x4xf32, #tpu.memory_space<vmem>>, %arg2: memref<1x16x16x4xf32, #tpu.memory_space<vmem>>, %arg3: memref<9x4xf32, #tpu.memory_space<vmem>>, %arg4: memref<36x4xf32, #tpu.memory_space<vmem>>, %arg5: memref<4x4xf32, #tpu.memory_space<vmem>>, %arg6: memref<2x4xf32, #tpu.memory_space<vmem>>, %arg7: memref<4x4xf32, #tpu.memory_space<vmem>>, %arg8: memref<4x4xf32, #tpu.memory_space<vmem>>, %arg9: memref<12x4xf32, #tpu.memory_space<vmem>>, %arg10: memref<1x16x16x4xf32, #tpu.memory_space<vmem>>, %arg11: memref<18x18x4xf32, #tpu.memory_space<vmem>>, %arg12: memref<20x20x4xf32, #tpu.memory_space<vmem>>, %arg13: memref<256x36xf32, #tpu.memory_space<vmem>>) attributes {dimension_semantics = [#tpu.dimension_semantics<parallel>], iteration_bounds = array<i64: 2>, scalar_prefetch = 0 : i64, scratch_operands = 3 : i64, tpu.core_type = #tpu.core_type<tc>, window_params = [{transform_indices = @transform_0, window_bounds = array<i64: 1, 16, 16, 4>}, {transform_indices = @transform_1, window_bounds = array<i64: 1, 16, 16, 4>}, {pipeline_mode = #tpu.pipeline_mode<synchronous>, transform_indices = @transform_2, window_bounds = array<i64: 9, 4>}, {pipeline_mode = #tpu.pipeline_mode<synchronous>, transform_indices = @transform_3, window_bounds = array<i64: 36, 4>}, {pipeline_mode = #tpu.pipeline_mode<synchronous>, transform_indices = @transform_4, window_bounds = array<i64: 4, 4>}, {pipeline_mode = #tpu.pipeline_mode<synchronous>, transform_indices = @transform_5, window_bounds = array<i64: 2, 4>}, {pipeline_mode = #tpu.pipeline_mode<synchronous>, transform_indices = @transform_6, window_bounds = array<i64: 4, 4>}, {pipeline_mode = #tpu.pipeline_mode<synchronous>, transform_indices = @transform_7, window_bounds = array<i64: 4, 4>}, {pipeline_mode = #tpu.pipeline_mode<synchronous>, transform_indices = @transform_8, window_bounds = array<i64: 12, 4>}, {transform_indices = @transform_9, window_bounds = array<i64: 1, 16, 16, 4>}]} {
    %c0 = arith.constant 0 : index
    %c0_0 = arith.constant 0 : index
    %c0_1 = arith.constant 0 : index
    %c0_2 = arith.constant 0 : index
    %0 = vector.load %arg1[%c0, %c0_0, %c0_1, %c0_2] : memref<1x16x16x4xf32, #tpu.memory_space<vmem>>, vector<1x16x16x4xf32>
    %1 = vector.shape_cast %0 : vector<1x16x16x4xf32> to vector<16x16x4xf32>
    %c0_3 = arith.constant 0 : index
    %c0_4 = arith.constant 0 : index
    %c0_5 = arith.constant 0 : index
    %c0_6 = arith.constant 0 : index
    %2 = vector.load %arg2[%c0_3, %c0_4, %c0_5, %c0_6] : memref<1x16x16x4xf32, #tpu.memory_space<vmem>>, vector<1x16x16x4xf32>
    %3 = vector.shape_cast %2 : vector<1x16x16x4xf32> to vector<16x16x4xf32>
    %cst = arith.constant 0.000000e+00 : f32
    %4 = vector.broadcast %cst : f32 to vector<18x18x4xf32>
    %c0_7 = arith.constant 0 : index
    %c0_8 = arith.constant 0 : index
    %c0_9 = arith.constant 0 : index
    %5 = vector.load %arg11[%c0_7, %c0_8, %c0_9] : memref<18x18x4xf32, #tpu.memory_space<vmem>>, vector<18x18x4xf32>
    tpu.vector_store %arg11[%c0_7, %c0_8, %c0_9], %4 {strides = array<i32>} : memref<18x18x4xf32, #tpu.memory_space<vmem>>, vector<18x18x4xf32>,
    %c1 = arith.constant 1 : index
    %c1_10 = arith.constant 1 : index
    %c0_11 = arith.constant 0 : index
    %6 = vector.load %arg11[%c1, %c1_10, %c0_11] : memref<18x18x4xf32, #tpu.memory_space<vmem>>, vector<16x16x4xf32>
    tpu.vector_store %arg11[%c1, %c1_10, %c0_11], %1 {strides = array<i32>} : memref<18x18x4xf32, #tpu.memory_space<vmem>>, vector<16x16x4xf32>,
    %c0_12 = arith.constant 0 : index
    %c0_13 = arith.constant 0 : index
    %c0_14 = arith.constant 0 : index
    %7 = vector.load %arg11[%c0_12, %c0_13, %c0_14] : memref<18x18x4xf32, #tpu.memory_space<vmem>>, vector<18x18x4xf32>
    %8 = vector.extract_strided_slice %7 {offsets = [0, 0, 0], sizes = [18, 16, 4], strides = [1, 1, 1]} : vector<18x18x4xf32> to vector<18x16x4xf32>
    %9 = vector.extract_strided_slice %7 {offsets = [0, 1, 0], sizes = [18, 16, 4], strides = [1, 1, 1]} : vector<18x18x4xf32> to vector<18x16x4xf32>
    %10 = vector.extract_strided_slice %7 {offsets = [0, 2, 0], sizes = [18, 16, 4], strides = [1, 1, 1]} : vector<18x18x4xf32> to vector<18x16x4xf32>
    %11 = vector.extract_strided_slice %8 {offsets = [0, 0, 0], sizes = [16, 16, 4], strides = [1, 1, 1]} : vector<18x16x4xf32> to vector<16x16x4xf32>
    %c0_15 = arith.constant 0 : index
    %c0_16 = arith.constant 0 : index
    %12 = vector.load %arg3[%c0_15, %c0_16] : memref<9x4xf32, #tpu.memory_space<vmem>>, vector<1x4xf32>
    %13 = vector.shape_cast %12 : vector<1x4xf32> to vector<4xf32>
    %14 = vector.shape_cast %13 : vector<4xf32> to vector<1x1x4xf32>
    %15 = vector.broadcast %14 : vector<1x1x4xf32> to vector<16x16x4xf32>
    %16 = arith.mulf %11, %15 : vector<16x16x4xf32>
    %17 = vector.extract_strided_slice %9 {offsets = [0, 0, 0], sizes = [16, 16, 4], strides = [1, 1, 1]} : vector<18x16x4xf32> to vector<16x16x4xf32>
    %c1_17 = arith.constant 1 : index
    %c0_18 = arith.constant 0 : index
    %18 = vector.load %arg3[%c1_17, %c0_18] : memref<9x4xf32, #tpu.memory_space<vmem>>, vector<1x4xf32>
    %19 = vector.shape_cast %18 : vector<1x4xf32> to vector<4xf32>
    %20 = vector.shape_cast %19 : vector<4xf32> to vector<1x1x4xf32>
    %21 = vector.broadcast %20 : vector<1x1x4xf32> to vector<16x16x4xf32>
    %22 = arith.mulf %17, %21 : vector<16x16x4xf32>
    %23 = arith.addf %16, %22 : vector<16x16x4xf32>
    %24 = vector.extract_strided_slice %10 {offsets = [0, 0, 0], sizes = [16, 16, 4], strides = [1, 1, 1]} : vector<18x16x4xf32> to vector<16x16x4xf32>
    %c2 = arith.constant 2 : index
    %c0_19 = arith.constant 0 : index
    %25 = vector.load %arg3[%c2, %c0_19] : memref<9x4xf32, #tpu.memory_space<vmem>>, vector<1x4xf32>
    %26 = vector.shape_cast %25 : vector<1x4xf32> to vector<4xf32>
    %27 = vector.shape_cast %26 : vector<4xf32> to vector<1x1x4xf32>
    %28 = vector.broadcast %27 : vector<1x1x4xf32> to vector<16x16x4xf32>
    %29 = arith.mulf %24, %28 : vector<16x16x4xf32>
    %30 = arith.addf %23, %29 : vector<16x16x4xf32>
    %31 = vector.extract_strided_slice %8 {offsets = [1, 0, 0], sizes = [16, 16, 4], strides = [1, 1, 1]} : vector<18x16x4xf32> to vector<16x16x4xf32>
    %c3 = arith.constant 3 : index
    %c0_20 = arith.constant 0 : index
    %32 = vector.load %arg3[%c3, %c0_20] : memref<9x4xf32, #tpu.memory_space<vmem>>, vector<1x4xf32>
    %33 = vector.shape_cast %32 : vector<1x4xf32> to vector<4xf32>
    %34 = vector.shape_cast %33 : vector<4xf32> to vector<1x1x4xf32>
    %35 = vector.broadcast %34 : vector<1x1x4xf32> to vector<16x16x4xf32>
    %36 = arith.mulf %31, %35 : vector<16x16x4xf32>
    %37 = arith.addf %30, %36 : vector<16x16x4xf32>
    %38 = vector.extract_strided_slice %9 {offsets = [1, 0, 0], sizes = [16, 16, 4], strides = [1, 1, 1]} : vector<18x16x4xf32> to vector<16x16x4xf32>
    %c4 = arith.constant 4 : index
    %c0_21 = arith.constant 0 : index
    %39 = vector.load %arg3[%c4, %c0_21] : memref<9x4xf32, #tpu.memory_space<vmem>>, vector<1x4xf32>
    %40 = vector.shape_cast %39 : vector<1x4xf32> to vector<4xf32>
    %41 = vector.shape_cast %40 : vector<4xf32> to vector<1x1x4xf32>
    %42 = vector.broadcast %41 : vector<1x1x4xf32> to vector<16x16x4xf32>
    %43 = arith.mulf %38, %42 : vector<16x16x4xf32>
    %44 = arith.addf %37, %43 : vector<16x16x4xf32>
    %45 = vector.extract_strided_slice %10 {offsets = [1, 0, 0], sizes = [16, 16, 4], strides = [1, 1, 1]} : vector<18x16x4xf32> to vector<16x16x4xf32>
    %c5 = arith.constant 5 : index
    %c0_22 = arith.constant 0 : index
    %46 = vector.load %arg3[%c5, %c0_22] : memref<9x4xf32, #tpu.memory_space<vmem>>, vector<1x4xf32>
    %47 = vector.shape_cast %46 : vector<1x4xf32> to vector<4xf32>
    %48 = vector.shape_cast %47 : vector<4xf32> to vector<1x1x4xf32>
    %49 = vector.broadcast %48 : vector<1x1x4xf32> to vector<16x16x4xf32>
    %50 = arith.mulf %45, %49 : vector<16x16x4xf32>
    %51 = arith.addf %44, %50 : vector<16x16x4xf32>
    %52 = vector.extract_strided_slice %8 {offsets = [2, 0, 0], sizes = [16, 16, 4], strides = [1, 1, 1]} : vector<18x16x4xf32> to vector<16x16x4xf32>
    %c6 = arith.constant 6 : index
    %c0_23 = arith.constant 0 : index
    %53 = vector.load %arg3[%c6, %c0_23] : memref<9x4xf32, #tpu.memory_space<vmem>>, vector<1x4xf32>
    %54 = vector.shape_cast %53 : vector<1x4xf32> to vector<4xf32>
    %55 = vector.shape_cast %54 : vector<4xf32> to vector<1x1x4xf32>
    %56 = vector.broadcast %55 : vector<1x1x4xf32> to vector<16x16x4xf32>
    %57 = arith.mulf %52, %56 : vector<16x16x4xf32>
    %58 = arith.addf %51, %57 : vector<16x16x4xf32>
    %59 = vector.extract_strided_slice %9 {offsets = [2, 0, 0], sizes = [16, 16, 4], strides = [1, 1, 1]} : vector<18x16x4xf32> to vector<16x16x4xf32>
    %c7 = arith.constant 7 : index
    %c0_24 = arith.constant 0 : index
    %60 = vector.load %arg3[%c7, %c0_24] : memref<9x4xf32, #tpu.memory_space<vmem>>, vector<1x4xf32>
    %61 = vector.shape_cast %60 : vector<1x4xf32> to vector<4xf32>
    %62 = vector.shape_cast %61 : vector<4xf32> to vector<1x1x4xf32>
    %63 = vector.broadcast %62 : vector<1x1x4xf32> to vector<16x16x4xf32>
    %64 = arith.mulf %59, %63 : vector<16x16x4xf32>
    %65 = arith.addf %58, %64 : vector<16x16x4xf32>
    %66 = vector.extract_strided_slice %10 {offsets = [2, 0, 0], sizes = [16, 16, 4], strides = [1, 1, 1]} : vector<18x16x4xf32> to vector<16x16x4xf32>
    %c8 = arith.constant 8 : index
    %c0_25 = arith.constant 0 : index
    %67 = vector.load %arg3[%c8, %c0_25] : memref<9x4xf32, #tpu.memory_space<vmem>>, vector<1x4xf32>
    %68 = vector.shape_cast %67 : vector<1x4xf32> to vector<4xf32>
    %69 = vector.shape_cast %68 : vector<4xf32> to vector<1x1x4xf32>
    %70 = vector.broadcast %69 : vector<1x1x4xf32> to vector<16x16x4xf32>
    %71 = arith.mulf %66, %70 : vector<16x16x4xf32>
    %72 = arith.addf %65, %71 : vector<16x16x4xf32>
    %c0_26 = arith.constant 0 : index
    %c0_27 = arith.constant 0 : index
    %73 = vector.load %arg9[%c0_26, %c0_27] : memref<12x4xf32, #tpu.memory_space<vmem>>, vector<1x4xf32>
    %74 = vector.shape_cast %73 : vector<1x4xf32> to vector<4xf32>
    %75 = vector.shape_cast %74 : vector<4xf32> to vector<1x1x4xf32>
    %76 = vector.broadcast %75 : vector<1x1x4xf32> to vector<16x16x4xf32>
    %77 = arith.mulf %72, %76 : vector<16x16x4xf32>
    %c1_28 = arith.constant 1 : index
    %c0_29 = arith.constant 0 : index
    %78 = vector.load %arg9[%c1_28, %c0_29] : memref<12x4xf32, #tpu.memory_space<vmem>>, vector<1x4xf32>
    %79 = vector.shape_cast %78 : vector<1x4xf32> to vector<4xf32>
    %80 = vector.shape_cast %79 : vector<4xf32> to vector<1x1x4xf32>
    %81 = vector.broadcast %80 : vector<1x1x4xf32> to vector<16x16x4xf32>
    %82 = arith.addf %77, %81 : vector<16x16x4xf32>
    %cst_30 = arith.constant 0.000000e+00 : f32
    %83 = vector.broadcast %cst_30 : f32 to vector<16x16x4xf32>
    %84 = arith.maximumf %82, %83 : vector<16x16x4xf32>
    %cst_31 = arith.constant 0.000000e+00 : f32
    %85 = vector.broadcast %cst_31 : f32 to vector<20x20x4xf32>
    %c0_32 = arith.constant 0 : index
    %c0_33 = arith.constant 0 : index
    %c0_34 = arith.constant 0 : index
    %86 = vector.load %arg12[%c0_32, %c0_33, %c0_34] : memref<20x20x4xf32, #tpu.memory_space<vmem>>, vector<20x20x4xf32>
    tpu.vector_store %arg12[%c0_32, %c0_33, %c0_34], %85 {strides = array<i32>} : memref<20x20x4xf32, #tpu.memory_space<vmem>>, vector<20x20x4xf32>,
    %c2_35 = arith.constant 2 : index
    %c2_36 = arith.constant 2 : index
    %c0_37 = arith.constant 0 : index
    %87 = vector.load %arg12[%c2_35, %c2_36, %c0_37] : memref<20x20x4xf32, #tpu.memory_space<vmem>>, vector<16x16x4xf32>
    tpu.vector_store %arg12[%c2_35, %c2_36, %c0_37], %84 {strides = array<i32>} : memref<20x20x4xf32, #tpu.memory_space<vmem>>, vector<16x16x4xf32>,
    %c0_38 = arith.constant 0 : index
    %c0_39 = arith.constant 0 : index
    %c0_40 = arith.constant 0 : index
    %88 = vector.load %arg12[%c0_38, %c0_39, %c0_40] : memref<20x20x4xf32, #tpu.memory_space<vmem>>, vector<20x20x4xf32>
    %89 = vector.extract_strided_slice %88 {offsets = [0, 0, 0], sizes = [20, 16, 4], strides = [1, 1, 1]} : vector<20x20x4xf32> to vector<20x16x4xf32>
    %90 = vector.extract_strided_slice %88 {offsets = [0, 2, 0], sizes = [20, 16, 4], strides = [1, 1, 1]} : vector<20x20x4xf32> to vector<20x16x4xf32>
    %91 = vector.extract_strided_slice %88 {offsets = [0, 4, 0], sizes = [20, 16, 4], strides = [1, 1, 1]} : vector<20x20x4xf32> to vector<20x16x4xf32>
    %92 = vector.extract_strided_slice %89 {offsets = [0, 0, 0], sizes = [16, 16, 4], strides = [1, 1, 1]} : vector<20x16x4xf32> to vector<16x16x4xf32>
    %93 = vector.shape_cast %92 : vector<16x16x4xf32> to vector<256x4xf32>
    %c0_41 = arith.constant 0 : index
    %c0_42 = arith.constant 0 : index
    %94 = vector.load %arg13[%c0_41, %c0_42] : memref<256x36xf32, #tpu.memory_space<vmem>>, vector<256x4xf32>
    tpu.vector_store %arg13[%c0_41, %c0_42], %93 {strides = array<i32>} : memref<256x36xf32, #tpu.memory_space<vmem>>, vector<256x4xf32>,
    %95 = vector.extract_strided_slice %90 {offsets = [0, 0, 0], sizes = [16, 16, 4], strides = [1, 1, 1]} : vector<20x16x4xf32> to vector<16x16x4xf32>
    %96 = vector.shape_cast %95 : vector<16x16x4xf32> to vector<256x4xf32>
    %c0_43 = arith.constant 0 : index
    %c4_44 = arith.constant 4 : index
    %97 = vector.load %arg13[%c0_43, %c4_44] : memref<256x36xf32, #tpu.memory_space<vmem>>, vector<256x4xf32>
    tpu.vector_store %arg13[%c0_43, %c4_44], %96 {strides = array<i32>} : memref<256x36xf32, #tpu.memory_space<vmem>>, vector<256x4xf32>,
    %98 = vector.extract_strided_slice %91 {offsets = [0, 0, 0], sizes = [16, 16, 4], strides = [1, 1, 1]} : vector<20x16x4xf32> to vector<16x16x4xf32>
    %99 = vector.shape_cast %98 : vector<16x16x4xf32> to vector<256x4xf32>
    %c0_45 = arith.constant 0 : index
    %c8_46 = arith.constant 8 : index
    %100 = vector.load %arg13[%c0_45, %c8_46] : memref<256x36xf32, #tpu.memory_space<vmem>>, vector<256x4xf32>
    tpu.vector_store %arg13[%c0_45, %c8_46], %99 {strides = array<i32>} : memref<256x36xf32, #tpu.memory_space<vmem>>, vector<256x4xf32>,
    %101 = vector.extract_strided_slice %89 {offsets = [2, 0, 0], sizes = [16, 16, 4], strides = [1, 1, 1]} : vector<20x16x4xf32> to vector<16x16x4xf32>
    %102 = vector.shape_cast %101 : vector<16x16x4xf32> to vector<256x4xf32>
    %c0_47 = arith.constant 0 : index
    %c12 = arith.constant 12 : index
    %103 = vector.load %arg13[%c0_47, %c12] : memref<256x36xf32, #tpu.memory_space<vmem>>, vector<256x4xf32>
    tpu.vector_store %arg13[%c0_47, %c12], %102 {strides = array<i32>} : memref<256x36xf32, #tpu.memory_space<vmem>>, vector<256x4xf32>,
    %104 = vector.extract_strided_slice %90 {offsets = [2, 0, 0], sizes = [16, 16, 4], strides = [1, 1, 1]} : vector<20x16x4xf32> to vector<16x16x4xf32>
    %105 = vector.shape_cast %104 : vector<16x16x4xf32> to vector<256x4xf32>
    %c0_48 = arith.constant 0 : index
    %c16 = arith.constant 16 : index
    %106 = vector.load %arg13[%c0_48, %c16] : memref<256x36xf32, #tpu.memory_space<vmem>>, vector<256x4xf32>
    tpu.vector_store %arg13[%c0_48, %c16], %105 {strides = array<i32>} : memref<256x36xf32, #tpu.memory_space<vmem>>, vector<256x4xf32>,
    %107 = vector.extract_strided_slice %91 {offsets = [2, 0, 0], sizes = [16, 16, 4], strides = [1, 1, 1]} : vector<20x16x4xf32> to vector<16x16x4xf32>
    %108 = vector.shape_cast %107 : vector<16x16x4xf32> to vector<256x4xf32>
    %c0_49 = arith.constant 0 : index
    %c20 = arith.constant 20 : index
    %109 = vector.load %arg13[%c0_49, %c20] : memref<256x36xf32, #tpu.memory_space<vmem>>, vector<256x4xf32>
    tpu.vector_store %arg13[%c0_49, %c20], %108 {strides = array<i32>} : memref<256x36xf32, #tpu.memory_space<vmem>>, vector<256x4xf32>,
    %110 = vector.extract_strided_slice %89 {offsets = [4, 0, 0], sizes = [16, 16, 4], strides = [1, 1, 1]} : vector<20x16x4xf32> to vector<16x16x4xf32>
    %111 = vector.shape_cast %110 : vector<16x16x4xf32> to vector<256x4xf32>
    %c0_50 = arith.constant 0 : index
    %c24 = arith.constant 24 : index
    %112 = vector.load %arg13[%c0_50, %c24] : memref<256x36xf32, #tpu.memory_space<vmem>>, vector<256x4xf32>
    tpu.vector_store %arg13[%c0_50, %c24], %111 {strides = array<i32>} : memref<256x36xf32, #tpu.memory_space<vmem>>, vector<256x4xf32>,
    %113 = vector.extract_strided_slice %90 {offsets = [4, 0, 0], sizes = [16, 16, 4], strides = [1, 1, 1]} : vector<20x16x4xf32> to vector<16x16x4xf32>
    %114 = vector.shape_cast %113 : vector<16x16x4xf32> to vector<256x4xf32>
    %c0_51 = arith.constant 0 : index
    %c28 = arith.constant 28 : index
    %115 = vector.load %arg13[%c0_51, %c28] : memref<256x36xf32, #tpu.memory_space<vmem>>, vector<256x4xf32>
    tpu.vector_store %arg13[%c0_51, %c28], %114 {strides = array<i32>} : memref<256x36xf32, #tpu.memory_space<vmem>>, vector<256x4xf32>,
    %116 = vector.extract_strided_slice %91 {offsets = [4, 0, 0], sizes = [16, 16, 4], strides = [1, 1, 1]} : vector<20x16x4xf32> to vector<16x16x4xf32>
    %117 = vector.shape_cast %116 : vector<16x16x4xf32> to vector<256x4xf32>
    %c0_52 = arith.constant 0 : index
    %c32 = arith.constant 32 : index
    %118 = vector.load %arg13[%c0_52, %c32] : memref<256x36xf32, #tpu.memory_space<vmem>>, vector<256x4xf32>
    tpu.vector_store %arg13[%c0_52, %c32], %117 {strides = array<i32>} : memref<256x36xf32, #tpu.memory_space<vmem>>, vector<256x4xf32>,
    %c0_53 = arith.constant 0 : index
    %c0_54 = arith.constant 0 : index
    %119 = vector.load %arg13[%c0_53, %c0_54] : memref<256x36xf32, #tpu.memory_space<vmem>>, vector<256x36xf32>
    %c0_55 = arith.constant 0 : index
    %c0_56 = arith.constant 0 : index
    %120 = vector.load %arg4[%c0_55, %c0_56] : memref<36x4xf32, #tpu.memory_space<vmem>>, vector<36x4xf32>
    %cst_57 = arith.constant dense<0.000000e+00> : vector<256x4xf32>
    %121 = tpu.matmul %119, %120, %cst_57 {dimension_numbers = #tpu.dot_dimension_numbers<[1], [0], [0], [1], [0, 0, 1, 1], [], []>} : vector<256x36xf32>, vector<36x4xf32>, vector<256x4xf32> -> vector<256x4xf32>
    %122 = vector.shape_cast %121 : vector<256x4xf32> to vector<16x16x4xf32>
    %c2_58 = arith.constant 2 : index
    %c0_59 = arith.constant 0 : index
    %123 = vector.load %arg9[%c2_58, %c0_59] : memref<12x4xf32, #tpu.memory_space<vmem>>, vector<1x4xf32>
    %124 = vector.shape_cast %123 : vector<1x4xf32> to vector<4xf32>
    %125 = vector.shape_cast %124 : vector<4xf32> to vector<1x1x4xf32>
    %126 = vector.broadcast %125 : vector<1x1x4xf32> to vector<16x16x4xf32>
    %127 = arith.mulf %122, %126 : vector<16x16x4xf32>
    %c3_60 = arith.constant 3 : index
    %c0_61 = arith.constant 0 : index
    %128 = vector.load %arg9[%c3_60, %c0_61] : memref<12x4xf32, #tpu.memory_space<vmem>>, vector<1x4xf32>
    %129 = vector.shape_cast %128 : vector<1x4xf32> to vector<4xf32>
    %130 = vector.shape_cast %129 : vector<4xf32> to vector<1x1x4xf32>
    %131 = vector.broadcast %130 : vector<1x1x4xf32> to vector<16x16x4xf32>
    %132 = arith.addf %127, %131 : vector<16x16x4xf32>
    %cst_62 = arith.constant 0.000000e+00 : f32
    %133 = vector.broadcast %cst_62 : f32 to vector<16x16x4xf32>
    %134 = arith.maximumf %132, %133 : vector<16x16x4xf32>
    %135 = vector.shape_cast %134 : vector<16x16x4xf32> to vector<256x4xf32>
    %c0_63 = arith.constant 0 : index
    %c0_64 = arith.constant 0 : index
    %136 = vector.load %arg5[%c0_63, %c0_64] : memref<4x4xf32, #tpu.memory_space<vmem>>, vector<4x4xf32>
    %cst_65 = arith.constant dense<0.000000e+00> : vector<256x4xf32>
    %137 = tpu.matmul %135, %136, %cst_65 {dimension_numbers = #tpu.dot_dimension_numbers<[1], [0], [0], [1], [0, 0, 1, 1], [], []>} : vector<256x4xf32>, vector<4x4xf32>, vector<256x4xf32> -> vector<256x4xf32>
    %138 = vector.shape_cast %137 : vector<256x4xf32> to vector<16x16x4xf32>
    %cst_66 = arith.constant dense<0.000000e+00> : vector<16x16xf32>
    %139 = vector.multi_reduction <add>, %3, %cst_66 [2] : vector<16x16x4xf32> to vector<16x16xf32>
    %140 = vector.shape_cast %139 : vector<16x16xf32> to vector<16x16x1xf32>
    %cst_67 = arith.constant 4.000000e+00 : f32
    %141 = vector.broadcast %cst_67 : f32 to vector<16x16x1xf32>
    %142 = arith.divf %140, %141 : vector<16x16x1xf32>
    %cst_68 = arith.constant dense<0xFF800000> : vector<16x16xf32>
    %143 = vector.multi_reduction <maximumf>, %3, %cst_68 [2] : vector<16x16x4xf32> to vector<16x16xf32>
    %144 = vector.shape_cast %143 : vector<16x16xf32> to vector<16x16x1xf32>
    %c4_69 = arith.constant 4 : index
    %c0_70 = arith.constant 0 : index
    %145 = vector.load %arg9[%c4_69, %c0_70] : memref<12x4xf32, #tpu.memory_space<vmem>>, vector<1x4xf32>
    %146 = vector.shape_cast %145 : vector<1x4xf32> to vector<4xf32>
    %147 = vector.shape_cast %146 : vector<4xf32> to vector<1x1x4xf32>
    %148 = vector.broadcast %147 : vector<1x1x4xf32> to vector<16x16x4xf32>
    %149 = arith.mulf %138, %148 : vector<16x16x4xf32>
    %c6_71 = arith.constant 6 : index
    %c0_72 = arith.constant 0 : index
    %150 = vector.load %arg9[%c6_71, %c0_72] : memref<12x4xf32, #tpu.memory_space<vmem>>, vector<1x4xf32>
    %151 = vector.shape_cast %150 : vector<1x4xf32> to vector<4xf32>
    %152 = vector.shape_cast %151 : vector<4xf32> to vector<1x1x4xf32>
    %153 = vector.broadcast %142 : vector<16x16x1xf32> to vector<16x16x4xf32>
    %154 = vector.broadcast %152 : vector<1x1x4xf32> to vector<16x16x4xf32>
    %155 = arith.mulf %153, %154 : vector<16x16x4xf32>
    %156 = arith.addf %149, %155 : vector<16x16x4xf32>
    %c7_73 = arith.constant 7 : index
    %c0_74 = arith.constant 0 : index
    %157 = vector.load %arg9[%c7_73, %c0_74] : memref<12x4xf32, #tpu.memory_space<vmem>>, vector<1x4xf32>
    %158 = vector.shape_cast %157 : vector<1x4xf32> to vector<4xf32>
    %159 = vector.shape_cast %158 : vector<4xf32> to vector<1x1x4xf32>
    %160 = vector.broadcast %144 : vector<16x16x1xf32> to vector<16x16x4xf32>
    %161 = vector.broadcast %159 : vector<1x1x4xf32> to vector<16x16x4xf32>
    %162 = arith.mulf %160, %161 : vector<16x16x4xf32>
    %163 = arith.addf %156, %162 : vector<16x16x4xf32>
    %c5_75 = arith.constant 5 : index
    %c0_76 = arith.constant 0 : index
    %164 = vector.load %arg9[%c5_75, %c0_76] : memref<12x4xf32, #tpu.memory_space<vmem>>, vector<1x4xf32>
    %165 = vector.shape_cast %164 : vector<1x4xf32> to vector<4xf32>
    %166 = vector.shape_cast %165 : vector<4xf32> to vector<1x1x4xf32>
    %167 = vector.broadcast %166 : vector<1x1x4xf32> to vector<16x16x4xf32>
    %168 = arith.addf %163, %167 : vector<16x16x4xf32>
    %c0_77 = arith.constant 0 : index
    %c0_78 = arith.constant 0 : index
    %169 = vector.load %arg6[%c0_77, %c0_78] : memref<2x4xf32, #tpu.memory_space<vmem>>, vector<1x4xf32>
    %170 = vector.shape_cast %169 : vector<1x4xf32> to vector<4xf32>
    %171 = vector.shape_cast %170 : vector<4xf32> to vector<1x1x4xf32>
    %172 = vector.broadcast %171 : vector<1x1x4xf32> to vector<16x16x4xf32>
    %173 = arith.mulf %168, %172 : vector<16x16x4xf32>
    %cst_79 = arith.constant dense<0.000000e+00> : vector<16x16xf32>
    %174 = vector.multi_reduction <add>, %173, %cst_79 [2] : vector<16x16x4xf32> to vector<16x16xf32>
    %175 = vector.shape_cast %174 : vector<16x16xf32> to vector<16x16x1xf32>
    %c1_80 = arith.constant 1 : index
    %c0_81 = arith.constant 0 : index
    %176 = vector.load %arg6[%c1_80, %c0_81] : memref<2x4xf32, #tpu.memory_space<vmem>>, vector<1x1xf32>
    %177 = vector.shape_cast %176 : vector<1x1xf32> to vector<1x1x1xf32>
    %178 = vector.broadcast %177 : vector<1x1x1xf32> to vector<16x16x1xf32>
    %179 = arith.addf %175, %178 : vector<16x16x1xf32>
    %cst_82 = arith.constant 0.000000e+00 : f32
    %180 = vector.broadcast %cst_82 : f32 to vector<16x16x1xf32>
    %181 = arith.subf %180, %179 : vector<16x16x1xf32>
    %182 = math.exp %181 : vector<16x16x1xf32>
    %cst_83 = arith.constant 1.000000e+00 : f32
    %183 = vector.broadcast %cst_83 : f32 to vector<16x16x1xf32>
    %184 = arith.addf %183, %182 : vector<16x16x1xf32>
    %cst_84 = arith.constant 1.000000e+00 : f32
    %185 = vector.broadcast %cst_84 : f32 to vector<16x16x1xf32>
    %186 = arith.divf %185, %184 : vector<16x16x1xf32>
    %cst_85 = arith.constant 1.000000e+00 : f32
    %187 = vector.broadcast %cst_85 : f32 to vector<16x16x1xf32>
    %188 = arith.addf %187, %186 : vector<16x16x1xf32>
    %189 = vector.broadcast %188 : vector<16x16x1xf32> to vector<16x16x4xf32>
    %190 = arith.mulf %1, %189 : vector<16x16x4xf32>
    %cst_86 = arith.constant 2.000000e+00 : f32
    %191 = vector.broadcast %cst_86 : f32 to vector<16x16x1xf32>
    %192 = arith.subf %191, %186 : vector<16x16x1xf32>
    %193 = vector.broadcast %192 : vector<16x16x1xf32> to vector<16x16x4xf32>
    %194 = arith.mulf %3, %193 : vector<16x16x4xf32>
    %195 = arith.mulf %190, %194 : vector<16x16x4xf32>
    %cst_87 = arith.constant 0.000000e+00 : f32
    %196 = vector.broadcast %cst_87 : f32 to vector<16x16x4xf32>
    %197 = arith.subf %196, %190 : vector<16x16x4xf32>
    %198 = math.exp %197 : vector<16x16x4xf32>
    %cst_88 = arith.constant 1.000000e+00 : f32
    %199 = vector.broadcast %cst_88 : f32 to vector<16x16x4xf32>
    %200 = arith.addf %199, %198 : vector<16x16x4xf32>
    %cst_89 = arith.constant 1.000000e+00 : f32
    %201 = vector.broadcast %cst_89 : f32 to vector<16x16x4xf32>
    %202 = arith.divf %201, %200 : vector<16x16x4xf32>
    %203 = arith.mulf %195, %202 : vector<16x16x4xf32>
    %cst_90 = arith.constant 0.000000e+00 : f32
    %204 = vector.broadcast %cst_90 : f32 to vector<16x16x4xf32>
    %205 = arith.subf %204, %194 : vector<16x16x4xf32>
    %206 = math.exp %205 : vector<16x16x4xf32>
    %cst_91 = arith.constant 1.000000e+00 : f32
    %207 = vector.broadcast %cst_91 : f32 to vector<16x16x4xf32>
    %208 = arith.addf %207, %206 : vector<16x16x4xf32>
    %cst_92 = arith.constant 1.000000e+00 : f32
    %209 = vector.broadcast %cst_92 : f32 to vector<16x16x4xf32>
    %210 = arith.divf %209, %208 : vector<16x16x4xf32>
    %211 = arith.mulf %203, %210 : vector<16x16x4xf32>
    %212 = vector.shape_cast %211 : vector<16x16x4xf32> to vector<256x4xf32>
    %c0_93 = arith.constant 0 : index
    %c0_94 = arith.constant 0 : index
    %213 = vector.load %arg7[%c0_93, %c0_94] : memref<4x4xf32, #tpu.memory_space<vmem>>, vector<4x4xf32>
    %cst_95 = arith.constant dense<0.000000e+00> : vector<256x4xf32>
    %214 = tpu.matmul %212, %213, %cst_95 {dimension_numbers = #tpu.dot_dimension_numbers<[1], [0], [0], [1], [0, 0, 1, 1], [], []>} : vector<256x4xf32>, vector<4x4xf32>, vector<256x4xf32> -> vector<256x4xf32>
    %215 = vector.shape_cast %214 : vector<256x4xf32> to vector<16x16x4xf32>
    %c8_96 = arith.constant 8 : index
    %c0_97 = arith.constant 0 : index
    %216 = vector.load %arg9[%c8_96, %c0_97] : memref<12x4xf32, #tpu.memory_space<vmem>>, vector<1x4xf32>
    %217 = vector.shape_cast %216 : vector<1x4xf32> to vector<4xf32>
    %218 = vector.shape_cast %217 : vector<4xf32> to vector<1x1x4xf32>
    %219 = vector.broadcast %218 : vector<1x1x4xf32> to vector<16x16x4xf32>
    %220 = arith.mulf %215, %219 : vector<16x16x4xf32>
    %c9 = arith.constant 9 : index
    %c0_98 = arith.constant 0 : index
    %221 = vector.load %arg9[%c9, %c0_98] : memref<12x4xf32, #tpu.memory_space<vmem>>, vector<1x4xf32>
    %222 = vector.shape_cast %221 : vector<1x4xf32> to vector<4xf32>
    %223 = vector.shape_cast %222 : vector<4xf32> to vector<1x1x4xf32>
    %224 = vector.broadcast %223 : vector<1x1x4xf32> to vector<16x16x4xf32>
    %225 = arith.addf %220, %224 : vector<16x16x4xf32>
    %cst_99 = arith.constant 0.000000e+00 : f32
    %226 = vector.broadcast %cst_99 : f32 to vector<16x16x4xf32>
    %227 = arith.subf %226, %225 : vector<16x16x4xf32>
    %228 = math.exp %227 : vector<16x16x4xf32>
    %cst_100 = arith.constant 1.000000e+00 : f32
    %229 = vector.broadcast %cst_100 : f32 to vector<16x16x4xf32>
    %230 = arith.addf %229, %228 : vector<16x16x4xf32>
    %cst_101 = arith.constant 1.000000e+00 : f32
    %231 = vector.broadcast %cst_101 : f32 to vector<16x16x4xf32>
    %232 = arith.divf %231, %230 : vector<16x16x4xf32>
    %233 = arith.mulf %232, %1 : vector<16x16x4xf32>
    %234 = vector.shape_cast %233 : vector<16x16x4xf32> to vector<256x4xf32>
    %c0_102 = arith.constant 0 : index
    %c0_103 = arith.constant 0 : index
    %235 = vector.load %arg8[%c0_102, %c0_103] : memref<4x4xf32, #tpu.memory_space<vmem>>, vector<4x4xf32>
    %cst_104 = arith.constant dense<0.000000e+00> : vector<256x4xf32>
    %236 = tpu.matmul %234, %235, %cst_104 {dimension_numbers = #tpu.dot_dimension_numbers<[1], [0], [0], [1], [0, 0, 1, 1], [], []>} : vector<256x4xf32>, vector<4x4xf32>, vector<256x4xf32> -> vector<256x4xf32>
    %237 = vector.shape_cast %236 : vector<256x4xf32> to vector<16x16x4xf32>
    %c10 = arith.constant 10 : index
    %c0_105 = arith.constant 0 : index
    %238 = vector.load %arg9[%c10, %c0_105] : memref<12x4xf32, #tpu.memory_space<vmem>>, vector<1x4xf32>
    %239 = vector.shape_cast %238 : vector<1x4xf32> to vector<4xf32>
    %240 = vector.shape_cast %239 : vector<4xf32> to vector<1x1x4xf32>
    %241 = vector.broadcast %240 : vector<1x1x4xf32> to vector<16x16x4xf32>
    %242 = arith.mulf %237, %241 : vector<16x16x4xf32>
    %c11 = arith.constant 11 : index
    %c0_106 = arith.constant 0 : index
    %243 = vector.load %arg9[%c11, %c0_106] : memref<12x4xf32, #tpu.memory_space<vmem>>, vector<1x4xf32>
    %244 = vector.shape_cast %243 : vector<1x4xf32> to vector<4xf32>
    %245 = vector.shape_cast %244 : vector<4xf32> to vector<1x1x4xf32>
    %246 = vector.broadcast %245 : vector<1x1x4xf32> to vector<16x16x4xf32>
    %247 = arith.addf %242, %246 : vector<16x16x4xf32>
    %c0_107 = arith.constant 0 : index
    %c0_108 = arith.constant 0 : index
    %c0_109 = arith.constant 0 : index
    %c0_110 = arith.constant 0 : index
    %248 = vector.load %arg10[%c0_107, %c0_108, %c0_109, %c0_110] : memref<1x16x16x4xf32, #tpu.memory_space<vmem>>, vector<1x16x16x4xf32>
    %249 = vector.shape_cast %248 : vector<1x16x16x4xf32> to vector<16x16x4xf32>
    %250 = vector.shape_cast %247 : vector<16x16x4xf32> to vector<1x16x16x4xf32>
    tpu.vector_store %arg10[%c0_107, %c0_108, %c0_109, %c0_110], %250 {strides = array<i32>} : memref<1x16x16x4xf32, #tpu.memory_space<vmem>>, vector<1x16x16x4xf32>,
    return
  }
  func.func @transform_0(%arg0: i32) -> (i32, i32, i32, i32) {
    %c0_i32 = arith.constant 0 : i32
    %c0_i32_0 = arith.constant 0 : i32
    %c0_i32_1 = arith.constant 0 : i32
    %c0_i32_2 = arith.constant 0 : i32
    return %arg0, %c0_i32, %c0_i32_0, %c0_i32_1 : i32, i32, i32, i32
  }
  func.func @transform_1(%arg0: i32) -> (i32, i32, i32, i32) {
    %c0_i32 = arith.constant 0 : i32
    %c0_i32_0 = arith.constant 0 : i32
    %c0_i32_1 = arith.constant 0 : i32
    %c0_i32_2 = arith.constant 0 : i32
    return %arg0, %c0_i32, %c0_i32_0, %c0_i32_1 : i32, i32, i32, i32
  }
  func.func @transform_2(%arg0: i32) -> (i32, i32) {
    %c0_i32 = arith.constant 0 : i32
    %c0_i32_0 = arith.constant 0 : i32
    %c0_i32_1 = arith.constant 0 : i32
    return %c0_i32, %c0_i32_0 : i32, i32
  }
  func.func @transform_3(%arg0: i32) -> (i32, i32) {
    %c0_i32 = arith.constant 0 : i32
    %c0_i32_0 = arith.constant 0 : i32
    %c0_i32_1 = arith.constant 0 : i32
    return %c0_i32, %c0_i32_0 : i32, i32
  }
  func.func @transform_4(%arg0: i32) -> (i32, i32) {
    %c0_i32 = arith.constant 0 : i32
    %c0_i32_0 = arith.constant 0 : i32
    %c0_i32_1 = arith.constant 0 : i32
    return %c0_i32, %c0_i32_0 : i32, i32
  }
  func.func @transform_5(%arg0: i32) -> (i32, i32) {
    %c0_i32 = arith.constant 0 : i32
    %c0_i32_0 = arith.constant 0 : i32
    %c0_i32_1 = arith.constant 0 : i32
    return %c0_i32, %c0_i32_0 : i32, i32
  }
  func.func @transform_6(%arg0: i32) -> (i32, i32) {
    %c0_i32 = arith.constant 0 : i32
    %c0_i32_0 = arith.constant 0 : i32
    %c0_i32_1 = arith.constant 0 : i32
    return %c0_i32, %c0_i32_0 : i32, i32
  }
  func.func @transform_7(%arg0: i32) -> (i32, i32) {
    %c0_i32 = arith.constant 0 : i32
    %c0_i32_0 = arith.constant 0 : i32
    %c0_i32_1 = arith.constant 0 : i32
    return %c0_i32, %c0_i32_0 : i32, i32
  }
  func.func @transform_8(%arg0: i32) -> (i32, i32) {
    %c0_i32 = arith.constant 0 : i32
    %c0_i32_0 = arith.constant 0 : i32
    %c0_i32_1 = arith.constant 0 : i32
    return %c0_i32, %c0_i32_0 : i32, i32
  }
  func.func @transform_9(%arg0: i32) -> (i32, i32, i32, i32) {
    %c0_i32 = arith.constant 0 : i32
    %c0_i32_0 = arith.constant 0 : i32
    %c0_i32_1 = arith.constant 0 : i32
    %c0_i32_2 = arith.constant 0 : i32
    return %arg0, %c0_i32, %c0_i32_0, %c0_i32_1 : i32, i32, i32, i32
  }
}

</mosaic_0001>

<llo_original>
// kernel: multiscale_gated_attn_forward.1
$region0: #{multiscale_gated_attn_forward.1}
  #allocation0 [shape = 'u32[]', space=smem, size = 0x4, offset = 0x4, fixed_abs, tag = 'smem constant byte address 0x4 - core index']
  #allocation1 [shape = 'u32[144,128]{1,0:T(1,128)}', space=vmem, size = 0x12000, scoped, tag = 'internal scratch']
  #allocation2 [shape = 'f32[18,18,4]{2,1,0:T(8,128)}', space=vmem, size = 0x36000, scoped, tag = 'scratch operand']
  #allocation3 [shape = 'f32[20,20,4]{2,1,0:T(8,128)}', space=vmem, size = 0x3c000, scoped, tag = 'scratch operand']
  #allocation4 [shape = 'f32[256,36]{1,0:T(8,128)}', space=vmem, size = 0x20000, scoped, tag = 'scratch operand']
  %s0 = inlined_call_operand.vmem [shape: f32[2,16,16,4], index: 0, kind: input, shape index: {}]
  %s1 = inlined_call_operand.vmem [shape: f32[2,16,16,4], index: 1, kind: input, shape index: {}]
  %s2 = inlined_call_operand.vmem [shape: f32[9,4], index: 2, kind: input, shape index: {}]
  %s3 = inlined_call_operand.vmem [shape: f32[36,4], index: 3, kind: input, shape index: {}]
  %s4 = inlined_call_operand.vmem [shape: f32[4,4], index: 4, kind: input, shape index: {}]
  %s5 = inlined_call_operand.vmem [shape: f32[2,4], index: 5, kind: input, shape index: {}]
  %s6 = inlined_call_operand.vmem [shape: f32[4,4], index: 6, kind: input, shape index: {}]
  %s7 = inlined_call_operand.vmem [shape: f32[4,4], index: 7, kind: input, shape index: {}]
  %s8 = inlined_call_operand.vmem [shape: f32[12,4], index: 8, kind: input, shape index: {}]
  %s9 = inlined_call_operand.vmem [shape: f32[2,16,16,4], index: 9, kind: output, shape index: {}]
  %s10 = sld [smem:[#allocation0]]
  $region69: #{multiscale_gated_attn_forward.1} parent=0
    _
  %s12 = ssub.s32 1, %s10
  %s13 = scalar_select 0, %s12, %s10
  loop: start=0, step=1, limit=4
  $region2: #{multiscale_gated_attn_forward.1} parent=0 // loop_pre_header
    _
  $region3: #{multiscale_gated_attn_forward.1} parent=0 // loop_header
    %s15 = sphi 0, %s19
    %p16 = scmp.ge.s32.totalorder %s15, 4
    %s25 = sphi 0, %s27
    %s28 = sphi 0, %s25
    %s29 = sphi 0, %s28
    %s45 = sphi 0, %s29
    %s51 = sphi 0, %s53
    %s54 = sphi 0, %s51
    %s55 = sphi 0, %s54
    %s71 = sphi 0, %s55
    %s75 = sphi 0, %s75
    %s77 = sphi 0, %s75
    %s78 = sphi 0, %s77
    %s92 = sphi 0, %s78
    %s96 = sphi 0, %s96
    %s98 = sphi 0, %s96
    %s99 = sphi 0, %s98
    %s113 = sphi 0, %s99
    %s117 = sphi 0, %s117
    %s119 = sphi 0, %s117
    %s120 = sphi 0, %s119
    %s134 = sphi 0, %s120
    %s138 = sphi 0, %s138
    %s140 = sphi 0, %s138
    %s141 = sphi 0, %s140
    %s155 = sphi 0, %s141
    %s159 = sphi 0, %s159
    %s161 = sphi 0, %s159
    %s162 = sphi 0, %s161
    %s176 = sphi 0, %s162
    %s180 = sphi 0, %s180
    %s182 = sphi 0, %s180
    %s183 = sphi 0, %s182
    %s197 = sphi 0, %s183
    %s201 = sphi 0, %s201
    %s203 = sphi 0, %s201
    %s204 = sphi 0, %s203
    %s218 = sphi 0, %s204
    %s224 = sphi 0, %s226
    %s227 = sphi 0, %s224
    %s228 = sphi 0, %s227
    %s244 = sphi 0, %s228
  $region4: #{multiscale_gated_attn_forward.1} parent=0 // loop_header_branch
    %18 = sbr.rel (%p16) target = $region8
  $region5: #{multiscale_gated_attn_forward.1} parent=0 // loop_body
    %s20 = ssub.s32 %s15, 1
    %s21 = ssub.s32 %s15, 2
    %s22 = sadd.s32 %s15, 1
    %s23 = ssub.s32 %s15, %s22
    %p24 = scmp.eq.s32.totalorder %s23, 0
    %s26 = sadd.s32 %s25, 1
    %s27 = scalar_select %p24, %s25, %s26
    %p30 = pneg %p24
    %p31 = scmp.eq.s32.totalorder %s15, 1
    %p32 = por %p30, %p31
    %p33 = scmp.ne.s32.totalorder %s25, %s28
    %p34 = scmp.eq.s32.totalorder %s15, 0
    %p35 = por %p33, %p34
    %p36 = scmp.ne.s32.totalorder %s25, %s28
    %p37 = scmp.eq.s32.totalorder %s20, 1
    %p38 = por %p36, %p37
    %p39 = scmp.ne.s32.totalorder %s28, %s29
    %p40 = scmp.eq.s32.totalorder %s20, 0
    %p41 = por %p39, %p40
    %p42 = scmp.ne.s32.totalorder %s28, %s29
    %p43 = scmp.eq.s32.totalorder %s21, 1
    %p44 = por %p42, %p43
    %p46 = scmp.ne.s32.totalorder %s29, %s45
    %p47 = scmp.eq.s32.totalorder %s21, 0
    %p48 = por %p46, %p47
    %s49 = ssub.s32 %s15, %s22
    %p50 = scmp.eq.s32.totalorder %s49, 0
    %s52 = sadd.s32 %s51, 1
    %s53 = scalar_select %p50, %s51, %s52
    %p56 = pneg %p50
    %p57 = scmp.eq.s32.totalorder %s15, 1
    %p58 = por %p56, %p57
    %p59 = scmp.ne.s32.totalorder %s51, %s54
    %p60 = scmp.eq.s32.totalorder %s15, 0
    %p61 = por %p59, %p60
    %p62 = scmp.ne.s32.totalorder %s51, %s54
    %p63 = scmp.eq.s32.totalorder %s20, 1
    %p64 = por %p62, %p63
    %p65 = scmp.ne.s32.totalorder %s54, %s55
    %p66 = scmp.eq.s32.totalorder %s20, 0
    %p67 = por %p65, %p66
    %p68 = scmp.ne.s32.totalorder %s54, %s55
    %p69 = scmp.eq.s32.totalorder %s21, 1
    %p70 = por %p68, %p69
    %p72 = scmp.ne.s32.totalorder %s55, %s71
    %p73 = scmp.eq.s32.totalorder %s21, 0
    %p74 = por %p72, %p73
    %s76 = sadd.s32 %s75, 1
    %p79 = scmp.eq.s32.totalorder %s15, 1
    %p80 = scmp.ne.s32.totalorder %s75, %s77
    %p81 = scmp.eq.s32.totalorder %s15, 0
    %p82 = por %p80, %p81
    %p83 = scmp.ne.s32.totalorder %s75, %s77
    %p84 = scmp.eq.s32.totalorder %s20, 1
    %p85 = por %p83, %p84
    %p86 = scmp.ne.s32.totalorder %s77, %s78
    %p87 = scmp.eq.s32.totalorder %s20, 0
    %p88 = por %p86, %p87
    %p89 = scmp.ne.s32.totalorder %s77, %s78
    %p90 = scmp.eq.s32.totalorder %s21, 1
    %p91 = por %p89, %p90
    %p93 = scmp.ne.s32.totalorder %s78, %s92
    %p94 = scmp.eq.s32.totalorder %s21, 0
    %p95 = por %p93, %p94
    %s97 = sadd.s32 %s96, 1
    %p100 = scmp.eq.s32.totalorder %s15, 1
    %p101 = scmp.ne.s32.totalorder %s96, %s98
    %p102 = scmp.eq.s32.totalorder %s15, 0
    %p103 = por %p101, %p102
    %p104 = scmp.ne.s32.totalorder %s96, %s98
    %p105 = scmp.eq.s32.totalorder %s20, 1
    %p106 = por %p104, %p105
    %p107 = scmp.ne.s32.totalorder %s98, %s99
    %p108 = scmp.eq.s32.totalorder %s20, 0
    %p109 = por %p107, %p108
    %p110 = scmp.ne.s32.totalorder %s98, %s99
    %p111 = scmp.eq.s32.totalorder %s21, 1
    %p112 = por %p110, %p111
    %p114 = scmp.ne.s32.totalorder %s99, %s113
    %p115 = scmp.eq.s32.totalorder %s21, 0
    %p116 = por %p114, %p115
    %s118 = sadd.s32 %s117, 1
    %p121 = scmp.eq.s32.totalorder %s15, 1
    %p122 = scmp.ne.s32.totalorder %s117, %s119
    %p123 = scmp.eq.s32.totalorder %s15, 0
    %p124 = por %p122, %p123
    %p125 = scmp.ne.s32.totalorder %s117, %s119
    %p126 = scmp.eq.s32.totalorder %s20, 1
    %p127 = por %p125, %p126
    %p128 = scmp.ne.s32.totalorder %s119, %s120
    %p129 = scmp.eq.s32.totalorder %s20, 0
    %p130 = por %p128, %p129
    %p131 = scmp.ne.s32.totalorder %s119, %s120
    %p132 = scmp.eq.s32.totalorder %s21, 1
    %p133 = por %p131, %p132
    %p135 = scmp.ne.s32.totalorder %s120, %s134
    %p136 = scmp.eq.s32.totalorder %s21, 0
    %p137 = por %p135, %p136
    %s139 = sadd.s32 %s138, 1
    %p142 = scmp.eq.s32.totalorder %s15, 1
    %p143 = scmp.ne.s32.totalorder %s138, %s140
    %p144 = scmp.eq.s32.totalorder %s15, 0
    %p145 = por %p143, %p144
    %p146 = scmp.ne.s32.totalorder %s138, %s140
    %p147 = scmp.eq.s32.totalorder %s20, 1
    %p148 = por %p146, %p147
    %p149 = scmp.ne.s32.totalorder %s140, %s141
    %p150 = scmp.eq.s32.totalorder %s20, 0
    %p151 = por %p149, %p150
    %p152 = scmp.ne.s32.totalorder %s140, %s141
    %p153 = scmp.eq.s32.totalorder %s21, 1
    %p154 = por %p152, %p153
    %p156 = scmp.ne.s32.totalorder %s141, %s155
    %p157 = scmp.eq.s32.totalorder %s21, 0
    %p158 = por %p156, %p157
    %s160 = sadd.s32 %s159, 1
    %p163 = scmp.eq.s32.totalorder %s15, 1
    %p164 = scmp.ne.s32.totalorder %s159, %s161
    %p165 = scmp.eq.s32.totalorder %s15, 0
    %p166 = por %p164, %p165
    %p167 = scmp.ne.s32.totalorder %s159, %s161
    %p168 = scmp.eq.s32.totalorder %s20, 1
    %p169 = por %p167, %p168
    %p170 = scmp.ne.s32.totalorder %s161, %s162
    %p171 = scmp.eq.s32.totalorder %s20, 0
    %p172 = por %p170, %p171
    %p173 = scmp.ne.s32.totalorder %s161, %s162
    %p174 = scmp.eq.s32.totalorder %s21, 1
    %p175 = por %p173, %p174
    %p177 = scmp.ne.s32.totalorder %s162, %s176
    %p178 = scmp.eq.s32.totalorder %s21, 0
    %p179 = por %p177, %p178
    %s181 = sadd.s32 %s180, 1
    %p184 = scmp.eq.s32.totalorder %s15, 1
    %p185 = scmp.ne.s32.totalorder %s180, %s182
    %p186 = scmp.eq.s32.totalorder %s15, 0
    %p187 = por %p185, %p186
    %p188 = scmp.ne.s32.totalorder %s180, %s182
    %p189 = scmp.eq.s32.totalorder %s20, 1
    %p190 = por %p188, %p189
    %p191 = scmp.ne.s32.totalorder %s182, %s183
    %p192 = scmp.eq.s32.totalorder %s20, 0
    %p193 = por %p191, %p192
    %p194 = scmp.ne.s32.totalorder %s182, %s183
    %p195 = scmp.eq.s32.totalorder %s21, 1
    %p196 = por %p194, %p195
    %p198 = scmp.ne.s32.totalorder %s183, %s197
    %p199 = scmp.eq.s32.totalorder %s21, 0
    %p200 = por %p198, %p199
    %s202 = sadd.s32 %s201, 1
    %p205 = scmp.eq.s32.totalorder %s15, 1
    %p206 = scmp.ne.s32.totalorder %s201, %s203
    %p207 = scmp.eq.s32.totalorder %s15, 0
    %p208 = por %p206, %p207
    %p209 = scmp.ne.s32.totalorder %s201, %s203
    %p210 = scmp.eq.s32.totalorder %s20, 1
    %p211 = por %p209, %p210
    %p212 = scmp.ne.s32.totalorder %s203, %s204
    %p213 = scmp.eq.s32.totalorder %s20, 0
    %p214 = por %p212, %p213
    %p215 = scmp.ne.s32.totalorder %s203, %s204
    %p216 = scmp.eq.s32.totalorder %s21, 1
    %p217 = por %p215, %p216
    %p219 = scmp.ne.s32.totalorder %s204, %s218
    %p220 = scmp.eq.s32.totalorder %s21, 0
    %p221 = por %p219, %p220
    %s222 = ssub.s32 %s15, %s22
    %p223 = scmp.eq.s32.totalorder %s222, 0
    %s225 = sadd.s32 %s224, 1
    %s226 = scalar_select %p223, %s224, %s225
    %p229 = pneg %p223
    %p230 = scmp.eq.s32.totalorder %s15, 1
    %p231 = por %p229, %p230
    %p232 = scmp.ne.s32.totalorder %s224, %s227
    %p233 = scmp.eq.s32.totalorder %s15, 0
    %p234 = por %p232, %p233
    %p235 = scmp.ne.s32.totalorder %s224, %s227
    %p236 = scmp.eq.s32.totalorder %s20, 1
    %p237 = por %p235, %p236
    %p238 = scmp.ne.s32.totalorder %s227, %s228
    %p239 = scmp.eq.s32.totalorder %s20, 0
    %p240 = por %p238, %p239
    %p241 = scmp.ne.s32.totalorder %s227, %s228
    %p242 = scmp.eq.s32.totalorder %s21, 1
    %p243 = por %p241, %p242
    %p245 = scmp.ne.s32.totalorder %s228, %s244
    %p246 = scmp.eq.s32.totalorder %s21, 0
    %p247 = por %p245, %p246
    %p248 = scmp.le.s32.totalorder 1, %s15
    %p249 = scmp.lt.s32.totalorder %s15, 3
    %p250 = pnand %p248, %p249
    %p251 = pneg %p250
    // Predicated region
    $region9: #{multiscale_gated_attn_forward.1} parent=5 // pred_check
      _
    $region10: #{multiscale_gated_attn_forward.1} parent=5 // pred_check_branch
      %253 = sbr.rel (%p250) target = $region12
    $region11: #{multiscale_gated_attn_forward.1} parent=5 // pred_region
      %s254 = ssub.s32 %s15, 1
      // Predicated region
      $region13: #{multiscale_gated_attn_forward.1} parent=11 // pred_check
        %p255 = pneg %p88
      $region14: #{multiscale_gated_attn_forward.1} parent=11 // pred_check_branch
        %257 = sbr.rel (%p255) target = $region16
      $region15: #{multiscale_gated_attn_forward.1} parent=11 // pred_region
        _
      $region16: #{multiscale_gated_attn_forward.1} parent=11 // pred_fallthru
        _
      // Predicated region
      $region17: #{multiscale_gated_attn_forward.1} parent=11 // pred_check
        %p258 = pneg %p109
      $region18: #{multiscale_gated_attn_forward.1} parent=11 // pred_check_branch
        %260 = sbr.rel (%p258) target = $region20
      $region19: #{multiscale_gated_attn_forward.1} parent=11 // pred_region
        _
      $region20: #{multiscale_gated_attn_forward.1} parent=11 // pred_fallthru
        _
      // Predicated region
      $region21: #{multiscale_gated_attn_forward.1} parent=11 // pred_check
        %p261 = pneg %p130
      $region22: #{multiscale_gated_attn_forward.1} parent=11 // pred_check_branch
        %263 = sbr.rel (%p261) target = $region24
      $region23: #{multiscale_gated_attn_forward.1} parent=11 // pred_region
        _
      $region24: #{multiscale_gated_attn_forward.1} parent=11 // pred_fallthru
        _
      // Predicated region
      $region25: #{multiscale_gated_attn_forward.1} parent=11 // pred_check
        %p264 = pneg %p151
      $region26: #{multiscale_gated_attn_forward.1} parent=11 // pred_check_branch
        %266 = sbr.rel (%p264) target = $region28
      $region27: #{multiscale_gated_attn_forward.1} parent=11 // pred_region
        _
      $region28: #{multiscale_gated_attn_forward.1} parent=11 // pred_fallthru
        _
      // Predicated region
      $region29: #{multiscale_gated_attn_forward.1} parent=11 // pred_check
        %p267 = pneg %p172
      $region30: #{multiscale_gated_attn_forward.1} parent=11 // pred_check_branch
        %269 = sbr.rel (%p267) target = $region32
      $region31: #{multiscale_gated_attn_forward.1} parent=11 // pred_region
        _
      $region32: #{multiscale_gated_attn_forward.1} parent=11 // pred_fallthru
        _
      // Predicated region
      $region33: #{multiscale_gated_attn_forward.1} parent=11 // pred_check
        %p270 = pneg %p193
      $region34: #{multiscale_gated_attn_forward.1} parent=11 // pred_check_branch
        %272 = sbr.rel (%p270) target = $region36
      $region35: #{multiscale_gated_attn_forward.1} parent=11 // pred_region
        _
      $region36: #{multiscale_gated_attn_forward.1} parent=11 // pred_fallthru
        _
      // Predicated region
      $region37: #{multiscale_gated_attn_forward.1} parent=11 // pred_check
        %p273 = pneg %p214
      $region38: #{multiscale_gated_attn_forward.1} parent=11 // pred_check_branch
        %275 = sbr.rel (%p273) target = $region40
      $region39: #{multiscale_gated_attn_forward.1} parent=11 // pred_region
        _
      $region40: #{multiscale_gated_attn_forward.1} parent=11 // pred_fallthru
        _
    $region12: #{multiscale_gated_attn_forward.1} parent=5 // pred_fallthru
      _
    %p276 = scmp.lt.s32.totalorder %s15, 2
    // Predicated region
    $region41: #{multiscale_gated_attn_forward.1} parent=5 // pred_check
      %p277 = pneg %p276
    $region42: #{multiscale_gated_attn_forward.1} parent=5 // pred_check_branch
      %279 = sbr.rel (%p277) target = $region44
    $region43: #{multiscale_gated_attn_forward.1} parent=5 // pred_region
      // Predicated region
      $region45: #{multiscale_gated_attn_forward.1} parent=43 // pred_check
        %p280 = pneg %p35
      $region46: #{multiscale_gated_attn_forward.1} parent=43 // pred_check_branch
        %282 = sbr.rel (%p280) target = $region48
      $region47: #{multiscale_gated_attn_forward.1} parent=43 // pred_region
        %p283 = scmp.lt.s32.totalorder %s15, 1
        %s284 = scalar_select %p283, %s15, 1
        %s285 = smul.addr %s284, 32
        %s286 = smul.addr %s285, 8
        %s287 = scalar_lea.vmem %s0, %s286
      $region48: #{multiscale_gated_attn_forward.1} parent=43 // pred_fallthru
        _
      // Predicated region
      $region49: #{multiscale_gated_attn_forward.1} parent=43 // pred_check
        %p288 = pneg %p61
      $region50: #{multiscale_gated_attn_forward.1} parent=43 // pred_check_branch
        %290 = sbr.rel (%p288) target = $region52
      $region51: #{multiscale_gated_attn_forward.1} parent=43 // pred_region
        %p291 = scmp.lt.s32.totalorder %s15, 1
        %s292 = scalar_select %p291, %s15, 1
        %s293 = smul.addr %s292, 32
        %s294 = smul.addr %s293, 8
        %s295 = scalar_lea.vmem %s1, %s294
      $region52: #{multiscale_gated_attn_forward.1} parent=43 // pred_fallthru
        _
    $region44: #{multiscale_gated_attn_forward.1} parent=5 // pred_fallthru
      _
    %p296 = scmp.le.s32.totalorder 1, %s15
    %p297 = scmp.lt.s32.totalorder %s15, 3
    %p298 = pnand %p296, %p297
    %p299 = pneg %p298
    // Predicated region
    $region53: #{multiscale_gated_attn_forward.1} parent=5 // pred_check
      _
    $region54: #{multiscale_gated_attn_forward.1} parent=5 // pred_check_branch
      %301 = sbr.rel (%p298) target = $region56
    $region55: #{multiscale_gated_attn_forward.1} parent=5 // pred_region
      %s302 = ssub.s32 %s15, 1
      %p303 = scmp.lt.s32.totalorder %s20, 1
      %s304 = scalar_select %p303, %s20, 1
      %s305 = smul.addr %s304, 32
      %s306 = smul.addr %s305, 8
      %s307 = scalar_lea.vmem %s0, %s306
      %p308 = pneg %p41
      %p309 = pneg %p38
      %p310 = scmp.lt.s32.totalorder %s20, 1
      %s311 = scalar_select %p310, %s20, 1
      %s312 = smul.addr %s311, 32
      %s313 = smul.addr %s312, 8
      %s314 = scalar_lea.vmem %s1, %s313
      %p315 = pneg %p67
      %p316 = pneg %p64
      %p317 = pneg %p88
      %p318 = pneg %p85
      %p319 = pneg %p109
      %p320 = pneg %p106
      %p321 = pneg %p130
      %p322 = pneg %p127
      %p323 = pneg %p151
      %p324 = pneg %p148
      %p325 = pneg %p172
      %p326 = pneg %p169
      %p327 = pneg %p193
      %p328 = pneg %p190
      %p329 = pneg %p214
      %p330 = pneg %p211
      %p331 = pneg %p240
      %p332 = pneg %p237
      %p333 = scmp.lt.s32.totalorder %s20, 1
      %s334 = scalar_select %p333, %s20, 1
      %s335 = smul.addr %s334, 32
      %s336 = smul.addr %s335, 8
      %s337 = scalar_lea.vmem %s9, %s336
      %p338 = scmp.lt.s32.totalorder %s20, 1
      %s339 = scalar_select %p338, %s20, 1
      %s340 = smul.addr %s339, 32
      %s341 = smul.addr %s340, 8
      %s342 = scalar_lea.vmem %s0, %s341
      %p343 = scmp.lt.s32.totalorder %s20, 1
      %s344 = scalar_select %p343, %s20, 1
      %s345 = smul.addr %s344, 32
      %s346 = smul.addr %s345, 8
      %s347 = scalar_lea.vmem %s1, %s346
      %p348 = scmp.lt.s32.totalorder %s20, 1
      %s349 = scalar_select %p348, %s20, 1
      %s350 = smul.addr %s349, 32
      %s351 = smul.addr %s350, 8
      %s352 = scalar_lea.vmem %s9, %s351
      %v353 = vld [vmem:[%s342] sm:$0xff]
      %v354 = vld [vmem:[%s342 + $0x8] sm:$0xff]
      %v355 = vld [vmem:[%s342 + $0x10] sm:$0xff]
      %v356 = vld [vmem:[%s342 + $0x18] sm:$0xff]
      %v357 = vld [vmem:[%s342 + $0x20] sm:$0xff]
      %v358 = vld [vmem:[%s342 + $0x28] sm:$0xff]
      %v359 = vld [vmem:[%s342 + $0x30] sm:$0xff]
      %v360 = vld [vmem:[%s342 + $0x38] sm:$0xff]
      %v361 = vld [vmem:[%s342 + $0x40] sm:$0xff]
      %v362 = vld [vmem:[%s342 + $0x48] sm:$0xff]
      %v363 = vld [vmem:[%s342 + $0x50] sm:$0xff]
      %v364 = vld [vmem:[%s342 + $0x58] sm:$0xff]
      %v365 = vld [vmem:[%s342 + $0x60] sm:$0xff]
      %v366 = vld [vmem:[%s342 + $0x68] sm:$0xff]
      %v367 = vld [vmem:[%s342 + $0x70] sm:$0xff]
      %v368 = vld [vmem:[%s342 + $0x78] sm:$0xff]
      %v369 = vld [vmem:[%s342 + $0x80] sm:$0xff]
      %v370 = vld [vmem:[%s342 + $0x88] sm:$0xff]
      %v371 = vld [vmem:[%s342 + $0x90] sm:$0xff]
      %v372 = vld [vmem:[%s342 + $0x98] sm:$0xff]
      %v373 = vld [vmem:[%s342 + $0xa0] sm:$0xff]
      %v374 = vld [vmem:[%s342 + $0xa8] sm:$0xff]
      %v375 = vld [vmem:[%s342 + $0xb0] sm:$0xff]
      %v376 = vld [vmem:[%s342 + $0xb8] sm:$0xff]
      %v377 = vld [vmem:[%s342 + $0xc0] sm:$0xff]
      %v378 = vld [vmem:[%s342 + $0xc8] sm:$0xff]
      %v379 = vld [vmem:[%s342 + $0xd0] sm:$0xff]
      %v380 = vld [vmem:[%s342 + $0xd8] sm:$0xff]
      %v381 = vld [vmem:[%s342 + $0xe0] sm:$0xff]
      %v382 = vld [vmem:[%s342 + $0xe8] sm:$0xff]
      %v383 = vld [vmem:[%s342 + $0xf0] sm:$0xff]
      %v384 = vld [vmem:[%s342 + $0xf8] sm:$0xff]
      %v385 = vld [vmem:[%s347] sm:$0xff]
      %v386 = vld [vmem:[%s347 + $0x8] sm:$0xff]
      %v387 = vld [vmem:[%s347 + $0x10] sm:$0xff]
      %v388 = vld [vmem:[%s347 + $0x18] sm:$0xff]
      %v389 = vld [vmem:[%s347 + $0x20] sm:$0xff]
      %v390 = vld [vmem:[%s347 + $0x28] sm:$0xff]
      %v391 = vld [vmem:[%s347 + $0x30] sm:$0xff]
      %v392 = vld [vmem:[%s347 + $0x38] sm:$0xff]
      %v393 = vld [vmem:[%s347 + $0x40] sm:$0xff]
      %v394 = vld [vmem:[%s347 + $0x48] sm:$0xff]
      %v395 = vld [vmem:[%s347 + $0x50] sm:$0xff]
      %v396 = vld [vmem:[%s347 + $0x58] sm:$0xff]
      %v397 = vld [vmem:[%s347 + $0x60] sm:$0xff]
      %v398 = vld [vmem:[%s347 + $0x68] sm:$0xff]
      %v399 = vld [vmem:[%s347 + $0x70] sm:$0xff]
      %v400 = vld [vmem:[%s347 + $0x78] sm:$0xff]
      %v401 = vld [vmem:[%s347 + $0x80] sm:$0xff]
      %v402 = vld [vmem:[%s347 + $0x88] sm:$0xff]
      %v403 = vld [vmem:[%s347 + $0x90] sm:$0xff]
      %v404 = vld [vmem:[%s347 + $0x98] sm:$0xff]
      %v405 = vld [vmem:[%s347 + $0xa0] sm:$0xff]
      %v406 = vld [vmem:[%s347 + $0xa8] sm:$0xff]
      %v407 = vld [vmem:[%s347 + $0xb0] sm:$0xff]
      %v408 = vld [vmem:[%s347 + $0xb8] sm:$0xff]
      %v409 = vld [vmem:[%s347 + $0xc0] sm:$0xff]
      %v410 = vld [vmem:[%s347 + $0xc8] sm:$0xff]
      %v411 = vld [vmem:[%s347 + $0xd0] sm:$0xff]
      %v412 = vld [vmem:[%s347 + $0xd8] sm:$0xff]
      %v413 = vld [vmem:[%s347 + $0xe0] sm:$0xff]
      %v414 = vld [vmem:[%s347 + $0xe8] sm:$0xff]
      %v415 = vld [vmem:[%s347 + $0xf0] sm:$0xff]
      %v416 = vld [vmem:[%s347 + $0xf8] sm:$0xff]
      %vm417 = vcmask 31744
      %418 = vst.msk [vmem:[#allocation2] sm:$0xff] %vm417, 0.0
      %419 = vst.msk [vmem:[#allocation2 + $0x8] sm:$0xff] %vm417, 0.0
      %vm420 = vcmask 25600
      %421 = vst.msk [vmem:[#allocation2 + $0x10] sm:$0x3] %vm420, 0.0
      %422 = vst.msk [vmem:[#allocation2 + $0x18] sm:$0xff] %vm417, 0.0
      %423 = vst.msk [vmem:[#allocation2 + $0x20] sm:$0xff] %vm417, 0.0
      %424 = vst.msk [vmem:[#allocation2 + $0x28] sm:$0x3] %vm420, 0.0
      %425 = vst.msk [vmem:[#allocation2 + $0x30] sm:$0xff] %vm417, 0.0
      %426 = vst.msk [vmem:[#allocation2 + $0x38] sm:$0xff] %vm417, 0.0
      %427 = vst.msk [vmem:[#allocation2 + $0x40] sm:$0x3] %vm420, 0.0
      %428 = vst.msk [vmem:[#allocation2 + $0x48] sm:$0xff] %vm417, 0.0
      %429 = vst.msk [vmem:[#allocation2 + $0x50] sm:$0xff] %vm417, 0.0
      %430 = vst.msk [vmem:[#allocation2 + $0x58] sm:$0x3] %vm420, 0.0
      %431 = vst.msk [vmem:[#allocation2 + $0x60] sm:$0xff] %vm417, 0.0
      %432 = vst.msk [vmem:[#allocation2 + $0x68] sm:$0xff] %vm417, 0.0
      %433 = vst.msk [vmem:[#allocation2 + $0x70] sm:$0x3] %vm420, 0.0
      %434 = vst.msk [vmem:[#allocation2 + $0x78] sm:$0xff] %vm417, 0.0
      %435 = vst.msk [vmem:[#allocation2 + $0x80] sm:$0xff] %vm417, 0.0
      %436 = vst.msk [vmem:[#allocation2 + $0x88] sm:$0x3] %vm420, 0.0
      %437 = vst.msk [vmem:[#allocation2 + $0x90] sm:$0xff] %vm417, 0.0
      %438 = vst.msk [vmem:[#allocation2 + $0x98] sm:$0xff] %vm417, 0.0
      %439 = vst.msk [vmem:[#allocation2 + $0xa0] sm:$0x3] %vm420, 0.0
      %440 = vst.msk [vmem:[#allocation2 + $0xa8] sm:$0xff] %vm417, 0.0
      %441 = vst.msk [vmem:[#allocation2 + $0xb0] sm:$0xff] %vm417, 0.0
      %442 = vst.msk [vmem:[#allocation2 + $0xb8] sm:$0x3] %vm420, 0.0
      %443 = vst.msk [vmem:[#allocation2 + $0xc0] sm:$0xff] %vm417, 0.0
      %444 = vst.msk [vmem:[#allocation2 + $0xc8] sm:$0xff] %vm417, 0.0
      %445 = vst.msk [vmem:[#allocation2 + $0xd0] sm:$0x3] %vm420, 0.0
      %446 = vst.msk [vmem:[#allocation2 + $0xd8] sm:$0xff] %vm417, 0.0
      %447 = vst.msk [vmem:[#allocation2 + $0xe0] sm:$0xff] %vm417, 0.0
      %448 = vst.msk [vmem:[#allocation2 + $0xe8] sm:$0x3] %vm420, 0.0
      %449 = vst.msk [vmem:[#allocation2 + $0xf0] sm:$0xff] %vm417, 0.0
      %450 = vst.msk [vmem:[#allocation2 + $0xf8] sm:$0xff] %vm417, 0.0
      %451 = vst.msk [vmem:[#allocation2 + $0x100] sm:$0x3] %vm420, 0.0
      %452 = vst.msk [vmem:[#allocation2 + $0x108] sm:$0xff] %vm417, 0.0
      %453 = vst.msk [vmem:[#allocation2 + $0x110] sm:$0xff] %vm417, 0.0
      %454 = vst.msk [vmem:[#allocation2 + $0x118] sm:$0x3] %vm420, 0.0
      %455 = vst.msk [vmem:[#allocation2 + $0x120] sm:$0xff] %vm417, 0.0
      %456 = vst.msk [vmem:[#allocation2 + $0x128] sm:$0xff] %vm417, 0.0
      %457 = vst.msk [vmem:[#allocation2 + $0x130] sm:$0x3] %vm420, 0.0
      %458 = vst.msk [vmem:[#allocation2 + $0x138] sm:$0xff] %vm417, 0.0
      %459 = vst.msk [vmem:[#allocation2 + $0x140] sm:$0xff] %vm417, 0.0
      %460 = vst.msk [vmem:[#allocation2 + $0x148] sm:$0x3] %vm420, 0.0
      %461 = vst.msk [vmem:[#allocation2 + $0x150] sm:$0xff] %vm417, 0.0
      %462 = vst.msk [vmem:[#allocation2 + $0x158] sm:$0xff] %vm417, 0.0
      %463 = vst.msk [vmem:[#allocation2 + $0x160] sm:$0x3] %vm420, 0.0
      %464 = vst.msk [vmem:[#allocation2 + $0x168] sm:$0xff] %vm417, 0.0
      %465 = vst.msk [vmem:[#allocation2 + $0x170] sm:$0xff] %vm417, 0.0
      %466 = vst.msk [vmem:[#allocation2 + $0x178] sm:$0x3] %vm420, 0.0
      %467 = vst.msk [vmem:[#allocation2 + $0x180] sm:$0xff] %vm417, 0.0
      %468 = vst.msk [vmem:[#allocation2 + $0x188] sm:$0xff] %vm417, 0.0
      %469 = vst.msk [vmem:[#allocation2 + $0x190] sm:$0x3] %vm420, 0.0
      %470 = vst.msk [vmem:[#allocation2 + $0x198] sm:$0xff] %vm417, 0.0
      %471 = vst.msk [vmem:[#allocation2 + $0x1a0] sm:$0xff] %vm417, 0.0
      %472 = vst.msk [vmem:[#allocation2 + $0x1a8] sm:$0x3] %vm420, 0.0
      %s473 = scalar_lea.vmem [#allocation2], 24
      %474 = vst.msk [vmem:[%s473 + $0x1] sm:$0xff] %vm417, %v353
      %475 = vst.msk [vmem:[%s473 + $0x9] sm:$0xff] %vm417, %v354
      %476 = vst.msk [vmem:[%s473 + $0x19] sm:$0xff] %vm417, %v355
      %477 = vst.msk [vmem:[%s473 + $0x21] sm:$0xff] %vm417, %v356
      %478 = vst.msk [vmem:[%s473 + $0x31] sm:$0xff] %vm417, %v357
      %479 = vst.msk [vmem:[%s473 + $0x39] sm:$0xff] %vm417, %v358
      %480 = vst.msk [vmem:[%s473 + $0x49] sm:$0xff] %vm417, %v359
      %481 = vst.msk [vmem:[%s473 + $0x51] sm:$0xff] %vm417, %v360
      %482 = vst.msk [vmem:[%s473 + $0x61] sm:$0xff] %vm417, %v361
      %483 = vst.msk [vmem:[%s473 + $0x69] sm:$0xff] %vm417, %v362
      %484 = vst.msk [vmem:[%s473 + $0x79] sm:$0xff] %vm417, %v363
      %485 = vst.msk [vmem:[%s473 + $0x81] sm:$0xff] %vm417, %v364
      %486 = vst.msk [vmem:[%s473 + $0x91] sm:$0xff] %vm417, %v365
      %487 = vst.msk [vmem:[%s473 + $0x99] sm:$0xff] %vm417, %v366
      %488 = vst.msk [vmem:[%s473 + $0xa9] sm:$0xff] %vm417, %v367
      %489 = vst.msk [vmem:[%s473 + $0xb1] sm:$0xff] %vm417, %v368
      %490 = vst.msk [vmem:[%s473 + $0xc1] sm:$0xff] %vm417, %v369
      %491 = vst.msk [vmem:[%s473 + $0xc9] sm:$0xff] %vm417, %v370
      %492 = vst.msk [vmem:[%s473 + $0xd9] sm:$0xff] %vm417, %v371
      %493 = vst.msk [vmem:[%s473 + $0xe1] sm:$0xff] %vm417, %v372
      %494 = vst.msk [vmem:[%s473 + $0xf1] sm:$0xff] %vm417, %v373
      %495 = vst.msk [vmem:[%s473 + $0xf9] sm:$0xff] %vm417, %v374
      %496 = vst.msk [vmem:[%s473 + $0x109] sm:$0xff] %vm417, %v375
      %497 = vst.msk [vmem:[%s473 + $0x111] sm:$0xff] %vm417, %v376
      %498 = vst.msk [vmem:[%s473 + $0x121] sm:$0xff] %vm417, %v377
      %499 = vst.msk [vmem:[%s473 + $0x129] sm:$0xff] %vm417, %v378
      %500 = vst.msk [vmem:[%s473 + $0x139] sm:$0xff] %vm417, %v379
      %501 = vst.msk [vmem:[%s473 + $0x141] sm:$0xff] %vm417, %v380
      %502 = vst.msk [vmem:[%s473 + $0x151] sm:$0xff] %vm417, %v381
      %503 = vst.msk [vmem:[%s473 + $0x159] sm:$0xff] %vm417, %v382
      %504 = vst.msk [vmem:[%s473 + $0x169] sm:$0xff] %vm417, %v383
      %505 = vst.msk [vmem:[%s473 + $0x171] sm:$0xff] %vm417, %v384
      %v506 = vld [vmem:[#allocation2] sm:$0xff]
      %v507 = vld [vmem:[#allocation2 + $0x8] sm:$0xff]
      %v508 = vld [vmem:[#allocation2 + $0x10] sm:$0x3]
      %v509 = vld [vmem:[#allocation2 + $0x18] sm:$0xff]
      %v510 = vld [vmem:[#allocation2 + $0x20] sm:$0xff]
      %v511 = vld [vmem:[#allocation2 + $0x28] sm:$0x3]
      %v512 = vld [vmem:[#allocation2 + $0x30] sm:$0xff]
      %v513 = vld [vmem:[#allocation2 + $0x38] sm:$0xff]
      %v514 = vld [vmem:[#allocation2 + $0x40] sm:$0x3]
      %v515 = vld [vmem:[#allocation2 + $0x48] sm:$0xff]
      %v516 = vld [vmem:[#allocation2 + $0x50] sm:$0xff]
      %v517 = vld [vmem:[#allocation2 + $0x58] sm:$0x3]
      %v518 = vld [vmem:[#allocation2 + $0x60] sm:$0xff]
      %v519 = vld [vmem:[#allocation2 + $0x68] sm:$0xff]
      %v520 = vld [vmem:[#allocation2 + $0x70] sm:$0x3]
      %v521 = vld [vmem:[#allocation2 + $0x78] sm:$0xff]
      %v522 = vld [vmem:[#allocation2 + $0x80] sm:$0xff]
      %v523 = vld [vmem:[#allocation2 + $0x88] sm:$0x3]
      %v524 = vld [vmem:[#allocation2 + $0x90] sm:$0xff]
      %v525 = vld [vmem:[#allocation2 + $0x98] sm:$0xff]
      %v526 = vld [vmem:[#allocation2 + $0xa0] sm:$0x3]
      %v527 = vld [vmem:[#allocation2 + $0xa8] sm:$0xff]
      %v528 = vld [vmem:[#allocation2 + $0xb0] sm:$0xff]
      %v529 = vld [vmem:[#allocation2 + $0xb8] sm:$0x3]
      %v530 = vld [vmem:[#allocation2 + $0xc0] sm:$0xff]
      %v531 = vld [vmem:[#allocation2 + $0xc8] sm:$0xff]
      %v532 = vld [vmem:[#allocation2 + $0xd0] sm:$0x3]
      %v533 = vld [vmem:[#allocation2 + $0xd8] sm:$0xff]
      %v534 = vld [vmem:[#allocation2 + $0xe0] sm:$0xff]
      %v535 = vld [vmem:[#allocation2 + $0xe8] sm:$0x3]
      %v536 = vld [vmem:[#allocation2 + $0xf0] sm:$0xff]
      %v537 = vld [vmem:[#allocation2 + $0xf8] sm:$0xff]
      %v538 = vld [vmem:[#allocation2 + $0x100] sm:$0x3]
      %v539 = vld [vmem:[#allocation2 + $0x108] sm:$0xff]
      %v540 = vld [vmem:[#allocation2 + $0x110] sm:$0xff]
      %v541 = vld [vmem:[#allocation2 + $0x118] sm:$0x3]
      %v542 = vld [vmem:[#allocation2 + $0x120] sm:$0xff]
      %v543 = vld [vmem:[#allocation2 + $0x128] sm:$0xff]
      %v544 = vld [vmem:[#allocation2 + $0x130] sm:$0x3]
      %v545 = vld [vmem:[#allocation2 + $0x138] sm:$0xff]
      %v546 = vld [vmem:[#allocation2 + $0x140] sm:$0xff]
      %v547 = vld [vmem:[#allocation2 + $0x148] sm:$0x3]
      %v548 = vld [vmem:[#allocation2 + $0x150] sm:$0xff]
      %v549 = vld [vmem:[#allocation2 + $0x158] sm:$0xff]
      %v550 = vld [vmem:[#allocation2 + $0x160] sm:$0x3]
      %v551 = vld [vmem:[#allocation2 + $0x168] sm:$0xff]
      %v552 = vld [vmem:[#allocation2 + $0x170] sm:$0xff]
      %v553 = vld [vmem:[#allocation2 + $0x178] sm:$0x3]
      %v554 = vld [vmem:[#allocation2 + $0x180] sm:$0xff]
      %v555 = vld [vmem:[#allocation2 + $0x188] sm:$0xff]
      %v556 = vld [vmem:[#allocation2 + $0x190] sm:$0x3]
      %v557 = vld [vmem:[#allocation2 + $0x198] sm:$0xff]
      %v558 = vld [vmem:[#allocation2 + $0x1a0] sm:$0xff]
      %v559 = vld [vmem:[#allocation2 + $0x1a8] sm:$0x3]
      %v560 = vld [vmem:[%s2] sm:$0x1]
      %v561 = vlaneseq
      %v562 = vshrl.u32 %v561, 7
      %v563 = vsub.s32 0, %v562
      %v564 = vrot.slane %v560, %v563
      %v565 = vmul.f32 %v506, %v564
      %v566 = vmul.f32 %v507, %v564
      %v567 = vmul.f32 %v509, %v564
      %v568 = vmul.f32 %v510, %v564
      %v569 = vmul.f32 %v512, %v564
      %v570 = vmul.f32 %v513, %v564
      %v571 = vmul.f32 %v515, %v564
      %v572 = vmul.f32 %v516, %v564
      %v573 = vmul.f32 %v518, %v564
      %v574 = vmul.f32 %v519, %v564
      %v575 = vmul.f32 %v521, %v564
      %v576 = vmul.f32 %v522, %v564
      %v577 = vmul.f32 %v524, %v564
      %v578 = vmul.f32 %v525, %v564
      %v579 = vmul.f32 %v527, %v564
      %v580 = vmul.f32 %v528, %v564
      %v581 = vmul.f32 %v530, %v564
      %v582 = vmul.f32 %v531, %v564
      %v583 = vmul.f32 %v533, %v564
      %v584 = vmul.f32 %v534, %v564
      %v585 = vmul.f32 %v536, %v564
      %v586 = vmul.f32 %v537, %v564
      %v587 = vmul.f32 %v539, %v564
      %v588 = vmul.f32 %v540, %v564
      %v589 = vmul.f32 %v542, %v564
      %v590 = vmul.f32 %v543, %v564
      %v591 = vmul.f32 %v545, %v564
      %v592 = vmul.f32 %v546, %v564
      %v593 = vmul.f32 %v548, %v564
      %v594 = vmul.f32 %v549, %v564
      %v595 = vmul.f32 %v551, %v564
      %v596 = vmul.f32 %v552, %v564
      %v597 = vld [vmem:[%s2 + $0x1] sm:$0x1]
      %v598 = vlaneseq
      %v599 = vshrl.u32 %v598, 7
      %v600 = vsub.s32 0, %v599
      %v601 = vrot.slane %v597, %v600
      %v602 = vmul.f32 %v506, %v601
      %v603 = vmul.f32 %v507, %v601
      %v604 = vmul.f32 %v508, %v601
      %v605 = vmul.f32 %v509, %v601
      %v606 = vmul.f32 %v510, %v601
      %v607 = vmul.f32 %v511, %v601
      %v608 = vmul.f32 %v512, %v601
      %v609 = vmul.f32 %v513, %v601
      %v610 = vmul.f32 %v514, %v601
      %v611 = vmul.f32 %v515, %v601
      %v612 = vmul.f32 %v516, %v601
      %v613 = vmul.f32 %v517, %v601
      %v614 = vmul.f32 %v518, %v601
      %v615 = vmul.f32 %v519, %v601
      %v616 = vmul.f32 %v520, %v601
      %v617 = vmul.f32 %v521, %v601
      %v618 = vmul.f32 %v522, %v601
      %v619 = vmul.f32 %v523, %v601
      %v620 = vmul.f32 %v524, %v601
      %v621 = vmul.f32 %v525, %v601
      %v622 = vmul.f32 %v526, %v601
      %v623 = vmul.f32 %v527, %v601
      %v624 = vmul.f32 %v528, %v601
      %v625 = vmul.f32 %v529, %v601
      %v626 = vmul.f32 %v530, %v601
      %v627 = vmul.f32 %v531, %v601
      %v628 = vmul.f32 %v532, %v601
      %v629 = vmul.f32 %v533, %v601
      %v630 = vmul.f32 %v534, %v601
      %v631 = vmul.f32 %v535, %v601
      %v632 = vmul.f32 %v536, %v601
      %v633 = vmul.f32 %v537, %v601
      %v634 = vmul.f32 %v538, %v601
      %v635 = vmul.f32 %v539, %v601
      %v636 = vmul.f32 %v540, %v601
      %v637 = vmul.f32 %v541, %v601
      %v638 = vmul.f32 %v542, %v601
      %v639 = vmul.f32 %v543, %v601
      %v640 = vmul.f32 %v544, %v601
      %v641 = vmul.f32 %v545, %v601
      %v642 = vmul.f32 %v546, %v601
      %v643 = vmul.f32 %v547, %v601
      %v644 = vmul.f32 %v548, %v601
      %v645 = vmul.f32 %v549, %v601
      %v646 = vmul.f32 %v550, %v601
      %v647 = vmul.f32 %v551, %v601
      %v648 = vmul.f32 %v552, %v601
      %v649 = vmul.f32 %v553, %v601
      %vm698 = vcmask 1046528
      %v699 = vrot.slane %v602, 1
      %v700 = vrot.slane %v603, 1
      %v701 = vsel %vm698, %v699, %v700
      %v702 = vrot.slane %v604, 1
      %v703 = vsel %vm698, %v700, %v702
      %v704 = vrot.slane %v605, 1
      %v705 = vrot.slane %v606, 1
      %v706 = vsel %vm698, %v704, %v705
      %v707 = vrot.slane %v607, 1
      %v708 = vsel %vm698, %v705, %v707
      %v709 = vrot.slane %v608, 1
      %v710 = vrot.slane %v609, 1
      %v711 = vsel %vm698, %v709, %v710
      %v712 = vrot.slane %v610, 1
      %v713 = vsel %vm698, %v710, %v712
      %v714 = vrot.slane %v611, 1
      %v715 = vrot.slane %v612, 1
      %v716 = vsel %vm698, %v714, %v715
      %v717 = vrot.slane %v613, 1
      %v718 = vsel %vm698, %v715, %v717
      %v719 = vrot.slane %v614, 1
      %v720 = vrot.slane %v615, 1
      %v721 = vsel %vm698, %v719, %v720
      %v722 = vrot.slane %v616, 1
      %v723 = vsel %vm698, %v720, %v722
      %v724 = vrot.slane %v617, 1
      %v725 = vrot.slane %v618, 1
      %v726 = vsel %vm698, %v724, %v725
      %v727 = vrot.slane %v619, 1
      %v728 = vsel %vm698, %v725, %v727
      %v729 = vrot.slane %v620, 1
      %v730 = vrot.slane %v621, 1
      %v731 = vsel %vm698, %v729, %v730
      %v732 = vrot.slane %v622, 1
      %v733 = vsel %vm698, %v730, %v732
      %v734 = vrot.slane %v623, 1
      %v735 = vrot.slane %v624, 1
      %v736 = vsel %vm698, %v734, %v735
      %v737 = vrot.slane %v625, 1
      %v738 = vsel %vm698, %v735, %v737
      %v739 = vrot.slane %v626, 1
      %v740 = vrot.slane %v627, 1
      %v741 = vsel %vm698, %v739, %v740
      %v742 = vrot.slane %v628, 1
      %v743 = vsel %vm698, %v740, %v742
      %v744 = vrot.slane %v629, 1
      %v745 = vrot.slane %v630, 1
      %v746 = vsel %vm698, %v744, %v745
      %v747 = vrot.slane %v631, 1
      %v748 = vsel %vm698, %v745, %v747
      %v749 = vrot.slane %v632, 1
      %v750 = vrot.slane %v633, 1
      %v751 = vsel %vm698, %v749, %v750
      %v752 = vrot.slane %v634, 1
      %v753 = vsel %vm698, %v750, %v752
      %v754 = vrot.slane %v635, 1
      %v755 = vrot.slane %v636, 1
      %v756 = vsel %vm698, %v754, %v755
      %v757 = vrot.slane %v637, 1
      %v758 = vsel %vm698, %v755, %v757
      %v759 = vrot.slane %v638, 1
      %v760 = vrot.slane %v639, 1
      %v761 = vsel %vm698, %v759, %v760
      %v762 = vrot.slane %v640, 1
      %v763 = vsel %vm698, %v760, %v762
      %v764 = vrot.slane %v641, 1
      %v765 = vrot.slane %v642, 1
      %v766 = vsel %vm698, %v764, %v765
      %v767 = vrot.slane %v643, 1
      %v768 = vsel %vm698, %v765, %v767
      %v769 = vrot.slane %v644, 1
      %v770 = vrot.slane %v645, 1
      %v771 = vsel %vm698, %v769, %v770
      %v772 = vrot.slane %v646, 1
      %v773 = vsel %vm698, %v770, %v772
      %v774 = vrot.slane %v647, 1
      %v775 = vrot.slane %v648, 1
      %v776 = vsel %vm698, %v774, %v775
      %v777 = vrot.slane %v649, 1
      %v778 = vsel %vm698, %v775, %v777
      %v811 = vadd.f32 %v565, %v701
      %v812 = vadd.f32 %v566, %v703
      %v813 = vadd.f32 %v567, %v706
      %v814 = vadd.f32 %v568, %v708
      %v815 = vadd.f32 %v569, %v711
      %v816 = vadd.f32 %v570, %v713
      %v817 = vadd.f32 %v571, %v716
      %v818 = vadd.f32 %v572, %v718
      %v819 = vadd.f32 %v573, %v721
      %v820 = vadd.f32 %v574, %v723
      %v821 = vadd.f32 %v575, %v726
      %v822 = vadd.f32 %v576, %v728
      %v823 = vadd.f32 %v577, %v731
      %v824 = vadd.f32 %v578, %v733
      %v825 = vadd.f32 %v579, %v736
      %v826 = vadd.f32 %v580, %v738
      %v827 = vadd.f32 %v581, %v741
      %v828 = vadd.f32 %v582, %v743
      %v829 = vadd.f32 %v583, %v746
      %v830 = vadd.f32 %v584, %v748
      %v831 = vadd.f32 %v585, %v751
      %v832 = vadd.f32 %v586, %v753
      %v833 = vadd.f32 %v587, %v756
      %v834 = vadd.f32 %v588, %v758
      %v835 = vadd.f32 %v589, %v761
      %v836 = vadd.f32 %v590, %v763
      %v837 = vadd.f32 %v591, %v766
      %v838 = vadd.f32 %v592, %v768
      %v839 = vadd.f32 %v593, %v771
      %v840 = vadd.f32 %v594, %v773
      %v841 = vadd.f32 %v595, %v776
      %v842 = vadd.f32 %v596, %v778
      %v843 = vld [vmem:[%s2 + $0x2] sm:$0x1]
      %v844 = vlaneseq
      %v845 = vshrl.u32 %v844, 7
      %v846 = vsub.s32 0, %v845
      %v847 = vrot.slane %v843, %v846
      %v848 = vmul.f32 %v506, %v847
      %v849 = vmul.f32 %v507, %v847
      %v850 = vmul.f32 %v508, %v847
      %v851 = vmul.f32 %v509, %v847
      %v852 = vmul.f32 %v510, %v847
      %v853 = vmul.f32 %v511, %v847
      %v854 = vmul.f32 %v512, %v847
      %v855 = vmul.f32 %v513, %v847
      %v856 = vmul.f32 %v514, %v847
      %v857 = vmul.f32 %v515, %v847
      %v858 = vmul.f32 %v516, %v847
      %v859 = vmul.f32 %v517, %v847
      %v860 = vmul.f32 %v518, %v847
      %v861 = vmul.f32 %v519, %v847
      %v862 = vmul.f32 %v520, %v847
      %v863 = vmul.f32 %v521, %v847
      %v864 = vmul.f32 %v522, %v847
      %v865 = vmul.f32 %v523, %v847
      %v866 = vmul.f32 %v524, %v847
      %v867 = vmul.f32 %v525, %v847
      %v868 = vmul.f32 %v526, %v847
      %v869 = vmul.f32 %v527, %v847
      %v870 = vmul.f32 %v528, %v847
      %v871 = vmul.f32 %v529, %v847
      %v872 = vmul.f32 %v530, %v847
      %v873 = vmul.f32 %v531, %v847
      %v874 = vmul.f32 %v532, %v847
      %v875 = vmul.f32 %v533, %v847
      %v876 = vmul.f32 %v534, %v847
      %v877 = vmul.f32 %v535, %v847
      %v878 = vmul.f32 %v536, %v847
      %v879 = vmul.f32 %v537, %v847
      %v880 = vmul.f32 %v538, %v847
      %v881 = vmul.f32 %v539, %v847
      %v882 = vmul.f32 %v540, %v847
      %v883 = vmul.f32 %v541, %v847
      %v884 = vmul.f32 %v542, %v847
      %v885 = vmul.f32 %v543, %v847
      %v886 = vmul.f32 %v544, %v847
      %v887 = vmul.f32 %v545, %v847
      %v888 = vmul.f32 %v546, %v847
      %v889 = vmul.f32 %v547, %v847
      %v890 = vmul.f32 %v548, %v847
      %v891 = vmul.f32 %v549, %v847
      %v892 = vmul.f32 %v550, %v847
      %v893 = vmul.f32 %v551, %v847
      %v894 = vmul.f32 %v552, %v847
      %v895 = vmul.f32 %v553, %v847
      %vm944 = vcmask 1045504
      %v945 = vrot.slane %v848, 2
      %v946 = vrot.slane %v849, 2
      %v947 = vsel %vm944, %v945, %v946
      %v948 = vrot.slane %v850, 2
      %v949 = vsel %vm944, %v946, %v948
      %v950 = vrot.slane %v851, 2
      %v951 = vrot.slane %v852, 2
      %v952 = vsel %vm944, %v950, %v951
      %v953 = vrot.slane %v853, 2
      %v954 = vsel %vm944, %v951, %v953
      %v955 = vrot.slane %v854, 2
      %v956 = vrot.slane %v855, 2
      %v957 = vsel %vm944, %v955, %v956
      %v958 = vrot.slane %v856, 2
      %v959 = vsel %vm944, %v956, %v958
      %v960 = vrot.slane %v857, 2
      %v961 = vrot.slane %v858, 2
      %v962 = vsel %vm944, %v960, %v961
      %v963 = vrot.slane %v859, 2
      %v964 = vsel %vm944, %v961, %v963
      %v965 = vrot.slane %v860, 2
      %v966 = vrot.slane %v861, 2
      %v967 = vsel %vm944, %v965, %v966
      %v968 = vrot.slane %v862, 2
      %v969 = vsel %vm944, %v966, %v968
      %v970 = vrot.slane %v863, 2
      %v971 = vrot.slane %v864, 2
      %v972 = vsel %vm944, %v970, %v971
      %v973 = vrot.slane %v865, 2
      %v974 = vsel %vm944, %v971, %v973
      %v975 = vrot.slane %v866, 2
      %v976 = vrot.slane %v867, 2
      %v977 = vsel %vm944, %v975, %v976
      %v978 = vrot.slane %v868, 2
      %v979 = vsel %vm944, %v976, %v978
      %v980 = vrot.slane %v869, 2
      %v981 = vrot.slane %v870, 2
      %v982 = vsel %vm944, %v980, %v981
      %v983 = vrot.slane %v871, 2
      %v984 = vsel %vm944, %v981, %v983
      %v985 = vrot.slane %v872, 2
      %v986 = vrot.slane %v873, 2
      %v987 = vsel %vm944, %v985, %v986
      %v988 = vrot.slane %v874, 2
      %v989 = vsel %vm944, %v986, %v988
      %v990 = vrot.slane %v875, 2
      %v991 = vrot.slane %v876, 2
      %v992 = vsel %vm944, %v990, %v991
      %v993 = vrot.slane %v877, 2
      %v994 = vsel %vm944, %v991, %v993
      %v995 = vrot.slane %v878, 2
      %v996 = vrot.slane %v879, 2
      %v997 = vsel %vm944, %v995, %v996
      %v998 = vrot.slane %v880, 2
      %v999 = vsel %vm944, %v996, %v998
      %v1000 = vrot.slane %v881, 2
      %v1001 = vrot.slane %v882, 2
      %v1002 = vsel %vm944, %v1000, %v1001
      %v1003 = vrot.slane %v883, 2
      %v1004 = vsel %vm944, %v1001, %v1003
      %v1005 = vrot.slane %v884, 2
      %v1006 = vrot.slane %v885, 2
      %v1007 = vsel %vm944, %v1005, %v1006
      %v1008 = vrot.slane %v886, 2
      %v1009 = vsel %vm944, %v1006, %v1008
      %v1010 = vrot.slane %v887, 2
      %v1011 = vrot.slane %v888, 2
      %v1012 = vsel %vm944, %v1010, %v1011
      %v1013 = vrot.slane %v889, 2
      %v1014 = vsel %vm944, %v1011, %v1013
      %v1015 = vrot.slane %v890, 2
      %v1016 = vrot.slane %v891, 2
      %v1017 = vsel %vm944, %v1015, %v1016
      %v1018 = vrot.slane %v892, 2
      %v1019 = vsel %vm944, %v1016, %v1018
      %v1020 = vrot.slane %v893, 2
      %v1021 = vrot.slane %v894, 2
      %v1022 = vsel %vm944, %v1020, %v1021
      %v1023 = vrot.slane %v895, 2
      %v1024 = vsel %vm944, %v1021, %v1023
      %v1057 = vadd.f32 %v811, %v947
      %v1058 = vadd.f32 %v812, %v949
      %v1059 = vadd.f32 %v813, %v952
      %v1060 = vadd.f32 %v814, %v954
      %v1061 = vadd.f32 %v815, %v957
      %v1062 = vadd.f32 %v816, %v959
      %v1063 = vadd.f32 %v817, %v962
      %v1064 = vadd.f32 %v818, %v964
      %v1065 = vadd.f32 %v819, %v967
      %v1066 = vadd.f32 %v820, %v969
      %v1067 = vadd.f32 %v821, %v972
      %v1068 = vadd.f32 %v822, %v974
      %v1069 = vadd.f32 %v823, %v977
      %v1070 = vadd.f32 %v824, %v979
      %v1071 = vadd.f32 %v825, %v982
      %v1072 = vadd.f32 %v826, %v984
      %v1073 = vadd.f32 %v827, %v987
      %v1074 = vadd.f32 %v828, %v989
      %v1075 = vadd.f32 %v829, %v992
      %v1076 = vadd.f32 %v830, %v994
      %v1077 = vadd.f32 %v831, %v997
      %v1078 = vadd.f32 %v832, %v999
      %v1079 = vadd.f32 %v833, %v1002
      %v1080 = vadd.f32 %v834, %v1004
      %v1081 = vadd.f32 %v835, %v1007
      %v1082 = vadd.f32 %v836, %v1009
      %v1083 = vadd.f32 %v837, %v1012
      %v1084 = vadd.f32 %v838, %v1014
      %v1085 = vadd.f32 %v839, %v1017
      %v1086 = vadd.f32 %v840, %v1019
      %v1087 = vadd.f32 %v841, %v1022
      %v1088 = vadd.f32 %v842, %v1024
      %v1089 = vld [vmem:[%s2 + $0x3] sm:$0x1]
      %v1090 = vlaneseq
      %v1091 = vshrl.u32 %v1090, 7
      %v1092 = vsub.s32 0, %v1091
      %v1093 = vrot.slane %v1089, %v1092
      %v1094 = vmul.f32 %v509, %v1093
      %v1095 = vmul.f32 %v510, %v1093
      %v1096 = vmul.f32 %v512, %v1093
      %v1097 = vmul.f32 %v513, %v1093
      %v1098 = vmul.f32 %v515, %v1093
      %v1099 = vmul.f32 %v516, %v1093
      %v1100 = vmul.f32 %v518, %v1093
      %v1101 = vmul.f32 %v519, %v1093
      %v1102 = vmul.f32 %v521, %v1093
      %v1103 = vmul.f32 %v522, %v1093
      %v1104 = vmul.f32 %v524, %v1093
      %v1105 = vmul.f32 %v525, %v1093
      %v1106 = vmul.f32 %v527, %v1093
      %v1107 = vmul.f32 %v528, %v1093
      %v1108 = vmul.f32 %v530, %v1093
      %v1109 = vmul.f32 %v531, %v1093
      %v1110 = vmul.f32 %v533, %v1093
      %v1111 = vmul.f32 %v534, %v1093
      %v1112 = vmul.f32 %v536, %v1093
      %v1113 = vmul.f32 %v537, %v1093
      %v1114 = vmul.f32 %v539, %v1093
      %v1115 = vmul.f32 %v540, %v1093
      %v1116 = vmul.f32 %v542, %v1093
      %v1117 = vmul.f32 %v543, %v1093
      %v1118 = vmul.f32 %v545, %v1093
      %v1119 = vmul.f32 %v546, %v1093
      %v1120 = vmul.f32 %v548, %v1093
      %v1121 = vmul.f32 %v549, %v1093
      %v1122 = vmul.f32 %v551, %v1093
      %v1123 = vmul.f32 %v552, %v1093
      %v1124 = vmul.f32 %v554, %v1093
      %v1125 = vmul.f32 %v555, %v1093
      %v1126 = vadd.f32 %v1057, %v1094
      %v1127 = vadd.f32 %v1058, %v1095
      %v1128 = vadd.f32 %v1059, %v1096
      %v1129 = vadd.f32 %v1060, %v1097
      %v1130 = vadd.f32 %v1061, %v1098
      %v1131 = vadd.f32 %v1062, %v1099
      %v1132 = vadd.f32 %v1063, %v1100
      %v1133 = vadd.f32 %v1064, %v1101
      %v1134 = vadd.f32 %v1065, %v1102
      %v1135 = vadd.f32 %v1066, %v1103
      %v1136 = vadd.f32 %v1067, %v1104
      %v1137 = vadd.f32 %v1068, %v1105
      %v1138 = vadd.f32 %v1069, %v1106
      %v1139 = vadd.f32 %v1070, %v1107
      %v1140 = vadd.f32 %v1071, %v1108
      %v1141 = vadd.f32 %v1072, %v1109
      %v1142 = vadd.f32 %v1073, %v1110
      %v1143 = vadd.f32 %v1074, %v1111
      %v1144 = vadd.f32 %v1075, %v1112
      %v1145 = vadd.f32 %v1076, %v1113
      %v1146 = vadd.f32 %v1077, %v1114
      %v1147 = vadd.f32 %v1078, %v1115
      %v1148 = vadd.f32 %v1079, %v1116
      %v1149 = vadd.f32 %v1080, %v1117
      %v1150 = vadd.f32 %v1081, %v1118
      %v1151 = vadd.f32 %v1082, %v1119
      %v1152 = vadd.f32 %v1083, %v1120
      %v1153 = vadd.f32 %v1084, %v1121
      %v1154 = vadd.f32 %v1085, %v1122
      %v1155 = vadd.f32 %v1086, %v1123
      %v1156 = vadd.f32 %v1087, %v1124
      %v1157 = vadd.f32 %v1088, %v1125
      %v1158 = vld [vmem:[%s2 + $0x4] sm:$0x1]
      %v1159 = vlaneseq
      %v1160 = vshrl.u32 %v1159, 7
      %v1161 = vsub.s32 0, %v1160
      %v1162 = vrot.slane %v1158, %v1161
      %v1163 = vmul.f32 %v509, %v1162
      %v1164 = vmul.f32 %v510, %v1162
      %v1165 = vmul.f32 %v511, %v1162
      %v1166 = vmul.f32 %v512, %v1162
      %v1167 = vmul.f32 %v513, %v1162
      %v1168 = vmul.f32 %v514, %v1162
      %v1169 = vmul.f32 %v515, %v1162
      %v1170 = vmul.f32 %v516, %v1162
      %v1171 = vmul.f32 %v517, %v1162
      %v1172 = vmul.f32 %v518, %v1162
      %v1173 = vmul.f32 %v519, %v1162
      %v1174 = vmul.f32 %v520, %v1162
      %v1175 = vmul.f32 %v521, %v1162
      %v1176 = vmul.f32 %v522, %v1162
      %v1177 = vmul.f32 %v523, %v1162
      %v1178 = vmul.f32 %v524, %v1162
      %v1179 = vmul.f32 %v525, %v1162
      %v1180 = vmul.f32 %v526, %v1162
      %v1181 = vmul.f32 %v527, %v1162
      %v1182 = vmul.f32 %v528, %v1162
      %v1183 = vmul.f32 %v529, %v1162
      %v1184 = vmul.f32 %v530, %v1162
      %v1185 = vmul.f32 %v531, %v1162
      %v1186 = vmul.f32 %v532, %v1162
      %v1187 = vmul.f32 %v533, %v1162
      %v1188 = vmul.f32 %v534, %v1162
      %v1189 = vmul.f32 %v535, %v1162
      %v1190 = vmul.f32 %v536, %v1162
      %v1191 = vmul.f32 %v537, %v1162
      %v1192 = vmul.f32 %v538, %v1162
      %v1193 = vmul.f32 %v539, %v1162
      %v1194 = vmul.f32 %v540, %v1162
      %v1195 = vmul.f32 %v541, %v1162
      %v1196 = vmul.f32 %v542, %v1162
      %v1197 = vmul.f32 %v543, %v1162
      %v1198 = vmul.f32 %v544, %v1162
      %v1199 = vmul.f32 %v545, %v1162
      %v1200 = vmul.f32 %v546, %v1162
      %v1201 = vmul.f32 %v547, %v1162
      %v1202 = vmul.f32 %v548, %v1162
      %v1203 = vmul.f32 %v549, %v1162
      %v1204 = vmul.f32 %v550, %v1162
      %v1205 = vmul.f32 %v551, %v1162
      %v1206 = vmul.f32 %v552, %v1162
      %v1207 = vmul.f32 %v553, %v1162
      %v1208 = vmul.f32 %v554, %v1162
      %v1209 = vmul.f32 %v555, %v1162
      %v1210 = vmul.f32 %v556, %v1162
      %v1259 = vrot.slane %v1163, 1
      %v1260 = vrot.slane %v1164, 1
      %v1261 = vsel %vm698, %v1259, %v1260
      %v1262 = vrot.slane %v1165, 1
      %v1263 = vsel %vm698, %v1260, %v1262
      %v1264 = vrot.slane %v1166, 1
      %v1265 = vrot.slane %v1167, 1
      %v1266 = vsel %vm698, %v1264, %v1265
      %v1267 = vrot.slane %v1168, 1
      %v1268 = vsel %vm698, %v1265, %v1267
      %v1269 = vrot.slane %v1169, 1
      %v1270 = vrot.slane %v1170, 1
      %v1271 = vsel %vm698, %v1269, %v1270
      %v1272 = vrot.slane %v1171, 1
      %v1273 = vsel %vm698, %v1270, %v1272
      %v1274 = vrot.slane %v1172, 1
      %v1275 = vrot.slane %v1173, 1
      %v1276 = vsel %vm698, %v1274, %v1275
      %v1277 = vrot.slane %v1174, 1
      %v1278 = vsel %vm698, %v1275, %v1277
      %v1279 = vrot.slane %v1175, 1
      %v1280 = vrot.slane %v1176, 1
      %v1281 = vsel %vm698, %v1279, %v1280
      %v1282 = vrot.slane %v1177, 1
      %v1283 = vsel %vm698, %v1280, %v1282
      %v1284 = vrot.slane %v1178, 1
      %v1285 = vrot.slane %v1179, 1
      %v1286 = vsel %vm698, %v1284, %v1285
      %v1287 = vrot.slane %v1180, 1
      %v1288 = vsel %vm698, %v1285, %v1287
      %v1289 = vrot.slane %v1181, 1
      %v1290 = vrot.slane %v1182, 1
      %v1291 = vsel %vm698, %v1289, %v1290
      %v1292 = vrot.slane %v1183, 1
      %v1293 = vsel %vm698, %v1290, %v1292
      %v1294 = vrot.slane %v1184, 1
      %v1295 = vrot.slane %v1185, 1
      %v1296 = vsel %vm698, %v1294, %v1295
      %v1297 = vrot.slane %v1186, 1
      %v1298 = vsel %vm698, %v1295, %v1297
      %v1299 = vrot.slane %v1187, 1
      %v1300 = vrot.slane %v1188, 1
      %v1301 = vsel %vm698, %v1299, %v1300
      %v1302 = vrot.slane %v1189, 1
      %v1303 = vsel %vm698, %v1300, %v1302
      %v1304 = vrot.slane %v1190, 1
      %v1305 = vrot.slane %v1191, 1
      %v1306 = vsel %vm698, %v1304, %v1305
      %v1307 = vrot.slane %v1192, 1
      %v1308 = vsel %vm698, %v1305, %v1307
      %v1309 = vrot.slane %v1193, 1
      %v1310 = vrot.slane %v1194, 1
      %v1311 = vsel %vm698, %v1309, %v1310
      %v1312 = vrot.slane %v1195, 1
      %v1313 = vsel %vm698, %v1310, %v1312
      %v1314 = vrot.slane %v1196, 1
      %v1315 = vrot.slane %v1197, 1
      %v1316 = vsel %vm698, %v1314, %v1315
      %v1317 = vrot.slane %v1198, 1
      %v1318 = vsel %vm698, %v1315, %v1317
      %v1319 = vrot.slane %v1199, 1
      %v1320 = vrot.slane %v1200, 1
      %v1321 = vsel %vm698, %v1319, %v1320
      %v1322 = vrot.slane %v1201, 1
      %v1323 = vsel %vm698, %v1320, %v1322
      %v1324 = vrot.slane %v1202, 1
      %v1325 = vrot.slane %v1203, 1
      %v1326 = vsel %vm698, %v1324, %v1325
      %v1327 = vrot.slane %v1204, 1
      %v1328 = vsel %vm698, %v1325, %v1327
      %v1329 = vrot.slane %v1205, 1
      %v1330 = vrot.slane %v1206, 1
      %v1331 = vsel %vm698, %v1329, %v1330
      %v1332 = vrot.slane %v1207, 1
      %v1333 = vsel %vm698, %v1330, %v1332
      %v1334 = vrot.slane %v1208, 1
      %v1335 = vrot.slane %v1209, 1
      %v1336 = vsel %vm698, %v1334, %v1335
      %v1337 = vrot.slane %v1210, 1
      %v1338 = vsel %vm698, %v1335, %v1337
      %v1371 = vadd.f32 %v1126, %v1261
      %v1372 = vadd.f32 %v1127, %v1263
      %v1373 = vadd.f32 %v1128, %v1266
      %v1374 = vadd.f32 %v1129, %v1268
      %v1375 = vadd.f32 %v1130, %v1271
      %v1376 = vadd.f32 %v1131, %v1273
      %v1377 = vadd.f32 %v1132, %v1276
      %v1378 = vadd.f32 %v1133, %v1278
      %v1379 = vadd.f32 %v1134, %v1281
      %v1380 = vadd.f32 %v1135, %v1283
      %v1381 = vadd.f32 %v1136, %v1286
      %v1382 = vadd.f32 %v1137, %v1288
      %v1383 = vadd.f32 %v1138, %v1291
      %v1384 = vadd.f32 %v1139, %v1293
      %v1385 = vadd.f32 %v1140, %v1296
      %v1386 = vadd.f32 %v1141, %v1298
      %v1387 = vadd.f32 %v1142, %v1301
      %v1388 = vadd.f32 %v1143, %v1303
      %v1389 = vadd.f32 %v1144, %v1306
      %v1390 = vadd.f32 %v1145, %v1308
      %v1391 = vadd.f32 %v1146, %v1311
      %v1392 = vadd.f32 %v1147, %v1313
      %v1393 = vadd.f32 %v1148, %v1316
      %v1394 = vadd.f32 %v1149, %v1318
      %v1395 = vadd.f32 %v1150, %v1321
      %v1396 = vadd.f32 %v1151, %v1323
      %v1397 = vadd.f32 %v1152, %v1326
      %v1398 = vadd.f32 %v1153, %v1328
      %v1399 = vadd.f32 %v1154, %v1331
      %v1400 = vadd.f32 %v1155, %v1333
      %v1401 = vadd.f32 %v1156, %v1336
      %v1402 = vadd.f32 %v1157, %v1338
      %v1403 = vld [vmem:[%s2 + $0x5] sm:$0x1]
      %v1404 = vlaneseq
      %v1405 = vshrl.u32 %v1404, 7
      %v1406 = vsub.s32 0, %v1405
      %v1407 = vrot.slane %v1403, %v1406
      %v1408 = vmul.f32 %v509, %v1407
      %v1409 = vmul.f32 %v510, %v1407
      %v1410 = vmul.f32 %v511, %v1407
      %v1411 = vmul.f32 %v512, %v1407
      %v1412 = vmul.f32 %v513, %v1407
      %v1413 = vmul.f32 %v514, %v1407
      %v1414 = vmul.f32 %v515, %v1407
      %v1415 = vmul.f32 %v516, %v1407
      %v1416 = vmul.f32 %v517, %v1407
      %v1417 = vmul.f32 %v518, %v1407
      %v1418 = vmul.f32 %v519, %v1407
      %v1419 = vmul.f32 %v520, %v1407
      %v1420 = vmul.f32 %v521, %v1407
      %v1421 = vmul.f32 %v522, %v1407
      %v1422 = vmul.f32 %v523, %v1407
      %v1423 = vmul.f32 %v524, %v1407
      %v1424 = vmul.f32 %v525, %v1407
      %v1425 = vmul.f32 %v526, %v1407
      %v1426 = vmul.f32 %v527, %v1407
      %v1427 = vmul.f32 %v528, %v1407
      %v1428 = vmul.f32 %v529, %v1407
      %v1429 = vmul.f32 %v530, %v1407
      %v1430 = vmul.f32 %v531, %v1407
      %v1431 = vmul.f32 %v532, %v1407
      %v1432 = vmul.f32 %v533, %v1407
      %v1433 = vmul.f32 %v534, %v1407
      %v1434 = vmul.f32 %v535, %v1407
      %v1435 = vmul.f32 %v536, %v1407
      %v1436 = vmul.f32 %v537, %v1407
      %v1437 = vmul.f32 %v538, %v1407
      %v1438 = vmul.f32 %v539, %v1407
      %v1439 = vmul.f32 %v540, %v1407
      %v1440 = vmul.f32 %v541, %v1407
      %v1441 = vmul.f32 %v542, %v1407
      %v1442 = vmul.f32 %v543, %v1407
      %v1443 = vmul.f32 %v544, %v1407
      %v1444 = vmul.f32 %v545, %v1407
      %v1445 = vmul.f32 %v546, %v1407
      %v1446 = vmul.f32 %v547, %v1407
      %v1447 = vmul.f32 %v548, %v1407
      %v1448 = vmul.f32 %v549, %v1407
      %v1449 = vmul.f32 %v550, %v1407
      %v1450 = vmul.f32 %v551, %v1407
      %v1451 = vmul.f32 %v552, %v1407
      %v1452 = vmul.f32 %v553, %v1407
      %v1453 = vmul.f32 %v554, %v1407
      %v1454 = vmul.f32 %v555, %v1407
      %v1455 = vmul.f32 %v556, %v1407
      %v1504 = vrot.slane %v1408, 2
      %v1505 = vrot.slane %v1409, 2
      %v1506 = vsel %vm944, %v1504, %v1505
      %v1507 = vrot.slane %v1410, 2
      %v1508 = vsel %vm944, %v1505, %v1507
      %v1509 = vrot.slane %v1411, 2
      %v1510 = vrot.slane %v1412, 2
      %v1511 = vsel %vm944, %v1509, %v1510
      %v1512 = vrot.slane %v1413, 2
      %v1513 = vsel %vm944, %v1510, %v1512
      %v1514 = vrot.slane %v1414, 2
      %v1515 = vrot.slane %v1415, 2
      %v1516 = vsel %vm944, %v1514, %v1515
      %v1517 = vrot.slane %v1416, 2
      %v1518 = vsel %vm944, %v1515, %v1517
      %v1519 = vrot.slane %v1417, 2
      %v1520 = vrot.slane %v1418, 2
      %v1521 = vsel %vm944, %v1519, %v1520
      %v1522 = vrot.slane %v1419, 2
      %v1523 = vsel %vm944, %v1520, %v1522
      %v1524 = vrot.slane %v1420, 2
      %v1525 = vrot.slane %v1421, 2
      %v1526 = vsel %vm944, %v1524, %v1525
      %v1527 = vrot.slane %v1422, 2
      %v1528 = vsel %vm944, %v1525, %v1527
      %v1529 = vrot.slane %v1423, 2
      %v1530 = vrot.slane %v1424, 2
      %v1531 = vsel %vm944, %v1529, %v1530
      %v1532 = vrot.slane %v1425, 2
      %v1533 = vsel %vm944, %v1530, %v1532
      %v1534 = vrot.slane %v1426, 2
      %v1535 = vrot.slane %v1427, 2
      %v1536 = vsel %vm944, %v1534, %v1535
      %v1537 = vrot.slane %v1428, 2
      %v1538 = vsel %vm944, %v1535, %v1537
      %v1539 = vrot.slane %v1429, 2
      %v1540 = vrot.slane %v1430, 2
      %v1541 = vsel %vm944, %v1539, %v1540
      %v1542 = vrot.slane %v1431, 2
      %v1543 = vsel %vm944, %v1540, %v1542
      %v1544 = vrot.slane %v1432, 2
      %v1545 = vrot.slane %v1433, 2
      %v1546 = vsel %vm944, %v1544, %v1545
      %v1547 = vrot.slane %v1434, 2
      %v1548 = vsel %vm944, %v1545, %v1547
      %v1549 = vrot.slane %v1435, 2
      %v1550 = vrot.slane %v1436, 2
      %v1551 = vsel %vm944, %v1549, %v1550
      %v1552 = vrot.slane %v1437, 2
      %v1553 = vsel %vm944, %v1550, %v1552
      %v1554 = vrot.slane %v1438, 2
      %v1555 = vrot.slane %v1439, 2
      %v1556 = vsel %vm944, %v1554, %v1555
      %v1557 = vrot.slane %v1440, 2
      %v1558 = vsel %vm944, %v1555, %v1557
      %v1559 = vrot.slane %v1441, 2
      %v1560 = vrot.slane %v1442, 2
      %v1561 = vsel %vm944, %v1559, %v1560
      %v1562 = vrot.slane %v1443, 2
      %v1563 = vsel %vm944, %v1560, %v1562
      %v1564 = vrot.slane %v1444, 2
      %v1565 = vrot.slane %v1445, 2
      %v1566 = vsel %vm944, %v1564, %v1565
      %v1567 = vrot.slane %v1446, 2
      %v1568 = vsel %vm944, %v1565, %v1567
      %v1569 = vrot.slane %v1447, 2
      %v1570 = vrot.slane %v1448, 2
      %v1571 = vsel %vm944, %v1569, %v1570
      %v1572 = vrot.slane %v1449, 2
      %v1573 = vsel %vm944, %v1570, %v1572
      %v1574 = vrot.slane %v1450, 2
      %v1575 = vrot.slane %v1451, 2
      %v1576 = vsel %vm944, %v1574, %v1575
      %v1577 = vrot.slane %v1452, 2
      %v1578 = vsel %vm944, %v1575, %v1577
      %v1579 = vrot.slane %v1453, 2
      %v1580 = vrot.slane %v1454, 2
      %v1581 = vsel %vm944, %v1579, %v1580
      %v1582 = vrot.slane %v1455, 2
      %v1583 = vsel %vm944, %v1580, %v1582
      %v1616 = vadd.f32 %v1371, %v1506
      %v1617 = vadd.f32 %v1372, %v1508
      %v1618 = vadd.f32 %v1373, %v1511
      %v1619 = vadd.f32 %v1374, %v1513
      %v1620 = vadd.f32 %v1375, %v1516
      %v1621 = vadd.f32 %v1376, %v1518
      %v1622 = vadd.f32 %v1377, %v1521
      %v1623 = vadd.f32 %v1378, %v1523
      %v1624 = vadd.f32 %v1379, %v1526
      %v1625 = vadd.f32 %v1380, %v1528
      %v1626 = vadd.f32 %v1381, %v1531
      %v1627 = vadd.f32 %v1382, %v1533
      %v1628 = vadd.f32 %v1383, %v1536
      %v1629 = vadd.f32 %v1384, %v1538
      %v1630 = vadd.f32 %v1385, %v1541
      %v1631 = vadd.f32 %v1386, %v1543
      %v1632 = vadd.f32 %v1387, %v1546
      %v1633 = vadd.f32 %v1388, %v1548
      %v1634 = vadd.f32 %v1389, %v1551
      %v1635 = vadd.f32 %v1390, %v1553
      %v1636 = vadd.f32 %v1391, %v1556
      %v1637 = vadd.f32 %v1392, %v1558
      %v1638 = vadd.f32 %v1393, %v1561
      %v1639 = vadd.f32 %v1394, %v1563
      %v1640 = vadd.f32 %v1395, %v1566
      %v1641 = vadd.f32 %v1396, %v1568
      %v1642 = vadd.f32 %v1397, %v1571
      %v1643 = vadd.f32 %v1398, %v1573
      %v1644 = vadd.f32 %v1399, %v1576
      %v1645 = vadd.f32 %v1400, %v1578
      %v1646 = vadd.f32 %v1401, %v1581
      %v1647 = vadd.f32 %v1402, %v1583
      %v1648 = vld [vmem:[%s2 + $0x6] sm:$0x1]
      %v1649 = vlaneseq
      %v1650 = vshrl.u32 %v1649, 7
      %v1651 = vsub.s32 0, %v1650
      %v1652 = vrot.slane %v1648, %v1651
      %v1653 = vmul.f32 %v512, %v1652
      %v1654 = vmul.f32 %v513, %v1652
      %v1655 = vmul.f32 %v515, %v1652
      %v1656 = vmul.f32 %v516, %v1652
      %v1657 = vmul.f32 %v518, %v1652
      %v1658 = vmul.f32 %v519, %v1652
      %v1659 = vmul.f32 %v521, %v1652
      %v1660 = vmul.f32 %v522, %v1652
      %v1661 = vmul.f32 %v524, %v1652
      %v1662 = vmul.f32 %v525, %v1652
      %v1663 = vmul.f32 %v527, %v1652
      %v1664 = vmul.f32 %v528, %v1652
      %v1665 = vmul.f32 %v530, %v1652
      %v1666 = vmul.f32 %v531, %v1652
      %v1667 = vmul.f32 %v533, %v1652
      %v1668 = vmul.f32 %v534, %v1652
      %v1669 = vmul.f32 %v536, %v1652
      %v1670 = vmul.f32 %v537, %v1652
      %v1671 = vmul.f32 %v539, %v1652
      %v1672 = vmul.f32 %v540, %v1652
      %v1673 = vmul.f32 %v542, %v1652
      %v1674 = vmul.f32 %v543, %v1652
      %v1675 = vmul.f32 %v545, %v1652
      %v1676 = vmul.f32 %v546, %v1652
      %v1677 = vmul.f32 %v548, %v1652
      %v1678 = vmul.f32 %v549, %v1652
      %v1679 = vmul.f32 %v551, %v1652
      %v1680 = vmul.f32 %v552, %v1652
      %v1681 = vmul.f32 %v554, %v1652
      %v1682 = vmul.f32 %v555, %v1652
      %v1683 = vmul.f32 %v557, %v1652
      %v1684 = vmul.f32 %v558, %v1652
      %v1685 = vadd.f32 %v1616, %v1653
      %v1686 = vadd.f32 %v1617, %v1654
      %v1687 = vadd.f32 %v1618, %v1655
      %v1688 = vadd.f32 %v1619, %v1656
      %v1689 = vadd.f32 %v1620, %v1657
      %v1690 = vadd.f32 %v1621, %v1658
      %v1691 = vadd.f32 %v1622, %v1659
      %v1692 = vadd.f32 %v1623, %v1660
      %v1693 = vadd.f32 %v1624, %v1661
      %v1694 = vadd.f32 %v1625, %v1662
      %v1695 = vadd.f32 %v1626, %v1663
      %v1696 = vadd.f32 %v1627, %v1664
      %v1697 = vadd.f32 %v1628, %v1665
      %v1698 = vadd.f32 %v1629, %v1666
      %v1699 = vadd.f32 %v1630, %v1667
      %v1700 = vadd.f32 %v1631, %v1668
      %v1701 = vadd.f32 %v1632, %v1669
      %v1702 = vadd.f32 %v1633, %v1670
      %v1703 = vadd.f32 %v1634, %v1671
      %v1704 = vadd.f32 %v1635, %v1672
      %v1705 = vadd.f32 %v1636, %v1673
      %v1706 = vadd.f32 %v1637, %v1674
      %v1707 = vadd.f32 %v1638, %v1675
      %v1708 = vadd.f32 %v1639, %v1676
      %v1709 = vadd.f32 %v1640, %v1677
      %v1710 = vadd.f32 %v1641, %v1678
      %v1711 = vadd.f32 %v1642, %v1679
      %v1712 = vadd.f32 %v1643, %v1680
      %v1713 = vadd.f32 %v1644, %v1681
      %v1714 = vadd.f32 %v1645, %v1682
      %v1715 = vadd.f32 %v1646, %v1683
      %v1716 = vadd.f32 %v1647, %v1684
      %v1717 = vld [vmem:[%s2 + $0x7] sm:$0x1]
      %v1718 = vlaneseq
      %v1719 = vshrl.u32 %v1718, 7
      %v1720 = vsub.s32 0, %v1719
      %v1721 = vrot.slane %v1717, %v1720
      %v1722 = vmul.f32 %v512, %v1721
      %v1723 = vmul.f32 %v513, %v1721
      %v1724 = vmul.f32 %v514, %v1721
      %v1725 = vmul.f32 %v515, %v1721
      %v1726 = vmul.f32 %v516, %v1721
      %v1727 = vmul.f32 %v517, %v1721
      %v1728 = vmul.f32 %v518, %v1721
      %v1729 = vmul.f32 %v519, %v1721
      %v1730 = vmul.f32 %v520, %v1721
      %v1731 = vmul.f32 %v521, %v1721
      %v1732 = vmul.f32 %v522, %v1721
      %v1733 = vmul.f32 %v523, %v1721
      %v1734 = vmul.f32 %v524, %v1721
      %v1735 = vmul.f32 %v525, %v1721
      %v1736 = vmul.f32 %v526, %v1721
      %v1737 = vmul.f32 %v527, %v1721
      %v1738 = vmul.f32 %v528, %v1721
      %v1739 = vmul.f32 %v529, %v1721
      %v1740 = vmul.f32 %v530, %v1721
      %v1741 = vmul.f32 %v531, %v1721
      %v1742 = vmul.f32 %v532, %v1721
      %v1743 = vmul.f32 %v533, %v1721
      %v1744 = vmul.f32 %v534, %v1721
      %v1745 = vmul.f32 %v535, %v1721
      %v1746 = vmul.f32 %v536, %v1721
      %v1747 = vmul.f32 %v537, %v1721
      %v1748 = vmul.f32 %v538, %v1721
      %v1749 = vmul.f32 %v539, %v1721
      %v1750 = vmul.f32 %v540, %v1721
      %v1751 = vmul.f32 %v541, %v1721
      %v1752 = vmul.f32 %v542, %v1721
      %v1753 = vmul.f32 %v543, %v1721
      %v1754 = vmul.f32 %v544, %v1721
      %v1755 = vmul.f32 %v545, %v1721
      %v1756 = vmul.f32 %v546, %v1721
      %v1757 = vmul.f32 %v547, %v1721
      %v1758 = vmul.f32 %v548, %v1721
      %v1759 = vmul.f32 %v549, %v1721
      %v1760 = vmul.f32 %v550, %v1721
      %v1761 = vmul.f32 %v551, %v1721
      %v1762 = vmul.f32 %v552, %v1721
      %v1763 = vmul.f32 %v553, %v1721
      %v1764 = vmul.f32 %v554, %v1721
      %v1765 = vmul.f32 %v555, %v1721
      %v1766 = vmul.f32 %v556, %v1721
      %v1767 = vmul.f32 %v557, %v1721
      %v1768 = vmul.f32 %v558, %v1721
      %v1769 = vmul.f32 %v559, %v1721
      %v1818 = vrot.slane %v1722, 1
      %v1819 = vrot.slane %v1723, 1
      %v1820 = vsel %vm698, %v1818, %v1819
      %v1821 = vrot.slane %v1724, 1
      %v1822 = vsel %vm698, %v1819, %v1821
      %v1823 = vrot.slane %v1725, 1
      %v1824 = vrot.slane %v1726, 1
      %v1825 = vsel %vm698, %v1823, %v1824
      %v1826 = vrot.slane %v1727, 1
      %v1827 = vsel %vm698, %v1824, %v1826
      %v1828 = vrot.slane %v1728, 1
      %v1829 = vrot.slane %v1729, 1
      %v1830 = vsel %vm698, %v1828, %v1829
      %v1831 = vrot.slane %v1730, 1
      %v1832 = vsel %vm698, %v1829, %v1831
      %v1833 = vrot.slane %v1731, 1
      %v1834 = vrot.slane %v1732, 1
      %v1835 = vsel %vm698, %v1833, %v1834
      %v1836 = vrot.slane %v1733, 1
      %v1837 = vsel %vm698, %v1834, %v1836
      %v1838 = vrot.slane %v1734, 1
      %v1839 = vrot.slane %v1735, 1
      %v1840 = vsel %vm698, %v1838, %v1839
      %v1841 = vrot.slane %v1736, 1
      %v1842 = vsel %vm698, %v1839, %v1841
      %v1843 = vrot.slane %v1737, 1
      %v1844 = vrot.slane %v1738, 1
      %v1845 = vsel %vm698, %v1843, %v1844
      %v1846 = vrot.slane %v1739, 1
      %v1847 = vsel %vm698, %v1844, %v1846
      %v1848 = vrot.slane %v1740, 1
      %v1849 = vrot.slane %v1741, 1
      %v1850 = vsel %vm698, %v1848, %v1849
      %v1851 = vrot.slane %v1742, 1
      %v1852 = vsel %vm698, %v1849, %v1851
      %v1853 = vrot.slane %v1743, 1
      %v1854 = vrot.slane %v1744, 1
      %v1855 = vsel %vm698, %v1853, %v1854
      %v1856 = vrot.slane %v1745, 1
      %v1857 = vsel %vm698, %v1854, %v1856
      %v1858 = vrot.slane %v1746, 1
      %v1859 = vrot.slane %v1747, 1
      %v1860 = vsel %vm698, %v1858, %v1859
      %v1861 = vrot.slane %v1748, 1
      %v1862 = vsel %vm698, %v1859, %v1861
      %v1863 = vrot.slane %v1749, 1
      %v1864 = vrot.slane %v1750, 1
      %v1865 = vsel %vm698, %v1863, %v1864
      %v1866 = vrot.slane %v1751, 1
      %v1867 = vsel %vm698, %v1864, %v1866
      %v1868 = vrot.slane %v1752, 1
      %v1869 = vrot.slane %v1753, 1
      %v1870 = vsel %vm698, %v1868, %v1869
      %v1871 = vrot.slane %v1754, 1
      %v1872 = vsel %vm698, %v1869, %v1871
      %v1873 = vrot.slane %v1755, 1
      %v1874 = vrot.slane %v1756, 1
      %v1875 = vsel %vm698, %v1873, %v1874
      %v1876 = vrot.slane %v1757, 1
      %v1877 = vsel %vm698, %v1874, %v1876
      %v1878 = vrot.slane %v1758, 1
      %v1879 = vrot.slane %v1759, 1
      %v1880 = vsel %vm698, %v1878, %v1879
      %v1881 = vrot.slane %v1760, 1
      %v1882 = vsel %vm698, %v1879, %v1881
      %v1883 = vrot.slane %v1761, 1
      %v1884 = vrot.slane %v1762, 1
      %v1885 = vsel %vm698, %v1883, %v1884
      %v1886 = vrot.slane %v1763, 1
      %v1887 = vsel %vm698, %v1884, %v1886
      %v1888 = vrot.slane %v1764, 1
      %v1889 = vrot.slane %v1765, 1
      %v1890 = vsel %vm698, %v1888, %v1889
      %v1891 = vrot.slane %v1766, 1
      %v1892 = vsel %vm698, %v1889, %v1891
      %v1893 = vrot.slane %v1767, 1
      %v1894 = vrot.slane %v1768, 1
      %v1895 = vsel %vm698, %v1893, %v1894
      %v1896 = vrot.slane %v1769, 1
      %v1897 = vsel %vm698, %v1894, %v1896
      %v1930 = vadd.f32 %v1685, %v1820
      %v1931 = vadd.f32 %v1686, %v1822
      %v1932 = vadd.f32 %v1687, %v1825
      %v1933 = vadd.f32 %v1688, %v1827
      %v1934 = vadd.f32 %v1689, %v1830
      %v1935 = vadd.f32 %v1690, %v1832
      %v1936 = vadd.f32 %v1691, %v1835
      %v1937 = vadd.f32 %v1692, %v1837
      %v1938 = vadd.f32 %v1693, %v1840
      %v1939 = vadd.f32 %v1694, %v1842
      %v1940 = vadd.f32 %v1695, %v1845
      %v1941 = vadd.f32 %v1696, %v1847
      %v1942 = vadd.f32 %v1697, %v1850
      %v1943 = vadd.f32 %v1698, %v1852
      %v1944 = vadd.f32 %v1699, %v1855
      %v1945 = vadd.f32 %v1700, %v1857
      %v1946 = vadd.f32 %v1701, %v1860
      %v1947 = vadd.f32 %v1702, %v1862
      %v1948 = vadd.f32 %v1703, %v1865
      %v1949 = vadd.f32 %v1704, %v1867
      %v1950 = vadd.f32 %v1705, %v1870
      %v1951 = vadd.f32 %v1706, %v1872
      %v1952 = vadd.f32 %v1707, %v1875
      %v1953 = vadd.f32 %v1708, %v1877
      %v1954 = vadd.f32 %v1709, %v1880
      %v1955 = vadd.f32 %v1710, %v1882
      %v1956 = vadd.f32 %v1711, %v1885
      %v1957 = vadd.f32 %v1712, %v1887
      %v1958 = vadd.f32 %v1713, %v1890
      %v1959 = vadd.f32 %v1714, %v1892
      %v1960 = vadd.f32 %v1715, %v1895
      %v1961 = vadd.f32 %v1716, %v1897
      %v1962 = vld [vmem:[%s2 + $0x8] sm:$0x1]
      %v1963 = vlaneseq
      %v1964 = vshrl.u32 %v1963, 7
      %v1965 = vsub.s32 0, %v1964
      %v1966 = vrot.slane %v1962, %v1965
      %v1967 = vmul.f32 %v512, %v1966
      %v1968 = vmul.f32 %v513, %v1966
      %v1969 = vmul.f32 %v514, %v1966
      %v1970 = vmul.f32 %v515, %v1966
      %v1971 = vmul.f32 %v516, %v1966
      %v1972 = vmul.f32 %v517, %v1966
      %v1973 = vmul.f32 %v518, %v1966
      %v1974 = vmul.f32 %v519, %v1966
      %v1975 = vmul.f32 %v520, %v1966
      %v1976 = vmul.f32 %v521, %v1966
      %v1977 = vmul.f32 %v522, %v1966
      %v1978 = vmul.f32 %v523, %v1966
      %v1979 = vmul.f32 %v524, %v1966
      %v1980 = vmul.f32 %v525, %v1966
      %v1981 = vmul.f32 %v526, %v1966
      %v1982 = vmul.f32 %v527, %v1966
      %v1983 = vmul.f32 %v528, %v1966
      %v1984 = vmul.f32 %v529, %v1966
      %v1985 = vmul.f32 %v530, %v1966
      %v1986 = vmul.f32 %v531, %v1966
      %v1987 = vmul.f32 %v532, %v1966
      %v1988 = vmul.f32 %v533, %v1966
      %v1989 = vmul.f32 %v534, %v1966
      %v1990 = vmul.f32 %v535, %v1966
      %v1991 = vmul.f32 %v536, %v1966
      %v1992 = vmul.f32 %v537, %v1966
      %v1993 = vmul.f32 %v538, %v1966
      %v1994 = vmul.f32 %v539, %v1966
      %v1995 = vmul.f32 %v540, %v1966
      %v1996 = vmul.f32 %v541, %v1966
      %v1997 = vmul.f32 %v542, %v1966
      %v1998 = vmul.f32 %v543, %v1966
      %v1999 = vmul.f32 %v544, %v1966
      %v2000 = vmul.f32 %v545, %v1966
      %v2001 = vmul.f32 %v546, %v1966
      %v2002 = vmul.f32 %v547, %v1966
      %v2003 = vmul.f32 %v548, %v1966
      %v2004 = vmul.f32 %v549, %v1966
      %v2005 = vmul.f32 %v550, %v1966
      %v2006 = vmul.f32 %v551, %v1966
      %v2007 = vmul.f32 %v552, %v1966
      %v2008 = vmul.f32 %v553, %v1966
      %v2009 = vmul.f32 %v554, %v1966
      %v2010 = vmul.f32 %v555, %v1966
      %v2011 = vmul.f32 %v556, %v1966
      %v2012 = vmul.f32 %v557, %v1966
      %v2013 = vmul.f32 %v558, %v1966
      %v2014 = vmul.f32 %v559, %v1966
      %v2063 = vrot.slane %v1967, 2
      %v2064 = vrot.slane %v1968, 2
      %v2065 = vsel %vm944, %v2063, %v2064
      %v2066 = vrot.slane %v1969, 2
      %v2067 = vsel %vm944, %v2064, %v2066
      %v2068 = vrot.slane %v1970, 2
      %v2069 = vrot.slane %v1971, 2
      %v2070 = vsel %vm944, %v2068, %v2069
      %v2071 = vrot.slane %v1972, 2
      %v2072 = vsel %vm944, %v2069, %v2071
      %v2073 = vrot.slane %v1973, 2
      %v2074 = vrot.slane %v1974, 2
      %v2075 = vsel %vm944, %v2073, %v2074
      %v2076 = vrot.slane %v1975, 2
      %v2077 = vsel %vm944, %v2074, %v2076
      %v2078 = vrot.slane %v1976, 2
      %v2079 = vrot.slane %v1977, 2
      %v2080 = vsel %vm944, %v2078, %v2079
      %v2081 = vrot.slane %v1978, 2
      %v2082 = vsel %vm944, %v2079, %v2081
      %v2083 = vrot.slane %v1979, 2
      %v2084 = vrot.slane %v1980, 2
      %v2085 = vsel %vm944, %v2083, %v2084
      %v2086 = vrot.slane %v1981, 2
      %v2087 = vsel %vm944, %v2084, %v2086
      %v2088 = vrot.slane %v1982, 2
      %v2089 = vrot.slane %v1983, 2
      %v2090 = vsel %vm944, %v2088, %v2089
      %v2091 = vrot.slane %v1984, 2
      %v2092 = vsel %vm944, %v2089, %v2091
      %v2093 = vrot.slane %v1985, 2
      %v2094 = vrot.slane %v1986, 2
      %v2095 = vsel %vm944, %v2093, %v2094
      %v2096 = vrot.slane %v1987, 2
      %v2097 = vsel %vm944, %v2094, %v2096
      %v2098 = vrot.slane %v1988, 2
      %v2099 = vrot.slane %v1989, 2
      %v2100 = vsel %vm944, %v2098, %v2099
      %v2101 = vrot.slane %v1990, 2
      %v2102 = vsel %vm944, %v2099, %v2101
      %v2103 = vrot.slane %v1991, 2
      %v2104 = vrot.slane %v1992, 2
      %v2105 = vsel %vm944, %v2103, %v2104
      %v2106 = vrot.slane %v1993, 2
      %v2107 = vsel %vm944, %v2104, %v2106
      %v2108 = vrot.slane %v1994, 2
      %v2109 = vrot.slane %v1995, 2
      %v2110 = vsel %vm944, %v2108, %v2109
      %v2111 = vrot.slane %v1996, 2
      %v2112 = vsel %vm944, %v2109, %v2111
      %v2113 = vrot.slane %v1997, 2
      %v2114 = vrot.slane %v1998, 2
      %v2115 = vsel %vm944, %v2113, %v2114
      %v2116 = vrot.slane %v1999, 2
      %v2117 = vsel %vm944, %v2114, %v2116
      %v2118 = vrot.slane %v2000, 2
      %v2119 = vrot.slane %v2001, 2
      %v2120 = vsel %vm944, %v2118, %v2119
      %v2121 = vrot.slane %v2002, 2
      %v2122 = vsel %vm944, %v2119, %v2121
      %v2123 = vrot.slane %v2003, 2
      %v2124 = vrot.slane %v2004, 2
      %v2125 = vsel %vm944, %v2123, %v2124
      %v2126 = vrot.slane %v2005, 2
      %v2127 = vsel %vm944, %v2124, %v2126
      %v2128 = vrot.slane %v2006, 2
      %v2129 = vrot.slane %v2007, 2
      %v2130 = vsel %vm944, %v2128, %v2129
      %v2131 = vrot.slane %v2008, 2
      %v2132 = vsel %vm944, %v2129, %v2131
      %v2133 = vrot.slane %v2009, 2
      %v2134 = vrot.slane %v2010, 2
      %v2135 = vsel %vm944, %v2133, %v2134
      %v2136 = vrot.slane %v2011, 2
      %v2137 = vsel %vm944, %v2134, %v2136
      %v2138 = vrot.slane %v2012, 2
      %v2139 = vrot.slane %v2013, 2
      %v2140 = vsel %vm944, %v2138, %v2139
      %v2141 = vrot.slane %v2014, 2
      %v2142 = vsel %vm944, %v2139, %v2141
      %v2175 = vadd.f32 %v1930, %v2065
      %v2176 = vadd.f32 %v1931, %v2067
      %v2177 = vadd.f32 %v1932, %v2070
      %v2178 = vadd.f32 %v1933, %v2072
      %v2179 = vadd.f32 %v1934, %v2075
      %v2180 = vadd.f32 %v1935, %v2077
      %v2181 = vadd.f32 %v1936, %v2080
      %v2182 = vadd.f32 %v1937, %v2082
      %v2183 = vadd.f32 %v1938, %v2085
      %v2184 = vadd.f32 %v1939, %v2087
      %v2185 = vadd.f32 %v1940, %v2090
      %v2186 = vadd.f32 %v1941, %v2092
      %v2187 = vadd.f32 %v1942, %v2095
      %v2188 = vadd.f32 %v1943, %v2097
      %v2189 = vadd.f32 %v1944, %v2100
      %v2190 = vadd.f32 %v1945, %v2102
      %v2191 = vadd.f32 %v1946, %v2105
      %v2192 = vadd.f32 %v1947, %v2107
      %v2193 = vadd.f32 %v1948, %v2110
      %v2194 = vadd.f32 %v1949, %v2112
      %v2195 = vadd.f32 %v1950, %v2115
      %v2196 = vadd.f32 %v1951, %v2117
      %v2197 = vadd.f32 %v1952, %v2120
      %v2198 = vadd.f32 %v1953, %v2122
      %v2199 = vadd.f32 %v1954, %v2125
      %v2200 = vadd.f32 %v1955, %v2127
      %v2201 = vadd.f32 %v1956, %v2130
      %v2202 = vadd.f32 %v1957, %v2132
      %v2203 = vadd.f32 %v1958, %v2135
      %v2204 = vadd.f32 %v1959, %v2137
      %v2205 = vadd.f32 %v1960, %v2140
      %v2206 = vadd.f32 %v1961, %v2142
      %v2207 = vld [vmem:[%s8] sm:$0x1]
      %v2208 = vlaneseq
      %v2209 = vshrl.u32 %v2208, 7
      %v2210 = vsub.s32 0, %v2209
      %v2211 = vrot.slane %v2207, %v2210
      %v2212 = vmul.f32 %v2175, %v2211
      %v2213 = vmul.f32 %v2176, %v2211
      %v2214 = vmul.f32 %v2177, %v2211
      %v2215 = vmul.f32 %v2178, %v2211
      %v2216 = vmul.f32 %v2179, %v2211
      %v2217 = vmul.f32 %v2180, %v2211
      %v2218 = vmul.f32 %v2181, %v2211
      %v2219 = vmul.f32 %v2182, %v2211
      %v2220 = vmul.f32 %v2183, %v2211
      %v2221 = vmul.f32 %v2184, %v2211
      %v2222 = vmul.f32 %v2185, %v2211
      %v2223 = vmul.f32 %v2186, %v2211
      %v2224 = vmul.f32 %v2187, %v2211
      %v2225 = vmul.f32 %v2188, %v2211
      %v2226 = vmul.f32 %v2189, %v2211
      %v2227 = vmul.f32 %v2190, %v2211
      %v2228 = vmul.f32 %v2191, %v2211
      %v2229 = vmul.f32 %v2192, %v2211
      %v2230 = vmul.f32 %v2193, %v2211
      %v2231 = vmul.f32 %v2194, %v2211
      %v2232 = vmul.f32 %v2195, %v2211
      %v2233 = vmul.f32 %v2196, %v2211
      %v2234 = vmul.f32 %v2197, %v2211
      %v2235 = vmul.f32 %v2198, %v2211
      %v2236 = vmul.f32 %v2199, %v2211
      %v2237 = vmul.f32 %v2200, %v2211
      %v2238 = vmul.f32 %v2201, %v2211
      %v2239 = vmul.f32 %v2202, %v2211
      %v2240 = vmul.f32 %v2203, %v2211
      %v2241 = vmul.f32 %v2204, %v2211
      %v2242 = vmul.f32 %v2205, %v2211
      %v2243 = vmul.f32 %v2206, %v2211
      %v2244 = vld [vmem:[%s8 + $0x1] sm:$0x1]
      %v2245 = vlaneseq
      %v2246 = vshrl.u32 %v2245, 7
      %v2247 = vsub.s32 0, %v2246
      %v2248 = vrot.slane %v2244, %v2247
      %v2249 = vadd.f32 %v2212, %v2248
      %v2250 = vadd.f32 %v2213, %v2248
      %v2251 = vadd.f32 %v2214, %v2248
      %v2252 = vadd.f32 %v2215, %v2248
      %v2253 = vadd.f32 %v2216, %v2248
      %v2254 = vadd.f32 %v2217, %v2248
      %v2255 = vadd.f32 %v2218, %v2248
      %v2256 = vadd.f32 %v2219, %v2248
      %v2257 = vadd.f32 %v2220, %v2248
      %v2258 = vadd.f32 %v2221, %v2248
      %v2259 = vadd.f32 %v2222, %v2248
      %v2260 = vadd.f32 %v2223, %v2248
      %v2261 = vadd.f32 %v2224, %v2248
      %v2262 = vadd.f32 %v2225, %v2248
      %v2263 = vadd.f32 %v2226, %v2248
      %v2264 = vadd.f32 %v2227, %v2248
      %v2265 = vadd.f32 %v2228, %v2248
      %v2266 = vadd.f32 %v2229, %v2248
      %v2267 = vadd.f32 %v2230, %v2248
      %v2268 = vadd.f32 %v2231, %v2248
      %v2269 = vadd.f32 %v2232, %v2248
      %v2270 = vadd.f32 %v2233, %v2248
      %v2271 = vadd.f32 %v2234, %v2248
      %v2272 = vadd.f32 %v2235, %v2248
      %v2273 = vadd.f32 %v2236, %v2248
      %v2274 = vadd.f32 %v2237, %v2248
      %v2275 = vadd.f32 %v2238, %v2248
      %v2276 = vadd.f32 %v2239, %v2248
      %v2277 = vadd.f32 %v2240, %v2248
      %v2278 = vadd.f32 %v2241, %v2248
      %v2279 = vadd.f32 %v2242, %v2248
      %v2280 = vadd.f32 %v2243, %v2248
      %v2281 = vmax.f32 %v2249, 0.0
      %v2282 = vmax.f32 %v2250, 0.0
      %v2283 = vmax.f32 %v2251, 0.0
      %v2284 = vmax.f32 %v2252, 0.0
      %v2285 = vmax.f32 %v2253, 0.0
      %v2286 = vmax.f32 %v2254, 0.0
      %v2287 = vmax.f32 %v2255, 0.0
      %v2288 = vmax.f32 %v2256, 0.0
      %v2289 = vmax.f32 %v2257, 0.0
      %v2290 = vmax.f32 %v2258, 0.0
      %v2291 = vmax.f32 %v2259, 0.0
      %v2292 = vmax.f32 %v2260, 0.0
      %v2293 = vmax.f32 %v2261, 0.0
      %v2294 = vmax.f32 %v2262, 0.0
      %v2295 = vmax.f32 %v2263, 0.0
      %v2296 = vmax.f32 %v2264, 0.0
      %v2297 = vmax.f32 %v2265, 0.0
      %v2298 = vmax.f32 %v2266, 0.0
      %v2299 = vmax.f32 %v2267, 0.0
      %v2300 = vmax.f32 %v2268, 0.0
      %v2301 = vmax.f32 %v2269, 0.0
      %v2302 = vmax.f32 %v2270, 0.0
      %v2303 = vmax.f32 %v2271, 0.0
      %v2304 = vmax.f32 %v2272, 0.0
      %v2305 = vmax.f32 %v2273, 0.0
      %v2306 = vmax.f32 %v2274, 0.0
      %v2307 = vmax.f32 %v2275, 0.0
      %v2308 = vmax.f32 %v2276, 0.0
      %v2309 = vmax.f32 %v2277, 0.0
      %v2310 = vmax.f32 %v2278, 0.0
      %v2311 = vmax.f32 %v2279, 0.0
      %v2312 = vmax.f32 %v2280, 0.0
      %2313 = vst.msk [vmem:[#allocation3] sm:$0xff] %vm417, 0.0
      %2314 = vst.msk [vmem:[#allocation3 + $0x8] sm:$0xff] %vm417, 0.0
      %vm2315 = vcmask 27648
      %2316 = vst.msk [vmem:[#allocation3 + $0x10] sm:$0xf] %vm2315, 0.0
      %2317 = vst.msk [vmem:[#allocation3 + $0x18] sm:$0xff] %vm417, 0.0
      %2318 = vst.msk [vmem:[#allocation3 + $0x20] sm:$0xff] %vm417, 0.0
      %2319 = vst.msk [vmem:[#allocation3 + $0x28] sm:$0xf] %vm2315, 0.0
      %2320 = vst.msk [vmem:[#allocation3 + $0x30] sm:$0xff] %vm417, 0.0
      %2321 = vst.msk [vmem:[#allocation3 + $0x38] sm:$0xff] %vm417, 0.0
      %2322 = vst.msk [vmem:[#allocation3 + $0x40] sm:$0xf] %vm2315, 0.0
      %2323 = vst.msk [vmem:[#allocation3 + $0x48] sm:$0xff] %vm417, 0.0
      %2324 = vst.msk [vmem:[#allocation3 + $0x50] sm:$0xff] %vm417, 0.0
      %2325 = vst.msk [vmem:[#allocation3 + $0x58] sm:$0xf] %vm2315, 0.0
      %2326 = vst.msk [vmem:[#allocation3 + $0x60] sm:$0xff] %vm417, 0.0
      %2327 = vst.msk [vmem:[#allocation3 + $0x68] sm:$0xff] %vm417, 0.0
      %2328 = vst.msk [vmem:[#allocation3 + $0x70] sm:$0xf] %vm2315, 0.0
      %2329 = vst.msk [vmem:[#allocation3 + $0x78] sm:$0xff] %vm417, 0.0
      %2330 = vst.msk [vmem:[#allocation3 + $0x80] sm:$0xff] %vm417, 0.0
      %2331 = vst.msk [vmem:[#allocation3 + $0x88] sm:$0xf] %vm2315, 0.0
      %2332 = vst.msk [vmem:[#allocation3 + $0x90] sm:$0xff] %vm417, 0.0
      %2333 = vst.msk [vmem:[#allocation3 + $0x98] sm:$0xff] %vm417, 0.0
      %2334 = vst.msk [vmem:[#allocation3 + $0xa0] sm:$0xf] %vm2315, 0.0
      %2335 = vst.msk [vmem:[#allocation3 + $0xa8] sm:$0xff] %vm417, 0.0
      %2336 = vst.msk [vmem:[#allocation3 + $0xb0] sm:$0xff] %vm417, 0.0
      %2337 = vst.msk [vmem:[#allocation3 + $0xb8] sm:$0xf] %vm2315, 0.0
      %2338 = vst.msk [vmem:[#allocation3 + $0xc0] sm:$0xff] %vm417, 0.0
      %2339 = vst.msk [vmem:[#allocation3 + $0xc8] sm:$0xff] %vm417, 0.0
      %2340 = vst.msk [vmem:[#allocation3 + $0xd0] sm:$0xf] %vm2315, 0.0
      %2341 = vst.msk [vmem:[#allocation3 + $0xd8] sm:$0xff] %vm417, 0.0
      %2342 = vst.msk [vmem:[#allocation3 + $0xe0] sm:$0xff] %vm417, 0.0
      %2343 = vst.msk [vmem:[#allocation3 + $0xe8] sm:$0xf] %vm2315, 0.0
      %2344 = vst.msk [vmem:[#allocation3 + $0xf0] sm:$0xff] %vm417, 0.0
      %2345 = vst.msk [vmem:[#allocation3 + $0xf8] sm:$0xff] %vm417, 0.0
      %2346 = vst.msk [vmem:[#allocation3 + $0x100] sm:$0xf] %vm2315, 0.0
      %2347 = vst.msk [vmem:[#allocation3 + $0x108] sm:$0xff] %vm417, 0.0
      %2348 = vst.msk [vmem:[#allocation3 + $0x110] sm:$0xff] %vm417, 0.0
      %2349 = vst.msk [vmem:[#allocation3 + $0x118] sm:$0xf] %vm2315, 0.0
      %2350 = vst.msk [vmem:[#allocation3 + $0x120] sm:$0xff] %vm417, 0.0
      %2351 = vst.msk [vmem:[#allocation3 + $0x128] sm:$0xff] %vm417, 0.0
      %2352 = vst.msk [vmem:[#allocation3 + $0x130] sm:$0xf] %vm2315, 0.0
      %2353 = vst.msk [vmem:[#allocation3 + $0x138] sm:$0xff] %vm417, 0.0
      %2354 = vst.msk [vmem:[#allocation3 + $0x140] sm:$0xff] %vm417, 0.0
      %2355 = vst.msk [vmem:[#allocation3 + $0x148] sm:$0xf] %vm2315, 0.0
      %2356 = vst.msk [vmem:[#allocation3 + $0x150] sm:$0xff] %vm417, 0.0
      %2357 = vst.msk [vmem:[#allocation3 + $0x158] sm:$0xff] %vm417, 0.0
      %2358 = vst.msk [vmem:[#allocation3 + $0x160] sm:$0xf] %vm2315, 0.0
      %2359 = vst.msk [vmem:[#allocation3 + $0x168] sm:$0xff] %vm417, 0.0
      %2360 = vst.msk [vmem:[#allocation3 + $0x170] sm:$0xff] %vm417, 0.0
      %2361 = vst.msk [vmem:[#allocation3 + $0x178] sm:$0xf] %vm2315, 0.0
      %2362 = vst.msk [vmem:[#allocation3 + $0x180] sm:$0xff] %vm417, 0.0
      %2363 = vst.msk [vmem:[#allocation3 + $0x188] sm:$0xff] %vm417, 0.0
      %2364 = vst.msk [vmem:[#allocation3 + $0x190] sm:$0xf] %vm2315, 0.0
      %2365 = vst.msk [vmem:[#allocation3 + $0x198] sm:$0xff] %vm417, 0.0
      %2366 = vst.msk [vmem:[#allocation3 + $0x1a0] sm:$0xff] %vm417, 0.0
      %2367 = vst.msk [vmem:[#allocation3 + $0x1a8] sm:$0xf] %vm2315, 0.0
      %2368 = vst.msk [vmem:[#allocation3 + $0x1b0] sm:$0xff] %vm417, 0.0
      %2369 = vst.msk [vmem:[#allocation3 + $0x1b8] sm:$0xff] %vm417, 0.0
      %2370 = vst.msk [vmem:[#allocation3 + $0x1c0] sm:$0xf] %vm2315, 0.0
      %2371 = vst.msk [vmem:[#allocation3 + $0x1c8] sm:$0xff] %vm417, 0.0
      %2372 = vst.msk [vmem:[#allocation3 + $0x1d0] sm:$0xff] %vm417, 0.0
      %2373 = vst.msk [vmem:[#allocation3 + $0x1d8] sm:$0xf] %vm2315, 0.0
      %s2374 = scalar_lea.vmem [#allocation3], 48
      %2375 = vst.msk [vmem:[%s2374 + $0x2] sm:$0xff] %vm417, %v2281
      %2376 = vst.msk [vmem:[%s2374 + $0xa] sm:$0xff] %vm417, %v2282
      %2377 = vst.msk [vmem:[%s2374 + $0x1a] sm:$0xff] %vm417, %v2283
      %2378 = vst.msk [vmem:[%s2374 + $0x22] sm:$0xff] %vm417, %v2284
      %2379 = vst.msk [vmem:[%s2374 + $0x32] sm:$0xff] %vm417, %v2285
      %2380 = vst.msk [vmem:[%s2374 + $0x3a] sm:$0xff] %vm417, %v2286
      %2381 = vst.msk [vmem:[%s2374 + $0x4a] sm:$0xff] %vm417, %v2287
      %2382 = vst.msk [vmem:[%s2374 + $0x52] sm:$0xff] %vm417, %v2288
      %2383 = vst.msk [vmem:[%s2374 + $0x62] sm:$0xff] %vm417, %v2289
      %2384 = vst.msk [vmem:[%s2374 + $0x6a] sm:$0xff] %vm417, %v2290
      %2385 = vst.msk [vmem:[%s2374 + $0x7a] sm:$0xff] %vm417, %v2291
      %2386 = vst.msk [vmem:[%s2374 + $0x82] sm:$0xff] %vm417, %v2292
      %2387 = vst.msk [vmem:[%s2374 + $0x92] sm:$0xff] %vm417, %v2293
      %2388 = vst.msk [vmem:[%s2374 + $0x9a] sm:$0xff] %vm417, %v2294
      %2389 = vst.msk [vmem:[%s2374 + $0xaa] sm:$0xff] %vm417, %v2295
      %2390 = vst.msk [vmem:[%s2374 + $0xb2] sm:$0xff] %vm417, %v2296
      %2391 = vst.msk [vmem:[%s2374 + $0xc2] sm:$0xff] %vm417, %v2297
      %2392 = vst.msk [vmem:[%s2374 + $0xca] sm:$0xff] %vm417, %v2298
      %2393 = vst.msk [vmem:[%s2374 + $0xda] sm:$0xff] %vm417, %v2299
      %2394 = vst.msk [vmem:[%s2374 + $0xe2] sm:$0xff] %vm417, %v2300
      %2395 = vst.msk [vmem:[%s2374 + $0xf2] sm:$0xff] %vm417, %v2301
      %2396 = vst.msk [vmem:[%s2374 + $0xfa] sm:$0xff] %vm417, %v2302
      %2397 = vst.msk [vmem:[%s2374 + $0x10a] sm:$0xff] %vm417, %v2303
      %2398 = vst.msk [vmem:[%s2374 + $0x112] sm:$0xff] %vm417, %v2304
      %2399 = vst.msk [vmem:[%s2374 + $0x122] sm:$0xff] %vm417, %v2305
      %2400 = vst.msk [vmem:[%s2374 + $0x12a] sm:$0xff] %vm417, %v2306
      %2401 = vst.msk [vmem:[%s2374 + $0x13a] sm:$0xff] %vm417, %v2307
      %2402 = vst.msk [vmem:[%s2374 + $0x142] sm:$0xff] %vm417, %v2308
      %2403 = vst.msk [vmem:[%s2374 + $0x152] sm:$0xff] %vm417, %v2309
      %2404 = vst.msk [vmem:[%s2374 + $0x15a] sm:$0xff] %vm417, %v2310
      %2405 = vst.msk [vmem:[%s2374 + $0x16a] sm:$0xff] %vm417, %v2311
      %2406 = vst.msk [vmem:[%s2374 + $0x172] sm:$0xff] %vm417, %v2312
      %v2407 = vld [vmem:[#allocation3] sm:$0xff]
      %v2408 = vld [vmem:[#allocation3 + $0x8] sm:$0xff]
      %v2409 = vld [vmem:[#allocation3 + $0x10] sm:$0xf]
      %v2410 = vld [vmem:[#allocation3 + $0x18] sm:$0xff]
      %v2411 = vld [vmem:[#allocation3 + $0x20] sm:$0xff]
      %v2412 = vld [vmem:[#allocation3 + $0x28] sm:$0xf]
      %v2413 = vld [vmem:[#allocation3 + $0x30] sm:$0xff]
      %v2414 = vld [vmem:[#allocation3 + $0x38] sm:$0xff]
      %v2415 = vld [vmem:[#allocation3 + $0x40] sm:$0xf]
      %v2416 = vld [vmem:[#allocation3 + $0x48] sm:$0xff]
      %v2417 = vld [vmem:[#allocation3 + $0x50] sm:$0xff]
      %v2418 = vld [vmem:[#allocation3 + $0x58] sm:$0xf]
      %v2419 = vld [vmem:[#allocation3 + $0x60] sm:$0xff]
      %v2420 = vld [vmem:[#allocation3 + $0x68] sm:$0xff]
      %v2421 = vld [vmem:[#allocation3 + $0x70] sm:$0xf]
      %v2422 = vld [vmem:[#allocation3 + $0x78] sm:$0xff]
      %v2423 = vld [vmem:[#allocation3 + $0x80] sm:$0xff]
      %v2424 = vld [vmem:[#allocation3 + $0x88] sm:$0xf]
      %v2425 = vld [vmem:[#allocation3 + $0x90] sm:$0xff]
      %v2426 = vld [vmem:[#allocation3 + $0x98] sm:$0xff]
      %v2427 = vld [vmem:[#allocation3 + $0xa0] sm:$0xf]
      %v2428 = vld [vmem:[#allocation3 + $0xa8] sm:$0xff]
      %v2429 = vld [vmem:[#allocation3 + $0xb0] sm:$0xff]
      %v2430 = vld [vmem:[#allocation3 + $0xb8] sm:$0xf]
      %v2431 = vld [vmem:[#allocation3 + $0xc0] sm:$0xff]
      %v2432 = vld [vmem:[#allocation3 + $0xc8] sm:$0xff]
      %v2433 = vld [vmem:[#allocation3 + $0xd0] sm:$0xf]
      %v2434 = vld [vmem:[#allocation3 + $0xd8] sm:$0xff]
      %v2435 = vld [vmem:[#allocation3 + $0xe0] sm:$0xff]
      %v2436 = vld [vmem:[#allocation3 + $0xe8] sm:$0xf]
      %v2437 = vld [vmem:[#allocation3 + $0xf0] sm:$0xff]
      %v2438 = vld [vmem:[#allocation3 + $0xf8] sm:$0xff]
      %v2439 = vld [vmem:[#allocation3 + $0x100] sm:$0xf]
      %v2440 = vld [vmem:[#allocation3 + $0x108] sm:$0xff]
      %v2441 = vld [vmem:[#allocation3 + $0x110] sm:$0xff]
      %v2442 = vld [vmem:[#allocation3 + $0x118] sm:$0xf]
      %v2443 = vld [vmem:[#allocation3 + $0x120] sm:$0xff]
      %v2444 = vld [vmem:[#allocation3 + $0x128] sm:$0xff]
      %v2445 = vld [vmem:[#allocation3 + $0x130] sm:$0xf]
      %v2446 = vld [vmem:[#allocation3 + $0x138] sm:$0xff]
      %v2447 = vld [vmem:[#allocation3 + $0x140] sm:$0xff]
      %v2448 = vld [vmem:[#allocation3 + $0x148] sm:$0xf]
      %v2449 = vld [vmem:[#allocation3 + $0x150] sm:$0xff]
      %v2450 = vld [vmem:[#allocation3 + $0x158] sm:$0xff]
      %v2451 = vld [vmem:[#allocation3 + $0x160] sm:$0xf]
      %v2452 = vld [vmem:[#allocation3 + $0x168] sm:$0xff]
      %v2453 = vld [vmem:[#allocation3 + $0x170] sm:$0xff]
      %v2454 = vld [vmem:[#allocation3 + $0x178] sm:$0xf]
      %v2455 = vld [vmem:[#allocation3 + $0x180] sm:$0xff]
      %v2456 = vld [vmem:[#allocation3 + $0x188] sm:$0xff]
      %v2457 = vld [vmem:[#allocation3 + $0x190] sm:$0xf]
      %v2458 = vld [vmem:[#allocation3 + $0x198] sm:$0xff]
      %v2459 = vld [vmem:[#allocation3 + $0x1a0] sm:$0xff]
      %v2460 = vld [vmem:[#allocation3 + $0x1a8] sm:$0xf]
      %v2461 = vld [vmem:[#allocation3 + $0x1b0] sm:$0xff]
      %v2462 = vld [vmem:[#allocation3 + $0x1b8] sm:$0xff]
      %v2463 = vld [vmem:[#allocation3 + $0x1c0] sm:$0xf]
      %v2464 = vld [vmem:[#allocation3 + $0x1c8] sm:$0xff]
      %v2465 = vld [vmem:[#allocation3 + $0x1d0] sm:$0xff]
      %v2466 = vld [vmem:[#allocation3 + $0x1d8] sm:$0xf]
      %2467 = vst.msk [vmem:[#allocation4] sm:$0xff] %vm417, %v2407
      %2468 = vst.msk [vmem:[#allocation4 + $0x8] sm:$0xff] %vm417, %v2408
      %2469 = vst.msk [vmem:[#allocation4 + $0x10] sm:$0xff] %vm417, %v2410
      %2470 = vst.msk [vmem:[#allocation4 + $0x18] sm:$0xff] %vm417, %v2411
      %2471 = vst.msk [vmem:[#allocation4 + $0x20] sm:$0xff] %vm417, %v2413
      %2472 = vst.msk [vmem:[#allocation4 + $0x28] sm:$0xff] %vm417, %v2414
      %2473 = vst.msk [vmem:[#allocation4 + $0x30] sm:$0xff] %vm417, %v2416
      %2474 = vst.msk [vmem:[#allocation4 + $0x38] sm:$0xff] %vm417, %v2417
      %2475 = vst.msk [vmem:[#allocation4 + $0x40] sm:$0xff] %vm417, %v2419
      %2476 = vst.msk [vmem:[#allocation4 + $0x48] sm:$0xff] %vm417, %v2420
      %2477 = vst.msk [vmem:[#allocation4 + $0x50] sm:$0xff] %vm417, %v2422
      %2478 = vst.msk [vmem:[#allocation4 + $0x58] sm:$0xff] %vm417, %v2423
      %2479 = vst.msk [vmem:[#allocation4 + $0x60] sm:$0xff] %vm417, %v2425
      %2480 = vst.msk [vmem:[#allocation4 + $0x68] sm:$0xff] %vm417, %v2426
      %2481 = vst.msk [vmem:[#allocation4 + $0x70] sm:$0xff] %vm417, %v2428
      %2482 = vst.msk [vmem:[#allocation4 + $0x78] sm:$0xff] %vm417, %v2429
      %2483 = vst.msk [vmem:[#allocation4 + $0x80] sm:$0xff] %vm417, %v2431
      %2484 = vst.msk [vmem:[#allocation4 + $0x88] sm:$0xff] %vm417, %v2432
      %2485 = vst.msk [vmem:[#allocation4 + $0x90] sm:$0xff] %vm417, %v2434
      %2486 = vst.msk [vmem:[#allocation4 + $0x98] sm:$0xff] %vm417, %v2435
      %2487 = vst.msk [vmem:[#allocation4 + $0xa0] sm:$0xff] %vm417, %v2437
      %2488 = vst.msk [vmem:[#allocation4 + $0xa8] sm:$0xff] %vm417, %v2438
      %2489 = vst.msk [vmem:[#allocation4 + $0xb0] sm:$0xff] %vm417, %v2440
      %2490 = vst.msk [vmem:[#allocation4 + $0xb8] sm:$0xff] %vm417, %v2441
      %2491 = vst.msk [vmem:[#allocation4 + $0xc0] sm:$0xff] %vm417, %v2443
      %2492 = vst.msk [vmem:[#allocation4 + $0xc8] sm:$0xff] %vm417, %v2444
      %2493 = vst.msk [vmem:[#allocation4 + $0xd0] sm:$0xff] %vm417, %v2446
      %2494 = vst.msk [vmem:[#allocation4 + $0xd8] sm:$0xff] %vm417, %v2447
      %2495 = vst.msk [vmem:[#allocation4 + $0xe0] sm:$0xff] %vm417, %v2449
      %2496 = vst.msk [vmem:[#allocation4 + $0xe8] sm:$0xff] %vm417, %v2450
      %2497 = vst.msk [vmem:[#allocation4 + $0xf0] sm:$0xff] %vm417, %v2452
      %2498 = vst.msk [vmem:[#allocation4 + $0xf8] sm:$0xff] %vm417, %v2453
      %v2547 = vrot.slane %v2407, 2
      %v2548 = vrot.slane %v2408, 2
      %v2549 = vsel %vm944, %v2547, %v2548
      %v2550 = vrot.slane %v2409, 2
      %v2551 = vsel %vm944, %v2548, %v2550
      %v2552 = vrot.slane %v2410, 2
      %v2553 = vrot.slane %v2411, 2
      %v2554 = vsel %vm944, %v2552, %v2553
      %v2555 = vrot.slane %v2412, 2
      %v2556 = vsel %vm944, %v2553, %v2555
      %v2557 = vrot.slane %v2413, 2
      %v2558 = vrot.slane %v2414, 2
      %v2559 = vsel %vm944, %v2557, %v2558
      %v2560 = vrot.slane %v2415, 2
      %v2561 = vsel %vm944, %v2558, %v2560
      %v2562 = vrot.slane %v2416, 2
      %v2563 = vrot.slane %v2417, 2
      %v2564 = vsel %vm944, %v2562, %v2563
      %v2565 = vrot.slane %v2418, 2
      %v2566 = vsel %vm944, %v2563, %v2565
      %v2567 = vrot.slane %v2419, 2
      %v2568 = vrot.slane %v2420, 2
      %v2569 = vsel %vm944, %v2567, %v2568
      %v2570 = vrot.slane %v2421, 2
      %v2571 = vsel %vm944, %v2568, %v2570
      %v2572 = vrot.slane %v2422, 2
      %v2573 = vrot.slane %v2423, 2
      %v2574 = vsel %vm944, %v2572, %v2573
      %v2575 = vrot.slane %v2424, 2
      %v2576 = vsel %vm944, %v2573, %v2575
      %v2577 = vrot.slane %v2425, 2
      %v2578 = vrot.slane %v2426, 2
      %v2579 = vsel %vm944, %v2577, %v2578
      %v2580 = vrot.slane %v2427, 2
      %v2581 = vsel %vm944, %v2578, %v2580
      %v2582 = vrot.slane %v2428, 2
      %v2583 = vrot.slane %v2429, 2
      %v2584 = vsel %vm944, %v2582, %v2583
      %v2585 = vrot.slane %v2430, 2
      %v2586 = vsel %vm944, %v2583, %v2585
      %v2587 = vrot.slane %v2431, 2
      %v2588 = vrot.slane %v2432, 2
      %v2589 = vsel %vm944, %v2587, %v2588
      %v2590 = vrot.slane %v2433, 2
      %v2591 = vsel %vm944, %v2588, %v2590
      %v2592 = vrot.slane %v2434, 2
      %v2593 = vrot.slane %v2435, 2
      %v2594 = vsel %vm944, %v2592, %v2593
      %v2595 = vrot.slane %v2436, 2
      %v2596 = vsel %vm944, %v2593, %v2595
      %v2597 = vrot.slane %v2437, 2
      %v2598 = vrot.slane %v2438, 2
      %v2599 = vsel %vm944, %v2597, %v2598
      %v2600 = vrot.slane %v2439, 2
      %v2601 = vsel %vm944, %v2598, %v2600
      %v2602 = vrot.slane %v2440, 2
      %v2603 = vrot.slane %v2441, 2
      %v2604 = vsel %vm944, %v2602, %v2603
      %v2605 = vrot.slane %v2442, 2
      %v2606 = vsel %vm944, %v2603, %v2605
      %v2607 = vrot.slane %v2443, 2
      %v2608 = vrot.slane %v2444, 2
      %v2609 = vsel %vm944, %v2607, %v2608
      %v2610 = vrot.slane %v2445, 2
      %v2611 = vsel %vm944, %v2608, %v2610
      %v2612 = vrot.slane %v2446, 2
      %v2613 = vrot.slane %v2447, 2
      %v2614 = vsel %vm944, %v2612, %v2613
      %v2615 = vrot.slane %v2448, 2
      %v2616 = vsel %vm944, %v2613, %v2615
      %v2617 = vrot.slane %v2449, 2
      %v2618 = vrot.slane %v2450, 2
      %v2619 = vsel %vm944, %v2617, %v2618
      %v2620 = vrot.slane %v2451, 2
      %v2621 = vsel %vm944, %v2618, %v2620
      %v2622 = vrot.slane %v2452, 2
      %v2623 = vrot.slane %v2453, 2
      %v2624 = vsel %vm944, %v2622, %v2623
      %v2625 = vrot.slane %v2454, 2
      %v2626 = vsel %vm944, %v2623, %v2625
      %2627 = vrot.lane.b32.xlu0 %v2549, 4
      %v2628 = vpop.permute.xlu0 %2627
      %2629 = vrot.lane.b32.xlu0 %v2551, 4
      %v2630 = vpop.permute.xlu0 %2629
      %2631 = vrot.lane.b32.xlu0 %v2554, 4
      %v2632 = vpop.permute.xlu0 %2631
      %2633 = vrot.lane.b32.xlu0 %v2556, 4
      %v2634 = vpop.permute.xlu0 %2633
      %2635 = vrot.lane.b32.xlu0 %v2559, 4
      %v2636 = vpop.permute.xlu0 %2635
      %2637 = vrot.lane.b32.xlu0 %v2561, 4
      %v2638 = vpop.permute.xlu0 %2637
      %2639 = vrot.lane.b32.xlu0 %v2564, 4
      %v2640 = vpop.permute.xlu0 %2639
      %2641 = vrot.lane.b32.xlu0 %v2566, 4
      %v2642 = vpop.permute.xlu0 %2641
      %2643 = vrot.lane.b32.xlu0 %v2569, 4
      %v2644 = vpop.permute.xlu0 %2643
      %2645 = vrot.lane.b32.xlu0 %v2571, 4
      %v2646 = vpop.permute.xlu0 %2645
      %2647 = vrot.lane.b32.xlu0 %v2574, 4
      %v2648 = vpop.permute.xlu0 %2647
      %2649 = vrot.lane.b32.xlu0 %v2576, 4
      %v2650 = vpop.permute.xlu0 %2649
      %2651 = vrot.lane.b32.xlu0 %v2579, 4
      %v2652 = vpop.permute.xlu0 %2651
      %2653 = vrot.lane.b32.xlu0 %v2581, 4
      %v2654 = vpop.permute.xlu0 %2653
      %2655 = vrot.lane.b32.xlu0 %v2584, 4
      %v2656 = vpop.permute.xlu0 %2655
      %2657 = vrot.lane.b32.xlu0 %v2586, 4
      %v2658 = vpop.permute.xlu0 %2657
      %2659 = vrot.lane.b32.xlu0 %v2589, 4
      %v2660 = vpop.permute.xlu0 %2659
      %2661 = vrot.lane.b32.xlu0 %v2591, 4
      %v2662 = vpop.permute.xlu0 %2661
      %2663 = vrot.lane.b32.xlu0 %v2594, 4
      %v2664 = vpop.permute.xlu0 %2663
      %2665 = vrot.lane.b32.xlu0 %v2596, 4
      %v2666 = vpop.permute.xlu0 %2665
      %2667 = vrot.lane.b32.xlu0 %v2599, 4
      %v2668 = vpop.permute.xlu0 %2667
      %2669 = vrot.lane.b32.xlu0 %v2601, 4
      %v2670 = vpop.permute.xlu0 %2669
      %2671 = vrot.lane.b32.xlu0 %v2604, 4
      %v2672 = vpop.permute.xlu0 %2671
      %2673 = vrot.lane.b32.xlu0 %v2606, 4
      %v2674 = vpop.permute.xlu0 %2673
      %2675 = vrot.lane.b32.xlu0 %v2609, 4
      %v2676 = vpop.permute.xlu0 %2675
      %2677 = vrot.lane.b32.xlu0 %v2611, 4
      %v2678 = vpop.permute.xlu0 %2677
      %2679 = vrot.lane.b32.xlu0 %v2614, 4
      %v2680 = vpop.permute.xlu0 %2679
      %2681 = vrot.lane.b32.xlu0 %v2616, 4
      %v2682 = vpop.permute.xlu0 %2681
      %2683 = vrot.lane.b32.xlu0 %v2619, 4
      %v2684 = vpop.permute.xlu0 %2683
      %2685 = vrot.lane.b32.xlu0 %v2621, 4
      %v2686 = vpop.permute.xlu0 %2685
      %2687 = vrot.lane.b32.xlu0 %v2624, 4
      %v2688 = vpop.permute.xlu0 %2687
      %2689 = vrot.lane.b32.xlu0 %v2626, 4
      %v2690 = vpop.permute.xlu0 %2689
      %vm2723 = vcmask 64544
      %2724 = vst.msk [vmem:[#allocation4] sm:$0xff] %vm2723, %v2628
      %2725 = vst.msk [vmem:[#allocation4 + $0x8] sm:$0xff] %vm2723, %v2630
      %2726 = vst.msk [vmem:[#allocation4 + $0x10] sm:$0xff] %vm2723, %v2632
      %2727 = vst.msk [vmem:[#allocation4 + $0x18] sm:$0xff] %vm2723, %v2634
      %2728 = vst.msk [vmem:[#allocation4 + $0x20] sm:$0xff] %vm2723, %v2636
      %2729 = vst.msk [vmem:[#allocation4 + $0x28] sm:$0xff] %vm2723, %v2638
      %2730 = vst.msk [vmem:[#allocation4 + $0x30] sm:$0xff] %vm2723, %v2640
      %2731 = vst.msk [vmem:[#allocation4 + $0x38] sm:$0xff] %vm2723, %v2642
      %2732 = vst.msk [vmem:[#allocation4 + $0x40] sm:$0xff] %vm2723, %v2644
      %2733 = vst.msk [vmem:[#allocation4 + $0x48] sm:$0xff] %vm2723, %v2646
      %2734 = vst.msk [vmem:[#allocation4 + $0x50] sm:$0xff] %vm2723, %v2648
      %2735 = vst.msk [vmem:[#allocation4 + $0x58] sm:$0xff] %vm2723, %v2650
      %2736 = vst.msk [vmem:[#allocation4 + $0x60] sm:$0xff] %vm2723, %v2652
      %2737 = vst.msk [vmem:[#allocation4 + $0x68] sm:$0xff] %vm2723, %v2654
      %2738 = vst.msk [vmem:[#allocation4 + $0x70] sm:$0xff] %vm2723, %v2656
      %2739 = vst.msk [vmem:[#allocation4 + $0x78] sm:$0xff] %vm2723, %v2658
      %2740 = vst.msk [vmem:[#allocation4 + $0x80] sm:$0xff] %vm2723, %v2660
      %2741 = vst.msk [vmem:[#allocation4 + $0x88] sm:$0xff] %vm2723, %v2662
      %2742 = vst.msk [vmem:[#allocation4 + $0x90] sm:$0xff] %vm2723, %v2664
      %2743 = vst.msk [vmem:[#allocation4 + $0x98] sm:$0xff] %vm2723, %v2666
      %2744 = vst.msk [vmem:[#allocation4 + $0xa0] sm:$0xff] %vm2723, %v2668
      %2745 = vst.msk [vmem:[#allocation4 + $0xa8] sm:$0xff] %vm2723, %v2670
      %2746 = vst.msk [vmem:[#allocation4 + $0xb0] sm:$0xff] %vm2723, %v2672
      %2747 = vst.msk [vmem:[#allocation4 + $0xb8] sm:$0xff] %vm2723, %v2674
      %2748 = vst.msk [vmem:[#allocation4 + $0xc0] sm:$0xff] %vm2723, %v2676
      %2749 = vst.msk [vmem:[#allocation4 + $0xc8] sm:$0xff] %vm2723, %v2678
      %2750 = vst.msk [vmem:[#allocation4 + $0xd0] sm:$0xff] %vm2723, %v2680
      %2751 = vst.msk [vmem:[#allocation4 + $0xd8] sm:$0xff] %vm2723, %v2682
      %2752 = vst.msk [vmem:[#allocation4 + $0xe0] sm:$0xff] %vm2723, %v2684
      %2753 = vst.msk [vmem:[#allocation4 + $0xe8] sm:$0xff] %vm2723, %v2686
      %2754 = vst.msk [vmem:[#allocation4 + $0xf0] sm:$0xff] %vm2723, %v2688
      %2755 = vst.msk [vmem:[#allocation4 + $0xf8] sm:$0xff] %vm2723, %v2690
      %vm2756 = vcmask 1043456
      %v2757 = vrot.slane %v2407, 4
      %v2758 = vrot.slane %v2408, 4
      %v2759 = vsel %vm2756, %v2757, %v2758
      %v2760 = vrot.slane %v2409, 4
      %v2761 = vsel %vm2756, %v2758, %v2760
      %v2762 = vrot.slane %v2410, 4
      %v2763 = vrot.slane %v2411, 4
      %v2764 = vsel %vm2756, %v2762, %v2763
      %v2765 = vrot.slane %v2412, 4
      %v2766 = vsel %vm2756, %v2763, %v2765
      %v2767 = vrot.slane %v2413, 4
      %v2768 = vrot.slane %v2414, 4
      %v2769 = vsel %vm2756, %v2767, %v2768
      %v2770 = vrot.slane %v2415, 4
      %v2771 = vsel %vm2756, %v2768, %v2770
      %v2772 = vrot.slane %v2416, 4
      %v2773 = vrot.slane %v2417, 4
      %v2774 = vsel %vm2756, %v2772, %v2773
      %v2775 = vrot.slane %v2418, 4
      %v2776 = vsel %vm2756, %v2773, %v2775
      %v2777 = vrot.slane %v2419, 4
      %v2778 = vrot.slane %v2420, 4
      %v2779 = vsel %vm2756, %v2777, %v2778
      %v2780 = vrot.slane %v2421, 4
      %v2781 = vsel %vm2756, %v2778, %v2780
      %v2782 = vrot.slane %v2422, 4
      %v2783 = vrot.slane %v2423, 4
      %v2784 = vsel %vm2756, %v2782, %v2783
      %v2785 = vrot.slane %v2424, 4
      %v2786 = vsel %vm2756, %v2783, %v2785
      %v2787 = vrot.slane %v2425, 4
      %v2788 = vrot.slane %v2426, 4
      %v2789 = vsel %vm2756, %v2787, %v2788
      %v2790 = vrot.slane %v2427, 4
      %v2791 = vsel %vm2756, %v2788, %v2790
      %v2792 = vrot.slane %v2428, 4
      %v2793 = vrot.slane %v2429, 4
      %v2794 = vsel %vm2756, %v2792, %v2793
      %v2795 = vrot.slane %v2430, 4
      %v2796 = vsel %vm2756, %v2793, %v2795
      %v2797 = vrot.slane %v2431, 4
      %v2798 = vrot.slane %v2432, 4
      %v2799 = vsel %vm2756, %v2797, %v2798
      %v2800 = vrot.slane %v2433, 4
      %v2801 = vsel %vm2756, %v2798, %v2800
      %v2802 = vrot.slane %v2434, 4
      %v2803 = vrot.slane %v2435, 4
      %v2804 = vsel %vm2756, %v2802, %v2803
      %v2805 = vrot.slane %v2436, 4
      %v2806 = vsel %vm2756, %v2803, %v2805
      %v2807 = vrot.slane %v2437, 4
      %v2808 = vrot.slane %v2438, 4
      %v2809 = vsel %vm2756, %v2807, %v2808
      %v2810 = vrot.slane %v2439, 4
      %v2811 = vsel %vm2756, %v2808, %v2810
      %v2812 = vrot.slane %v2440, 4
      %v2813 = vrot.slane %v2441, 4
      %v2814 = vsel %vm2756, %v2812, %v2813
      %v2815 = vrot.slane %v2442, 4
      %v2816 = vsel %vm2756, %v2813, %v2815
      %v2817 = vrot.slane %v2443, 4
      %v2818 = vrot.slane %v2444, 4
      %v2819 = vsel %vm2756, %v2817, %v2818
      %v2820 = vrot.slane %v2445, 4
      %v2821 = vsel %vm2756, %v2818, %v2820
      %v2822 = vrot.slane %v2446, 4
      %v2823 = vrot.slane %v2447, 4
      %v2824 = vsel %vm2756, %v2822, %v2823
      %v2825 = vrot.slane %v2448, 4
      %v2826 = vsel %vm2756, %v2823, %v2825
      %v2827 = vrot.slane %v2449, 4
      %v2828 = vrot.slane %v2450, 4
      %v2829 = vsel %vm2756, %v2827, %v2828
      %v2830 = vrot.slane %v2451, 4
      %v2831 = vsel %vm2756, %v2828, %v2830
      %v2832 = vrot.slane %v2452, 4
      %v2833 = vrot.slane %v2453, 4
      %v2834 = vsel %vm2756, %v2832, %v2833
      %v2835 = vrot.slane %v2454, 4
      %v2836 = vsel %vm2756, %v2833, %v2835
      %2837 = vrot.lane.b32.xlu0 %v2759, 8
      %v2838 = vpop.permute.xlu0 %2837
      %2839 = vrot.lane.b32.xlu0 %v2761, 8
      %v2840 = vpop.permute.xlu0 %2839
      %2841 = vrot.lane.b32.xlu0 %v2764, 8
      %v2842 = vpop.permute.xlu0 %2841
      %2843 = vrot.lane.b32.xlu0 %v2766, 8
      %v2844 = vpop.permute.xlu0 %2843
      %2845 = vrot.lane.b32.xlu0 %v2769, 8
      %v2846 = vpop.permute.xlu0 %2845
      %2847 = vrot.lane.b32.xlu0 %v2771, 8
      %v2848 = vpop.permute.xlu0 %2847
      %2849 = vrot.lane.b32.xlu0 %v2774, 8
      %v2850 = vpop.permute.xlu0 %2849
      %2851 = vrot.lane.b32.xlu0 %v2776, 8
      %v2852 = vpop.permute.xlu0 %2851
      %2853 = vrot.lane.b32.xlu0 %v2779, 8
      %v2854 = vpop.permute.xlu0 %2853
      %2855 = vrot.lane.b32.xlu0 %v2781, 8
      %v2856 = vpop.permute.xlu0 %2855
      %2857 = vrot.lane.b32.xlu0 %v2784, 8
      %v2858 = vpop.permute.xlu0 %2857
      %2859 = vrot.lane.b32.xlu0 %v2786, 8
      %v2860 = vpop.permute.xlu0 %2859
      %2861 = vrot.lane.b32.xlu0 %v2789, 8
      %v2862 = vpop.permute.xlu0 %2861
      %2863 = vrot.lane.b32.xlu0 %v2791, 8
      %v2864 = vpop.permute.xlu0 %2863
      %2865 = vrot.lane.b32.xlu0 %v2794, 8
      %v2866 = vpop.permute.xlu0 %2865
      %2867 = vrot.lane.b32.xlu0 %v2796, 8
      %v2868 = vpop.permute.xlu0 %2867
      %2869 = vrot.lane.b32.xlu0 %v2799, 8
      %v2870 = vpop.permute.xlu0 %2869
      %2871 = vrot.lane.b32.xlu0 %v2801, 8
      %v2872 = vpop.permute.xlu0 %2871
      %2873 = vrot.lane.b32.xlu0 %v2804, 8
      %v2874 = vpop.permute.xlu0 %2873
      %2875 = vrot.lane.b32.xlu0 %v2806, 8
      %v2876 = vpop.permute.xlu0 %2875
      %2877 = vrot.lane.b32.xlu0 %v2809, 8
      %v2878 = vpop.permute.xlu0 %2877
      %2879 = vrot.lane.b32.xlu0 %v2811, 8
      %v2880 = vpop.permute.xlu0 %2879
      %2881 = vrot.lane.b32.xlu0 %v2814, 8
      %v2882 = vpop.permute.xlu0 %2881
      %2883 = vrot.lane.b32.xlu0 %v2816, 8
      %v2884 = vpop.permute.xlu0 %2883
      %2885 = vrot.lane.b32.xlu0 %v2819, 8
      %v2886 = vpop.permute.xlu0 %2885
      %2887 = vrot.lane.b32.xlu0 %v2821, 8
      %v2888 = vpop.permute.xlu0 %2887
      %2889 = vrot.lane.b32.xlu0 %v2824, 8
      %v2890 = vpop.permute.xlu0 %2889
      %2891 = vrot.lane.b32.xlu0 %v2826, 8
      %v2892 = vpop.permute.xlu0 %2891
      %2893 = vrot.lane.b32.xlu0 %v2829, 8
      %v2894 = vpop.permute.xlu0 %2893
      %2895 = vrot.lane.b32.xlu0 %v2831, 8
      %v2896 = vpop.permute.xlu0 %2895
      %2897 = vrot.lane.b32.xlu0 %v2834, 8
      %v2898 = vpop.permute.xlu0 %2897
      %2899 = vrot.lane.b32.xlu0 %v2836, 8
      %v2900 = vpop.permute.xlu0 %2899
      %vm2933 = vcmask 97344
      %2934 = vst.msk [vmem:[#allocation4] sm:$0xff] %vm2933, %v2838
      %2935 = vst.msk [vmem:[#allocation4 + $0x8] sm:$0xff] %vm2933, %v2840
      %2936 = vst.msk [vmem:[#allocation4 + $0x10] sm:$0xff] %vm2933, %v2842
      %2937 = vst.msk [vmem:[#allocation4 + $0x18] sm:$0xff] %vm2933, %v2844
      %2938 = vst.msk [vmem:[#allocation4 + $0x20] sm:$0xff] %vm2933, %v2846
      %2939 = vst.msk [vmem:[#allocation4 + $0x28] sm:$0xff] %vm2933, %v2848
      %2940 = vst.msk [vmem:[#allocation4 + $0x30] sm:$0xff] %vm2933, %v2850
      %2941 = vst.msk [vmem:[#allocation4 + $0x38] sm:$0xff] %vm2933, %v2852
      %2942 = vst.msk [vmem:[#allocation4 + $0x40] sm:$0xff] %vm2933, %v2854
      %2943 = vst.msk [vmem:[#allocation4 + $0x48] sm:$0xff] %vm2933, %v2856
      %2944 = vst.msk [vmem:[#allocation4 + $0x50] sm:$0xff] %vm2933, %v2858
      %2945 = vst.msk [vmem:[#allocation4 + $0x58] sm:$0xff] %vm2933, %v2860
      %2946 = vst.msk [vmem:[#allocation4 + $0x60] sm:$0xff] %vm2933, %v2862
      %2947 = vst.msk [vmem:[#allocation4 + $0x68] sm:$0xff] %vm2933, %v2864
      %2948 = vst.msk [vmem:[#allocation4 + $0x70] sm:$0xff] %vm2933, %v2866
      %2949 = vst.msk [vmem:[#allocation4 + $0x78] sm:$0xff] %vm2933, %v2868
      %2950 = vst.msk [vmem:[#allocation4 + $0x80] sm:$0xff] %vm2933, %v2870
      %2951 = vst.msk [vmem:[#allocation4 + $0x88] sm:$0xff] %vm2933, %v2872
      %2952 = vst.msk [vmem:[#allocation4 + $0x90] sm:$0xff] %vm2933, %v2874
      %2953 = vst.msk [vmem:[#allocation4 + $0x98] sm:$0xff] %vm2933, %v2876
      %2954 = vst.msk [vmem:[#allocation4 + $0xa0] sm:$0xff] %vm2933, %v2878
      %2955 = vst.msk [vmem:[#allocation4 + $0xa8] sm:$0xff] %vm2933, %v2880
      %2956 = vst.msk [vmem:[#allocation4 + $0xb0] sm:$0xff] %vm2933, %v2882
      %2957 = vst.msk [vmem:[#allocation4 + $0xb8] sm:$0xff] %vm2933, %v2884
      %2958 = vst.msk [vmem:[#allocation4 + $0xc0] sm:$0xff] %vm2933, %v2886
      %2959 = vst.msk [vmem:[#allocation4 + $0xc8] sm:$0xff] %vm2933, %v2888
      %2960 = vst.msk [vmem:[#allocation4 + $0xd0] sm:$0xff] %vm2933, %v2890
      %2961 = vst.msk [vmem:[#allocation4 + $0xd8] sm:$0xff] %vm2933, %v2892
      %2962 = vst.msk [vmem:[#allocation4 + $0xe0] sm:$0xff] %vm2933, %v2894
      %2963 = vst.msk [vmem:[#allocation4 + $0xe8] sm:$0xff] %vm2933, %v2896
      %2964 = vst.msk [vmem:[#allocation4 + $0xf0] sm:$0xff] %vm2933, %v2898
      %2965 = vst.msk [vmem:[#allocation4 + $0xf8] sm:$0xff] %vm2933, %v2900
      %2970 = vrot.lane.b32.xlu0 %v2413, 12
      %v2971 = vpop.permute.xlu0 %2970
      %2972 = vrot.lane.b32.xlu0 %v2414, 12
      %v2973 = vpop.permute.xlu0 %2972
      %2974 = vrot.lane.b32.xlu0 %v2416, 12
      %v2975 = vpop.permute.xlu0 %2974
      %2976 = vrot.lane.b32.xlu0 %v2417, 12
      %v2977 = vpop.permute.xlu0 %2976
      %2978 = vrot.lane.b32.xlu0 %v2419, 12
      %v2979 = vpop.permute.xlu0 %2978
      %2980 = vrot.lane.b32.xlu0 %v2420, 12
      %v2981 = vpop.permute.xlu0 %2980
      %2982 = vrot.lane.b32.xlu0 %v2422, 12
      %v2983 = vpop.permute.xlu0 %2982
      %2984 = vrot.lane.b32.xlu0 %v2423, 12
      %v2985 = vpop.permute.xlu0 %2984
      %2986 = vrot.lane.b32.xlu0 %v2425, 12
      %v2987 = vpop.permute.xlu0 %2986
      %2988 = vrot.lane.b32.xlu0 %v2426, 12
      %v2989 = vpop.permute.xlu0 %2988
      %2990 = vrot.lane.b32.xlu0 %v2428, 12
      %v2991 = vpop.permute.xlu0 %2990
      %2992 = vrot.lane.b32.xlu0 %v2429, 12
      %v2993 = vpop.permute.xlu0 %2992
      %2994 = vrot.lane.b32.xlu0 %v2431, 12
      %v2995 = vpop.permute.xlu0 %2994
      %2996 = vrot.lane.b32.xlu0 %v2432, 12
      %v2997 = vpop.permute.xlu0 %2996
      %2998 = vrot.lane.b32.xlu0 %v2434, 12
      %v2999 = vpop.permute.xlu0 %2998
      %3000 = vrot.lane.b32.xlu0 %v2435, 12
      %v3001 = vpop.permute.xlu0 %3000
      %3002 = vrot.lane.b32.xlu0 %v2437, 12
      %v3003 = vpop.permute.xlu0 %3002
      %3004 = vrot.lane.b32.xlu0 %v2438, 12
      %v3005 = vpop.permute.xlu0 %3004
      %3006 = vrot.lane.b32.xlu0 %v2440, 12
      %v3007 = vpop.permute.xlu0 %3006
      %3008 = vrot.lane.b32.xlu0 %v2441, 12
      %v3009 = vpop.permute.xlu0 %3008
      %3010 = vrot.lane.b32.xlu0 %v2443, 12
      %v3011 = vpop.permute.xlu0 %3010
      %3012 = vrot.lane.b32.xlu0 %v2444, 12
      %v3013 = vpop.permute.xlu0 %3012
      %3014 = vrot.lane.b32.xlu0 %v2446, 12
      %v3015 = vpop.permute.xlu0 %3014
      %3016 = vrot.lane.b32.xlu0 %v2447, 12
      %v3017 = vpop.permute.xlu0 %3016
      %3018 = vrot.lane.b32.xlu0 %v2449, 12
      %v3019 = vpop.permute.xlu0 %3018
      %3020 = vrot.lane.b32.xlu0 %v2450, 12
      %v3021 = vpop.permute.xlu0 %3020
      %3022 = vrot.lane.b32.xlu0 %v2452, 12
      %v3023 = vpop.permute.xlu0 %3022
      %3024 = vrot.lane.b32.xlu0 %v2453, 12
      %v3025 = vpop.permute.xlu0 %3024
      %3026 = vrot.lane.b32.xlu0 %v2455, 12
      %v3027 = vpop.permute.xlu0 %3026
      %3028 = vrot.lane.b32.xlu0 %v2456, 12
      %v3029 = vpop.permute.xlu0 %3028
      %3030 = vrot.lane.b32.xlu0 %v2458, 12
      %v3031 = vpop.permute.xlu0 %3030
      %3032 = vrot.lane.b32.xlu0 %v2459, 12
      %v3033 = vpop.permute.xlu0 %3032
      %vm3066 = vcmask 130144
      %3067 = vst.msk [vmem:[#allocation4] sm:$0xff] %vm3066, %v2971
      %3068 = vst.msk [vmem:[#allocation4 + $0x8] sm:$0xff] %vm3066, %v2973
      %3069 = vst.msk [vmem:[#allocation4 + $0x10] sm:$0xff] %vm3066, %v2975
      %3070 = vst.msk [vmem:[#allocation4 + $0x18] sm:$0xff] %vm3066, %v2977
      %3071 = vst.msk [vmem:[#allocation4 + $0x20] sm:$0xff] %vm3066, %v2979
      %3072 = vst.msk [vmem:[#allocation4 + $0x28] sm:$0xff] %vm3066, %v2981
      %3073 = vst.msk [vmem:[#allocation4 + $0x30] sm:$0xff] %vm3066, %v2983
      %3074 = vst.msk [vmem:[#allocation4 + $0x38] sm:$0xff] %vm3066, %v2985
      %3075 = vst.msk [vmem:[#allocation4 + $0x40] sm:$0xff] %vm3066, %v2987
      %3076 = vst.msk [vmem:[#allocation4 + $0x48] sm:$0xff] %vm3066, %v2989
      %3077 = vst.msk [vmem:[#allocation4 + $0x50] sm:$0xff] %vm3066, %v2991
      %3078 = vst.msk [vmem:[#allocation4 + $0x58] sm:$0xff] %vm3066, %v2993
      %3079 = vst.msk [vmem:[#allocation4 + $0x60] sm:$0xff] %vm3066, %v2995
      %3080 = vst.msk [vmem:[#allocation4 + $0x68] sm:$0xff] %vm3066, %v2997
      %3081 = vst.msk [vmem:[#allocation4 + $0x70] sm:$0xff] %vm3066, %v2999
      %3082 = vst.msk [vmem:[#allocation4 + $0x78] sm:$0xff] %vm3066, %v3001
      %3083 = vst.msk [vmem:[#allocation4 + $0x80] sm:$0xff] %vm3066, %v3003
      %3084 = vst.msk [vmem:[#allocation4 + $0x88] sm:$0xff] %vm3066, %v3005
      %3085 = vst.msk [vmem:[#allocation4 + $0x90] sm:$0xff] %vm3066, %v3007
      %3086 = vst.msk [vmem:[#allocation4 + $0x98] sm:$0xff] %vm3066, %v3009
      %3087 = vst.msk [vmem:[#allocation4 + $0xa0] sm:$0xff] %vm3066, %v3011
      %3088 = vst.msk [vmem:[#allocation4 + $0xa8] sm:$0xff] %vm3066, %v3013
      %3089 = vst.msk [vmem:[#allocation4 + $0xb0] sm:$0xff] %vm3066, %v3015
      %3090 = vst.msk [vmem:[#allocation4 + $0xb8] sm:$0xff] %vm3066, %v3017
      %3091 = vst.msk [vmem:[#allocation4 + $0xc0] sm:$0xff] %vm3066, %v3019
      %3092 = vst.msk [vmem:[#allocation4 + $0xc8] sm:$0xff] %vm3066, %v3021
      %3093 = vst.msk [vmem:[#allocation4 + $0xd0] sm:$0xff] %vm3066, %v3023
      %3094 = vst.msk [vmem:[#allocation4 + $0xd8] sm:$0xff] %vm3066, %v3025
      %3095 = vst.msk [vmem:[#allocation4 + $0xe0] sm:$0xff] %vm3066, %v3027
      %3096 = vst.msk [vmem:[#allocation4 + $0xe8] sm:$0xff] %vm3066, %v3029
      %3097 = vst.msk [vmem:[#allocation4 + $0xf0] sm:$0xff] %vm3066, %v3031
      %3098 = vst.msk [vmem:[#allocation4 + $0xf8] sm:$0xff] %vm3066, %v3033
      %v3101 = vrot.slane %v2455, 2
      %v3102 = vrot.slane %v2456, 2
      %v3103 = vsel %vm944, %v3101, %v3102
      %v3104 = vrot.slane %v2457, 2
      %v3105 = vsel %vm944, %v3102, %v3104
      %v3106 = vrot.slane %v2458, 2
      %v3107 = vrot.slane %v2459, 2
      %v3108 = vsel %vm944, %v3106, %v3107
      %v3109 = vrot.slane %v2460, 2
      %v3110 = vsel %vm944, %v3107, %v3109
      %3111 = vrot.lane.b32.xlu0 %v2559, 16
      %v3112 = vpop.permute.xlu0 %3111
      %3113 = vrot.lane.b32.xlu0 %v2561, 16
      %v3114 = vpop.permute.xlu0 %3113
      %3115 = vrot.lane.b32.xlu0 %v2564, 16
      %v3116 = vpop.permute.xlu0 %3115
      %3117 = vrot.lane.b32.xlu0 %v2566, 16
      %v3118 = vpop.permute.xlu0 %3117
      %3119 = vrot.lane.b32.xlu0 %v2569, 16
      %v3120 = vpop.permute.xlu0 %3119
      %3121 = vrot.lane.b32.xlu0 %v2571, 16
      %v3122 = vpop.permute.xlu0 %3121
      %3123 = vrot.lane.b32.xlu0 %v2574, 16
      %v3124 = vpop.permute.xlu0 %3123
      %3125 = vrot.lane.b32.xlu0 %v2576, 16
      %v3126 = vpop.permute.xlu0 %3125
      %3127 = vrot.lane.b32.xlu0 %v2579, 16
      %v3128 = vpop.permute.xlu0 %3127
      %3129 = vrot.lane.b32.xlu0 %v2581, 16
      %v3130 = vpop.permute.xlu0 %3129
      %3131 = vrot.lane.b32.xlu0 %v2584, 16
      %v3132 = vpop.permute.xlu0 %3131
      %3133 = vrot.lane.b32.xlu0 %v2586, 16
      %v3134 = vpop.permute.xlu0 %3133
      %3135 = vrot.lane.b32.xlu0 %v2589, 16
      %v3136 = vpop.permute.xlu0 %3135
      %3137 = vrot.lane.b32.xlu0 %v2591, 16
      %v3138 = vpop.permute.xlu0 %3137
      %3139 = vrot.lane.b32.xlu0 %v2594, 16
      %v3140 = vpop.permute.xlu0 %3139
      %3141 = vrot.lane.b32.xlu0 %v2596, 16
      %v3142 = vpop.permute.xlu0 %3141
      %3143 = vrot.lane.b32.xlu0 %v2599, 16
      %v3144 = vpop.permute.xlu0 %3143
      %3145 = vrot.lane.b32.xlu0 %v2601, 16
      %v3146 = vpop.permute.xlu0 %3145
      %3147 = vrot.lane.b32.xlu0 %v2604, 16
      %v3148 = vpop.permute.xlu0 %3147
      %3149 = vrot.lane.b32.xlu0 %v2606, 16
      %v3150 = vpop.permute.xlu0 %3149
      %3151 = vrot.lane.b32.xlu0 %v2609, 16
      %v3152 = vpop.permute.xlu0 %3151
      %3153 = vrot.lane.b32.xlu0 %v2611, 16
      %v3154 = vpop.permute.xlu0 %3153
      %3155 = vrot.lane.b32.xlu0 %v2614, 16
      %v3156 = vpop.permute.xlu0 %3155
      %3157 = vrot.lane.b32.xlu0 %v2616, 16
      %v3158 = vpop.permute.xlu0 %3157
      %3159 = vrot.lane.b32.xlu0 %v2619, 16
      %v3160 = vpop.permute.xlu0 %3159
      %3161 = vrot.lane.b32.xlu0 %v2621, 16
      %v3162 = vpop.permute.xlu0 %3161
      %3163 = vrot.lane.b32.xlu0 %v2624, 16
      %v3164 = vpop.permute.xlu0 %3163
      %3165 = vrot.lane.b32.xlu0 %v2626, 16
      %v3166 = vpop.permute.xlu0 %3165
      %3167 = vrot.lane.b32.xlu0 %v3103, 16
      %v3168 = vpop.permute.xlu0 %3167
      %3169 = vrot.lane.b32.xlu0 %v3105, 16
      %v3170 = vpop.permute.xlu0 %3169
      %3171 = vrot.lane.b32.xlu0 %v3108, 16
      %v3172 = vpop.permute.xlu0 %3171
      %3173 = vrot.lane.b32.xlu0 %v3110, 16
      %v3174 = vpop.permute.xlu0 %3173
      %vm3207 = vcmask 162944
      %3208 = vst.msk [vmem:[#allocation4] sm:$0xff] %vm3207, %v3112
      %3209 = vst.msk [vmem:[#allocation4 + $0x8] sm:$0xff] %vm3207, %v3114
      %3210 = vst.msk [vmem:[#allocation4 + $0x10] sm:$0xff] %vm3207, %v3116
      %3211 = vst.msk [vmem:[#allocation4 + $0x18] sm:$0xff] %vm3207, %v3118
      %3212 = vst.msk [vmem:[#allocation4 + $0x20] sm:$0xff] %vm3207, %v3120
      %3213 = vst.msk [vmem:[#allocation4 + $0x28] sm:$0xff] %vm3207, %v3122
      %3214 = vst.msk [vmem:[#allocation4 + $0x30] sm:$0xff] %vm3207, %v3124
      %3215 = vst.msk [vmem:[#allocation4 + $0x38] sm:$0xff] %vm3207, %v3126
      %3216 = vst.msk [vmem:[#allocation4 + $0x40] sm:$0xff] %vm3207, %v3128
      %3217 = vst.msk [vmem:[#allocation4 + $0x48] sm:$0xff] %vm3207, %v3130
      %3218 = vst.msk [vmem:[#allocation4 + $0x50] sm:$0xff] %vm3207, %v3132
      %3219 = vst.msk [vmem:[#allocation4 + $0x58] sm:$0xff] %vm3207, %v3134
      %3220 = vst.msk [vmem:[#allocation4 + $0x60] sm:$0xff] %vm3207, %v3136
      %3221 = vst.msk [vmem:[#allocation4 + $0x68] sm:$0xff] %vm3207, %v3138
      %3222 = vst.msk [vmem:[#allocation4 + $0x70] sm:$0xff] %vm3207, %v3140
      %3223 = vst.msk [vmem:[#allocation4 + $0x78] sm:$0xff] %vm3207, %v3142
      %3224 = vst.msk [vmem:[#allocation4 + $0x80] sm:$0xff] %vm3207, %v3144
      %3225 = vst.msk [vmem:[#allocation4 + $0x88] sm:$0xff] %vm3207, %v3146
      %3226 = vst.msk [vmem:[#allocation4 + $0x90] sm:$0xff] %vm3207, %v3148
      %3227 = vst.msk [vmem:[#allocation4 + $0x98] sm:$0xff] %vm3207, %v3150
      %3228 = vst.msk [vmem:[#allocation4 + $0xa0] sm:$0xff] %vm3207, %v3152
      %3229 = vst.msk [vmem:[#allocation4 + $0xa8] sm:$0xff] %vm3207, %v3154
      %3230 = vst.msk [vmem:[#allocation4 + $0xb0] sm:$0xff] %vm3207, %v3156
      %3231 = vst.msk [vmem:[#allocation4 + $0xb8] sm:$0xff] %vm3207, %v3158
      %3232 = vst.msk [vmem:[#allocation4 + $0xc0] sm:$0xff] %vm3207, %v3160
      %3233 = vst.msk [vmem:[#allocation4 + $0xc8] sm:$0xff] %vm3207, %v3162
      %3234 = vst.msk [vmem:[#allocation4 + $0xd0] sm:$0xff] %vm3207, %v3164
      %3235 = vst.msk [vmem:[#allocation4 + $0xd8] sm:$0xff] %vm3207, %v3166
      %3236 = vst.msk [vmem:[#allocation4 + $0xe0] sm:$0xff] %vm3207, %v3168
      %3237 = vst.msk [vmem:[#allocation4 + $0xe8] sm:$0xff] %vm3207, %v3170
      %3238 = vst.msk [vmem:[#allocation4 + $0xf0] sm:$0xff] %vm3207, %v3172
      %3239 = vst.msk [vmem:[#allocation4 + $0xf8] sm:$0xff] %vm3207, %v3174
      %v3240 = vrot.slane %v2455, 4
      %v3241 = vrot.slane %v2456, 4
      %v3242 = vsel %vm2756, %v3240, %v3241
      %v3243 = vrot.slane %v2457, 4
      %v3244 = vsel %vm2756, %v3241, %v3243
      %v3245 = vrot.slane %v2458, 4
      %v3246 = vrot.slane %v2459, 4
      %v3247 = vsel %vm2756, %v3245, %v3246
      %v3248 = vrot.slane %v2460, 4
      %v3249 = vsel %vm2756, %v3246, %v3248
      %3250 = vrot.lane.b32.xlu0 %v2769, 20
      %v3251 = vpop.permute.xlu0 %3250
      %3252 = vrot.lane.b32.xlu0 %v2771, 20
      %v3253 = vpop.permute.xlu0 %3252
      %3254 = vrot.lane.b32.xlu0 %v2774, 20
      %v3255 = vpop.permute.xlu0 %3254
      %3256 = vrot.lane.b32.xlu0 %v2776, 20
      %v3257 = vpop.permute.xlu0 %3256
      %3258 = vrot.lane.b32.xlu0 %v2779, 20
      %v3259 = vpop.permute.xlu0 %3258
      %3260 = vrot.lane.b32.xlu0 %v2781, 20
      %v3261 = vpop.permute.xlu0 %3260
      %3262 = vrot.lane.b32.xlu0 %v2784, 20
      %v3263 = vpop.permute.xlu0 %3262
      %3264 = vrot.lane.b32.xlu0 %v2786, 20
      %v3265 = vpop.permute.xlu0 %3264
      %3266 = vrot.lane.b32.xlu0 %v2789, 20
      %v3267 = vpop.permute.xlu0 %3266
      %3268 = vrot.lane.b32.xlu0 %v2791, 20
      %v3269 = vpop.permute.xlu0 %3268
      %3270 = vrot.lane.b32.xlu0 %v2794, 20
      %v3271 = vpop.permute.xlu0 %3270
      %3272 = vrot.lane.b32.xlu0 %v2796, 20
      %v3273 = vpop.permute.xlu0 %3272
      %3274 = vrot.lane.b32.xlu0 %v2799, 20
      %v3275 = vpop.permute.xlu0 %3274
      %3276 = vrot.lane.b32.xlu0 %v2801, 20
      %v3277 = vpop.permute.xlu0 %3276
      %3278 = vrot.lane.b32.xlu0 %v2804, 20
      %v3279 = vpop.permute.xlu0 %3278
      %3280 = vrot.lane.b32.xlu0 %v2806, 20
      %v3281 = vpop.permute.xlu0 %3280
      %3282 = vrot.lane.b32.xlu0 %v2809, 20
      %v3283 = vpop.permute.xlu0 %3282
      %3284 = vrot.lane.b32.xlu0 %v2811, 20
      %v3285 = vpop.permute.xlu0 %3284
      %3286 = vrot.lane.b32.xlu0 %v2814, 20
      %v3287 = vpop.permute.xlu0 %3286
      %3288 = vrot.lane.b32.xlu0 %v2816, 20
      %v3289 = vpop.permute.xlu0 %3288
      %3290 = vrot.lane.b32.xlu0 %v2819, 20
      %v3291 = vpop.permute.xlu0 %3290
      %3292 = vrot.lane.b32.xlu0 %v2821, 20
      %v3293 = vpop.permute.xlu0 %3292
      %3294 = vrot.lane.b32.xlu0 %v2824, 20
      %v3295 = vpop.permute.xlu0 %3294
      %3296 = vrot.lane.b32.xlu0 %v2826, 20
      %v3297 = vpop.permute.xlu0 %3296
      %3298 = vrot.lane.b32.xlu0 %v2829, 20
      %v3299 = vpop.permute.xlu0 %3298
      %3300 = vrot.lane.b32.xlu0 %v2831, 20
      %v3301 = vpop.permute.xlu0 %3300
      %3302 = vrot.lane.b32.xlu0 %v2834, 20
      %v3303 = vpop.permute.xlu0 %3302
      %3304 = vrot.lane.b32.xlu0 %v2836, 20
      %v3305 = vpop.permute.xlu0 %3304
      %3306 = vrot.lane.b32.xlu0 %v3242, 20
      %v3307 = vpop.permute.xlu0 %3306
      %3308 = vrot.lane.b32.xlu0 %v3244, 20
      %v3309 = vpop.permute.xlu0 %3308
      %3310 = vrot.lane.b32.xlu0 %v3247, 20
      %v3311 = vpop.permute.xlu0 %3310
      %3312 = vrot.lane.b32.xlu0 %v3249, 20
      %v3313 = vpop.permute.xlu0 %3312
      %vm3346 = vcmask 195744
      %3347 = vst.msk [vmem:[#allocation4] sm:$0xff] %vm3346, %v3251
      %3348 = vst.msk [vmem:[#allocation4 + $0x8] sm:$0xff] %vm3346, %v3253
      %3349 = vst.msk [vmem:[#allocation4 + $0x10] sm:$0xff] %vm3346, %v3255
      %3350 = vst.msk [vmem:[#allocation4 + $0x18] sm:$0xff] %vm3346, %v3257
      %3351 = vst.msk [vmem:[#allocation4 + $0x20] sm:$0xff] %vm3346, %v3259
      %3352 = vst.msk [vmem:[#allocation4 + $0x28] sm:$0xff] %vm3346, %v3261
      %3353 = vst.msk [vmem:[#allocation4 + $0x30] sm:$0xff] %vm3346, %v3263
      %3354 = vst.msk [vmem:[#allocation4 + $0x38] sm:$0xff] %vm3346, %v3265
      %3355 = vst.msk [vmem:[#allocation4 + $0x40] sm:$0xff] %vm3346, %v3267
      %3356 = vst.msk [vmem:[#allocation4 + $0x48] sm:$0xff] %vm3346, %v3269
      %3357 = vst.msk [vmem:[#allocation4 + $0x50] sm:$0xff] %vm3346, %v3271
      %3358 = vst.msk [vmem:[#allocation4 + $0x58] sm:$0xff] %vm3346, %v3273
      %3359 = vst.msk [vmem:[#allocation4 + $0x60] sm:$0xff] %vm3346, %v3275
      %3360 = vst.msk [vmem:[#allocation4 + $0x68] sm:$0xff] %vm3346, %v3277
      %3361 = vst.msk [vmem:[#allocation4 + $0x70] sm:$0xff] %vm3346, %v3279
      %3362 = vst.msk [vmem:[#allocation4 + $0x78] sm:$0xff] %vm3346, %v3281
      %3363 = vst.msk [vmem:[#allocation4 + $0x80] sm:$0xff] %vm3346, %v3283
      %3364 = vst.msk [vmem:[#allocation4 + $0x88] sm:$0xff] %vm3346, %v3285
      %3365 = vst.msk [vmem:[#allocation4 + $0x90] sm:$0xff] %vm3346, %v3287
      %3366 = vst.msk [vmem:[#allocation4 + $0x98] sm:$0xff] %vm3346, %v3289
      %3367 = vst.msk [vmem:[#allocation4 + $0xa0] sm:$0xff] %vm3346, %v3291
      %3368 = vst.msk [vmem:[#allocation4 + $0xa8] sm:$0xff] %vm3346, %v3293
      %3369 = vst.msk [vmem:[#allocation4 + $0xb0] sm:$0xff] %vm3346, %v3295
      %3370 = vst.msk [vmem:[#allocation4 + $0xb8] sm:$0xff] %vm3346, %v3297
      %3371 = vst.msk [vmem:[#allocation4 + $0xc0] sm:$0xff] %vm3346, %v3299
      %3372 = vst.msk [vmem:[#allocation4 + $0xc8] sm:$0xff] %vm3346, %v3301
      %3373 = vst.msk [vmem:[#allocation4 + $0xd0] sm:$0xff] %vm3346, %v3303
      %3374 = vst.msk [vmem:[#allocation4 + $0xd8] sm:$0xff] %vm3346, %v3305
      %3375 = vst.msk [vmem:[#allocation4 + $0xe0] sm:$0xff] %vm3346, %v3307
      %3376 = vst.msk [vmem:[#allocation4 + $0xe8] sm:$0xff] %vm3346, %v3309
      %3377 = vst.msk [vmem:[#allocation4 + $0xf0] sm:$0xff] %vm3346, %v3311
      %3378 = vst.msk [vmem:[#allocation4 + $0xf8] sm:$0xff] %vm3346, %v3313
      %3383 = vrot.lane.b32.xlu0 %v2419, 24
      %v3384 = vpop.permute.xlu0 %3383
      %3385 = vrot.lane.b32.xlu0 %v2420, 24
      %v3386 = vpop.permute.xlu0 %3385
      %3387 = vrot.lane.b32.xlu0 %v2422, 24
      %v3388 = vpop.permute.xlu0 %3387
      %3389 = vrot.lane.b32.xlu0 %v2423, 24
      %v3390 = vpop.permute.xlu0 %3389
      %3391 = vrot.lane.b32.xlu0 %v2425, 24
      %v3392 = vpop.permute.xlu0 %3391
      %3393 = vrot.lane.b32.xlu0 %v2426, 24
      %v3394 = vpop.permute.xlu0 %3393
      %3395 = vrot.lane.b32.xlu0 %v2428, 24
      %v3396 = vpop.permute.xlu0 %3395
      %3397 = vrot.lane.b32.xlu0 %v2429, 24
      %v3398 = vpop.permute.xlu0 %3397
      %3399 = vrot.lane.b32.xlu0 %v2431, 24
      %v3400 = vpop.permute.xlu0 %3399
      %3401 = vrot.lane.b32.xlu0 %v2432, 24
      %v3402 = vpop.permute.xlu0 %3401
      %3403 = vrot.lane.b32.xlu0 %v2434, 24
      %v3404 = vpop.permute.xlu0 %3403
      %3405 = vrot.lane.b32.xlu0 %v2435, 24
      %v3406 = vpop.permute.xlu0 %3405
      %3407 = vrot.lane.b32.xlu0 %v2437, 24
      %v3408 = vpop.permute.xlu0 %3407
      %3409 = vrot.lane.b32.xlu0 %v2438, 24
      %v3410 = vpop.permute.xlu0 %3409
      %3411 = vrot.lane.b32.xlu0 %v2440, 24
      %v3412 = vpop.permute.xlu0 %3411
      %3413 = vrot.lane.b32.xlu0 %v2441, 24
      %v3414 = vpop.permute.xlu0 %3413
      %3415 = vrot.lane.b32.xlu0 %v2443, 24
      %v3416 = vpop.permute.xlu0 %3415
      %3417 = vrot.lane.b32.xlu0 %v2444, 24
      %v3418 = vpop.permute.xlu0 %3417
      %3419 = vrot.lane.b32.xlu0 %v2446, 24
      %v3420 = vpop.permute.xlu0 %3419
      %3421 = vrot.lane.b32.xlu0 %v2447, 24
      %v3422 = vpop.permute.xlu0 %3421
      %3423 = vrot.lane.b32.xlu0 %v2449, 24
      %v3424 = vpop.permute.xlu0 %3423
      %3425 = vrot.lane.b32.xlu0 %v2450, 24
      %v3426 = vpop.permute.xlu0 %3425
      %3427 = vrot.lane.b32.xlu0 %v2452, 24
      %v3428 = vpop.permute.xlu0 %3427
      %3429 = vrot.lane.b32.xlu0 %v2453, 24
      %v3430 = vpop.permute.xlu0 %3429
      %3431 = vrot.lane.b32.xlu0 %v2455, 24
      %v3432 = vpop.permute.xlu0 %3431
      %3433 = vrot.lane.b32.xlu0 %v2456, 24
      %v3434 = vpop.permute.xlu0 %3433
      %3435 = vrot.lane.b32.xlu0 %v2458, 24
      %v3436 = vpop.permute.xlu0 %3435
      %3437 = vrot.lane.b32.xlu0 %v2459, 24
      %v3438 = vpop.permute.xlu0 %3437
      %3439 = vrot.lane.b32.xlu0 %v2461, 24
      %v3440 = vpop.permute.xlu0 %3439
      %3441 = vrot.lane.b32.xlu0 %v2462, 24
      %v3442 = vpop.permute.xlu0 %3441
      %3443 = vrot.lane.b32.xlu0 %v2464, 24
      %v3444 = vpop.permute.xlu0 %3443
      %3445 = vrot.lane.b32.xlu0 %v2465, 24
      %v3446 = vpop.permute.xlu0 %3445
      %vm3479 = vcmask 228544
      %3480 = vst.msk [vmem:[#allocation4] sm:$0xff] %vm3479, %v3384
      %3481 = vst.msk [vmem:[#allocation4 + $0x8] sm:$0xff] %vm3479, %v3386
      %3482 = vst.msk [vmem:[#allocation4 + $0x10] sm:$0xff] %vm3479, %v3388
      %3483 = vst.msk [vmem:[#allocation4 + $0x18] sm:$0xff] %vm3479, %v3390
      %3484 = vst.msk [vmem:[#allocation4 + $0x20] sm:$0xff] %vm3479, %v3392
      %3485 = vst.msk [vmem:[#allocation4 + $0x28] sm:$0xff] %vm3479, %v3394
      %3486 = vst.msk [vmem:[#allocation4 + $0x30] sm:$0xff] %vm3479, %v3396
      %3487 = vst.msk [vmem:[#allocation4 + $0x38] sm:$0xff] %vm3479, %v3398
      %3488 = vst.msk [vmem:[#allocation4 + $0x40] sm:$0xff] %vm3479, %v3400
      %3489 = vst.msk [vmem:[#allocation4 + $0x48] sm:$0xff] %vm3479, %v3402
      %3490 = vst.msk [vmem:[#allocation4 + $0x50] sm:$0xff] %vm3479, %v3404
      %3491 = vst.msk [vmem:[#allocation4 + $0x58] sm:$0xff] %vm3479, %v3406
      %3492 = vst.msk [vmem:[#allocation4 + $0x60] sm:$0xff] %vm3479, %v3408
      %3493 = vst.msk [vmem:[#allocation4 + $0x68] sm:$0xff] %vm3479, %v3410
      %3494 = vst.msk [vmem:[#allocation4 + $0x70] sm:$0xff] %vm3479, %v3412
      %3495 = vst.msk [vmem:[#allocation4 + $0x78] sm:$0xff] %vm3479, %v3414
      %3496 = vst.msk [vmem:[#allocation4 + $0x80] sm:$0xff] %vm3479, %v3416
      %3497 = vst.msk [vmem:[#allocation4 + $0x88] sm:$0xff] %vm3479, %v3418
      %3498 = vst.msk [vmem:[#allocation4 + $0x90] sm:$0xff] %vm3479, %v3420
      %3499 = vst.msk [vmem:[#allocation4 + $0x98] sm:$0xff] %vm3479, %v3422
      %3500 = vst.msk [vmem:[#allocation4 + $0xa0] sm:$0xff] %vm3479, %v3424
      %3501 = vst.msk [vmem:[#allocation4 + $0xa8] sm:$0xff] %vm3479, %v3426
      %3502 = vst.msk [vmem:[#allocation4 + $0xb0] sm:$0xff] %vm3479, %v3428
      %3503 = vst.msk [vmem:[#allocation4 + $0xb8] sm:$0xff] %vm3479, %v3430
      %3504 = vst.msk [vmem:[#allocation4 + $0xc0] sm:$0xff] %vm3479, %v3432
      %3505 = vst.msk [vmem:[#allocation4 + $0xc8] sm:$0xff] %vm3479, %v3434
      %3506 = vst.msk [vmem:[#allocation4 + $0xd0] sm:$0xff] %vm3479, %v3436
      %3507 = vst.msk [vmem:[#allocation4 + $0xd8] sm:$0xff] %vm3479, %v3438
      %3508 = vst.msk [vmem:[#allocation4 + $0xe0] sm:$0xff] %vm3479, %v3440
      %3509 = vst.msk [vmem:[#allocation4 + $0xe8] sm:$0xff] %vm3479, %v3442
      %3510 = vst.msk [vmem:[#allocation4 + $0xf0] sm:$0xff] %vm3479, %v3444
      %3511 = vst.msk [vmem:[#allocation4 + $0xf8] sm:$0xff] %vm3479, %v3446
      %v3514 = vrot.slane %v2461, 2
      %v3515 = vrot.slane %v2462, 2
      %v3516 = vsel %vm944, %v3514, %v3515
      %v3517 = vrot.slane %v2463, 2
      %v3518 = vsel %vm944, %v3515, %v3517
      %v3519 = vrot.slane %v2464, 2
      %v3520 = vrot.slane %v2465, 2
      %v3521 = vsel %vm944, %v3519, %v3520
      %v3522 = vrot.slane %v2466, 2
      %v3523 = vsel %vm944, %v3520, %v3522
      %3524 = vrot.lane.b32.xlu0 %v2569, 28
      %v3525 = vpop.permute.xlu0 %3524
      %3526 = vrot.lane.b32.xlu0 %v2571, 28
      %v3527 = vpop.permute.xlu0 %3526
      %3528 = vrot.lane.b32.xlu0 %v2574, 28
      %v3529 = vpop.permute.xlu0 %3528
      %3530 = vrot.lane.b32.xlu0 %v2576, 28
      %v3531 = vpop.permute.xlu0 %3530
      %3532 = vrot.lane.b32.xlu0 %v2579, 28
      %v3533 = vpop.permute.xlu0 %3532
      %3534 = vrot.lane.b32.xlu0 %v2581, 28
      %v3535 = vpop.permute.xlu0 %3534
      %3536 = vrot.lane.b32.xlu0 %v2584, 28
      %v3537 = vpop.permute.xlu0 %3536
      %3538 = vrot.lane.b32.xlu0 %v2586, 28
      %v3539 = vpop.permute.xlu0 %3538
      %3540 = vrot.lane.b32.xlu0 %v2589, 28
      %v3541 = vpop.permute.xlu0 %3540
      %3542 = vrot.lane.b32.xlu0 %v2591, 28
      %v3543 = vpop.permute.xlu0 %3542
      %3544 = vrot.lane.b32.xlu0 %v2594, 28
      %v3545 = vpop.permute.xlu0 %3544
      %3546 = vrot.lane.b32.xlu0 %v2596, 28
      %v3547 = vpop.permute.xlu0 %3546
      %3548 = vrot.lane.b32.xlu0 %v2599, 28
      %v3549 = vpop.permute.xlu0 %3548
      %3550 = vrot.lane.b32.xlu0 %v2601, 28
      %v3551 = vpop.permute.xlu0 %3550
      %3552 = vrot.lane.b32.xlu0 %v2604, 28
      %v3553 = vpop.permute.xlu0 %3552
      %3554 = vrot.lane.b32.xlu0 %v2606, 28
      %v3555 = vpop.permute.xlu0 %3554
      %3556 = vrot.lane.b32.xlu0 %v2609, 28
      %v3557 = vpop.permute.xlu0 %3556
      %3558 = vrot.lane.b32.xlu0 %v2611, 28
      %v3559 = vpop.permute.xlu0 %3558
      %3560 = vrot.lane.b32.xlu0 %v2614, 28
      %v3561 = vpop.permute.xlu0 %3560
      %3562 = vrot.lane.b32.xlu0 %v2616, 28
      %v3563 = vpop.permute.xlu0 %3562
      %3564 = vrot.lane.b32.xlu0 %v2619, 28
      %v3565 = vpop.permute.xlu0 %3564
      %3566 = vrot.lane.b32.xlu0 %v2621, 28
      %v3567 = vpop.permute.xlu0 %3566
      %3568 = vrot.lane.b32.xlu0 %v2624, 28
      %v3569 = vpop.permute.xlu0 %3568
      %3570 = vrot.lane.b32.xlu0 %v2626, 28
      %v3571 = vpop.permute.xlu0 %3570
      %3572 = vrot.lane.b32.xlu0 %v3103, 28
      %v3573 = vpop.permute.xlu0 %3572
      %3574 = vrot.lane.b32.xlu0 %v3105, 28
      %v3575 = vpop.permute.xlu0 %3574
      %3576 = vrot.lane.b32.xlu0 %v3108, 28
      %v3577 = vpop.permute.xlu0 %3576
      %3578 = vrot.lane.b32.xlu0 %v3110, 28
      %v3579 = vpop.permute.xlu0 %3578
      %3580 = vrot.lane.b32.xlu0 %v3516, 28
      %v3581 = vpop.permute.xlu0 %3580
      %3582 = vrot.lane.b32.xlu0 %v3518, 28
      %v3583 = vpop.permute.xlu0 %3582
      %3584 = vrot.lane.b32.xlu0 %v3521, 28
      %v3585 = vpop.permute.xlu0 %3584
      %3586 = vrot.lane.b32.xlu0 %v3523, 28
      %v3587 = vpop.permute.xlu0 %3586
      %vm3620 = vcmask 261344
      %3621 = vst.msk [vmem:[#allocation4] sm:$0xff] %vm3620, %v3525
      %3622 = vst.msk [vmem:[#allocation4 + $0x8] sm:$0xff] %vm3620, %v3527
      %3623 = vst.msk [vmem:[#allocation4 + $0x10] sm:$0xff] %vm3620, %v3529
      %3624 = vst.msk [vmem:[#allocation4 + $0x18] sm:$0xff] %vm3620, %v3531
      %3625 = vst.msk [vmem:[#allocation4 + $0x20] sm:$0xff] %vm3620, %v3533
      %3626 = vst.msk [vmem:[#allocation4 + $0x28] sm:$0xff] %vm3620, %v3535
      %3627 = vst.msk [vmem:[#allocation4 + $0x30] sm:$0xff] %vm3620, %v3537
      %3628 = vst.msk [vmem:[#allocation4 + $0x38] sm:$0xff] %vm3620, %v3539
      %3629 = vst.msk [vmem:[#allocation4 + $0x40] sm:$0xff] %vm3620, %v3541
      %3630 = vst.msk [vmem:[#allocation4 + $0x48] sm:$0xff] %vm3620, %v3543
      %3631 = vst.msk [vmem:[#allocation4 + $0x50] sm:$0xff] %vm3620, %v3545
      %3632 = vst.msk [vmem:[#allocation4 + $0x58] sm:$0xff] %vm3620, %v3547
      %3633 = vst.msk [vmem:[#allocation4 + $0x60] sm:$0xff] %vm3620, %v3549
      %3634 = vst.msk [vmem:[#allocation4 + $0x68] sm:$0xff] %vm3620, %v3551
      %3635 = vst.msk [vmem:[#allocation4 + $0x70] sm:$0xff] %vm3620, %v3553
      %3636 = vst.msk [vmem:[#allocation4 + $0x78] sm:$0xff] %vm3620, %v3555
      %3637 = vst.msk [vmem:[#allocation4 + $0x80] sm:$0xff] %vm3620, %v3557
      %3638 = vst.msk [vmem:[#allocation4 + $0x88] sm:$0xff] %vm3620, %v3559
      %3639 = vst.msk [vmem:[#allocation4 + $0x90] sm:$0xff] %vm3620, %v3561
      %3640 = vst.msk [vmem:[#allocation4 + $0x98] sm:$0xff] %vm3620, %v3563
      %3641 = vst.msk [vmem:[#allocation4 + $0xa0] sm:$0xff] %vm3620, %v3565
      %3642 = vst.msk [vmem:[#allocation4 + $0xa8] sm:$0xff] %vm3620, %v3567
      %3643 = vst.msk [vmem:[#allocation4 + $0xb0] sm:$0xff] %vm3620, %v3569
      %3644 = vst.msk [vmem:[#allocation4 + $0xb8] sm:$0xff] %vm3620, %v3571
      %3645 = vst.msk [vmem:[#allocation4 + $0xc0] sm:$0xff] %vm3620, %v3573
      %3646 = vst.msk [vmem:[#allocation4 + $0xc8] sm:$0xff] %vm3620, %v3575
      %3647 = vst.msk [vmem:[#allocation4 + $0xd0] sm:$0xff] %vm3620, %v3577
      %3648 = vst.msk [vmem:[#allocation4 + $0xd8] sm:$0xff] %vm3620, %v3579
      %3649 = vst.msk [vmem:[#allocation4 + $0xe0] sm:$0xff] %vm3620, %v3581
      %3650 = vst.msk [vmem:[#allocation4 + $0xe8] sm:$0xff] %vm3620, %v3583
      %3651 = vst.msk [vmem:[#allocation4 + $0xf0] sm:$0xff] %vm3620, %v3585
      %3652 = vst.msk [vmem:[#allocation4 + $0xf8] sm:$0xff] %vm3620, %v3587
      %v3653 = vrot.slane %v2461, 4
      %v3654 = vrot.slane %v2462, 4
      %v3655 = vsel %vm2756, %v3653, %v3654
      %v3656 = vrot.slane %v2463, 4
      %v3657 = vsel %vm2756, %v3654, %v3656
      %v3658 = vrot.slane %v2464, 4
      %v3659 = vrot.slane %v2465, 4
      %v3660 = vsel %vm2756, %v3658, %v3659
      %v3661 = vrot.slane %v2466, 4
      %v3662 = vsel %vm2756, %v3659, %v3661
      %3663 = vrot.lane.b32.xlu0 %v2779, 32
      %v3664 = vpop.permute.xlu0 %3663
      %3665 = vrot.lane.b32.xlu0 %v2781, 32
      %v3666 = vpop.permute.xlu0 %3665
      %3667 = vrot.lane.b32.xlu0 %v2784, 32
      %v3668 = vpop.permute.xlu0 %3667
      %3669 = vrot.lane.b32.xlu0 %v2786, 32
      %v3670 = vpop.permute.xlu0 %3669
      %3671 = vrot.lane.b32.xlu0 %v2789, 32
      %v3672 = vpop.permute.xlu0 %3671
      %3673 = vrot.lane.b32.xlu0 %v2791, 32
      %v3674 = vpop.permute.xlu0 %3673
      %3675 = vrot.lane.b32.xlu0 %v2794, 32
      %v3676 = vpop.permute.xlu0 %3675
      %3677 = vrot.lane.b32.xlu0 %v2796, 32
      %v3678 = vpop.permute.xlu0 %3677
      %3679 = vrot.lane.b32.xlu0 %v2799, 32
      %v3680 = vpop.permute.xlu0 %3679
      %3681 = vrot.lane.b32.xlu0 %v2801, 32
      %v3682 = vpop.permute.xlu0 %3681
      %3683 = vrot.lane.b32.xlu0 %v2804, 32
      %v3684 = vpop.permute.xlu0 %3683
      %3685 = vrot.lane.b32.xlu0 %v2806, 32
      %v3686 = vpop.permute.xlu0 %3685
      %3687 = vrot.lane.b32.xlu0 %v2809, 32
      %v3688 = vpop.permute.xlu0 %3687
      %3689 = vrot.lane.b32.xlu0 %v2811, 32
      %v3690 = vpop.permute.xlu0 %3689
      %3691 = vrot.lane.b32.xlu0 %v2814, 32
      %v3692 = vpop.permute.xlu0 %3691
      %3693 = vrot.lane.b32.xlu0 %v2816, 32
      %v3694 = vpop.permute.xlu0 %3693
      %3695 = vrot.lane.b32.xlu0 %v2819, 32
      %v3696 = vpop.permute.xlu0 %3695
      %3697 = vrot.lane.b32.xlu0 %v2821, 32
      %v3698 = vpop.permute.xlu0 %3697
      %3699 = vrot.lane.b32.xlu0 %v2824, 32
      %v3700 = vpop.permute.xlu0 %3699
      %3701 = vrot.lane.b32.xlu0 %v2826, 32
      %v3702 = vpop.permute.xlu0 %3701
      %3703 = vrot.lane.b32.xlu0 %v2829, 32
      %v3704 = vpop.permute.xlu0 %3703
      %3705 = vrot.lane.b32.xlu0 %v2831, 32
      %v3706 = vpop.permute.xlu0 %3705
      %3707 = vrot.lane.b32.xlu0 %v2834, 32
      %v3708 = vpop.permute.xlu0 %3707
      %3709 = vrot.lane.b32.xlu0 %v2836, 32
      %v3710 = vpop.permute.xlu0 %3709
      %3711 = vrot.lane.b32.xlu0 %v3242, 32
      %v3712 = vpop.permute.xlu0 %3711
      %3713 = vrot.lane.b32.xlu0 %v3244, 32
      %v3714 = vpop.permute.xlu0 %3713
      %3715 = vrot.lane.b32.xlu0 %v3247, 32
      %v3716 = vpop.permute.xlu0 %3715
      %3717 = vrot.lane.b32.xlu0 %v3249, 32
      %v3718 = vpop.permute.xlu0 %3717
      %3719 = vrot.lane.b32.xlu0 %v3655, 32
      %v3720 = vpop.permute.xlu0 %3719
      %3721 = vrot.lane.b32.xlu0 %v3657, 32
      %v3722 = vpop.permute.xlu0 %3721
      %3723 = vrot.lane.b32.xlu0 %v3660, 32
      %v3724 = vpop.permute.xlu0 %3723
      %3725 = vrot.lane.b32.xlu0 %v3662, 32
      %v3726 = vpop.permute.xlu0 %3725
      %vm3759 = vcmask 294144
      %3760 = vst.msk [vmem:[#allocation4] sm:$0xff] %vm3759, %v3664
      %3761 = vst.msk [vmem:[#allocation4 + $0x8] sm:$0xff] %vm3759, %v3666
      %3762 = vst.msk [vmem:[#allocation4 + $0x10] sm:$0xff] %vm3759, %v3668
      %3763 = vst.msk [vmem:[#allocation4 + $0x18] sm:$0xff] %vm3759, %v3670
      %3764 = vst.msk [vmem:[#allocation4 + $0x20] sm:$0xff] %vm3759, %v3672
      %3765 = vst.msk [vmem:[#allocation4 + $0x28] sm:$0xff] %vm3759, %v3674
      %3766 = vst.msk [vmem:[#allocation4 + $0x30] sm:$0xff] %vm3759, %v3676
      %3767 = vst.msk [vmem:[#allocation4 + $0x38] sm:$0xff] %vm3759, %v3678
      %3768 = vst.msk [vmem:[#allocation4 + $0x40] sm:$0xff] %vm3759, %v3680
      %3769 = vst.msk [vmem:[#allocation4 + $0x48] sm:$0xff] %vm3759, %v3682
      %3770 = vst.msk [vmem:[#allocation4 + $0x50] sm:$0xff] %vm3759, %v3684
      %3771 = vst.msk [vmem:[#allocation4 + $0x58] sm:$0xff] %vm3759, %v3686
      %3772 = vst.msk [vmem:[#allocation4 + $0x60] sm:$0xff] %vm3759, %v3688
      %3773 = vst.msk [vmem:[#allocation4 + $0x68] sm:$0xff] %vm3759, %v3690
      %3774 = vst.msk [vmem:[#allocation4 + $0x70] sm:$0xff] %vm3759, %v3692
      %3775 = vst.msk [vmem:[#allocation4 + $0x78] sm:$0xff] %vm3759, %v3694
      %3776 = vst.msk [vmem:[#allocation4 + $0x80] sm:$0xff] %vm3759, %v3696
      %3777 = vst.msk [vmem:[#allocation4 + $0x88] sm:$0xff] %vm3759, %v3698
      %3778 = vst.msk [vmem:[#allocation4 + $0x90] sm:$0xff] %vm3759, %v3700
      %3779 = vst.msk [vmem:[#allocation4 + $0x98] sm:$0xff] %vm3759, %v3702
      %3780 = vst.msk [vmem:[#allocation4 + $0xa0] sm:$0xff] %vm3759, %v3704
      %3781 = vst.msk [vmem:[#allocation4 + $0xa8] sm:$0xff] %vm3759, %v3706
      %3782 = vst.msk [vmem:[#allocation4 + $0xb0] sm:$0xff] %vm3759, %v3708
      %3783 = vst.msk [vmem:[#allocation4 + $0xb8] sm:$0xff] %vm3759, %v3710
      %3784 = vst.msk [vmem:[#allocation4 + $0xc0] sm:$0xff] %vm3759, %v3712
      %3785 = vst.msk [vmem:[#allocation4 + $0xc8] sm:$0xff] %vm3759, %v3714
      %3786 = vst.msk [vmem:[#allocation4 + $0xd0] sm:$0xff] %vm3759, %v3716
      %3787 = vst.msk [vmem:[#allocation4 + $0xd8] sm:$0xff] %vm3759, %v3718
      %3788 = vst.msk [vmem:[#allocation4 + $0xe0] sm:$0xff] %vm3759, %v3720
      %3789 = vst.msk [vmem:[#allocation4 + $0xe8] sm:$0xff] %vm3759, %v3722
      %3790 = vst.msk [vmem:[#allocation4 + $0xf0] sm:$0xff] %vm3759, %v3724
      %3791 = vst.msk [vmem:[#allocation4 + $0xf8] sm:$0xff] %vm3759, %v3726
      %v3792 = vld [vmem:[#allocation4] sm:$0xff]
      %v3793 = vld [vmem:[#allocation4 + $0x8] sm:$0xff]
      %v3794 = vld [vmem:[#allocation4 + $0x10] sm:$0xff]
      %v3795 = vld [vmem:[#allocation4 + $0x18] sm:$0xff]
      %v3796 = vld [vmem:[#allocation4 + $0x20] sm:$0xff]
      %v3797 = vld [vmem:[#allocation4 + $0x28] sm:$0xff]
      %v3798 = vld [vmem:[#allocation4 + $0x30] sm:$0xff]
      %v3799 = vld [vmem:[#allocation4 + $0x38] sm:$0xff]
      %v3800 = vld [vmem:[#allocation4 + $0x40] sm:$0xff]
      %v3801 = vld [vmem:[#allocation4 + $0x48] sm:$0xff]
      %v3802 = vld [vmem:[#allocation4 + $0x50] sm:$0xff]
      %v3803 = vld [vmem:[#allocation4 + $0x58] sm:$0xff]
      %v3804 = vld [vmem:[#allocation4 + $0x60] sm:$0xff]
      %v3805 = vld [vmem:[#allocation4 + $0x68] sm:$0xff]
      %v3806 = vld [vmem:[#allocation4 + $0x70] sm:$0xff]
      %v3807 = vld [vmem:[#allocation4 + $0x78] sm:$0xff]
      %v3808 = vld [vmem:[#allocation4 + $0x80] sm:$0xff]
      %v3809 = vld [vmem:[#allocation4 + $0x88] sm:$0xff]
      %v3810 = vld [vmem:[#allocation4 + $0x90] sm:$0xff]
      %v3811 = vld [vmem:[#allocation4 + $0x98] sm:$0xff]
      %v3812 = vld [vmem:[#allocation4 + $0xa0] sm:$0xff]
      %v3813 = vld [vmem:[#allocation4 + $0xa8] sm:$0xff]
      %v3814 = vld [vmem:[#allocation4 + $0xb0] sm:$0xff]
      %v3815 = vld [vmem:[#allocation4 + $0xb8] sm:$0xff]
      %v3816 = vld [vmem:[#allocation4 + $0xc0] sm:$0xff]
      %v3817 = vld [vmem:[#allocation4 + $0xc8] sm:$0xff]
      %v3818 = vld [vmem:[#allocation4 + $0xd0] sm:$0xff]
      %v3819 = vld [vmem:[#allocation4 + $0xd8] sm:$0xff]
      %v3820 = vld [vmem:[#allocation4 + $0xe0] sm:$0xff]
      %v3821 = vld [vmem:[#allocation4 + $0xe8] sm:$0xff]
      %v3822 = vld [vmem:[#allocation4 + $0xf0] sm:$0xff]
      %v3823 = vld [vmem:[#allocation4 + $0xf8] sm:$0xff]
      %v3824 = vld [vmem:[%s3] sm:$0xff]
      %v3825 = vld [vmem:[%s3 + $0x8] sm:$0xff]
      %v3826 = vld [vmem:[%s3 + $0x10] sm:$0xff]
      %v3827 = vld [vmem:[%s3 + $0x18] sm:$0xff]
      %v3828 = vld [vmem:[%s3 + $0x20] sm:$0xf]
      %vm3829 = vcmask 293888
      %v3831 = vsel %vm3829, %v3792, 0
      %v3834 = vsel %vm3829, %v3793, 0
      %v3837 = vsel %vm3829, %v3794, 0
      %v3840 = vsel %vm3829, %v3795, 0
      %v3843 = vsel %vm3829, %v3796, 0
      %v3846 = vsel %vm3829, %v3797, 0
      %v3849 = vsel %vm3829, %v3798, 0
      %v3852 = vsel %vm3829, %v3799, 0
      %v3855 = vsel %vm3829, %v3800, 0
      %v3858 = vsel %vm3829, %v3801, 0
      %v3861 = vsel %vm3829, %v3802, 0
      %v3864 = vsel %vm3829, %v3803, 0
      %v3867 = vsel %vm3829, %v3804, 0
      %v3870 = vsel %vm3829, %v3805, 0
      %v3873 = vsel %vm3829, %v3806, 0
      %v3876 = vsel %vm3829, %v3807, 0
      %v3879 = vsel %vm3829, %v3808, 0
      %v3882 = vsel %vm3829, %v3809, 0
      %v3885 = vsel %vm3829, %v3810, 0
      %v3888 = vsel %vm3829, %v3811, 0
      %v3891 = vsel %vm3829, %v3812, 0
      %v3894 = vsel %vm3829, %v3813, 0
      %v3897 = vsel %vm3829, %v3814, 0
      %v3900 = vsel %vm3829, %v3815, 0
      %v3903 = vsel %vm3829, %v3816, 0
      %v3906 = vsel %vm3829, %v3817, 0
      %v3909 = vsel %vm3829, %v3818, 0
      %v3912 = vsel %vm3829, %v3819, 0
      %v3915 = vsel %vm3829, %v3820, 0
      %v3918 = vsel %vm3829, %v3821, 0
      %v3921 = vsel %vm3829, %v3822, 0
      %v3924 = vsel %vm3829, %v3823, 0
      %v3927 = vsel %vm2756, %v3828, 0
      %3929 = vmatprep.subr.mxu0 0.0
      %3930 = vmatpush1.msra.mxu0 %v3824
      %3931 = vmatprep.subr.mxu0 0.0
      %3932 = vmatpush1.msra.mxu0 %v3825
      %3933 = vmatprep.subr.mxu0 0.0
      %3934 = vmatpush1.msra.mxu0 %v3826
      %3935 = vmatprep.subr.mxu0 0.0
      %3936 = vmatpush1.msra.mxu0 %v3827
      %3937 = vmatprep.subr.mxu0 0.0
      %3938 = vmatpush1.msra.mxu0 %v3927
      %3939 = vmatprep.subr.mxu0 0.0
      %3940 = vmatpush1.msra.mxu0 0.0
      %3941 = vmatprep.subr.mxu0 0.0
      %3942 = vmatpush1.msra.mxu0 0.0
      %3943 = vmatprep.subr.mxu0 0.0
      %3944 = vmatpush1.msra.mxu0 0.0
      %3945 = vmatprep.subr.mxu0 0.0
      %3946 = vmatpush1.msra.mxu0 0.0
      %3947 = vmatprep.subr.mxu0 0.0
      %3948 = vmatpush1.msra.mxu0 0.0
      %3949 = vmatprep.subr.mxu0 0.0
      %3950 = vmatpush1.msra.mxu0 0.0
      %3951 = vmatprep.subr.mxu0 0.0
      %3952 = vmatpush1.msra.mxu0 0.0
      %3953 = vmatprep.subr.mxu0 0.0
      %3954 = vmatpush1.msra.mxu0 0.0
      %3955 = vmatprep.subr.mxu0 0.0
      %3956 = vmatpush1.msra.mxu0 0.0
      %3957 = vmatprep.subr.mxu0 0.0
      %3958 = vmatpush1.msra.mxu0 0.0
      %3959 = vmatprep.subr.mxu0 0.0
      %3960 = vmatpush1.msra.mxu0 0.0
      %3961 = vmatprep.subr.mxu0 0.0
      %3962 = vmatpush1.msra.mxu0 0.0
      %3963 = vmatprep.subr.mxu0 0.0
      %3964 = vmatpush1.msra.mxu0 0.0
      %3965 = vmatprep.subr.mxu0 0.0
      %3966 = vmatpush1.msra.mxu0 0.0
      %3967 = vmatprep.subr.mxu0 0.0
      %3968 = vmatpush1.msra.mxu0 0.0
      %3969 = vmatprep.subr.mxu0 0.0
      %3970 = vmatpush1.msra.mxu0 0.0
      %3971 = vmatprep.subr.mxu0 0.0
      %3972 = vmatpush1.msra.mxu0 0.0
      %3973 = vmatprep.subr.mxu0 0.0
      %3974 = vmatpush1.msra.mxu0 0.0
      %3975 = vmatprep.subr.mxu0 0.0
      %3976 = vmatpush1.msra.mxu0 0.0
      %3977 = vmatprep.subr.mxu0 0.0
      %3978 = vmatpush1.msra.mxu0 0.0
      %3979 = vmatprep.subr.mxu0 0.0
      %3980 = vmatpush1.msra.mxu0 0.0
      %3981 = vmatprep.subr.mxu0 0.0
      %3982 = vmatpush1.msra.mxu0 0.0
      %3983 = vmatprep.subr.mxu0 0.0
      %3984 = vmatpush1.msra.mxu0 0.0
      %3985 = vmatprep.subr.mxu0 0.0
      %3986 = vmatpush1.msra.mxu0 0.0
      %3987 = vmatprep.subr.mxu0 0.0
      %3988 = vmatpush1.msra.mxu0 0.0
      %3989 = vmatprep.subr.mxu0 0.0
      %3990 = vmatpush1.msra.mxu0 0.0
      %3991 = vmatprep.subr.mxu0 0.0
      %3992 = vmatpush1.msra.mxu0 0.0
      %3993 = vmatprep.mubr.f32.mxu0 0.0
      %3994 = vmatmul.mubr.f32.gmra.mrb[0].mxu0 %v3831
      %v3995 = vpop.f32.mrb[0].mxu0
      %v3996 = vadd.f32 0.0, %v3995
      %v3997 = vpop.f32.mrb[0].mxu0
      %3998 = vmatprep.mubr.f32.mxu0 0.0
      %3999 = vmatmul.mubr.f32.gmra.mrb[0].mxu0 %v3834
      %v4000 = vpop.f32.mrb[0].mxu0
      %v4001 = vadd.f32 0.0, %v4000
      %v4002 = vpop.f32.mrb[0].mxu0
      %4003 = vmatprep.mubr.f32.mxu0 0.0
      %4004 = vmatmul.mubr.f32.gmra.mrb[0].mxu0 %v3837
      %v4005 = vpop.f32.mrb[0].mxu0
      %v4006 = vadd.f32 0.0, %v4005
      %v4007 = vpop.f32.mrb[0].mxu0
      %4008 = vmatprep.mubr.f32.mxu0 0.0
      %4009 = vmatmul.mubr.f32.gmra.mrb[0].mxu0 %v3840
      %v4010 = vpop.f32.mrb[0].mxu0
      %v4011 = vadd.f32 0.0, %v4010
      %v4012 = vpop.f32.mrb[0].mxu0
      %4013 = vmatprep.mubr.f32.mxu0 0.0
      %4014 = vmatmul.mubr.f32.gmra.mrb[0].mxu0 %v3843
      %v4015 = vpop.f32.mrb[0].mxu0
      %v4016 = vadd.f32 0.0, %v4015
      %v4017 = vpop.f32.mrb[0].mxu0
      %4018 = vmatprep.mubr.f32.mxu0 0.0
      %4019 = vmatmul.mubr.f32.gmra.mrb[0].mxu0 %v3846
      %v4020 = vpop.f32.mrb[0].mxu0
      %v4021 = vadd.f32 0.0, %v4020
      %v4022 = vpop.f32.mrb[0].mxu0
      %4023 = vmatprep.mubr.f32.mxu0 0.0
      %4024 = vmatmul.mubr.f32.gmra.mrb[0].mxu0 %v3849
      %v4025 = vpop.f32.mrb[0].mxu0
      %v4026 = vadd.f32 0.0, %v4025
      %v4027 = vpop.f32.mrb[0].mxu0
      %4028 = vmatprep.mubr.f32.mxu0 0.0
      %4029 = vmatmul.mubr.f32.gmra.mrb[0].mxu0 %v3852
      %v4030 = vpop.f32.mrb[0].mxu0
      %v4031 = vadd.f32 0.0, %v4030
      %v4032 = vpop.f32.mrb[0].mxu0
      %4033 = vmatprep.mubr.f32.mxu0 0.0
      %4034 = vmatmul.mubr.f32.gmra.mrb[0].mxu0 %v3855
      %v4035 = vpop.f32.mrb[0].mxu0
      %v4036 = vadd.f32 0.0, %v4035
      %v4037 = vpop.f32.mrb[0].mxu0
      %4038 = vmatprep.mubr.f32.mxu0 0.0
      %4039 = vmatmul.mubr.f32.gmra.mrb[0].mxu0 %v3858
      %v4040 = vpop.f32.mrb[0].mxu0
      %v4041 = vadd.f32 0.0, %v4040
      %v4042 = vpop.f32.mrb[0].mxu0
      %4043 = vmatprep.mubr.f32.mxu0 0.0
      %4044 = vmatmul.mubr.f32.gmra.mrb[0].mxu0 %v3861
      %v4045 = vpop.f32.mrb[0].mxu0
      %v4046 = vadd.f32 0.0, %v4045
      %v4047 = vpop.f32.mrb[0].mxu0
      %4048 = vmatprep.mubr.f32.mxu0 0.0
      %4049 = vmatmul.mubr.f32.gmra.mrb[0].mxu0 %v3864
      %v4050 = vpop.f32.mrb[0].mxu0
      %v4051 = vadd.f32 0.0, %v4050
      %v4052 = vpop.f32.mrb[0].mxu0
      %4053 = vmatprep.mubr.f32.mxu0 0.0
      %4054 = vmatmul.mubr.f32.gmra.mrb[0].mxu0 %v3867
      %v4055 = vpop.f32.mrb[0].mxu0
      %v4056 = vadd.f32 0.0, %v4055
      %v4057 = vpop.f32.mrb[0].mxu0
      %4058 = vmatprep.mubr.f32.mxu0 0.0
      %4059 = vmatmul.mubr.f32.gmra.mrb[0].mxu0 %v3870
      %v4060 = vpop.f32.mrb[0].mxu0
      %v4061 = vadd.f32 0.0, %v4060
      %v4062 = vpop.f32.mrb[0].mxu0
      %4063 = vmatprep.mubr.f32.mxu0 0.0
      %4064 = vmatmul.mubr.f32.gmra.mrb[0].mxu0 %v3873
      %v4065 = vpop.f32.mrb[0].mxu0
      %v4066 = vadd.f32 0.0, %v4065
      %v4067 = vpop.f32.mrb[0].mxu0
      %4068 = vmatprep.mubr.f32.mxu0 0.0
      %4069 = vmatmul.mubr.f32.gmra.mrb[0].mxu0 %v3876
      %v4070 = vpop.f32.mrb[0].mxu0
      %v4071 = vadd.f32 0.0, %v4070
      %v4072 = vpop.f32.mrb[0].mxu0
      %4073 = vmatprep.mubr.f32.mxu0 0.0
      %4074 = vmatmul.mubr.f32.gmra.mrb[0].mxu0 %v3879
      %v4075 = vpop.f32.mrb[0].mxu0
      %v4076 = vadd.f32 0.0, %v4075
      %v4077 = vpop.f32.mrb[0].mxu0
      %4078 = vmatprep.mubr.f32.mxu0 0.0
      %4079 = vmatmul.mubr.f32.gmra.mrb[0].mxu0 %v3882
      %v4080 = vpop.f32.mrb[0].mxu0
      %v4081 = vadd.f32 0.0, %v4080
      %v4082 = vpop.f32.mrb[0].mxu0
      %4083 = vmatprep.mubr.f32.mxu0 0.0
      %4084 = vmatmul.mubr.f32.gmra.mrb[0].mxu0 %v3885
      %v4085 = vpop.f32.mrb[0].mxu0
      %v4086 = vadd.f32 0.0, %v4085
      %v4087 = vpop.f32.mrb[0].mxu0
      %4088 = vmatprep.mubr.f32.mxu0 0.0
      %4089 = vmatmul.mubr.f32.gmra.mrb[0].mxu0 %v3888
      %v4090 = vpop.f32.mrb[0].mxu0
      %v4091 = vadd.f32 0.0, %v4090
      %v4092 = vpop.f32.mrb[0].mxu0
      %4093 = vmatprep.mubr.f32.mxu0 0.0
      %4094 = vmatmul.mubr.f32.gmra.mrb[0].mxu0 %v3891
      %v4095 = vpop.f32.mrb[0].mxu0
      %v4096 = vadd.f32 0.0, %v4095
      %v4097 = vpop.f32.mrb[0].mxu0
      %4098 = vmatprep.mubr.f32.mxu0 0.0
      %4099 = vmatmul.mubr.f32.gmra.mrb[0].mxu0 %v3894
      %v4100 = vpop.f32.mrb[0].mxu0
      %v4101 = vadd.f32 0.0, %v4100
      %v4102 = vpop.f32.mrb[0].mxu0
      %4103 = vmatprep.mubr.f32.mxu0 0.0
      %4104 = vmatmul.mubr.f32.gmra.mrb[0].mxu0 %v3897
      %v4105 = vpop.f32.mrb[0].mxu0
      %v4106 = vadd.f32 0.0, %v4105
      %v4107 = vpop.f32.mrb[0].mxu0
      %4108 = vmatprep.mubr.f32.mxu0 0.0
      %4109 = vmatmul.mubr.f32.gmra.mrb[0].mxu0 %v3900
      %v4110 = vpop.f32.mrb[0].mxu0
      %v4111 = vadd.f32 0.0, %v4110
      %v4112 = vpop.f32.mrb[0].mxu0
      %4113 = vmatprep.mubr.f32.mxu0 0.0
      %4114 = vmatmul.mubr.f32.gmra.mrb[0].mxu0 %v3903
      %v4115 = vpop.f32.mrb[0].mxu0
      %v4116 = vadd.f32 0.0, %v4115
      %v4117 = vpop.f32.mrb[0].mxu0
      %4118 = vmatprep.mubr.f32.mxu0 0.0
      %4119 = vmatmul.mubr.f32.gmra.mrb[0].mxu0 %v3906
      %v4120 = vpop.f32.mrb[0].mxu0
      %v4121 = vadd.f32 0.0, %v4120
      %v4122 = vpop.f32.mrb[0].mxu0
      %4123 = vmatprep.mubr.f32.mxu0 0.0
      %4124 = vmatmul.mubr.f32.gmra.mrb[0].mxu0 %v3909
      %v4125 = vpop.f32.mrb[0].mxu0
      %v4126 = vadd.f32 0.0, %v4125
      %v4127 = vpop.f32.mrb[0].mxu0
      %4128 = vmatprep.mubr.f32.mxu0 0.0
      %4129 = vmatmul.mubr.f32.gmra.mrb[0].mxu0 %v3912
      %v4130 = vpop.f32.mrb[0].mxu0
      %v4131 = vadd.f32 0.0, %v4130
      %v4132 = vpop.f32.mrb[0].mxu0
      %4133 = vmatprep.mubr.f32.mxu0 0.0
      %4134 = vmatmul.mubr.f32.gmra.mrb[0].mxu0 %v3915
      %v4135 = vpop.f32.mrb[0].mxu0
      %v4136 = vadd.f32 0.0, %v4135
      %v4137 = vpop.f32.mrb[0].mxu0
      %4138 = vmatprep.mubr.f32.mxu0 0.0
      %4139 = vmatmul.mubr.f32.gmra.mrb[0].mxu0 %v3918
      %v4140 = vpop.f32.mrb[0].mxu0
      %v4141 = vadd.f32 0.0, %v4140
      %v4142 = vpop.f32.mrb[0].mxu0
      %4143 = vmatprep.mubr.f32.mxu0 0.0
      %4144 = vmatmul.mubr.f32.gmra.mrb[0].mxu0 %v3921
      %v4145 = vpop.f32.mrb[0].mxu0
      %v4146 = vadd.f32 0.0, %v4145
      %v4147 = vpop.f32.mrb[0].mxu0
      %4148 = vmatprep.mubr.f32.mxu0 0.0
      %4149 = vmatmul.mubr.f32.gmra.mrb[0].mxu0 %v3924
      %v4150 = vpop.f32.mrb[0].mxu0
      %v4151 = vadd.f32 0.0, %v4150
      %v4152 = vpop.f32.mrb[0].mxu0
      %4153 = vdwg.mxu0
      %v4154 = vld [vmem:[%s8 + $0x2] sm:$0x1]
      %v4155 = vlaneseq
      %v4156 = vshrl.u32 %v4155, 7
      %v4157 = vsub.s32 0, %v4156
      %v4158 = vrot.slane %v4154, %v4157
      %v4159 = vmul.f32 %v3996, %v4158
      %v4160 = vmul.f32 %v4001, %v4158
      %v4161 = vmul.f32 %v4006, %v4158
      %v4162 = vmul.f32 %v4011, %v4158
      %v4163 = vmul.f32 %v4016, %v4158
      %v4164 = vmul.f32 %v4021, %v4158
      %v4165 = vmul.f32 %v4026, %v4158
      %v4166 = vmul.f32 %v4031, %v4158
      %v4167 = vmul.f32 %v4036, %v4158
      %v4168 = vmul.f32 %v4041, %v4158
      %v4169 = vmul.f32 %v4046, %v4158
      %v4170 = vmul.f32 %v4051, %v4158
      %v4171 = vmul.f32 %v4056, %v4158
      %v4172 = vmul.f32 %v4061, %v4158
      %v4173 = vmul.f32 %v4066, %v4158
      %v4174 = vmul.f32 %v4071, %v4158
      %v4175 = vmul.f32 %v4076, %v4158
      %v4176 = vmul.f32 %v4081, %v4158
      %v4177 = vmul.f32 %v4086, %v4158
      %v4178 = vmul.f32 %v4091, %v4158
      %v4179 = vmul.f32 %v4096, %v4158
      %v4180 = vmul.f32 %v4101, %v4158
      %v4181 = vmul.f32 %v4106, %v4158
      %v4182 = vmul.f32 %v4111, %v4158
      %v4183 = vmul.f32 %v4116, %v4158
      %v4184 = vmul.f32 %v4121, %v4158
      %v4185 = vmul.f32 %v4126, %v4158
      %v4186 = vmul.f32 %v4131, %v4158
      %v4187 = vmul.f32 %v4136, %v4158
      %v4188 = vmul.f32 %v4141, %v4158
      %v4189 = vmul.f32 %v4146, %v4158
      %v4190 = vmul.f32 %v4151, %v4158
      %v4191 = vld [vmem:[%s8 + $0x3] sm:$0x1]
      %v4192 = vlaneseq
      %v4193 = vshrl.u32 %v4192, 7
      %v4194 = vsub.s32 0, %v4193
      %v4195 = vrot.slane %v4191, %v4194
      %v4196 = vadd.f32 %v4159, %v4195
      %v4197 = vadd.f32 %v4160, %v4195
      %v4198 = vadd.f32 %v4161, %v4195
      %v4199 = vadd.f32 %v4162, %v4195
      %v4200 = vadd.f32 %v4163, %v4195
      %v4201 = vadd.f32 %v4164, %v4195
      %v4202 = vadd.f32 %v4165, %v4195
      %v4203 = vadd.f32 %v4166, %v4195
      %v4204 = vadd.f32 %v4167, %v4195
      %v4205 = vadd.f32 %v4168, %v4195
      %v4206 = vadd.f32 %v4169, %v4195
      %v4207 = vadd.f32 %v4170, %v4195
      %v4208 = vadd.f32 %v4171, %v4195
      %v4209 = vadd.f32 %v4172, %v4195
      %v4210 = vadd.f32 %v4173, %v4195
      %v4211 = vadd.f32 %v4174, %v4195
      %v4212 = vadd.f32 %v4175, %v4195
      %v4213 = vadd.f32 %v4176, %v4195
      %v4214 = vadd.f32 %v4177, %v4195
      %v4215 = vadd.f32 %v4178, %v4195
      %v4216 = vadd.f32 %v4179, %v4195
      %v4217 = vadd.f32 %v4180, %v4195
      %v4218 = vadd.f32 %v4181, %v4195
      %v4219 = vadd.f32 %v4182, %v4195
      %v4220 = vadd.f32 %v4183, %v4195
      %v4221 = vadd.f32 %v4184, %v4195
      %v4222 = vadd.f32 %v4185, %v4195
      %v4223 = vadd.f32 %v4186, %v4195
      %v4224 = vadd.f32 %v4187, %v4195
      %v4225 = vadd.f32 %v4188, %v4195
      %v4226 = vadd.f32 %v4189, %v4195
      %v4227 = vadd.f32 %v4190, %v4195
      %v4228 = vmax.f32 %v4196, 0.0
      %v4229 = vmax.f32 %v4197, 0.0
      %v4230 = vmax.f32 %v4198, 0.0
      %v4231 = vmax.f32 %v4199, 0.0
      %v4232 = vmax.f32 %v4200, 0.0
      %v4233 = vmax.f32 %v4201, 0.0
      %v4234 = vmax.f32 %v4202, 0.0
      %v4235 = vmax.f32 %v4203, 0.0
      %v4236 = vmax.f32 %v4204, 0.0
      %v4237 = vmax.f32 %v4205, 0.0
      %v4238 = vmax.f32 %v4206, 0.0
      %v4239 = vmax.f32 %v4207, 0.0
      %v4240 = vmax.f32 %v4208, 0.0
      %v4241 = vmax.f32 %v4209, 0.0
      %v4242 = vmax.f32 %v4210, 0.0
      %v4243 = vmax.f32 %v4211, 0.0
      %v4244 = vmax.f32 %v4212, 0.0
      %v4245 = vmax.f32 %v4213, 0.0
      %v4246 = vmax.f32 %v4214, 0.0
      %v4247 = vmax.f32 %v4215, 0.0
      %v4248 = vmax.f32 %v4216, 0.0
      %v4249 = vmax.f32 %v4217, 0.0
      %v4250 = vmax.f32 %v4218, 0.0
      %v4251 = vmax.f32 %v4219, 0.0
      %v4252 = vmax.f32 %v4220, 0.0
      %v4253 = vmax.f32 %v4221, 0.0
      %v4254 = vmax.f32 %v4222, 0.0
      %v4255 = vmax.f32 %v4223, 0.0
      %v4256 = vmax.f32 %v4224, 0.0
      %v4257 = vmax.f32 %v4225, 0.0
      %v4258 = vmax.f32 %v4226, 0.0
      %v4259 = vmax.f32 %v4227, 0.0
      %v4260 = vld [vmem:[%s4] sm:$0xf]
      %v4262 = vsel %vm417, %v4228, 0
      %v4265 = vsel %vm417, %v4229, 0
      %v4268 = vsel %vm417, %v4230, 0
      %v4271 = vsel %vm417, %v4231, 0
      %v4274 = vsel %vm417, %v4232, 0
      %v4277 = vsel %vm417, %v4233, 0
      %v4280 = vsel %vm417, %v4234, 0
      %v4283 = vsel %vm417, %v4235, 0
      %v4286 = vsel %vm417, %v4236, 0
      %v4289 = vsel %vm417, %v4237, 0
      %v4292 = vsel %vm417, %v4238, 0
      %v4295 = vsel %vm417, %v4239, 0
      %v4298 = vsel %vm417, %v4240, 0
      %v4301 = vsel %vm417, %v4241, 0
      %v4304 = vsel %vm417, %v4242, 0
      %v4307 = vsel %vm417, %v4243, 0
      %v4310 = vsel %vm417, %v4244, 0
      %v4313 = vsel %vm417, %v4245, 0
      %v4316 = vsel %vm417, %v4246, 0
      %v4319 = vsel %vm417, %v4247, 0
      %v4322 = vsel %vm417, %v4248, 0
      %v4325 = vsel %vm417, %v4249, 0
      %v4328 = vsel %vm417, %v4250, 0
      %v4331 = vsel %vm417, %v4251, 0
      %v4334 = vsel %vm417, %v4252, 0
      %v4337 = vsel %vm417, %v4253, 0
      %v4340 = vsel %vm417, %v4254, 0
      %v4343 = vsel %vm417, %v4255, 0
      %v4346 = vsel %vm417, %v4256, 0
      %v4349 = vsel %vm417, %v4257, 0
      %v4352 = vsel %vm417, %v4258, 0
      %v4355 = vsel %vm417, %v4259, 0
      %v4358 = vsel %vm2756, %v4260, 0
      %4360 = vmatprep.subr.mxu0 0.0
      %4361 = vmatpush1.msra.mxu0 %v4358
      %4362 = vmatprep.subr.mxu0 0.0
      %4363 = vmatpush1.msra.mxu0 0.0
      %4364 = vmatprep.subr.mxu0 0.0
      %4365 = vmatpush1.msra.mxu0 0.0
      %4366 = vmatprep.subr.mxu0 0.0
      %4367 = vmatpush1.msra.mxu0 0.0
      %4368 = vmatprep.subr.mxu0 0.0
      %4369 = vmatpush1.msra.mxu0 0.0
      %4370 = vmatprep.subr.mxu0 0.0
      %4371 = vmatpush1.msra.mxu0 0.0
      %4372 = vmatprep.subr.mxu0 0.0
      %4373 = vmatpush1.msra.mxu0 0.0
      %4374 = vmatprep.subr.mxu0 0.0
      %4375 = vmatpush1.msra.mxu0 0.0
      %4376 = vmatprep.subr.mxu0 0.0
      %4377 = vmatpush1.msra.mxu0 0.0
      %4378 = vmatprep.subr.mxu0 0.0
      %4379 = vmatpush1.msra.mxu0 0.0
      %4380 = vmatprep.subr.mxu0 0.0
      %4381 = vmatpush1.msra.mxu0 0.0
      %4382 = vmatprep.subr.mxu0 0.0
      %4383 = vmatpush1.msra.mxu0 0.0
      %4384 = vmatprep.subr.mxu0 0.0
      %4385 = vmatpush1.msra.mxu0 0.0
      %4386 = vmatprep.subr.mxu0 0.0
      %4387 = vmatpush1.msra.mxu0 0.0
      %4388 = vmatprep.subr.mxu0 0.0
      %4389 = vmatpush1.msra.mxu0 0.0
      %4390 = vmatprep.subr.mxu0 0.0
      %4391 = vmatpush1.msra.mxu0 0.0
      %4392 = vmatprep.subr.mxu0 0.0
      %4393 = vmatpush1.msra.mxu0 0.0
      %4394 = vmatprep.subr.mxu0 0.0
      %4395 = vmatpush1.msra.mxu0 0.0
      %4396 = vmatprep.subr.mxu0 0.0
      %4397 = vmatpush1.msra.mxu0 0.0
      %4398 = vmatprep.subr.mxu0 0.0
      %4399 = vmatpush1.msra.mxu0 0.0
      %4400 = vmatprep.subr.mxu0 0.0
      %4401 = vmatpush1.msra.mxu0 0.0
      %4402 = vmatprep.subr.mxu0 0.0
      %4403 = vmatpush1.msra.mxu0 0.0
      %4404 = vmatprep.subr.mxu0 0.0
      %4405 = vmatpush1.msra.mxu0 0.0
      %4406 = vmatprep.subr.mxu0 0.0
      %4407 = vmatpush1.msra.mxu0 0.0
      %4408 = vmatprep.subr.mxu0 0.0
      %4409 = vmatpush1.msra.mxu0 0.0
      %4410 = vmatprep.subr.mxu0 0.0
      %4411 = vmatpush1.msra.mxu0 0.0
      %4412 = vmatprep.subr.mxu0 0.0
      %4413 = vmatpush1.msra.mxu0 0.0
      %4414 = vmatprep.subr.mxu0 0.0
      %4415 = vmatpush1.msra.mxu0 0.0
      %4416 = vmatprep.subr.mxu0 0.0
      %4417 = vmatpush1.msra.mxu0 0.0
      %4418 = vmatprep.subr.mxu0 0.0
      %4419 = vmatpush1.msra.mxu0 0.0
      %4420 = vmatprep.subr.mxu0 0.0
      %4421 = vmatpush1.msra.mxu0 0.0
      %4422 = vmatprep.subr.mxu0 0.0
      %4423 = vmatpush1.msra.mxu0 0.0
      %4424 = vmatprep.mubr.f32.mxu0 0.0
      %4425 = vmatmul.mubr.f32.gmra.mrb[0].mxu0 %v4262
      %v4426 = vpop.f32.mrb[0].mxu0
      %v4427 = vadd.f32 0.0, %v4426
      %v4428 = vpop.f32.mrb[0].mxu0
      %4429 = vmatprep.mubr.f32.mxu0 0.0
      %4430 = vmatmul.mubr.f32.gmra.mrb[0].mxu0 %v4265
      %v4431 = vpop.f32.mrb[0].mxu0
      %v4432 = vadd.f32 0.0, %v4431
      %v4433 = vpop.f32.mrb[0].mxu0
      %4434 = vmatprep.mubr.f32.mxu0 0.0
      %4435 = vmatmul.mubr.f32.gmra.mrb[0].mxu0 %v4268
      %v4436 = vpop.f32.mrb[0].mxu0
      %v4437 = vadd.f32 0.0, %v4436
      %v4438 = vpop.f32.mrb[0].mxu0
      %4439 = vmatprep.mubr.f32.mxu0 0.0
      %4440 = vmatmul.mubr.f32.gmra.mrb[0].mxu0 %v4271
      %v4441 = vpop.f32.mrb[0].mxu0
      %v4442 = vadd.f32 0.0, %v4441
      %v4443 = vpop.f32.mrb[0].mxu0
      %4444 = vmatprep.mubr.f32.mxu0 0.0
      %4445 = vmatmul.mubr.f32.gmra.mrb[0].mxu0 %v4274
      %v4446 = vpop.f32.mrb[0].mxu0
      %v4447 = vadd.f32 0.0, %v4446
      %v4448 = vpop.f32.mrb[0].mxu0
      %4449 = vmatprep.mubr.f32.mxu0 0.0
      %4450 = vmatmul.mubr.f32.gmra.mrb[0].mxu0 %v4277
      %v4451 = vpop.f32.mrb[0].mxu0
      %v4452 = vadd.f32 0.0, %v4451
      %v4453 = vpop.f32.mrb[0].mxu0
      %4454 = vmatprep.mubr.f32.mxu0 0.0
      %4455 = vmatmul.mubr.f32.gmra.mrb[0].mxu0 %v4280
      %v4456 = vpop.f32.mrb[0].mxu0
      %v4457 = vadd.f32 0.0, %v4456
      %v4458 = vpop.f32.mrb[0].mxu0
      %4459 = vmatprep.mubr.f32.mxu0 0.0
      %4460 = vmatmul.mubr.f32.gmra.mrb[0].mxu0 %v4283
      %v4461 = vpop.f32.mrb[0].mxu0
      %v4462 = vadd.f32 0.0, %v4461
      %v4463 = vpop.f32.mrb[0].mxu0
      %4464 = vmatprep.mubr.f32.mxu0 0.0
      %4465 = vmatmul.mubr.f32.gmra.mrb[0].mxu0 %v4286
      %v4466 = vpop.f32.mrb[0].mxu0
      %v4467 = vadd.f32 0.0, %v4466
      %v4468 = vpop.f32.mrb[0].mxu0
      %4469 = vmatprep.mubr.f32.mxu0 0.0
      %4470 = vmatmul.mubr.f32.gmra.mrb[0].mxu0 %v4289
      %v4471 = vpop.f32.mrb[0].mxu0
      %v4472 = vadd.f32 0.0, %v4471
      %v4473 = vpop.f32.mrb[0].mxu0
      %4474 = vmatprep.mubr.f32.mxu0 0.0
      %4475 = vmatmul.mubr.f32.gmra.mrb[0].mxu0 %v4292
      %v4476 = vpop.f32.mrb[0].mxu0
      %v4477 = vadd.f32 0.0, %v4476
      %v4478 = vpop.f32.mrb[0].mxu0
      %4479 = vmatprep.mubr.f32.mxu0 0.0
      %4480 = vmatmul.mubr.f32.gmra.mrb[0].mxu0 %v4295
      %v4481 = vpop.f32.mrb[0].mxu0
      %v4482 = vadd.f32 0.0, %v4481
      %v4483 = vpop.f32.mrb[0].mxu0
      %4484 = vmatprep.mubr.f32.mxu0 0.0
      %4485 = vmatmul.mubr.f32.gmra.mrb[0].mxu0 %v4298
      %v4486 = vpop.f32.mrb[0].mxu0
      %v4487 = vadd.f32 0.0, %v4486
      %v4488 = vpop.f32.mrb[0].mxu0
      %4489 = vmatprep.mubr.f32.mxu0 0.0
      %4490 = vmatmul.mubr.f32.gmra.mrb[0].mxu0 %v4301
      %v4491 = vpop.f32.mrb[0].mxu0
      %v4492 = vadd.f32 0.0, %v4491
      %v4493 = vpop.f32.mrb[0].mxu0
      %4494 = vmatprep.mubr.f32.mxu0 0.0
      %4495 = vmatmul.mubr.f32.gmra.mrb[0].mxu0 %v4304
      %v4496 = vpop.f32.mrb[0].mxu0
      %v4497 = vadd.f32 0.0, %v4496
      %v4498 = vpop.f32.mrb[0].mxu0
      %4499 = vmatprep.mubr.f32.mxu0 0.0
      %4500 = vmatmul.mubr.f32.gmra.mrb[0].mxu0 %v4307
      %v4501 = vpop.f32.mrb[0].mxu0
      %v4502 = vadd.f32 0.0, %v4501
      %v4503 = vpop.f32.mrb[0].mxu0
      %4504 = vmatprep.mubr.f32.mxu0 0.0
      %4505 = vmatmul.mubr.f32.gmra.mrb[0].mxu0 %v4310
      %v4506 = vpop.f32.mrb[0].mxu0
      %v4507 = vadd.f32 0.0, %v4506
      %v4508 = vpop.f32.mrb[0].mxu0
      %4509 = vmatprep.mubr.f32.mxu0 0.0
      %4510 = vmatmul.mubr.f32.gmra.mrb[0].mxu0 %v4313
      %v4511 = vpop.f32.mrb[0].mxu0
      %v4512 = vadd.f32 0.0, %v4511
      %v4513 = vpop.f32.mrb[0].mxu0
      %4514 = vmatprep.mubr.f32.mxu0 0.0
      %4515 = vmatmul.mubr.f32.gmra.mrb[0].mxu0 %v4316
      %v4516 = vpop.f32.mrb[0].mxu0
      %v4517 = vadd.f32 0.0, %v4516
      %v4518 = vpop.f32.mrb[0].mxu0
      %4519 = vmatprep.mubr.f32.mxu0 0.0
      %4520 = vmatmul.mubr.f32.gmra.mrb[0].mxu0 %v4319
      %v4521 = vpop.f32.mrb[0].mxu0
      %v4522 = vadd.f32 0.0, %v4521
      %v4523 = vpop.f32.mrb[0].mxu0
      %4524 = vmatprep.mubr.f32.mxu0 0.0
      %4525 = vmatmul.mubr.f32.gmra.mrb[0].mxu0 %v4322
      %v4526 = vpop.f32.mrb[0].mxu0
      %v4527 = vadd.f32 0.0, %v4526
      %v4528 = vpop.f32.mrb[0].mxu0
      %4529 = vmatprep.mubr.f32.mxu0 0.0
      %4530 = vmatmul.mubr.f32.gmra.mrb[0].mxu0 %v4325
      %v4531 = vpop.f32.mrb[0].mxu0
      %v4532 = vadd.f32 0.0, %v4531
      %v4533 = vpop.f32.mrb[0].mxu0
      %4534 = vmatprep.mubr.f32.mxu0 0.0
      %4535 = vmatmul.mubr.f32.gmra.mrb[0].mxu0 %v4328
      %v4536 = vpop.f32.mrb[0].mxu0
      %v4537 = vadd.f32 0.0, %v4536
      %v4538 = vpop.f32.mrb[0].mxu0
      %4539 = vmatprep.mubr.f32.mxu0 0.0
      %4540 = vmatmul.mubr.f32.gmra.mrb[0].mxu0 %v4331
      %v4541 = vpop.f32.mrb[0].mxu0
      %v4542 = vadd.f32 0.0, %v4541
      %v4543 = vpop.f32.mrb[0].mxu0
      %4544 = vmatprep.mubr.f32.mxu0 0.0
      %4545 = vmatmul.mubr.f32.gmra.mrb[0].mxu0 %v4334
      %v4546 = vpop.f32.mrb[0].mxu0
      %v4547 = vadd.f32 0.0, %v4546
      %v4548 = vpop.f32.mrb[0].mxu0
      %4549 = vmatprep.mubr.f32.mxu0 0.0
      %4550 = vmatmul.mubr.f32.gmra.mrb[0].mxu0 %v4337
      %v4551 = vpop.f32.mrb[0].mxu0
      %v4552 = vadd.f32 0.0, %v4551
      %v4553 = vpop.f32.mrb[0].mxu0
      %4554 = vmatprep.mubr.f32.mxu0 0.0
      %4555 = vmatmul.mubr.f32.gmra.mrb[0].mxu0 %v4340
      %v4556 = vpop.f32.mrb[0].mxu0
      %v4557 = vadd.f32 0.0, %v4556
      %v4558 = vpop.f32.mrb[0].mxu0
      %4559 = vmatprep.mubr.f32.mxu0 0.0
      %4560 = vmatmul.mubr.f32.gmra.mrb[0].mxu0 %v4343
      %v4561 = vpop.f32.mrb[0].mxu0
      %v4562 = vadd.f32 0.0, %v4561
      %v4563 = vpop.f32.mrb[0].mxu0
      %4564 = vmatprep.mubr.f32.mxu0 0.0
      %4565 = vmatmul.mubr.f32.gmra.mrb[0].mxu0 %v4346
      %v4566 = vpop.f32.mrb[0].mxu0
      %v4567 = vadd.f32 0.0, %v4566
      %v4568 = vpop.f32.mrb[0].mxu0
      %4569 = vmatprep.mubr.f32.mxu0 0.0
      %4570 = vmatmul.mubr.f32.gmra.mrb[0].mxu0 %v4349
      %v4571 = vpop.f32.mrb[0].mxu0
      %v4572 = vadd.f32 0.0, %v4571
      %v4573 = vpop.f32.mrb[0].mxu0
      %4574 = vmatprep.mubr.f32.mxu0 0.0
      %4575 = vmatmul.mubr.f32.gmra.mrb[0].mxu0 %v4352
      %v4576 = vpop.f32.mrb[0].mxu0
      %v4577 = vadd.f32 0.0, %v4576
      %v4578 = vpop.f32.mrb[0].mxu0
      %4579 = vmatprep.mubr.f32.mxu0 0.0
      %4580 = vmatmul.mubr.f32.gmra.mrb[0].mxu0 %v4355
      %v4581 = vpop.f32.mrb[0].mxu0
      %v4582 = vadd.f32 0.0, %v4581
      %v4583 = vpop.f32.mrb[0].mxu0
      %4584 = vdwg.mxu0
      %v4585 = vsel %vm417, %v385, 0.0
      %4586 = vadd.xlane.f32.xlu0 %v4585
      %v4587 = vpop.xlane.xlu0 %4586
      %v4588 = vsel %vm417, %v386, 0.0
      %4589 = vadd.xlane.f32.xlu0 %v4588
      %v4590 = vpop.xlane.xlu0 %4589
      %v4591 = vsel %vm417, %v387, 0.0
      %4592 = vadd.xlane.f32.xlu0 %v4591
      %v4593 = vpop.xlane.xlu0 %4592
      %v4594 = vsel %vm417, %v388, 0.0
      %4595 = vadd.xlane.f32.xlu0 %v4594
      %v4596 = vpop.xlane.xlu0 %4595
      %v4597 = vsel %vm417, %v389, 0.0
      %4598 = vadd.xlane.f32.xlu0 %v4597
      %v4599 = vpop.xlane.xlu0 %4598
      %v4600 = vsel %vm417, %v390, 0.0
      %4601 = vadd.xlane.f32.xlu0 %v4600
      %v4602 = vpop.xlane.xlu0 %4601
      %v4603 = vsel %vm417, %v391, 0.0
      %4604 = vadd.xlane.f32.xlu0 %v4603
      %v4605 = vpop.xlane.xlu0 %4604
      %v4606 = vsel %vm417, %v392, 0.0
      %4607 = vadd.xlane.f32.xlu0 %v4606
      %v4608 = vpop.xlane.xlu0 %4607
      %v4609 = vsel %vm417, %v393, 0.0
      %4610 = vadd.xlane.f32.xlu0 %v4609
      %v4611 = vpop.xlane.xlu0 %4610
      %v4612 = vsel %vm417, %v394, 0.0
      %4613 = vadd.xlane.f32.xlu0 %v4612
      %v4614 = vpop.xlane.xlu0 %4613
      %v4615 = vsel %vm417, %v395, 0.0
      %4616 = vadd.xlane.f32.xlu0 %v4615
      %v4617 = vpop.xlane.xlu0 %4616
      %v4618 = vsel %vm417, %v396, 0.0
      %4619 = vadd.xlane.f32.xlu0 %v4618
      %v4620 = vpop.xlane.xlu0 %4619
      %v4621 = vsel %vm417, %v397, 0.0
      %4622 = vadd.xlane.f32.xlu0 %v4621
      %v4623 = vpop.xlane.xlu0 %4622
      %v4624 = vsel %vm417, %v398, 0.0
      %4625 = vadd.xlane.f32.xlu0 %v4624
      %v4626 = vpop.xlane.xlu0 %4625
      %v4627 = vsel %vm417, %v399, 0.0
      %4628 = vadd.xlane.f32.xlu0 %v4627
      %v4629 = vpop.xlane.xlu0 %4628
      %v4630 = vsel %vm417, %v400, 0.0
      %4631 = vadd.xlane.f32.xlu0 %v4630
      %v4632 = vpop.xlane.xlu0 %4631
      %v4633 = vsel %vm417, %v401, 0.0
      %4634 = vadd.xlane.f32.xlu0 %v4633
      %v4635 = vpop.xlane.xlu0 %4634
      %v4636 = vsel %vm417, %v402, 0.0
      %4637 = vadd.xlane.f32.xlu0 %v4636
      %v4638 = vpop.xlane.xlu0 %4637
      %v4639 = vsel %vm417, %v403, 0.0
      %4640 = vadd.xlane.f32.xlu0 %v4639
      %v4641 = vpop.xlane.xlu0 %4640
      %v4642 = vsel %vm417, %v404, 0.0
      %4643 = vadd.xlane.f32.xlu0 %v4642
      %v4644 = vpop.xlane.xlu0 %4643
      %v4645 = vsel %vm417, %v405, 0.0
      %4646 = vadd.xlane.f32.xlu0 %v4645
      %v4647 = vpop.xlane.xlu0 %4646
      %v4648 = vsel %vm417, %v406, 0.0
      %4649 = vadd.xlane.f32.xlu0 %v4648
      %v4650 = vpop.xlane.xlu0 %4649
      %v4651 = vsel %vm417, %v407, 0.0
      %4652 = vadd.xlane.f32.xlu0 %v4651
      %v4653 = vpop.xlane.xlu0 %4652
      %v4654 = vsel %vm417, %v408, 0.0
      %4655 = vadd.xlane.f32.xlu0 %v4654
      %v4656 = vpop.xlane.xlu0 %4655
      %v4657 = vsel %vm417, %v409, 0.0
      %4658 = vadd.xlane.f32.xlu0 %v4657
      %v4659 = vpop.xlane.xlu0 %4658
      %v4660 = vsel %vm417, %v410, 0.0
      %4661 = vadd.xlane.f32.xlu0 %v4660
      %v4662 = vpop.xlane.xlu0 %4661
      %v4663 = vsel %vm417, %v411, 0.0
      %4664 = vadd.xlane.f32.xlu0 %v4663
      %v4665 = vpop.xlane.xlu0 %4664
      %v4666 = vsel %vm417, %v412, 0.0
      %4667 = vadd.xlane.f32.xlu0 %v4666
      %v4668 = vpop.xlane.xlu0 %4667
      %v4669 = vsel %vm417, %v413, 0.0
      %4670 = vadd.xlane.f32.xlu0 %v4669
      %v4671 = vpop.xlane.xlu0 %4670
      %v4672 = vsel %vm417, %v414, 0.0
      %4673 = vadd.xlane.f32.xlu0 %v4672
      %v4674 = vpop.xlane.xlu0 %4673
      %v4675 = vsel %vm417, %v415, 0.0
      %4676 = vadd.xlane.f32.xlu0 %v4675
      %v4677 = vpop.xlane.xlu0 %4676
      %v4678 = vsel %vm417, %v416, 0.0
      %4679 = vadd.xlane.f32.xlu0 %v4678
      %v4680 = vpop.xlane.xlu0 %4679
      %v4681 = vrcp.pop 4.0
      %v4682 = vmul.f32 %v4587, %v4681
      %v4683 = vmul.f32 %v4590, %v4681
      %v4684 = vmul.f32 %v4593, %v4681
      %v4685 = vmul.f32 %v4596, %v4681
      %v4686 = vmul.f32 %v4599, %v4681
      %v4687 = vmul.f32 %v4602, %v4681
      %v4688 = vmul.f32 %v4605, %v4681
      %v4689 = vmul.f32 %v4608, %v4681
      %v4690 = vmul.f32 %v4611, %v4681
      %v4691 = vmul.f32 %v4614, %v4681
      %v4692 = vmul.f32 %v4617, %v4681
      %v4693 = vmul.f32 %v4620, %v4681
      %v4694 = vmul.f32 %v4623, %v4681
      %v4695 = vmul.f32 %v4626, %v4681
      %v4696 = vmul.f32 %v4629, %v4681
      %v4697 = vmul.f32 %v4632, %v4681
      %v4698 = vmul.f32 %v4635, %v4681
      %v4699 = vmul.f32 %v4638, %v4681
      %v4700 = vmul.f32 %v4641, %v4681
      %v4701 = vmul.f32 %v4644, %v4681
      %v4702 = vmul.f32 %v4647, %v4681
      %v4703 = vmul.f32 %v4650, %v4681
      %v4704 = vmul.f32 %v4653, %v4681
      %v4705 = vmul.f32 %v4656, %v4681
      %v4706 = vmul.f32 %v4659, %v4681
      %v4707 = vmul.f32 %v4662, %v4681
      %v4708 = vmul.f32 %v4665, %v4681
      %v4709 = vmul.f32 %v4668, %v4681
      %v4710 = vmul.f32 %v4671, %v4681
      %v4711 = vmul.f32 %v4674, %v4681
      %v4712 = vmul.f32 %v4677, %v4681
      %v4713 = vmul.f32 %v4680, %v4681
      %v4714 = vsel %vm417, %v385, -inf
      %4715 = vmax.xlane.f32.xlu0 %v4714
      %v4716 = vpop.xlane.xlu0 %4715
      %v4717 = vsel %vm417, %v386, -inf
      %4718 = vmax.xlane.f32.xlu0 %v4717
      %v4719 = vpop.xlane.xlu0 %4718
      %v4720 = vsel %vm417, %v387, -inf
      %4721 = vmax.xlane.f32.xlu0 %v4720
      %v4722 = vpop.xlane.xlu0 %4721
      %v4723 = vsel %vm417, %v388, -inf
      %4724 = vmax.xlane.f32.xlu0 %v4723
      %v4725 = vpop.xlane.xlu0 %4724
      %v4726 = vsel %vm417, %v389, -inf
      %4727 = vmax.xlane.f32.xlu0 %v4726
      %v4728 = vpop.xlane.xlu0 %4727
      %v4729 = vsel %vm417, %v390, -inf
      %4730 = vmax.xlane.f32.xlu0 %v4729
      %v4731 = vpop.xlane.xlu0 %4730
      %v4732 = vsel %vm417, %v391, -inf
      %4733 = vmax.xlane.f32.xlu0 %v4732
      %v4734 = vpop.xlane.xlu0 %4733
      %v4735 = vsel %vm417, %v392, -inf
      %4736 = vmax.xlane.f32.xlu0 %v4735
      %v4737 = vpop.xlane.xlu0 %4736
      %v4738 = vsel %vm417, %v393, -inf
      %4739 = vmax.xlane.f32.xlu0 %v4738
      %v4740 = vpop.xlane.xlu0 %4739
      %v4741 = vsel %vm417, %v394, -inf
      %4742 = vmax.xlane.f32.xlu0 %v4741
      %v4743 = vpop.xlane.xlu0 %4742
      %v4744 = vsel %vm417, %v395, -inf
      %4745 = vmax.xlane.f32.xlu0 %v4744
      %v4746 = vpop.xlane.xlu0 %4745
      %v4747 = vsel %vm417, %v396, -inf
      %4748 = vmax.xlane.f32.xlu0 %v4747
      %v4749 = vpop.xlane.xlu0 %4748
      %v4750 = vsel %vm417, %v397, -inf
      %4751 = vmax.xlane.f32.xlu0 %v4750
      %v4752 = vpop.xlane.xlu0 %4751
      %v4753 = vsel %vm417, %v398, -inf
      %4754 = vmax.xlane.f32.xlu0 %v4753
      %v4755 = vpop.xlane.xlu0 %4754
      %v4756 = vsel %vm417, %v399, -inf
      %4757 = vmax.xlane.f32.xlu0 %v4756
      %v4758 = vpop.xlane.xlu0 %4757
      %v4759 = vsel %vm417, %v400, -inf
      %4760 = vmax.xlane.f32.xlu0 %v4759
      %v4761 = vpop.xlane.xlu0 %4760
      %v4762 = vsel %vm417, %v401, -inf
      %4763 = vmax.xlane.f32.xlu0 %v4762
      %v4764 = vpop.xlane.xlu0 %4763
      %v4765 = vsel %vm417, %v402, -inf
      %4766 = vmax.xlane.f32.xlu0 %v4765
      %v4767 = vpop.xlane.xlu0 %4766
      %v4768 = vsel %vm417, %v403, -inf
      %4769 = vmax.xlane.f32.xlu0 %v4768
      %v4770 = vpop.xlane.xlu0 %4769
      %v4771 = vsel %vm417, %v404, -inf
      %4772 = vmax.xlane.f32.xlu0 %v4771
      %v4773 = vpop.xlane.xlu0 %4772
      %v4774 = vsel %vm417, %v405, -inf
      %4775 = vmax.xlane.f32.xlu0 %v4774
      %v4776 = vpop.xlane.xlu0 %4775
      %v4777 = vsel %vm417, %v406, -inf
      %4778 = vmax.xlane.f32.xlu0 %v4777
      %v4779 = vpop.xlane.xlu0 %4778
      %v4780 = vsel %vm417, %v407, -inf
      %4781 = vmax.xlane.f32.xlu0 %v4780
      %v4782 = vpop.xlane.xlu0 %4781
      %v4783 = vsel %vm417, %v408, -inf
      %4784 = vmax.xlane.f32.xlu0 %v4783
      %v4785 = vpop.xlane.xlu0 %4784
      %v4786 = vsel %vm417, %v409, -inf
      %4787 = vmax.xlane.f32.xlu0 %v4786
      %v4788 = vpop.xlane.xlu0 %4787
      %v4789 = vsel %vm417, %v410, -inf
      %4790 = vmax.xlane.f32.xlu0 %v4789
      %v4791 = vpop.xlane.xlu0 %4790
      %v4792 = vsel %vm417, %v411, -inf
      %4793 = vmax.xlane.f32.xlu0 %v4792
      %v4794 = vpop.xlane.xlu0 %4793
      %v4795 = vsel %vm417, %v412, -inf
      %4796 = vmax.xlane.f32.xlu0 %v4795
      %v4797 = vpop.xlane.xlu0 %4796
      %v4798 = vsel %vm417, %v413, -inf
      %4799 = vmax.xlane.f32.xlu0 %v4798
      %v4800 = vpop.xlane.xlu0 %4799
      %v4801 = vsel %vm417, %v414, -inf
      %4802 = vmax.xlane.f32.xlu0 %v4801
      %v4803 = vpop.xlane.xlu0 %4802
      %v4804 = vsel %vm417, %v415, -inf
      %4805 = vmax.xlane.f32.xlu0 %v4804
      %v4806 = vpop.xlane.xlu0 %4805
      %v4807 = vsel %vm417, %v416, -inf
      %4808 = vmax.xlane.f32.xlu0 %v4807
      %v4809 = vpop.xlane.xlu0 %4808
      %v4810 = vld [vmem:[%s8 + $0x4] sm:$0x1]
      %v4811 = vlaneseq
      %v4812 = vshrl.u32 %v4811, 7
      %v4813 = vsub.s32 0, %v4812
      %v4814 = vrot.slane %v4810, %v4813
      %v4815 = vmul.f32 %v4427, %v4814
      %v4816 = vmul.f32 %v4432, %v4814
      %v4817 = vmul.f32 %v4437, %v4814
      %v4818 = vmul.f32 %v4442, %v4814
      %v4819 = vmul.f32 %v4447, %v4814
      %v4820 = vmul.f32 %v4452, %v4814
      %v4821 = vmul.f32 %v4457, %v4814
      %v4822 = vmul.f32 %v4462, %v4814
      %v4823 = vmul.f32 %v4467, %v4814
      %v4824 = vmul.f32 %v4472, %v4814
      %v4825 = vmul.f32 %v4477, %v4814
      %v4826 = vmul.f32 %v4482, %v4814
      %v4827 = vmul.f32 %v4487, %v4814
      %v4828 = vmul.f32 %v4492, %v4814
      %v4829 = vmul.f32 %v4497, %v4814
      %v4830 = vmul.f32 %v4502, %v4814
      %v4831 = vmul.f32 %v4507, %v4814
      %v4832 = vmul.f32 %v4512, %v4814
      %v4833 = vmul.f32 %v4517, %v4814
      %v4834 = vmul.f32 %v4522, %v4814
      %v4835 = vmul.f32 %v4527, %v4814
      %v4836 = vmul.f32 %v4532, %v4814
      %v4837 = vmul.f32 %v4537, %v4814
      %v4838 = vmul.f32 %v4542, %v4814
      %v4839 = vmul.f32 %v4547, %v4814
      %v4840 = vmul.f32 %v4552, %v4814
      %v4841 = vmul.f32 %v4557, %v4814
      %v4842 = vmul.f32 %v4562, %v4814
      %v4843 = vmul.f32 %v4567, %v4814
      %v4844 = vmul.f32 %v4572, %v4814
      %v4845 = vmul.f32 %v4577, %v4814
      %v4846 = vmul.f32 %v4582, %v4814
      %v4847 = vld [vmem:[%s8 + $0x6] sm:$0x1]
      %v4848 = vlaneseq
      %v4849 = vshrl.u32 %v4848, 7
      %v4850 = vsub.s32 0, %v4849
      %v4851 = vrot.slane %v4847, %v4850
      %v4852 = vmul.f32 %v4682, %v4851
      %v4853 = vmul.f32 %v4683, %v4851
      %v4854 = vmul.f32 %v4684, %v4851
      %v4855 = vmul.f32 %v4685, %v4851
      %v4856 = vmul.f32 %v4686, %v4851
      %v4857 = vmul.f32 %v4687, %v4851
      %v4858 = vmul.f32 %v4688, %v4851
      %v4859 = vmul.f32 %v4689, %v4851
      %v4860 = vmul.f32 %v4690, %v4851
      %v4861 = vmul.f32 %v4691, %v4851
      %v4862 = vmul.f32 %v4692, %v4851
      %v4863 = vmul.f32 %v4693, %v4851
      %v4864 = vmul.f32 %v4694, %v4851
      %v4865 = vmul.f32 %v4695, %v4851
      %v4866 = vmul.f32 %v4696, %v4851
      %v4867 = vmul.f32 %v4697, %v4851
      %v4868 = vmul.f32 %v4698, %v4851
      %v4869 = vmul.f32 %v4699, %v4851
      %v4870 = vmul.f32 %v4700, %v4851
      %v4871 = vmul.f32 %v4701, %v4851
      %v4872 = vmul.f32 %v4702, %v4851
      %v4873 = vmul.f32 %v4703, %v4851
      %v4874 = vmul.f32 %v4704, %v4851
      %v4875 = vmul.f32 %v4705, %v4851
      %v4876 = vmul.f32 %v4706, %v4851
      %v4877 = vmul.f32 %v4707, %v4851
      %v4878 = vmul.f32 %v4708, %v4851
      %v4879 = vmul.f32 %v4709, %v4851
      %v4880 = vmul.f32 %v4710, %v4851
      %v4881 = vmul.f32 %v4711, %v4851
      %v4882 = vmul.f32 %v4712, %v4851
      %v4883 = vmul.f32 %v4713, %v4851
      %v4884 = vadd.f32 %v4815, %v4852
      %v4885 = vadd.f32 %v4816, %v4853
      %v4886 = vadd.f32 %v4817, %v4854
      %v4887 = vadd.f32 %v4818, %v4855
      %v4888 = vadd.f32 %v4819, %v4856
      %v4889 = vadd.f32 %v4820, %v4857
      %v4890 = vadd.f32 %v4821, %v4858
      %v4891 = vadd.f32 %v4822, %v4859
      %v4892 = vadd.f32 %v4823, %v4860
      %v4893 = vadd.f32 %v4824, %v4861
      %v4894 = vadd.f32 %v4825, %v4862
      %v4895 = vadd.f32 %v4826, %v4863
      %v4896 = vadd.f32 %v4827, %v4864
      %v4897 = vadd.f32 %v4828, %v4865
      %v4898 = vadd.f32 %v4829, %v4866
      %v4899 = vadd.f32 %v4830, %v4867
      %v4900 = vadd.f32 %v4831, %v4868
      %v4901 = vadd.f32 %v4832, %v4869
      %v4902 = vadd.f32 %v4833, %v4870
      %v4903 = vadd.f32 %v4834, %v4871
      %v4904 = vadd.f32 %v4835, %v4872
      %v4905 = vadd.f32 %v4836, %v4873
      %v4906 = vadd.f32 %v4837, %v4874
      %v4907 = vadd.f32 %v4838, %v4875
      %v4908 = vadd.f32 %v4839, %v4876
      %v4909 = vadd.f32 %v4840, %v4877
      %v4910 = vadd.f32 %v4841, %v4878
      %v4911 = vadd.f32 %v4842, %v4879
      %v4912 = vadd.f32 %v4843, %v4880
      %v4913 = vadd.f32 %v4844, %v4881
      %v4914 = vadd.f32 %v4845, %v4882
      %v4915 = vadd.f32 %v4846, %v4883
      %v4916 = vld [vmem:[%s8 + $0x7] sm:$0x1]
      %v4917 = vlaneseq
      %v4918 = vshrl.u32 %v4917, 7
      %v4919 = vsub.s32 0, %v4918
      %v4920 = vrot.slane %v4916, %v4919
      %v4921 = vmul.f32 %v4716, %v4920
      %v4922 = vmul.f32 %v4719, %v4920
      %v4923 = vmul.f32 %v4722, %v4920
      %v4924 = vmul.f32 %v4725, %v4920
      %v4925 = vmul.f32 %v4728, %v4920
      %v4926 = vmul.f32 %v4731, %v4920
      %v4927 = vmul.f32 %v4734, %v4920
      %v4928 = vmul.f32 %v4737, %v4920
      %v4929 = vmul.f32 %v4740, %v4920
      %v4930 = vmul.f32 %v4743, %v4920
      %v4931 = vmul.f32 %v4746, %v4920
      %v4932 = vmul.f32 %v4749, %v4920
      %v4933 = vmul.f32 %v4752, %v4920
      %v4934 = vmul.f32 %v4755, %v4920
      %v4935 = vmul.f32 %v4758, %v4920
      %v4936 = vmul.f32 %v4761, %v4920
      %v4937 = vmul.f32 %v4764, %v4920
      %v4938 = vmul.f32 %v4767, %v4920
      %v4939 = vmul.f32 %v4770, %v4920
      %v4940 = vmul.f32 %v4773, %v4920
      %v4941 = vmul.f32 %v4776, %v4920
      %v4942 = vmul.f32 %v4779, %v4920
      %v4943 = vmul.f32 %v4782, %v4920
      %v4944 = vmul.f32 %v4785, %v4920
      %v4945 = vmul.f32 %v4788, %v4920
      %v4946 = vmul.f32 %v4791, %v4920
      %v4947 = vmul.f32 %v4794, %v4920
      %v4948 = vmul.f32 %v4797, %v4920
      %v4949 = vmul.f32 %v4800, %v4920
      %v4950 = vmul.f32 %v4803, %v4920
      %v4951 = vmul.f32 %v4806, %v4920
      %v4952 = vmul.f32 %v4809, %v4920
      %v4953 = vadd.f32 %v4884, %v4921
      %v4954 = vadd.f32 %v4885, %v4922
      %v4955 = vadd.f32 %v4886, %v4923
      %v4956 = vadd.f32 %v4887, %v4924
      %v4957 = vadd.f32 %v4888, %v4925
      %v4958 = vadd.f32 %v4889, %v4926
      %v4959 = vadd.f32 %v4890, %v4927
      %v4960 = vadd.f32 %v4891, %v4928
      %v4961 = vadd.f32 %v4892, %v4929
      %v4962 = vadd.f32 %v4893, %v4930
      %v4963 = vadd.f32 %v4894, %v4931
      %v4964 = vadd.f32 %v4895, %v4932
      %v4965 = vadd.f32 %v4896, %v4933
      %v4966 = vadd.f32 %v4897, %v4934
      %v4967 = vadd.f32 %v4898, %v4935
      %v4968 = vadd.f32 %v4899, %v4936
      %v4969 = vadd.f32 %v4900, %v4937
      %v4970 = vadd.f32 %v4901, %v4938
      %v4971 = vadd.f32 %v4902, %v4939
      %v4972 = vadd.f32 %v4903, %v4940
      %v4973 = vadd.f32 %v4904, %v4941
      %v4974 = vadd.f32 %v4905, %v4942
      %v4975 = vadd.f32 %v4906, %v4943
      %v4976 = vadd.f32 %v4907, %v4944
      %v4977 = vadd.f32 %v4908, %v4945
      %v4978 = vadd.f32 %v4909, %v4946
      %v4979 = vadd.f32 %v4910, %v4947
      %v4980 = vadd.f32 %v4911, %v4948
      %v4981 = vadd.f32 %v4912, %v4949
      %v4982 = vadd.f32 %v4913, %v4950
      %v4983 = vadd.f32 %v4914, %v4951
      %v4984 = vadd.f32 %v4915, %v4952
      %v4985 = vld [vmem:[%s8 + $0x5] sm:$0x1]
      %v4986 = vlaneseq
      %v4987 = vshrl.u32 %v4986, 7
      %v4988 = vsub.s32 0, %v4987
      %v4989 = vrot.slane %v4985, %v4988
      %v4990 = vadd.f32 %v4953, %v4989
      %v4991 = vadd.f32 %v4954, %v4989
      %v4992 = vadd.f32 %v4955, %v4989
      %v4993 = vadd.f32 %v4956, %v4989
      %v4994 = vadd.f32 %v4957, %v4989
      %v4995 = vadd.f32 %v4958, %v4989
      %v4996 = vadd.f32 %v4959, %v4989
      %v4997 = vadd.f32 %v4960, %v4989
      %v4998 = vadd.f32 %v4961, %v4989
      %v4999 = vadd.f32 %v4962, %v4989
      %v5000 = vadd.f32 %v4963, %v4989
      %v5001 = vadd.f32 %v4964, %v4989
      %v5002 = vadd.f32 %v4965, %v4989
      %v5003 = vadd.f32 %v4966, %v4989
      %v5004 = vadd.f32 %v4967, %v4989
      %v5005 = vadd.f32 %v4968, %v4989
      %v5006 = vadd.f32 %v4969, %v4989
      %v5007 = vadd.f32 %v4970, %v4989
      %v5008 = vadd.f32 %v4971, %v4989
      %v5009 = vadd.f32 %v4972, %v4989
      %v5010 = vadd.f32 %v4973, %v4989
      %v5011 = vadd.f32 %v4974, %v4989
      %v5012 = vadd.f32 %v4975, %v4989
      %v5013 = vadd.f32 %v4976, %v4989
      %v5014 = vadd.f32 %v4977, %v4989
      %v5015 = vadd.f32 %v4978, %v4989
      %v5016 = vadd.f32 %v4979, %v4989
      %v5017 = vadd.f32 %v4980, %v4989
      %v5018 = vadd.f32 %v4981, %v4989
      %v5019 = vadd.f32 %v4982, %v4989
      %v5020 = vadd.f32 %v4983, %v4989
      %v5021 = vadd.f32 %v4984, %v4989
      %v5022 = vld [vmem:[%s5] sm:$0x1]
      %v5023 = vlaneseq
      %v5024 = vshrl.u32 %v5023, 7
      %v5025 = vsub.s32 0, %v5024
      %v5026 = vrot.slane %v5022, %v5025
      %v5027 = vmul.f32 %v4990, %v5026
      %v5028 = vmul.f32 %v4991, %v5026
      %v5029 = vmul.f32 %v4992, %v5026
      %v5030 = vmul.f32 %v4993, %v5026
      %v5031 = vmul.f32 %v4994, %v5026
      %v5032 = vmul.f32 %v4995, %v5026
      %v5033 = vmul.f32 %v4996, %v5026
      %v5034 = vmul.f32 %v4997, %v5026
      %v5035 = vmul.f32 %v4998, %v5026
      %v5036 = vmul.f32 %v4999, %v5026
      %v5037 = vmul.f32 %v5000, %v5026
      %v5038 = vmul.f32 %v5001, %v5026
      %v5039 = vmul.f32 %v5002, %v5026
      %v5040 = vmul.f32 %v5003, %v5026
      %v5041 = vmul.f32 %v5004, %v5026
      %v5042 = vmul.f32 %v5005, %v5026
      %v5043 = vmul.f32 %v5006, %v5026
      %v5044 = vmul.f32 %v5007, %v5026
      %v5045 = vmul.f32 %v5008, %v5026
      %v5046 = vmul.f32 %v5009, %v5026
      %v5047 = vmul.f32 %v5010, %v5026
      %v5048 = vmul.f32 %v5011, %v5026
      %v5049 = vmul.f32 %v5012, %v5026
      %v5050 = vmul.f32 %v5013, %v5026
      %v5051 = vmul.f32 %v5014, %v5026
      %v5052 = vmul.f32 %v5015, %v5026
      %v5053 = vmul.f32 %v5016, %v5026
      %v5054 = vmul.f32 %v5017, %v5026
      %v5055 = vmul.f32 %v5018, %v5026
      %v5056 = vmul.f32 %v5019, %v5026
      %v5057 = vmul.f32 %v5020, %v5026
      %v5058 = vmul.f32 %v5021, %v5026
      %v5059 = vsel %vm417, %v5027, 0.0
      %5060 = vadd.xlane.f32.xlu0 %v5059
      %v5061 = vpop.xlane.xlu0 %5060
      %v5062 = vsel %vm417, %v5028, 0.0
      %5063 = vadd.xlane.f32.xlu0 %v5062
      %v5064 = vpop.xlane.xlu0 %5063
      %v5065 = vsel %vm417, %v5029, 0.0
      %5066 = vadd.xlane.f32.xlu0 %v5065
      %v5067 = vpop.xlane.xlu0 %5066
      %v5068 = vsel %vm417, %v5030, 0.0
      %5069 = vadd.xlane.f32.xlu0 %v5068
      %v5070 = vpop.xlane.xlu0 %5069
      %v5071 = vsel %vm417, %v5031, 0.0
      %5072 = vadd.xlane.f32.xlu0 %v5071
      %v5073 = vpop.xlane.xlu0 %5072
      %v5074 = vsel %vm417, %v5032, 0.0
      %5075 = vadd.xlane.f32.xlu0 %v5074
      %v5076 = vpop.xlane.xlu0 %5075
      %v5077 = vsel %vm417, %v5033, 0.0
      %5078 = vadd.xlane.f32.xlu0 %v5077
      %v5079 = vpop.xlane.xlu0 %5078
      %v5080 = vsel %vm417, %v5034, 0.0
      %5081 = vadd.xlane.f32.xlu0 %v5080
      %v5082 = vpop.xlane.xlu0 %5081
      %v5083 = vsel %vm417, %v5035, 0.0
      %5084 = vadd.xlane.f32.xlu0 %v5083
      %v5085 = vpop.xlane.xlu0 %5084
      %v5086 = vsel %vm417, %v5036, 0.0
      %5087 = vadd.xlane.f32.xlu0 %v5086
      %v5088 = vpop.xlane.xlu0 %5087
      %v5089 = vsel %vm417, %v5037, 0.0
      %5090 = vadd.xlane.f32.xlu0 %v5089
      %v5091 = vpop.xlane.xlu0 %5090
      %v5092 = vsel %vm417, %v5038, 0.0
      %5093 = vadd.xlane.f32.xlu0 %v5092
      %v5094 = vpop.xlane.xlu0 %5093
      %v5095 = vsel %vm417, %v5039, 0.0
      %5096 = vadd.xlane.f32.xlu0 %v5095
      %v5097 = vpop.xlane.xlu0 %5096
      %v5098 = vsel %vm417, %v5040, 0.0
      %5099 = vadd.xlane.f32.xlu0 %v5098
      %v5100 = vpop.xlane.xlu0 %5099
      %v5101 = vsel %vm417, %v5041, 0.0
      %5102 = vadd.xlane.f32.xlu0 %v5101
      %v5103 = vpop.xlane.xlu0 %5102
      %v5104 = vsel %vm417, %v5042, 0.0
      %5105 = vadd.xlane.f32.xlu0 %v5104
      %v5106 = vpop.xlane.xlu0 %5105
      %v5107 = vsel %vm417, %v5043, 0.0
      %5108 = vadd.xlane.f32.xlu0 %v5107
      %v5109 = vpop.xlane.xlu0 %5108
      %v5110 = vsel %vm417, %v5044, 0.0
      %5111 = vadd.xlane.f32.xlu0 %v5110
      %v5112 = vpop.xlane.xlu0 %5111
      %v5113 = vsel %vm417, %v5045, 0.0
      %5114 = vadd.xlane.f32.xlu0 %v5113
      %v5115 = vpop.xlane.xlu0 %5114
      %v5116 = vsel %vm417, %v5046, 0.0
      %5117 = vadd.xlane.f32.xlu0 %v5116
      %v5118 = vpop.xlane.xlu0 %5117
      %v5119 = vsel %vm417, %v5047, 0.0
      %5120 = vadd.xlane.f32.xlu0 %v5119
      %v5121 = vpop.xlane.xlu0 %5120
      %v5122 = vsel %vm417, %v5048, 0.0
      %5123 = vadd.xlane.f32.xlu0 %v5122
      %v5124 = vpop.xlane.xlu0 %5123
      %v5125 = vsel %vm417, %v5049, 0.0
      %5126 = vadd.xlane.f32.xlu0 %v5125
      %v5127 = vpop.xlane.xlu0 %5126
      %v5128 = vsel %vm417, %v5050, 0.0
      %5129 = vadd.xlane.f32.xlu0 %v5128
      %v5130 = vpop.xlane.xlu0 %5129
      %v5131 = vsel %vm417, %v5051, 0.0
      %5132 = vadd.xlane.f32.xlu0 %v5131
      %v5133 = vpop.xlane.xlu0 %5132
      %v5134 = vsel %vm417, %v5052, 0.0
      %5135 = vadd.xlane.f32.xlu0 %v5134
      %v5136 = vpop.xlane.xlu0 %5135
      %v5137 = vsel %vm417, %v5053, 0.0
      %5138 = vadd.xlane.f32.xlu0 %v5137
      %v5139 = vpop.xlane.xlu0 %5138
      %v5140 = vsel %vm417, %v5054, 0.0
      %5141 = vadd.xlane.f32.xlu0 %v5140
      %v5142 = vpop.xlane.xlu0 %5141
      %v5143 = vsel %vm417, %v5055, 0.0
      %5144 = vadd.xlane.f32.xlu0 %v5143
      %v5145 = vpop.xlane.xlu0 %5144
      %v5146 = vsel %vm417, %v5056, 0.0
      %5147 = vadd.xlane.f32.xlu0 %v5146
      %v5148 = vpop.xlane.xlu0 %5147
      %v5149 = vsel %vm417, %v5057, 0.0
      %5150 = vadd.xlane.f32.xlu0 %v5149
      %v5151 = vpop.xlane.xlu0 %5150
      %v5152 = vsel %vm417, %v5058, 0.0
      %5153 = vadd.xlane.f32.xlu0 %v5152
      %v5154 = vpop.xlane.xlu0 %5153
      %v5155 = vld [vmem:[%s5 + $0x1] sm:$0x1]
      %v5156 = vlaneseq
      %v5157 = vshrl.u32 %v5156, 7
      %v5158 = vsub.s32 0, %v5157
      %v5159 = vrot.slane %v5155, %v5158
      %v5160 = vadd.f32 %v5061, %v5159
      %v5161 = vadd.f32 %v5064, %v5159
      %v5162 = vadd.f32 %v5067, %v5159
      %v5163 = vadd.f32 %v5070, %v5159
      %v5164 = vadd.f32 %v5073, %v5159
      %v5165 = vadd.f32 %v5076, %v5159
      %v5166 = vadd.f32 %v5079, %v5159
      %v5167 = vadd.f32 %v5082, %v5159
      %v5168 = vadd.f32 %v5085, %v5159
      %v5169 = vadd.f32 %v5088, %v5159
      %v5170 = vadd.f32 %v5091, %v5159
      %v5171 = vadd.f32 %v5094, %v5159
      %v5172 = vadd.f32 %v5097, %v5159
      %v5173 = vadd.f32 %v5100, %v5159
      %v5174 = vadd.f32 %v5103, %v5159
      %v5175 = vadd.f32 %v5106, %v5159
      %v5176 = vadd.f32 %v5109, %v5159
      %v5177 = vadd.f32 %v5112, %v5159
      %v5178 = vadd.f32 %v5115, %v5159
      %v5179 = vadd.f32 %v5118, %v5159
      %v5180 = vadd.f32 %v5121, %v5159
      %v5181 = vadd.f32 %v5124, %v5159
      %v5182 = vadd.f32 %v5127, %v5159
      %v5183 = vadd.f32 %v5130, %v5159
      %v5184 = vadd.f32 %v5133, %v5159
      %v5185 = vadd.f32 %v5136, %v5159
      %v5186 = vadd.f32 %v5139, %v5159
      %v5187 = vadd.f32 %v5142, %v5159
      %v5188 = vadd.f32 %v5145, %v5159
      %v5189 = vadd.f32 %v5148, %v5159
      %v5190 = vadd.f32 %v5151, %v5159
      %v5191 = vadd.f32 %v5154, %v5159
      %v5192 = vsub.f32 0.0, %v5160
      %v5193 = vsub.f32 0.0, %v5161
      %v5194 = vsub.f32 0.0, %v5162
      %v5195 = vsub.f32 0.0, %v5163
      %v5196 = vsub.f32 0.0, %v5164
      %v5197 = vsub.f32 0.0, %v5165
      %v5198 = vsub.f32 0.0, %v5166
      %v5199 = vsub.f32 0.0, %v5167
      %v5200 = vsub.f32 0.0, %v5168
      %v5201 = vsub.f32 0.0, %v5169
      %v5202 = vsub.f32 0.0, %v5170
      %v5203 = vsub.f32 0.0, %v5171
      %v5204 = vsub.f32 0.0, %v5172
      %v5205 = vsub.f32 0.0, %v5173
      %v5206 = vsub.f32 0.0, %v5174
      %v5207 = vsub.f32 0.0, %v5175
      %v5208 = vsub.f32 0.0, %v5176
      %v5209 = vsub.f32 0.0, %v5177
      %v5210 = vsub.f32 0.0, %v5178
      %v5211 = vsub.f32 0.0, %v5179
      %v5212 = vsub.f32 0.0, %v5180
      %v5213 = vsub.f32 0.0, %v5181
      %v5214 = vsub.f32 0.0, %v5182
      %v5215 = vsub.f32 0.0, %v5183
      %v5216 = vsub.f32 0.0, %v5184
      %v5217 = vsub.f32 0.0, %v5185
      %v5218 = vsub.f32 0.0, %v5186
      %v5219 = vsub.f32 0.0, %v5187
      %v5220 = vsub.f32 0.0, %v5188
      %v5221 = vsub.f32 0.0, %v5189
      %v5222 = vsub.f32 0.0, %v5190
      %v5223 = vsub.f32 0.0, %v5191
      %v5224 = vmul.f32 %v5192, 1.442695
      %v5225 = vpow.pop %v5224
      %v5226 = vmul.f32 %v5193, 1.442695
      %v5227 = vpow.pop %v5226
      %v5228 = vmul.f32 %v5194, 1.442695
      %v5229 = vpow.pop %v5228
      %v5230 = vmul.f32 %v5195, 1.442695
      %v5231 = vpow.pop %v5230
      %v5232 = vmul.f32 %v5196, 1.442695
      %v5233 = vpow.pop %v5232
      %v5234 = vmul.f32 %v5197, 1.442695
      %v5235 = vpow.pop %v5234
      %v5236 = vmul.f32 %v5198, 1.442695
      %v5237 = vpow.pop %v5236
      %v5238 = vmul.f32 %v5199, 1.442695
      %v5239 = vpow.pop %v5238
      %v5240 = vmul.f32 %v5200, 1.442695
      %v5241 = vpow.pop %v5240
      %v5242 = vmul.f32 %v5201, 1.442695
      %v5243 = vpow.pop %v5242
      %v5244 = vmul.f32 %v5202, 1.442695
      %v5245 = vpow.pop %v5244
      %v5246 = vmul.f32 %v5203, 1.442695
      %v5247 = vpow.pop %v5246
      %v5248 = vmul.f32 %v5204, 1.442695
      %v5249 = vpow.pop %v5248
      %v5250 = vmul.f32 %v5205, 1.442695
      %v5251 = vpow.pop %v5250
      %v5252 = vmul.f32 %v5206, 1.442695
      %v5253 = vpow.pop %v5252
      %v5254 = vmul.f32 %v5207, 1.442695
      %v5255 = vpow.pop %v5254
      %v5256 = vmul.f32 %v5208, 1.442695
      %v5257 = vpow.pop %v5256
      %v5258 = vmul.f32 %v5209, 1.442695
      %v5259 = vpow.pop %v5258
      %v5260 = vmul.f32 %v5210, 1.442695
      %v5261 = vpow.pop %v5260
      %v5262 = vmul.f32 %v5211, 1.442695
      %v5263 = vpow.pop %v5262
      %v5264 = vmul.f32 %v5212, 1.442695
      %v5265 = vpow.pop %v5264
      %v5266 = vmul.f32 %v5213, 1.442695
      %v5267 = vpow.pop %v5266
      %v5268 = vmul.f32 %v5214, 1.442695
      %v5269 = vpow.pop %v5268
      %v5270 = vmul.f32 %v5215, 1.442695
      %v5271 = vpow.pop %v5270
      %v5272 = vmul.f32 %v5216, 1.442695
      %v5273 = vpow.pop %v5272
      %v5274 = vmul.f32 %v5217, 1.442695
      %v5275 = vpow.pop %v5274
      %v5276 = vmul.f32 %v5218, 1.442695
      %v5277 = vpow.pop %v5276
      %v5278 = vmul.f32 %v5219, 1.442695
      %v5279 = vpow.pop %v5278
      %v5280 = vmul.f32 %v5220, 1.442695
      %v5281 = vpow.pop %v5280
      %v5282 = vmul.f32 %v5221, 1.442695
      %v5283 = vpow.pop %v5282
      %v5284 = vmul.f32 %v5222, 1.442695
      %v5285 = vpow.pop %v5284
      %v5286 = vmul.f32 %v5223, 1.442695
      %v5287 = vpow.pop %v5286
      %v5288 = vadd.f32 %v5225, 1.0
      %v5289 = vadd.f32 %v5227, 1.0
      %v5290 = vadd.f32 %v5229, 1.0
      %v5291 = vadd.f32 %v5231, 1.0
      %v5292 = vadd.f32 %v5233, 1.0
      %v5293 = vadd.f32 %v5235, 1.0
      %v5294 = vadd.f32 %v5237, 1.0
      %v5295 = vadd.f32 %v5239, 1.0
      %v5296 = vadd.f32 %v5241, 1.0
      %v5297 = vadd.f32 %v5243, 1.0
      %v5298 = vadd.f32 %v5245, 1.0
      %v5299 = vadd.f32 %v5247, 1.0
      %v5300 = vadd.f32 %v5249, 1.0
      %v5301 = vadd.f32 %v5251, 1.0
      %v5302 = vadd.f32 %v5253, 1.0
      %v5303 = vadd.f32 %v5255, 1.0
      %v5304 = vadd.f32 %v5257, 1.0
      %v5305 = vadd.f32 %v5259, 1.0
      %v5306 = vadd.f32 %v5261, 1.0
      %v5307 = vadd.f32 %v5263, 1.0
      %v5308 = vadd.f32 %v5265, 1.0
      %v5309 = vadd.f32 %v5267, 1.0
      %v5310 = vadd.f32 %v5269, 1.0
      %v5311 = vadd.f32 %v5271, 1.0
      %v5312 = vadd.f32 %v5273, 1.0
      %v5313 = vadd.f32 %v5275, 1.0
      %v5314 = vadd.f32 %v5277, 1.0
      %v5315 = vadd.f32 %v5279, 1.0
      %v5316 = vadd.f32 %v5281, 1.0
      %v5317 = vadd.f32 %v5283, 1.0
      %v5318 = vadd.f32 %v5285, 1.0
      %v5319 = vadd.f32 %v5287, 1.0
      %v5320 = vrcp.pop %v5288
      %v5321 = vmul.f32 1.0, %v5320
      %v5322 = vrcp.pop %v5289
      %v5323 = vmul.f32 1.0, %v5322
      %v5324 = vrcp.pop %v5290
      %v5325 = vmul.f32 1.0, %v5324
      %v5326 = vrcp.pop %v5291
      %v5327 = vmul.f32 1.0, %v5326
      %v5328 = vrcp.pop %v5292
      %v5329 = vmul.f32 1.0, %v5328
      %v5330 = vrcp.pop %v5293
      %v5331 = vmul.f32 1.0, %v5330
      %v5332 = vrcp.pop %v5294
      %v5333 = vmul.f32 1.0, %v5332
      %v5334 = vrcp.pop %v5295
      %v5335 = vmul.f32 1.0, %v5334
      %v5336 = vrcp.pop %v5296
      %v5337 = vmul.f32 1.0, %v5336
      %v5338 = vrcp.pop %v5297
      %v5339 = vmul.f32 1.0, %v5338
      %v5340 = vrcp.pop %v5298
      %v5341 = vmul.f32 1.0, %v5340
      %v5342 = vrcp.pop %v5299
      %v5343 = vmul.f32 1.0, %v5342
      %v5344 = vrcp.pop %v5300
      %v5345 = vmul.f32 1.0, %v5344
      %v5346 = vrcp.pop %v5301
      %v5347 = vmul.f32 1.0, %v5346
      %v5348 = vrcp.pop %v5302
      %v5349 = vmul.f32 1.0, %v5348
      %v5350 = vrcp.pop %v5303
      %v5351 = vmul.f32 1.0, %v5350
      %v5352 = vrcp.pop %v5304
      %v5353 = vmul.f32 1.0, %v5352
      %v5354 = vrcp.pop %v5305
      %v5355 = vmul.f32 1.0, %v5354
      %v5356 = vrcp.pop %v5306
      %v5357 = vmul.f32 1.0, %v5356
      %v5358 = vrcp.pop %v5307
      %v5359 = vmul.f32 1.0, %v5358
      %v5360 = vrcp.pop %v5308
      %v5361 = vmul.f32 1.0, %v5360
      %v5362 = vrcp.pop %v5309
      %v5363 = vmul.f32 1.0, %v5362
      %v5364 = vrcp.pop %v5310
      %v5365 = vmul.f32 1.0, %v5364
      %v5366 = vrcp.pop %v5311
      %v5367 = vmul.f32 1.0, %v5366
      %v5368 = vrcp.pop %v5312
      %v5369 = vmul.f32 1.0, %v5368
      %v5370 = vrcp.pop %v5313
      %v5371 = vmul.f32 1.0, %v5370
      %v5372 = vrcp.pop %v5314
      %v5373 = vmul.f32 1.0, %v5372
      %v5374 = vrcp.pop %v5315
      %v5375 = vmul.f32 1.0, %v5374
      %v5376 = vrcp.pop %v5316
      %v5377 = vmul.f32 1.0, %v5376
      %v5378 = vrcp.pop %v5317
      %v5379 = vmul.f32 1.0, %v5378
      %v5380 = vrcp.pop %v5318
      %v5381 = vmul.f32 1.0, %v5380
      %v5382 = vrcp.pop %v5319
      %v5383 = vmul.f32 1.0, %v5382
      %v5384 = vadd.f32 %v5321, 1.0
      %v5385 = vadd.f32 %v5323, 1.0
      %v5386 = vadd.f32 %v5325, 1.0
      %v5387 = vadd.f32 %v5327, 1.0
      %v5388 = vadd.f32 %v5329, 1.0
      %v5389 = vadd.f32 %v5331, 1.0
      %v5390 = vadd.f32 %v5333, 1.0
      %v5391 = vadd.f32 %v5335, 1.0
      %v5392 = vadd.f32 %v5337, 1.0
      %v5393 = vadd.f32 %v5339, 1.0
      %v5394 = vadd.f32 %v5341, 1.0
      %v5395 = vadd.f32 %v5343, 1.0
      %v5396 = vadd.f32 %v5345, 1.0
      %v5397 = vadd.f32 %v5347, 1.0
      %v5398 = vadd.f32 %v5349, 1.0
      %v5399 = vadd.f32 %v5351, 1.0
      %v5400 = vadd.f32 %v5353, 1.0
      %v5401 = vadd.f32 %v5355, 1.0
      %v5402 = vadd.f32 %v5357, 1.0
      %v5403 = vadd.f32 %v5359, 1.0
      %v5404 = vadd.f32 %v5361, 1.0
      %v5405 = vadd.f32 %v5363, 1.0
      %v5406 = vadd.f32 %v5365, 1.0
      %v5407 = vadd.f32 %v5367, 1.0
      %v5408 = vadd.f32 %v5369, 1.0
      %v5409 = vadd.f32 %v5371, 1.0
      %v5410 = vadd.f32 %v5373, 1.0
      %v5411 = vadd.f32 %v5375, 1.0
      %v5412 = vadd.f32 %v5377, 1.0
      %v5413 = vadd.f32 %v5379, 1.0
      %v5414 = vadd.f32 %v5381, 1.0
      %v5415 = vadd.f32 %v5383, 1.0
      %5417 = vset.pattern.permute.xlu0 0
      %5418 = vperm.xlu0 %5417, %v5384
      %v5419 = vpop.permute.xlu0 %5418
      %5422 = vset.pattern.permute.xlu0 0
      %5423 = vperm.xlu0 %5422, %v5385
      %v5424 = vpop.permute.xlu0 %5423
      %5427 = vset.pattern.permute.xlu0 0
      %5428 = vperm.xlu0 %5427, %v5386
      %v5429 = vpop.permute.xlu0 %5428
      %5432 = vset.pattern.permute.xlu0 0
      %5433 = vperm.xlu0 %5432, %v5387
      %v5434 = vpop.permute.xlu0 %5433
      %5437 = vset.pattern.permute.xlu0 0
      %5438 = vperm.xlu0 %5437, %v5388
      %v5439 = vpop.permute.xlu0 %5438
      %5442 = vset.pattern.permute.xlu0 0
      %5443 = vperm.xlu0 %5442, %v5389
      %v5444 = vpop.permute.xlu0 %5443
      %5447 = vset.pattern.permute.xlu0 0
      %5448 = vperm.xlu0 %5447, %v5390
      %v5449 = vpop.permute.xlu0 %5448
      %5452 = vset.pattern.permute.xlu0 0
      %5453 = vperm.xlu0 %5452, %v5391
      %v5454 = vpop.permute.xlu0 %5453
      %5457 = vset.pattern.permute.xlu0 0
      %5458 = vperm.xlu0 %5457, %v5392
      %v5459 = vpop.permute.xlu0 %5458
      %5462 = vset.pattern.permute.xlu0 0
      %5463 = vperm.xlu0 %5462, %v5393
      %v5464 = vpop.permute.xlu0 %5463
      %5467 = vset.pattern.permute.xlu0 0
      %5468 = vperm.xlu0 %5467, %v5394
      %v5469 = vpop.permute.xlu0 %5468
      %5472 = vset.pattern.permute.xlu0 0
      %5473 = vperm.xlu0 %5472, %v5395
      %v5474 = vpop.permute.xlu0 %5473
      %5477 = vset.pattern.permute.xlu0 0
      %5478 = vperm.xlu0 %5477, %v5396
      %v5479 = vpop.permute.xlu0 %5478
      %5482 = vset.pattern.permute.xlu0 0
      %5483 = vperm.xlu0 %5482, %v5397
      %v5484 = vpop.permute.xlu0 %5483
      %5487 = vset.pattern.permute.xlu0 0
      %5488 = vperm.xlu0 %5487, %v5398
      %v5489 = vpop.permute.xlu0 %5488
      %5492 = vset.pattern.permute.xlu0 0
      %5493 = vperm.xlu0 %5492, %v5399
      %v5494 = vpop.permute.xlu0 %5493
      %5497 = vset.pattern.permute.xlu0 0
      %5498 = vperm.xlu0 %5497, %v5400
      %v5499 = vpop.permute.xlu0 %5498
      %5502 = vset.pattern.permute.xlu0 0
      %5503 = vperm.xlu0 %5502, %v5401
      %v5504 = vpop.permute.xlu0 %5503
      %5507 = vset.pattern.permute.xlu0 0
      %5508 = vperm.xlu0 %5507, %v5402
      %v5509 = vpop.permute.xlu0 %5508
      %5512 = vset.pattern.permute.xlu0 0
      %5513 = vperm.xlu0 %5512, %v5403
      %v5514 = vpop.permute.xlu0 %5513
      %5517 = vset.pattern.permute.xlu0 0
      %5518 = vperm.xlu0 %5517, %v5404
      %v5519 = vpop.permute.xlu0 %5518
      %5522 = vset.pattern.permute.xlu0 0
      %5523 = vperm.xlu0 %5522, %v5405
      %v5524 = vpop.permute.xlu0 %5523
      %5527 = vset.pattern.permute.xlu0 0
      %5528 = vperm.xlu0 %5527, %v5406
      %v5529 = vpop.permute.xlu0 %5528
      %5532 = vset.pattern.permute.xlu0 0
      %5533 = vperm.xlu0 %5532, %v5407
      %v5534 = vpop.permute.xlu0 %5533
      %5537 = vset.pattern.permute.xlu0 0
      %5538 = vperm.xlu0 %5537, %v5408
      %v5539 = vpop.permute.xlu0 %5538
      %5542 = vset.pattern.permute.xlu0 0
      %5543 = vperm.xlu0 %5542, %v5409
      %v5544 = vpop.permute.xlu0 %5543
      %5547 = vset.pattern.permute.xlu0 0
      %5548 = vperm.xlu0 %5547, %v5410
      %v5549 = vpop.permute.xlu0 %5548
      %5552 = vset.pattern.permute.xlu0 0
      %5553 = vperm.xlu0 %5552, %v5411
      %v5554 = vpop.permute.xlu0 %5553
      %5557 = vset.pattern.permute.xlu0 0
      %5558 = vperm.xlu0 %5557, %v5412
      %v5559 = vpop.permute.xlu0 %5558
      %5562 = vset.pattern.permute.xlu0 0
      %5563 = vperm.xlu0 %5562, %v5413
      %v5564 = vpop.permute.xlu0 %5563
      %5567 = vset.pattern.permute.xlu0 0
      %5568 = vperm.xlu0 %5567, %v5414
      %v5569 = vpop.permute.xlu0 %5568
      %5572 = vset.pattern.permute.xlu0 0
      %5573 = vperm.xlu0 %5572, %v5415
      %v5574 = vpop.permute.xlu0 %5573
      %v5576 = vmul.f32 %v353, %v5419
      %v5577 = vmul.f32 %v354, %v5424
      %v5578 = vmul.f32 %v355, %v5429
      %v5579 = vmul.f32 %v356, %v5434
      %v5580 = vmul.f32 %v357, %v5439
      %v5581 = vmul.f32 %v358, %v5444
      %v5582 = vmul.f32 %v359, %v5449
      %v5583 = vmul.f32 %v360, %v5454
      %v5584 = vmul.f32 %v361, %v5459
      %v5585 = vmul.f32 %v362, %v5464
      %v5586 = vmul.f32 %v363, %v5469
      %v5587 = vmul.f32 %v364, %v5474
      %v5588 = vmul.f32 %v365, %v5479
      %v5589 = vmul.f32 %v366, %v5484
      %v5590 = vmul.f32 %v367, %v5489
      %v5591 = vmul.f32 %v368, %v5494
      %v5592 = vmul.f32 %v369, %v5499
      %v5593 = vmul.f32 %v370, %v5504
      %v5594 = vmul.f32 %v371, %v5509
      %v5595 = vmul.f32 %v372, %v5514
      %v5596 = vmul.f32 %v373, %v5519
      %v5597 = vmul.f32 %v374, %v5524
      %v5598 = vmul.f32 %v375, %v5529
      %v5599 = vmul.f32 %v376, %v5534
      %v5600 = vmul.f32 %v377, %v5539
      %v5601 = vmul.f32 %v378, %v5544
      %v5602 = vmul.f32 %v379, %v5549
      %v5603 = vmul.f32 %v380, %v5554
      %v5604 = vmul.f32 %v381, %v5559
      %v5605 = vmul.f32 %v382, %v5564
      %v5606 = vmul.f32 %v383, %v5569
      %v5607 = vmul.f32 %v384, %v5574
      %v5608 = vsub.f32 2.0, %v5321
      %v5609 = vsub.f32 2.0, %v5323
      %v5610 = vsub.f32 2.0, %v5325
      %v5611 = vsub.f32 2.0, %v5327
      %v5612 = vsub.f32 2.0, %v5329
      %v5613 = vsub.f32 2.0, %v5331
      %v5614 = vsub.f32 2.0, %v5333
      %v5615 = vsub.f32 2.0, %v5335
      %v5616 = vsub.f32 2.0, %v5337
      %v5617 = vsub.f32 2.0, %v5339
      %v5618 = vsub.f32 2.0, %v5341
      %v5619 = vsub.f32 2.0, %v5343
      %v5620 = vsub.f32 2.0, %v5345
      %v5621 = vsub.f32 2.0, %v5347
      %v5622 = vsub.f32 2.0, %v5349
      %v5623 = vsub.f32 2.0, %v5351
      %v5624 = vsub.f32 2.0, %v5353
      %v5625 = vsub.f32 2.0, %v5355
      %v5626 = vsub.f32 2.0, %v5357
      %v5627 = vsub.f32 2.0, %v5359
      %v5628 = vsub.f32 2.0, %v5361
      %v5629 = vsub.f32 2.0, %v5363
      %v5630 = vsub.f32 2.0, %v5365
      %v5631 = vsub.f32 2.0, %v5367
      %v5632 = vsub.f32 2.0, %v5369
      %v5633 = vsub.f32 2.0, %v5371
      %v5634 = vsub.f32 2.0, %v5373
      %v5635 = vsub.f32 2.0, %v5375
      %v5636 = vsub.f32 2.0, %v5377
      %v5637 = vsub.f32 2.0, %v5379
      %v5638 = vsub.f32 2.0, %v5381
      %v5639 = vsub.f32 2.0, %v5383
      %5641 = vset.pattern.permute.xlu0 0
      %5642 = vperm.xlu0 %5641, %v5608
      %v5643 = vpop.permute.xlu0 %5642
      %5646 = vset.pattern.permute.xlu0 0
      %5647 = vperm.xlu0 %5646, %v5609
      %v5648 = vpop.permute.xlu0 %5647
      %5651 = vset.pattern.permute.xlu0 0
      %5652 = vperm.xlu0 %5651, %v5610
      %v5653 = vpop.permute.xlu0 %5652
      %5656 = vset.pattern.permute.xlu0 0
      %5657 = vperm.xlu0 %5656, %v5611
      %v5658 = vpop.permute.xlu0 %5657
      %5661 = vset.pattern.permute.xlu0 0
      %5662 = vperm.xlu0 %5661, %v5612
      %v5663 = vpop.permute.xlu0 %5662
      %5666 = vset.pattern.permute.xlu0 0
      %5667 = vperm.xlu0 %5666, %v5613
      %v5668 = vpop.permute.xlu0 %5667
      %5671 = vset.pattern.permute.xlu0 0
      %5672 = vperm.xlu0 %5671, %v5614
      %v5673 = vpop.permute.xlu0 %5672
      %5676 = vset.pattern.permute.xlu0 0
      %5677 = vperm.xlu0 %5676, %v5615
      %v5678 = vpop.permute.xlu0 %5677
      %5681 = vset.pattern.permute.xlu0 0
      %5682 = vperm.xlu0 %5681, %v5616
      %v5683 = vpop.permute.xlu0 %5682
      %5686 = vset.pattern.permute.xlu0 0
      %5687 = vperm.xlu0 %5686, %v5617
      %v5688 = vpop.permute.xlu0 %5687
      %5691 = vset.pattern.permute.xlu0 0
      %5692 = vperm.xlu0 %5691, %v5618
      %v5693 = vpop.permute.xlu0 %5692
      %5696 = vset.pattern.permute.xlu0 0
      %5697 = vperm.xlu0 %5696, %v5619
      %v5698 = vpop.permute.xlu0 %5697
      %5701 = vset.pattern.permute.xlu0 0
      %5702 = vperm.xlu0 %5701, %v5620
      %v5703 = vpop.permute.xlu0 %5702
      %5706 = vset.pattern.permute.xlu0 0
      %5707 = vperm.xlu0 %5706, %v5621
      %v5708 = vpop.permute.xlu0 %5707
      %5711 = vset.pattern.permute.xlu0 0
      %5712 = vperm.xlu0 %5711, %v5622
      %v5713 = vpop.permute.xlu0 %5712
      %5716 = vset.pattern.permute.xlu0 0
      %5717 = vperm.xlu0 %5716, %v5623
      %v5718 = vpop.permute.xlu0 %5717
      %5721 = vset.pattern.permute.xlu0 0
      %5722 = vperm.xlu0 %5721, %v5624
      %v5723 = vpop.permute.xlu0 %5722
      %5726 = vset.pattern.permute.xlu0 0
      %5727 = vperm.xlu0 %5726, %v5625
      %v5728 = vpop.permute.xlu0 %5727
      %5731 = vset.pattern.permute.xlu0 0
      %5732 = vperm.xlu0 %5731, %v5626
      %v5733 = vpop.permute.xlu0 %5732
      %5736 = vset.pattern.permute.xlu0 0
      %5737 = vperm.xlu0 %5736, %v5627
      %v5738 = vpop.permute.xlu0 %5737
      %5741 = vset.pattern.permute.xlu0 0
      %5742 = vperm.xlu0 %5741, %v5628
      %v5743 = vpop.permute.xlu0 %5742
      %5746 = vset.pattern.permute.xlu0 0
      %5747 = vperm.xlu0 %5746, %v5629
      %v5748 = vpop.permute.xlu0 %5747
      %5751 = vset.pattern.permute.xlu0 0
      %5752 = vperm.xlu0 %5751, %v5630
      %v5753 = vpop.permute.xlu0 %5752
      %5756 = vset.pattern.permute.xlu0 0
      %5757 = vperm.xlu0 %5756, %v5631
      %v5758 = vpop.permute.xlu0 %5757
      %5761 = vset.pattern.permute.xlu0 0
      %5762 = vperm.xlu0 %5761, %v5632
      %v5763 = vpop.permute.xlu0 %5762
      %5766 = vset.pattern.permute.xlu0 0
      %5767 = vperm.xlu0 %5766, %v5633
      %v5768 = vpop.permute.xlu0 %5767
      %5771 = vset.pattern.permute.xlu0 0
      %5772 = vperm.xlu0 %5771, %v5634
      %v5773 = vpop.permute.xlu0 %5772
      %5776 = vset.pattern.permute.xlu0 0
      %5777 = vperm.xlu0 %5776, %v5635
      %v5778 = vpop.permute.xlu0 %5777
      %5781 = vset.pattern.permute.xlu0 0
      %5782 = vperm.xlu0 %5781, %v5636
      %v5783 = vpop.permute.xlu0 %5782
      %5786 = vset.pattern.permute.xlu0 0
      %5787 = vperm.xlu0 %5786, %v5637
      %v5788 = vpop.permute.xlu0 %5787
      %5791 = vset.pattern.permute.xlu0 0
      %5792 = vperm.xlu0 %5791, %v5638
      %v5793 = vpop.permute.xlu0 %5792
      %5796 = vset.pattern.permute.xlu0 0
      %5797 = vperm.xlu0 %5796, %v5639
      %v5798 = vpop.permute.xlu0 %5797
      %v5800 = vmul.f32 %v385, %v5643
      %v5801 = vmul.f32 %v386, %v5648
      %v5802 = vmul.f32 %v387, %v5653
      %v5803 = vmul.f32 %v388, %v5658
      %v5804 = vmul.f32 %v389, %v5663
      %v5805 = vmul.f32 %v390, %v5668
      %v5806 = vmul.f32 %v391, %v5673
      %v5807 = vmul.f32 %v392, %v5678
      %v5808 = vmul.f32 %v393, %v5683
      %v5809 = vmul.f32 %v394, %v5688
      %v5810 = vmul.f32 %v395, %v5693
      %v5811 = vmul.f32 %v396, %v5698
      %v5812 = vmul.f32 %v397, %v5703
      %v5813 = vmul.f32 %v398, %v5708
      %v5814 = vmul.f32 %v399, %v5713
      %v5815 = vmul.f32 %v400, %v5718
      %v5816 = vmul.f32 %v401, %v5723
      %v5817 = vmul.f32 %v402, %v5728
      %v5818 = vmul.f32 %v403, %v5733
      %v5819 = vmul.f32 %v404, %v5738
      %v5820 = vmul.f32 %v405, %v5743
      %v5821 = vmul.f32 %v406, %v5748
      %v5822 = vmul.f32 %v407, %v5753
      %v5823 = vmul.f32 %v408, %v5758
      %v5824 = vmul.f32 %v409, %v5763
      %v5825 = vmul.f32 %v410, %v5768
      %v5826 = vmul.f32 %v411, %v5773
      %v5827 = vmul.f32 %v412, %v5778
      %v5828 = vmul.f32 %v413, %v5783
      %v5829 = vmul.f32 %v414, %v5788
      %v5830 = vmul.f32 %v415, %v5793
      %v5831 = vmul.f32 %v416, %v5798
      %v5832 = vmul.f32 %v5576, %v5800
      %v5833 = vmul.f32 %v5577, %v5801
      %v5834 = vmul.f32 %v5578, %v5802
      %v5835 = vmul.f32 %v5579, %v5803
      %v5836 = vmul.f32 %v5580, %v5804
      %v5837 = vmul.f32 %v5581, %v5805
      %v5838 = vmul.f32 %v5582, %v5806
      %v5839 = vmul.f32 %v5583, %v5807
      %v5840 = vmul.f32 %v5584, %v5808
      %v5841 = vmul.f32 %v5585, %v5809
      %v5842 = vmul.f32 %v5586, %v5810
      %v5843 = vmul.f32 %v5587, %v5811
      %v5844 = vmul.f32 %v5588, %v5812
      %v5845 = vmul.f32 %v5589, %v5813
      %v5846 = vmul.f32 %v5590, %v5814
      %v5847 = vmul.f32 %v5591, %v5815
      %v5848 = vmul.f32 %v5592, %v5816
      %v5849 = vmul.f32 %v5593, %v5817
      %v5850 = vmul.f32 %v5594, %v5818
      %v5851 = vmul.f32 %v5595, %v5819
      %v5852 = vmul.f32 %v5596, %v5820
      %v5853 = vmul.f32 %v5597, %v5821
      %v5854 = vmul.f32 %v5598, %v5822
      %v5855 = vmul.f32 %v5599, %v5823
      %v5856 = vmul.f32 %v5600, %v5824
      %v5857 = vmul.f32 %v5601, %v5825
      %v5858 = vmul.f32 %v5602, %v5826
      %v5859 = vmul.f32 %v5603, %v5827
      %v5860 = vmul.f32 %v5604, %v5828
      %v5861 = vmul.f32 %v5605, %v5829
      %v5862 = vmul.f32 %v5606, %v5830
      %v5863 = vmul.f32 %v5607, %v5831
      %v5864 = vsub.f32 0.0, %v5576
      %v5865 = vsub.f32 0.0, %v5577
      %v5866 = vsub.f32 0.0, %v5578
      %v5867 = vsub.f32 0.0, %v5579
      %v5868 = vsub.f32 0.0, %v5580
      %v5869 = vsub.f32 0.0, %v5581
      %v5870 = vsub.f32 0.0, %v5582
      %v5871 = vsub.f32 0.0, %v5583
      %v5872 = vsub.f32 0.0, %v5584
      %v5873 = vsub.f32 0.0, %v5585
      %v5874 = vsub.f32 0.0, %v5586
      %v5875 = vsub.f32 0.0, %v5587
      %v5876 = vsub.f32 0.0, %v5588
      %v5877 = vsub.f32 0.0, %v5589
      %v5878 = vsub.f32 0.0, %v5590
      %v5879 = vsub.f32 0.0, %v5591
      %v5880 = vsub.f32 0.0, %v5592
      %v5881 = vsub.f32 0.0, %v5593
      %v5882 = vsub.f32 0.0, %v5594
      %v5883 = vsub.f32 0.0, %v5595
      %v5884 = vsub.f32 0.0, %v5596
      %v5885 = vsub.f32 0.0, %v5597
      %v5886 = vsub.f32 0.0, %v5598
      %v5887 = vsub.f32 0.0, %v5599
      %v5888 = vsub.f32 0.0, %v5600
      %v5889 = vsub.f32 0.0, %v5601
      %v5890 = vsub.f32 0.0, %v5602
      %v5891 = vsub.f32 0.0, %v5603
      %v5892 = vsub.f32 0.0, %v5604
      %v5893 = vsub.f32 0.0, %v5605
      %v5894 = vsub.f32 0.0, %v5606
      %v5895 = vsub.f32 0.0, %v5607
      %v5896 = vmul.f32 %v5864, 1.442695
      %v5897 = vpow.pop %v5896
      %v5898 = vmul.f32 %v5865, 1.442695
      %v5899 = vpow.pop %v5898
      %v5900 = vmul.f32 %v5866, 1.442695
      %v5901 = vpow.pop %v5900
      %v5902 = vmul.f32 %v5867, 1.442695
      %v5903 = vpow.pop %v5902
      %v5904 = vmul.f32 %v5868, 1.442695
      %v5905 = vpow.pop %v5904
      %v5906 = vmul.f32 %v5869, 1.442695
      %v5907 = vpow.pop %v5906
      %v5908 = vmul.f32 %v5870, 1.442695
      %v5909 = vpow.pop %v5908
      %v5910 = vmul.f32 %v5871, 1.442695
      %v5911 = vpow.pop %v5910
      %v5912 = vmul.f32 %v5872, 1.442695
      %v5913 = vpow.pop %v5912
      %v5914 = vmul.f32 %v5873, 1.442695
      %v5915 = vpow.pop %v5914
      %v5916 = vmul.f32 %v5874, 1.442695
      %v5917 = vpow.pop %v5916
      %v5918 = vmul.f32 %v5875, 1.442695
      %v5919 = vpow.pop %v5918
      %v5920 = vmul.f32 %v5876, 1.442695
      %v5921 = vpow.pop %v5920
      %v5922 = vmul.f32 %v5877, 1.442695
      %v5923 = vpow.pop %v5922
      %v5924 = vmul.f32 %v5878, 1.442695
      %v5925 = vpow.pop %v5924
      %v5926 = vmul.f32 %v5879, 1.442695
      %v5927 = vpow.pop %v5926
      %v5928 = vmul.f32 %v5880, 1.442695
      %v5929 = vpow.pop %v5928
      %v5930 = vmul.f32 %v5881, 1.442695
      %v5931 = vpow.pop %v5930
      %v5932 = vmul.f32 %v5882, 1.442695
      %v5933 = vpow.pop %v5932
      %v5934 = vmul.f32 %v5883, 1.442695
      %v5935 = vpow.pop %v5934
      %v5936 = vmul.f32 %v5884, 1.442695
      %v5937 = vpow.pop %v5936
      %v5938 = vmul.f32 %v5885, 1.442695
      %v5939 = vpow.pop %v5938
      %v5940 = vmul.f32 %v5886, 1.442695
      %v5941 = vpow.pop %v5940
      %v5942 = vmul.f32 %v5887, 1.442695
      %v5943 = vpow.pop %v5942
      %v5944 = vmul.f32 %v5888, 1.442695
      %v5945 = vpow.pop %v5944
      %v5946 = vmul.f32 %v5889, 1.442695
      %v5947 = vpow.pop %v5946
      %v5948 = vmul.f32 %v5890, 1.442695
      %v5949 = vpow.pop %v5948
      %v5950 = vmul.f32 %v5891, 1.442695
      %v5951 = vpow.pop %v5950
      %v5952 = vmul.f32 %v5892, 1.442695
      %v5953 = vpow.pop %v5952
      %v5954 = vmul.f32 %v5893, 1.442695
      %v5955 = vpow.pop %v5954
      %v5956 = vmul.f32 %v5894, 1.442695
      %v5957 = vpow.pop %v5956
      %v5958 = vmul.f32 %v5895, 1.442695
      %v5959 = vpow.pop %v5958
      %v5960 = vadd.f32 %v5897, 1.0
      %v5961 = vadd.f32 %v5899, 1.0
      %v5962 = vadd.f32 %v5901, 1.0
      %v5963 = vadd.f32 %v5903, 1.0
      %v5964 = vadd.f32 %v5905, 1.0
      %v5965 = vadd.f32 %v5907, 1.0
      %v5966 = vadd.f32 %v5909, 1.0
      %v5967 = vadd.f32 %v5911, 1.0
      %v5968 = vadd.f32 %v5913, 1.0
      %v5969 = vadd.f32 %v5915, 1.0
      %v5970 = vadd.f32 %v5917, 1.0
      %v5971 = vadd.f32 %v5919, 1.0
      %v5972 = vadd.f32 %v5921, 1.0
      %v5973 = vadd.f32 %v5923, 1.0
      %v5974 = vadd.f32 %v5925, 1.0
      %v5975 = vadd.f32 %v5927, 1.0
      %v5976 = vadd.f32 %v5929, 1.0
      %v5977 = vadd.f32 %v5931, 1.0
      %v5978 = vadd.f32 %v5933, 1.0
      %v5979 = vadd.f32 %v5935, 1.0
      %v5980 = vadd.f32 %v5937, 1.0
      %v5981 = vadd.f32 %v5939, 1.0
      %v5982 = vadd.f32 %v5941, 1.0
      %v5983 = vadd.f32 %v5943, 1.0
      %v5984 = vadd.f32 %v5945, 1.0
      %v5985 = vadd.f32 %v5947, 1.0
      %v5986 = vadd.f32 %v5949, 1.0
      %v5987 = vadd.f32 %v5951, 1.0
      %v5988 = vadd.f32 %v5953, 1.0
      %v5989 = vadd.f32 %v5955, 1.0
      %v5990 = vadd.f32 %v5957, 1.0
      %v5991 = vadd.f32 %v5959, 1.0
      %v5992 = vrcp.pop %v5960
      %v5993 = vmul.f32 1.0, %v5992
      %v5994 = vrcp.pop %v5961
      %v5995 = vmul.f32 1.0, %v5994
      %v5996 = vrcp.pop %v5962
      %v5997 = vmul.f32 1.0, %v5996
      %v5998 = vrcp.pop %v5963
      %v5999 = vmul.f32 1.0, %v5998
      %v6000 = vrcp.pop %v5964
      %v6001 = vmul.f32 1.0, %v6000
      %v6002 = vrcp.pop %v5965
      %v6003 = vmul.f32 1.0, %v6002
      %v6004 = vrcp.pop %v5966
      %v6005 = vmul.f32 1.0, %v6004
      %v6006 = vrcp.pop %v5967
      %v6007 = vmul.f32 1.0, %v6006
      %v6008 = vrcp.pop %v5968
      %v6009 = vmul.f32 1.0, %v6008
      %v6010 = vrcp.pop %v5969
      %v6011 = vmul.f32 1.0, %v6010
      %v6012 = vrcp.pop %v5970
      %v6013 = vmul.f32 1.0, %v6012
      %v6014 = vrcp.pop %v5971
      %v6015 = vmul.f32 1.0, %v6014
      %v6016 = vrcp.pop %v5972
      %v6017 = vmul.f32 1.0, %v6016
      %v6018 = vrcp.pop %v5973
      %v6019 = vmul.f32 1.0, %v6018
      %v6020 = vrcp.pop %v5974
      %v6021 = vmul.f32 1.0, %v6020
      %v6022 = vrcp.pop %v5975
      %v6023 = vmul.f32 1.0, %v6022
      %v6024 = vrcp.pop %v5976
      %v6025 = vmul.f32 1.0, %v6024
      %v6026 = vrcp.pop %v5977
      %v6027 = vmul.f32 1.0, %v6026
      %v6028 = vrcp.pop %v5978
      %v6029 = vmul.f32 1.0, %v6028
      %v6030 = vrcp.pop %v5979
      %v6031 = vmul.f32 1.0, %v6030
      %v6032 = vrcp.pop %v5980
      %v6033 = vmul.f32 1.0, %v6032
      %v6034 = vrcp.pop %v5981
      %v6035 = vmul.f32 1.0, %v6034
      %v6036 = vrcp.pop %v5982
      %v6037 = vmul.f32 1.0, %v6036
      %v6038 = vrcp.pop %v5983
      %v6039 = vmul.f32 1.0, %v6038
      %v6040 = vrcp.pop %v5984
      %v6041 = vmul.f32 1.0, %v6040
      %v6042 = vrcp.pop %v5985
      %v6043 = vmul.f32 1.0, %v6042
      %v6044 = vrcp.pop %v5986
      %v6045 = vmul.f32 1.0, %v6044
      %v6046 = vrcp.pop %v5987
      %v6047 = vmul.f32 1.0, %v6046
      %v6048 = vrcp.pop %v5988
      %v6049 = vmul.f32 1.0, %v6048
      %v6050 = vrcp.pop %v5989
      %v6051 = vmul.f32 1.0, %v6050
      %v6052 = vrcp.pop %v5990
      %v6053 = vmul.f32 1.0, %v6052
      %v6054 = vrcp.pop %v5991
      %v6055 = vmul.f32 1.0, %v6054
      %v6056 = vmul.f32 %v5832, %v5993
      %v6057 = vmul.f32 %v5833, %v5995
      %v6058 = vmul.f32 %v5834, %v5997
      %v6059 = vmul.f32 %v5835, %v5999
      %v6060 = vmul.f32 %v5836, %v6001
      %v6061 = vmul.f32 %v5837, %v6003
      %v6062 = vmul.f32 %v5838, %v6005
      %v6063 = vmul.f32 %v5839, %v6007
      %v6064 = vmul.f32 %v5840, %v6009
      %v6065 = vmul.f32 %v5841, %v6011
      %v6066 = vmul.f32 %v5842, %v6013
      %v6067 = vmul.f32 %v5843, %v6015
      %v6068 = vmul.f32 %v5844, %v6017
      %v6069 = vmul.f32 %v5845, %v6019
      %v6070 = vmul.f32 %v5846, %v6021
      %v6071 = vmul.f32 %v5847, %v6023
      %v6072 = vmul.f32 %v5848, %v6025
      %v6073 = vmul.f32 %v5849, %v6027
      %v6074 = vmul.f32 %v5850, %v6029
      %v6075 = vmul.f32 %v5851, %v6031
      %v6076 = vmul.f32 %v5852, %v6033
      %v6077 = vmul.f32 %v5853, %v6035
      %v6078 = vmul.f32 %v5854, %v6037
      %v6079 = vmul.f32 %v5855, %v6039
      %v6080 = vmul.f32 %v5856, %v6041
      %v6081 = vmul.f32 %v5857, %v6043
      %v6082 = vmul.f32 %v5858, %v6045
      %v6083 = vmul.f32 %v5859, %v6047
      %v6084 = vmul.f32 %v5860, %v6049
      %v6085 = vmul.f32 %v5861, %v6051
      %v6086 = vmul.f32 %v5862, %v6053
      %v6087 = vmul.f32 %v5863, %v6055
      %v6088 = vsub.f32 0.0, %v5800
      %v6089 = vsub.f32 0.0, %v5801
      %v6090 = vsub.f32 0.0, %v5802
      %v6091 = vsub.f32 0.0, %v5803
      %v6092 = vsub.f32 0.0, %v5804
      %v6093 = vsub.f32 0.0, %v5805
      %v6094 = vsub.f32 0.0, %v5806
      %v6095 = vsub.f32 0.0, %v5807
      %v6096 = vsub.f32 0.0, %v5808
      %v6097 = vsub.f32 0.0, %v5809
      %v6098 = vsub.f32 0.0, %v5810
      %v6099 = vsub.f32 0.0, %v5811
      %v6100 = vsub.f32 0.0, %v5812
      %v6101 = vsub.f32 0.0, %v5813
      %v6102 = vsub.f32 0.0, %v5814
      %v6103 = vsub.f32 0.0, %v5815
      %v6104 = vsub.f32 0.0, %v5816
      %v6105 = vsub.f32 0.0, %v5817
      %v6106 = vsub.f32 0.0, %v5818
      %v6107 = vsub.f32 0.0, %v5819
      %v6108 = vsub.f32 0.0, %v5820
      %v6109 = vsub.f32 0.0, %v5821
      %v6110 = vsub.f32 0.0, %v5822
      %v6111 = vsub.f32 0.0, %v5823
      %v6112 = vsub.f32 0.0, %v5824
      %v6113 = vsub.f32 0.0, %v5825
      %v6114 = vsub.f32 0.0, %v5826
      %v6115 = vsub.f32 0.0, %v5827
      %v6116 = vsub.f32 0.0, %v5828
      %v6117 = vsub.f32 0.0, %v5829
      %v6118 = vsub.f32 0.0, %v5830
      %v6119 = vsub.f32 0.0, %v5831
      %v6120 = vmul.f32 %v6088, 1.442695
      %v6121 = vpow.pop %v6120
      %v6122 = vmul.f32 %v6089, 1.442695
      %v6123 = vpow.pop %v6122
      %v6124 = vmul.f32 %v6090, 1.442695
      %v6125 = vpow.pop %v6124
      %v6126 = vmul.f32 %v6091, 1.442695
      %v6127 = vpow.pop %v6126
      %v6128 = vmul.f32 %v6092, 1.442695
      %v6129 = vpow.pop %v6128
      %v6130 = vmul.f32 %v6093, 1.442695
      %v6131 = vpow.pop %v6130
      %v6132 = vmul.f32 %v6094, 1.442695
      %v6133 = vpow.pop %v6132
      %v6134 = vmul.f32 %v6095, 1.442695
      %v6135 = vpow.pop %v6134
      %v6136 = vmul.f32 %v6096, 1.442695
      %v6137 = vpow.pop %v6136
      %v6138 = vmul.f32 %v6097, 1.442695
      %v6139 = vpow.pop %v6138
      %v6140 = vmul.f32 %v6098, 1.442695
      %v6141 = vpow.pop %v6140
      %v6142 = vmul.f32 %v6099, 1.442695
      %v6143 = vpow.pop %v6142
      %v6144 = vmul.f32 %v6100, 1.442695
      %v6145 = vpow.pop %v6144
      %v6146 = vmul.f32 %v6101, 1.442695
      %v6147 = vpow.pop %v6146
      %v6148 = vmul.f32 %v6102, 1.442695
      %v6149 = vpow.pop %v6148
      %v6150 = vmul.f32 %v6103, 1.442695
      %v6151 = vpow.pop %v6150
      %v6152 = vmul.f32 %v6104, 1.442695
      %v6153 = vpow.pop %v6152
      %v6154 = vmul.f32 %v6105, 1.442695
      %v6155 = vpow.pop %v6154
      %v6156 = vmul.f32 %v6106, 1.442695
      %v6157 = vpow.pop %v6156
      %v6158 = vmul.f32 %v6107, 1.442695
      %v6159 = vpow.pop %v6158
      %v6160 = vmul.f32 %v6108, 1.442695
      %v6161 = vpow.pop %v6160
      %v6162 = vmul.f32 %v6109, 1.442695
      %v6163 = vpow.pop %v6162
      %v6164 = vmul.f32 %v6110, 1.442695
      %v6165 = vpow.pop %v6164
      %v6166 = vmul.f32 %v6111, 1.442695
      %v6167 = vpow.pop %v6166
      %v6168 = vmul.f32 %v6112, 1.442695
      %v6169 = vpow.pop %v6168
      %v6170 = vmul.f32 %v6113, 1.442695
      %v6171 = vpow.pop %v6170
      %v6172 = vmul.f32 %v6114, 1.442695
      %v6173 = vpow.pop %v6172
      %v6174 = vmul.f32 %v6115, 1.442695
      %v6175 = vpow.pop %v6174
      %v6176 = vmul.f32 %v6116, 1.442695
      %v6177 = vpow.pop %v6176
      %v6178 = vmul.f32 %v6117, 1.442695
      %v6179 = vpow.pop %v6178
      %v6180 = vmul.f32 %v6118, 1.442695
      %v6181 = vpow.pop %v6180
      %v6182 = vmul.f32 %v6119, 1.442695
      %v6183 = vpow.pop %v6182
      %v6184 = vadd.f32 %v6121, 1.0
      %v6185 = vadd.f32 %v6123, 1.0
      %v6186 = vadd.f32 %v6125, 1.0
      %v6187 = vadd.f32 %v6127, 1.0
      %v6188 = vadd.f32 %v6129, 1.0
      %v6189 = vadd.f32 %v6131, 1.0
      %v6190 = vadd.f32 %v6133, 1.0
      %v6191 = vadd.f32 %v6135, 1.0
      %v6192 = vadd.f32 %v6137, 1.0
      %v6193 = vadd.f32 %v6139, 1.0
      %v6194 = vadd.f32 %v6141, 1.0
      %v6195 = vadd.f32 %v6143, 1.0
      %v6196 = vadd.f32 %v6145, 1.0
      %v6197 = vadd.f32 %v6147, 1.0
      %v6198 = vadd.f32 %v6149, 1.0
      %v6199 = vadd.f32 %v6151, 1.0
      %v6200 = vadd.f32 %v6153, 1.0
      %v6201 = vadd.f32 %v6155, 1.0
      %v6202 = vadd.f32 %v6157, 1.0
      %v6203 = vadd.f32 %v6159, 1.0
      %v6204 = vadd.f32 %v6161, 1.0
      %v6205 = vadd.f32 %v6163, 1.0
      %v6206 = vadd.f32 %v6165, 1.0
      %v6207 = vadd.f32 %v6167, 1.0
      %v6208 = vadd.f32 %v6169, 1.0
      %v6209 = vadd.f32 %v6171, 1.0
      %v6210 = vadd.f32 %v6173, 1.0
      %v6211 = vadd.f32 %v6175, 1.0
      %v6212 = vadd.f32 %v6177, 1.0
      %v6213 = vadd.f32 %v6179, 1.0
      %v6214 = vadd.f32 %v6181, 1.0
      %v6215 = vadd.f32 %v6183, 1.0
      %v6216 = vrcp.pop %v6184
      %v6217 = vmul.f32 1.0, %v6216
      %v6218 = vrcp.pop %v6185
      %v6219 = vmul.f32 1.0, %v6218
      %v6220 = vrcp.pop %v6186
      %v6221 = vmul.f32 1.0, %v6220
      %v6222 = vrcp.pop %v6187
      %v6223 = vmul.f32 1.0, %v6222
      %v6224 = vrcp.pop %v6188
      %v6225 = vmul.f32 1.0, %v6224
      %v6226 = vrcp.pop %v6189
      %v6227 = vmul.f32 1.0, %v6226
      %v6228 = vrcp.pop %v6190
      %v6229 = vmul.f32 1.0, %v6228
      %v6230 = vrcp.pop %v6191
      %v6231 = vmul.f32 1.0, %v6230
      %v6232 = vrcp.pop %v6192
      %v6233 = vmul.f32 1.0, %v6232
      %v6234 = vrcp.pop %v6193
      %v6235 = vmul.f32 1.0, %v6234
      %v6236 = vrcp.pop %v6194
      %v6237 = vmul.f32 1.0, %v6236
      %v6238 = vrcp.pop %v6195
      %v6239 = vmul.f32 1.0, %v6238
      %v6240 = vrcp.pop %v6196
      %v6241 = vmul.f32 1.0, %v6240
      %v6242 = vrcp.pop %v6197
      %v6243 = vmul.f32 1.0, %v6242
      %v6244 = vrcp.pop %v6198
      %v6245 = vmul.f32 1.0, %v6244
      %v6246 = vrcp.pop %v6199
      %v6247 = vmul.f32 1.0, %v6246
      %v6248 = vrcp.pop %v6200
      %v6249 = vmul.f32 1.0, %v6248
      %v6250 = vrcp.pop %v6201
      %v6251 = vmul.f32 1.0, %v6250
      %v6252 = vrcp.pop %v6202
      %v6253 = vmul.f32 1.0, %v6252
      %v6254 = vrcp.pop %v6203
      %v6255 = vmul.f32 1.0, %v6254
      %v6256 = vrcp.pop %v6204
      %v6257 = vmul.f32 1.0, %v6256
      %v6258 = vrcp.pop %v6205
      %v6259 = vmul.f32 1.0, %v6258
      %v6260 = vrcp.pop %v6206
      %v6261 = vmul.f32 1.0, %v6260
      %v6262 = vrcp.pop %v6207
      %v6263 = vmul.f32 1.0, %v6262
      %v6264 = vrcp.pop %v6208
      %v6265 = vmul.f32 1.0, %v6264
      %v6266 = vrcp.pop %v6209
      %v6267 = vmul.f32 1.0, %v6266
      %v6268 = vrcp.pop %v6210
      %v6269 = vmul.f32 1.0, %v6268
      %v6270 = vrcp.pop %v6211
      %v6271 = vmul.f32 1.0, %v6270
      %v6272 = vrcp.pop %v6212
      %v6273 = vmul.f32 1.0, %v6272
      %v6274 = vrcp.pop %v6213
      %v6275 = vmul.f32 1.0, %v6274
      %v6276 = vrcp.pop %v6214
      %v6277 = vmul.f32 1.0, %v6276
      %v6278 = vrcp.pop %v6215
      %v6279 = vmul.f32 1.0, %v6278
      %v6280 = vmul.f32 %v6056, %v6217
      %v6281 = vmul.f32 %v6057, %v6219
      %v6282 = vmul.f32 %v6058, %v6221
      %v6283 = vmul.f32 %v6059, %v6223
      %v6284 = vmul.f32 %v6060, %v6225
      %v6285 = vmul.f32 %v6061, %v6227
      %v6286 = vmul.f32 %v6062, %v6229
      %v6287 = vmul.f32 %v6063, %v6231
      %v6288 = vmul.f32 %v6064, %v6233
      %v6289 = vmul.f32 %v6065, %v6235
      %v6290 = vmul.f32 %v6066, %v6237
      %v6291 = vmul.f32 %v6067, %v6239
      %v6292 = vmul.f32 %v6068, %v6241
      %v6293 = vmul.f32 %v6069, %v6243
      %v6294 = vmul.f32 %v6070, %v6245
      %v6295 = vmul.f32 %v6071, %v6247
      %v6296 = vmul.f32 %v6072, %v6249
      %v6297 = vmul.f32 %v6073, %v6251
      %v6298 = vmul.f32 %v6074, %v6253
      %v6299 = vmul.f32 %v6075, %v6255
      %v6300 = vmul.f32 %v6076, %v6257
      %v6301 = vmul.f32 %v6077, %v6259
      %v6302 = vmul.f32 %v6078, %v6261
      %v6303 = vmul.f32 %v6079, %v6263
      %v6304 = vmul.f32 %v6080, %v6265
      %v6305 = vmul.f32 %v6081, %v6267
      %v6306 = vmul.f32 %v6082, %v6269
      %v6307 = vmul.f32 %v6083, %v6271
      %v6308 = vmul.f32 %v6084, %v6273
      %v6309 = vmul.f32 %v6085, %v6275
      %v6310 = vmul.f32 %v6086, %v6277
      %v6311 = vmul.f32 %v6087, %v6279
      %v6312 = vld [vmem:[%s6] sm:$0xf]
      %v6314 = vsel %vm417, %v6280, 0
      %v6317 = vsel %vm417, %v6281, 0
      %v6320 = vsel %vm417, %v6282, 0
      %v6323 = vsel %vm417, %v6283, 0
      %v6326 = vsel %vm417, %v6284, 0
      %v6329 = vsel %vm417, %v6285, 0
      %v6332 = vsel %vm417, %v6286, 0
      %v6335 = vsel %vm417, %v6287, 0
      %v6338 = vsel %vm417, %v6288, 0
      %v6341 = vsel %vm417, %v6289, 0
      %v6344 = vsel %vm417, %v6290, 0
      %v6347 = vsel %vm417, %v6291, 0
      %v6350 = vsel %vm417, %v6292, 0
      %v6353 = vsel %vm417, %v6293, 0
      %v6356 = vsel %vm417, %v6294, 0
      %v6359 = vsel %vm417, %v6295, 0
      %v6362 = vsel %vm417, %v6296, 0
      %v6365 = vsel %vm417, %v6297, 0
      %v6368 = vsel %vm417, %v6298, 0
      %v6371 = vsel %vm417, %v6299, 0
      %v6374 = vsel %vm417, %v6300, 0
      %v6377 = vsel %vm417, %v6301, 0
      %v6380 = vsel %vm417, %v6302, 0
      %v6383 = vsel %vm417, %v6303, 0
      %v6386 = vsel %vm417, %v6304, 0
      %v6389 = vsel %vm417, %v6305, 0
      %v6392 = vsel %vm417, %v6306, 0
      %v6395 = vsel %vm417, %v6307, 0
      %v6398 = vsel %vm417, %v6308, 0
      %v6401 = vsel %vm417, %v6309, 0
      %v6404 = vsel %vm417, %v6310, 0
      %v6407 = vsel %vm417, %v6311, 0
      %v6410 = vsel %vm2756, %v6312, 0
      %6412 = vmatprep.subr.mxu0 0.0
      %6413 = vmatpush1.msra.mxu0 %v6410
      %6414 = vmatprep.subr.mxu0 0.0
      %6415 = vmatpush1.msra.mxu0 0.0
      %6416 = vmatprep.subr.mxu0 0.0
      %6417 = vmatpush1.msra.mxu0 0.0
      %6418 = vmatprep.subr.mxu0 0.0
      %6419 = vmatpush1.msra.mxu0 0.0
      %6420 = vmatprep.subr.mxu0 0.0
      %6421 = vmatpush1.msra.mxu0 0.0
      %6422 = vmatprep.subr.mxu0 0.0
      %6423 = vmatpush1.msra.mxu0 0.0
      %6424 = vmatprep.subr.mxu0 0.0
      %6425 = vmatpush1.msra.mxu0 0.0
      %6426 = vmatprep.subr.mxu0 0.0
      %6427 = vmatpush1.msra.mxu0 0.0
      %6428 = vmatprep.subr.mxu0 0.0
      %6429 = vmatpush1.msra.mxu0 0.0
      %6430 = vmatprep.subr.mxu0 0.0
      %6431 = vmatpush1.msra.mxu0 0.0
      %6432 = vmatprep.subr.mxu0 0.0
      %6433 = vmatpush1.msra.mxu0 0.0
      %6434 = vmatprep.subr.mxu0 0.0
      %6435 = vmatpush1.msra.mxu0 0.0
      %6436 = vmatprep.subr.mxu0 0.0
      %6437 = vmatpush1.msra.mxu0 0.0
      %6438 = vmatprep.subr.mxu0 0.0
      %6439 = vmatpush1.msra.mxu0 0.0
      %6440 = vmatprep.subr.mxu0 0.0
      %6441 = vmatpush1.msra.mxu0 0.0
      %6442 = vmatprep.subr.mxu0 0.0
      %6443 = vmatpush1.msra.mxu0 0.0
      %6444 = vmatprep.subr.mxu0 0.0
      %6445 = vmatpush1.msra.mxu0 0.0
      %6446 = vmatprep.subr.mxu0 0.0
      %6447 = vmatpush1.msra.mxu0 0.0
      %6448 = vmatprep.subr.mxu0 0.0
      %6449 = vmatpush1.msra.mxu0 0.0
      %6450 = vmatprep.subr.mxu0 0.0
      %6451 = vmatpush1.msra.mxu0 0.0
      %6452 = vmatprep.subr.mxu0 0.0
      %6453 = vmatpush1.msra.mxu0 0.0
      %6454 = vmatprep.subr.mxu0 0.0
      %6455 = vmatpush1.msra.mxu0 0.0
      %6456 = vmatprep.subr.mxu0 0.0
      %6457 = vmatpush1.msra.mxu0 0.0
      %6458 = vmatprep.subr.mxu0 0.0
      %6459 = vmatpush1.msra.mxu0 0.0
      %6460 = vmatprep.subr.mxu0 0.0
      %6461 = vmatpush1.msra.mxu0 0.0
      %6462 = vmatprep.subr.mxu0 0.0
      %6463 = vmatpush1.msra.mxu0 0.0
      %6464 = vmatprep.subr.mxu0 0.0
      %6465 = vmatpush1.msra.mxu0 0.0
      %6466 = vmatprep.subr.mxu0 0.0
      %6467 = vmatpush1.msra.mxu0 0.0
      %6468 = vmatprep.subr.mxu0 0.0
      %6469 = vmatpush1.msra.mxu0 0.0
      %6470 = vmatprep.subr.mxu0 0.0
      %6471 = vmatpush1.msra.mxu0 0.0
      %6472 = vmatprep.subr.mxu0 0.0
      %6473 = vmatpush1.msra.mxu0 0.0
      %6474 = vmatprep.subr.mxu0 0.0
      %6475 = vmatpush1.msra.mxu0 0.0
      %6476 = vmatprep.mubr.f32.mxu0 0.0
      %6477 = vmatmul.mubr.f32.gmra.mrb[0].mxu0 %v6314
      %v6478 = vpop.f32.mrb[0].mxu0
      %v6479 = vadd.f32 0.0, %v6478
      %v6480 = vpop.f32.mrb[0].mxu0
      %6481 = vmatprep.mubr.f32.mxu0 0.0
      %6482 = vmatmul.mubr.f32.gmra.mrb[0].mxu0 %v6317
      %v6483 = vpop.f32.mrb[0].mxu0
      %v6484 = vadd.f32 0.0, %v6483
      %v6485 = vpop.f32.mrb[0].mxu0
      %6486 = vmatprep.mubr.f32.mxu0 0.0
      %6487 = vmatmul.mubr.f32.gmra.mrb[0].mxu0 %v6320
      %v6488 = vpop.f32.mrb[0].mxu0
      %v6489 = vadd.f32 0.0, %v6488
      %v6490 = vpop.f32.mrb[0].mxu0
      %6491 = vmatprep.mubr.f32.mxu0 0.0
      %6492 = vmatmul.mubr.f32.gmra.mrb[0].mxu0 %v6323
      %v6493 = vpop.f32.mrb[0].mxu0
      %v6494 = vadd.f32 0.0, %v6493
      %v6495 = vpop.f32.mrb[0].mxu0
      %6496 = vmatprep.mubr.f32.mxu0 0.0
      %6497 = vmatmul.mubr.f32.gmra.mrb[0].mxu0 %v6326
      %v6498 = vpop.f32.mrb[0].mxu0
      %v6499 = vadd.f32 0.0, %v6498
      %v6500 = vpop.f32.mrb[0].mxu0
      %6501 = vmatprep.mubr.f32.mxu0 0.0
      %6502 = vmatmul.mubr.f32.gmra.mrb[0].mxu0 %v6329
      %v6503 = vpop.f32.mrb[0].mxu0
      %v6504 = vadd.f32 0.0, %v6503
      %v6505 = vpop.f32.mrb[0].mxu0
      %6506 = vmatprep.mubr.f32.mxu0 0.0
      %6507 = vmatmul.mubr.f32.gmra.mrb[0].mxu0 %v6332
      %v6508 = vpop.f32.mrb[0].mxu0
      %v6509 = vadd.f32 0.0, %v6508
      %v6510 = vpop.f32.mrb[0].mxu0
      %6511 = vmatprep.mubr.f32.mxu0 0.0
      %6512 = vmatmul.mubr.f32.gmra.mrb[0].mxu0 %v6335
      %v6513 = vpop.f32.mrb[0].mxu0
      %v6514 = vadd.f32 0.0, %v6513
      %v6515 = vpop.f32.mrb[0].mxu0
      %6516 = vmatprep.mubr.f32.mxu0 0.0
      %6517 = vmatmul.mubr.f32.gmra.mrb[0].mxu0 %v6338
      %v6518 = vpop.f32.mrb[0].mxu0
      %v6519 = vadd.f32 0.0, %v6518
      %v6520 = vpop.f32.mrb[0].mxu0
      %6521 = vmatprep.mubr.f32.mxu0 0.0
      %6522 = vmatmul.mubr.f32.gmra.mrb[0].mxu0 %v6341
      %v6523 = vpop.f32.mrb[0].mxu0
      %v6524 = vadd.f32 0.0, %v6523
      %v6525 = vpop.f32.mrb[0].mxu0
      %6526 = vmatprep.mubr.f32.mxu0 0.0
      %6527 = vmatmul.mubr.f32.gmra.mrb[0].mxu0 %v6344
      %v6528 = vpop.f32.mrb[0].mxu0
      %v6529 = vadd.f32 0.0, %v6528
      %v6530 = vpop.f32.mrb[0].mxu0
      %6531 = vmatprep.mubr.f32.mxu0 0.0
      %6532 = vmatmul.mubr.f32.gmra.mrb[0].mxu0 %v6347
      %v6533 = vpop.f32.mrb[0].mxu0
      %v6534 = vadd.f32 0.0, %v6533
      %v6535 = vpop.f32.mrb[0].mxu0
      %6536 = vmatprep.mubr.f32.mxu0 0.0
      %6537 = vmatmul.mubr.f32.gmra.mrb[0].mxu0 %v6350
      %v6538 = vpop.f32.mrb[0].mxu0
      %v6539 = vadd.f32 0.0, %v6538
      %v6540 = vpop.f32.mrb[0].mxu0
      %6541 = vmatprep.mubr.f32.mxu0 0.0
      %6542 = vmatmul.mubr.f32.gmra.mrb[0].mxu0 %v6353
      %v6543 = vpop.f32.mrb[0].mxu0
      %v6544 = vadd.f32 0.0, %v6543
      %v6545 = vpop.f32.mrb[0].mxu0
      %6546 = vmatprep.mubr.f32.mxu0 0.0
      %6547 = vmatmul.mubr.f32.gmra.mrb[0].mxu0 %v6356
      %v6548 = vpop.f32.mrb[0].mxu0
      %v6549 = vadd.f32 0.0, %v6548
      %v6550 = vpop.f32.mrb[0].mxu0
      %6551 = vmatprep.mubr.f32.mxu0 0.0
      %6552 = vmatmul.mubr.f32.gmra.mrb[0].mxu0 %v6359
      %v6553 = vpop.f32.mrb[0].mxu0
      %v6554 = vadd.f32 0.0, %v6553
      %v6555 = vpop.f32.mrb[0].mxu0
      %6556 = vmatprep.mubr.f32.mxu0 0.0
      %6557 = vmatmul.mubr.f32.gmra.mrb[0].mxu0 %v6362
      %v6558 = vpop.f32.mrb[0].mxu0
      %v6559 = vadd.f32 0.0, %v6558
      %v6560 = vpop.f32.mrb[0].mxu0
      %6561 = vmatprep.mubr.f32.mxu0 0.0
      %6562 = vmatmul.mubr.f32.gmra.mrb[0].mxu0 %v6365
      %v6563 = vpop.f32.mrb[0].mxu0
      %v6564 = vadd.f32 0.0, %v6563
      %v6565 = vpop.f32.mrb[0].mxu0
      %6566 = vmatprep.mubr.f32.mxu0 0.0
      %6567 = vmatmul.mubr.f32.gmra.mrb[0].mxu0 %v6368
      %v6568 = vpop.f32.mrb[0].mxu0
      %v6569 = vadd.f32 0.0, %v6568
      %v6570 = vpop.f32.mrb[0].mxu0
      %6571 = vmatprep.mubr.f32.mxu0 0.0
      %6572 = vmatmul.mubr.f32.gmra.mrb[0].mxu0 %v6371
      %v6573 = vpop.f32.mrb[0].mxu0
      %v6574 = vadd.f32 0.0, %v6573
      %v6575 = vpop.f32.mrb[0].mxu0
      %6576 = vmatprep.mubr.f32.mxu0 0.0
      %6577 = vmatmul.mubr.f32.gmra.mrb[0].mxu0 %v6374
      %v6578 = vpop.f32.mrb[0].mxu0
      %v6579 = vadd.f32 0.0, %v6578
      %v6580 = vpop.f32.mrb[0].mxu0
      %6581 = vmatprep.mubr.f32.mxu0 0.0
      %6582 = vmatmul.mubr.f32.gmra.mrb[0].mxu0 %v6377
      %v6583 = vpop.f32.mrb[0].mxu0
      %v6584 = vadd.f32 0.0, %v6583
      %v6585 = vpop.f32.mrb[0].mxu0
      %6586 = vmatprep.mubr.f32.mxu0 0.0
      %6587 = vmatmul.mubr.f32.gmra.mrb[0].mxu0 %v6380
      %v6588 = vpop.f32.mrb[0].mxu0
      %v6589 = vadd.f32 0.0, %v6588
      %v6590 = vpop.f32.mrb[0].mxu0
      %6591 = vmatprep.mubr.f32.mxu0 0.0
      %6592 = vmatmul.mubr.f32.gmra.mrb[0].mxu0 %v6383
      %v6593 = vpop.f32.mrb[0].mxu0
      %v6594 = vadd.f32 0.0, %v6593
      %v6595 = vpop.f32.mrb[0].mxu0
      %6596 = vmatprep.mubr.f32.mxu0 0.0
      %6597 = vmatmul.mubr.f32.gmra.mrb[0].mxu0 %v6386
      %v6598 = vpop.f32.mrb[0].mxu0
      %v6599 = vadd.f32 0.0, %v6598
      %v6600 = vpop.f32.mrb[0].mxu0
      %6601 = vmatprep.mubr.f32.mxu0 0.0
      %6602 = vmatmul.mubr.f32.gmra.mrb[0].mxu0 %v6389
      %v6603 = vpop.f32.mrb[0].mxu0
      %v6604 = vadd.f32 0.0, %v6603
      %v6605 = vpop.f32.mrb[0].mxu0
      %6606 = vmatprep.mubr.f32.mxu0 0.0
      %6607 = vmatmul.mubr.f32.gmra.mrb[0].mxu0 %v6392
      %v6608 = vpop.f32.mrb[0].mxu0
      %v6609 = vadd.f32 0.0, %v6608
      %v6610 = vpop.f32.mrb[0].mxu0
      %6611 = vmatprep.mubr.f32.mxu0 0.0
      %6612 = vmatmul.mubr.f32.gmra.mrb[0].mxu0 %v6395
      %v6613 = vpop.f32.mrb[0].mxu0
      %v6614 = vadd.f32 0.0, %v6613
      %v6615 = vpop.f32.mrb[0].mxu0
      %6616 = vmatprep.mubr.f32.mxu0 0.0
      %6617 = vmatmul.mubr.f32.gmra.mrb[0].mxu0 %v6398
      %v6618 = vpop.f32.mrb[0].mxu0
      %v6619 = vadd.f32 0.0, %v6618
      %v6620 = vpop.f32.mrb[0].mxu0
      %6621 = vmatprep.mubr.f32.mxu0 0.0
      %6622 = vmatmul.mubr.f32.gmra.mrb[0].mxu0 %v6401
      %v6623 = vpop.f32.mrb[0].mxu0
      %v6624 = vadd.f32 0.0, %v6623
      %v6625 = vpop.f32.mrb[0].mxu0
      %6626 = vmatprep.mubr.f32.mxu0 0.0
      %6627 = vmatmul.mubr.f32.gmra.mrb[0].mxu0 %v6404
      %v6628 = vpop.f32.mrb[0].mxu0
      %v6629 = vadd.f32 0.0, %v6628
      %v6630 = vpop.f32.mrb[0].mxu0
      %6631 = vmatprep.mubr.f32.mxu0 0.0
      %6632 = vmatmul.mubr.f32.gmra.mrb[0].mxu0 %v6407
      %v6633 = vpop.f32.mrb[0].mxu0
      %v6634 = vadd.f32 0.0, %v6633
      %v6635 = vpop.f32.mrb[0].mxu0
      %6636 = vdwg.mxu0
      %v6637 = vld [vmem:[%s8 + $0x8] sm:$0x1]
      %v6638 = vlaneseq
      %v6639 = vshrl.u32 %v6638, 7
      %v6640 = vsub.s32 0, %v6639
      %v6641 = vrot.slane %v6637, %v6640
      %v6642 = vmul.f32 %v6479, %v6641
      %v6643 = vmul.f32 %v6484, %v6641
      %v6644 = vmul.f32 %v6489, %v6641
      %v6645 = vmul.f32 %v6494, %v6641
      %v6646 = vmul.f32 %v6499, %v6641
      %v6647 = vmul.f32 %v6504, %v6641
      %v6648 = vmul.f32 %v6509, %v6641
      %v6649 = vmul.f32 %v6514, %v6641
      %v6650 = vmul.f32 %v6519, %v6641
      %v6651 = vmul.f32 %v6524, %v6641
      %v6652 = vmul.f32 %v6529, %v6641
      %v6653 = vmul.f32 %v6534, %v6641
      %v6654 = vmul.f32 %v6539, %v6641
      %v6655 = vmul.f32 %v6544, %v6641
      %v6656 = vmul.f32 %v6549, %v6641
      %v6657 = vmul.f32 %v6554, %v6641
      %v6658 = vmul.f32 %v6559, %v6641
      %v6659 = vmul.f32 %v6564, %v6641
      %v6660 = vmul.f32 %v6569, %v6641
      %v6661 = vmul.f32 %v6574, %v6641
      %v6662 = vmul.f32 %v6579, %v6641
      %v6663 = vmul.f32 %v6584, %v6641
      %v6664 = vmul.f32 %v6589, %v6641
      %v6665 = vmul.f32 %v6594, %v6641
      %v6666 = vmul.f32 %v6599, %v6641
      %v6667 = vmul.f32 %v6604, %v6641
      %v6668 = vmul.f32 %v6609, %v6641
      %v6669 = vmul.f32 %v6614, %v6641
      %v6670 = vmul.f32 %v6619, %v6641
      %v6671 = vmul.f32 %v6624, %v6641
      %v6672 = vmul.f32 %v6629, %v6641
      %v6673 = vmul.f32 %v6634, %v6641
      %v6674 = vld [vmem:[%s8 + $0x9] sm:$0x1]
      %v6675 = vlaneseq
      %v6676 = vshrl.u32 %v6675, 7
      %v6677 = vsub.s32 0, %v6676
      %v6678 = vrot.slane %v6674, %v6677
      %v6679 = vadd.f32 %v6642, %v6678
      %v6680 = vadd.f32 %v6643, %v6678
      %v6681 = vadd.f32 %v6644, %v6678
      %v6682 = vadd.f32 %v6645, %v6678
      %v6683 = vadd.f32 %v6646, %v6678
      %v6684 = vadd.f32 %v6647, %v6678
      %v6685 = vadd.f32 %v6648, %v6678
      %v6686 = vadd.f32 %v6649, %v6678
      %v6687 = vadd.f32 %v6650, %v6678
      %v6688 = vadd.f32 %v6651, %v6678
      %v6689 = vadd.f32 %v6652, %v6678
      %v6690 = vadd.f32 %v6653, %v6678
      %v6691 = vadd.f32 %v6654, %v6678
      %v6692 = vadd.f32 %v6655, %v6678
      %v6693 = vadd.f32 %v6656, %v6678
      %v6694 = vadd.f32 %v6657, %v6678
      %v6695 = vadd.f32 %v6658, %v6678
      %v6696 = vadd.f32 %v6659, %v6678
      %v6697 = vadd.f32 %v6660, %v6678
      %v6698 = vadd.f32 %v6661, %v6678
      %v6699 = vadd.f32 %v6662, %v6678
      %v6700 = vadd.f32 %v6663, %v6678
      %v6701 = vadd.f32 %v6664, %v6678
      %v6702 = vadd.f32 %v6665, %v6678
      %v6703 = vadd.f32 %v6666, %v6678
      %v6704 = vadd.f32 %v6667, %v6678
      %v6705 = vadd.f32 %v6668, %v6678
      %v6706 = vadd.f32 %v6669, %v6678
      %v6707 = vadd.f32 %v6670, %v6678
      %v6708 = vadd.f32 %v6671, %v6678
      %v6709 = vadd.f32 %v6672, %v6678
      %v6710 = vadd.f32 %v6673, %v6678
      %v6711 = vsub.f32 0.0, %v6679
      %v6712 = vsub.f32 0.0, %v6680
      %v6713 = vsub.f32 0.0, %v6681
      %v6714 = vsub.f32 0.0, %v6682
      %v6715 = vsub.f32 0.0, %v6683
      %v6716 = vsub.f32 0.0, %v6684
      %v6717 = vsub.f32 0.0, %v6685
      %v6718 = vsub.f32 0.0, %v6686
      %v6719 = vsub.f32 0.0, %v6687
      %v6720 = vsub.f32 0.0, %v6688
      %v6721 = vsub.f32 0.0, %v6689
      %v6722 = vsub.f32 0.0, %v6690
      %v6723 = vsub.f32 0.0, %v6691
      %v6724 = vsub.f32 0.0, %v6692
      %v6725 = vsub.f32 0.0, %v6693
      %v6726 = vsub.f32 0.0, %v6694
      %v6727 = vsub.f32 0.0, %v6695
      %v6728 = vsub.f32 0.0, %v6696
      %v6729 = vsub.f32 0.0, %v6697
      %v6730 = vsub.f32 0.0, %v6698
      %v6731 = vsub.f32 0.0, %v6699
      %v6732 = vsub.f32 0.0, %v6700
      %v6733 = vsub.f32 0.0, %v6701
      %v6734 = vsub.f32 0.0, %v6702
      %v6735 = vsub.f32 0.0, %v6703
      %v6736 = vsub.f32 0.0, %v6704
      %v6737 = vsub.f32 0.0, %v6705
      %v6738 = vsub.f32 0.0, %v6706
      %v6739 = vsub.f32 0.0, %v6707
      %v6740 = vsub.f32 0.0, %v6708
      %v6741 = vsub.f32 0.0, %v6709
      %v6742 = vsub.f32 0.0, %v6710
      %v6743 = vmul.f32 %v6711, 1.442695
      %v6744 = vpow.pop %v6743
      %v6745 = vmul.f32 %v6712, 1.442695
      %v6746 = vpow.pop %v6745
      %v6747 = vmul.f32 %v6713, 1.442695
      %v6748 = vpow.pop %v6747
      %v6749 = vmul.f32 %v6714, 1.442695
      %v6750 = vpow.pop %v6749
      %v6751 = vmul.f32 %v6715, 1.442695
      %v6752 = vpow.pop %v6751
      %v6753 = vmul.f32 %v6716, 1.442695
      %v6754 = vpow.pop %v6753
      %v6755 = vmul.f32 %v6717, 1.442695
      %v6756 = vpow.pop %v6755
      %v6757 = vmul.f32 %v6718, 1.442695
      %v6758 = vpow.pop %v6757
      %v6759 = vmul.f32 %v6719, 1.442695
      %v6760 = vpow.pop %v6759
      %v6761 = vmul.f32 %v6720, 1.442695
      %v6762 = vpow.pop %v6761
      %v6763 = vmul.f32 %v6721, 1.442695
      %v6764 = vpow.pop %v6763
      %v6765 = vmul.f32 %v6722, 1.442695
      %v6766 = vpow.pop %v6765
      %v6767 = vmul.f32 %v6723, 1.442695
      %v6768 = vpow.pop %v6767
      %v6769 = vmul.f32 %v6724, 1.442695
      %v6770 = vpow.pop %v6769
      %v6771 = vmul.f32 %v6725, 1.442695
      %v6772 = vpow.pop %v6771
      %v6773 = vmul.f32 %v6726, 1.442695
      %v6774 = vpow.pop %v6773
      %v6775 = vmul.f32 %v6727, 1.442695
      %v6776 = vpow.pop %v6775
      %v6777 = vmul.f32 %v6728, 1.442695
      %v6778 = vpow.pop %v6777
      %v6779 = vmul.f32 %v6729, 1.442695
      %v6780 = vpow.pop %v6779
      %v6781 = vmul.f32 %v6730, 1.442695
      %v6782 = vpow.pop %v6781
      %v6783 = vmul.f32 %v6731, 1.442695
      %v6784 = vpow.pop %v6783
      %v6785 = vmul.f32 %v6732, 1.442695
      %v6786 = vpow.pop %v6785
      %v6787 = vmul.f32 %v6733, 1.442695
      %v6788 = vpow.pop %v6787
      %v6789 = vmul.f32 %v6734, 1.442695
      %v6790 = vpow.pop %v6789
      %v6791 = vmul.f32 %v6735, 1.442695
      %v6792 = vpow.pop %v6791
      %v6793 = vmul.f32 %v6736, 1.442695
      %v6794 = vpow.pop %v6793
      %v6795 = vmul.f32 %v6737, 1.442695
      %v6796 = vpow.pop %v6795
      %v6797 = vmul.f32 %v6738, 1.442695
      %v6798 = vpow.pop %v6797
      %v6799 = vmul.f32 %v6739, 1.442695
      %v6800 = vpow.pop %v6799
      %v6801 = vmul.f32 %v6740, 1.442695
      %v6802 = vpow.pop %v6801
      %v6803 = vmul.f32 %v6741, 1.442695
      %v6804 = vpow.pop %v6803
      %v6805 = vmul.f32 %v6742, 1.442695
      %v6806 = vpow.pop %v6805
      %v6807 = vadd.f32 %v6744, 1.0
      %v6808 = vadd.f32 %v6746, 1.0
      %v6809 = vadd.f32 %v6748, 1.0
      %v6810 = vadd.f32 %v6750, 1.0
      %v6811 = vadd.f32 %v6752, 1.0
      %v6812 = vadd.f32 %v6754, 1.0
      %v6813 = vadd.f32 %v6756, 1.0
      %v6814 = vadd.f32 %v6758, 1.0
      %v6815 = vadd.f32 %v6760, 1.0
      %v6816 = vadd.f32 %v6762, 1.0
      %v6817 = vadd.f32 %v6764, 1.0
      %v6818 = vadd.f32 %v6766, 1.0
      %v6819 = vadd.f32 %v6768, 1.0
      %v6820 = vadd.f32 %v6770, 1.0
      %v6821 = vadd.f32 %v6772, 1.0
      %v6822 = vadd.f32 %v6774, 1.0
      %v6823 = vadd.f32 %v6776, 1.0
      %v6824 = vadd.f32 %v6778, 1.0
      %v6825 = vadd.f32 %v6780, 1.0
      %v6826 = vadd.f32 %v6782, 1.0
      %v6827 = vadd.f32 %v6784, 1.0
      %v6828 = vadd.f32 %v6786, 1.0
      %v6829 = vadd.f32 %v6788, 1.0
      %v6830 = vadd.f32 %v6790, 1.0
      %v6831 = vadd.f32 %v6792, 1.0
      %v6832 = vadd.f32 %v6794, 1.0
      %v6833 = vadd.f32 %v6796, 1.0
      %v6834 = vadd.f32 %v6798, 1.0
      %v6835 = vadd.f32 %v6800, 1.0
      %v6836 = vadd.f32 %v6802, 1.0
      %v6837 = vadd.f32 %v6804, 1.0
      %v6838 = vadd.f32 %v6806, 1.0
      %v6839 = vrcp.pop %v6807
      %v6840 = vmul.f32 1.0, %v6839
      %v6841 = vrcp.pop %v6808
      %v6842 = vmul.f32 1.0, %v6841
      %v6843 = vrcp.pop %v6809
      %v6844 = vmul.f32 1.0, %v6843
      %v6845 = vrcp.pop %v6810
      %v6846 = vmul.f32 1.0, %v6845
      %v6847 = vrcp.pop %v6811
      %v6848 = vmul.f32 1.0, %v6847
      %v6849 = vrcp.pop %v6812
      %v6850 = vmul.f32 1.0, %v6849
      %v6851 = vrcp.pop %v6813
      %v6852 = vmul.f32 1.0, %v6851
      %v6853 = vrcp.pop %v6814
      %v6854 = vmul.f32 1.0, %v6853
      %v6855 = vrcp.pop %v6815
      %v6856 = vmul.f32 1.0, %v6855
      %v6857 = vrcp.pop %v6816
      %v6858 = vmul.f32 1.0, %v6857
      %v6859 = vrcp.pop %v6817
      %v6860 = vmul.f32 1.0, %v6859
      %v6861 = vrcp.pop %v6818
      %v6862 = vmul.f32 1.0, %v6861
      %v6863 = vrcp.pop %v6819
      %v6864 = vmul.f32 1.0, %v6863
      %v6865 = vrcp.pop %v6820
      %v6866 = vmul.f32 1.0, %v6865
      %v6867 = vrcp.pop %v6821
      %v6868 = vmul.f32 1.0, %v6867
      %v6869 = vrcp.pop %v6822
      %v6870 = vmul.f32 1.0, %v6869
      %v6871 = vrcp.pop %v6823
      %v6872 = vmul.f32 1.0, %v6871
      %v6873 = vrcp.pop %v6824
      %v6874 = vmul.f32 1.0, %v6873
      %v6875 = vrcp.pop %v6825
      %v6876 = vmul.f32 1.0, %v6875
      %v6877 = vrcp.pop %v6826
      %v6878 = vmul.f32 1.0, %v6877
      %v6879 = vrcp.pop %v6827
      %v6880 = vmul.f32 1.0, %v6879
      %v6881 = vrcp.pop %v6828
      %v6882 = vmul.f32 1.0, %v6881
      %v6883 = vrcp.pop %v6829
      %v6884 = vmul.f32 1.0, %v6883
      %v6885 = vrcp.pop %v6830
      %v6886 = vmul.f32 1.0, %v6885
      %v6887 = vrcp.pop %v6831
      %v6888 = vmul.f32 1.0, %v6887
      %v6889 = vrcp.pop %v6832
      %v6890 = vmul.f32 1.0, %v6889
      %v6891 = vrcp.pop %v6833
      %v6892 = vmul.f32 1.0, %v6891
      %v6893 = vrcp.pop %v6834
      %v6894 = vmul.f32 1.0, %v6893
      %v6895 = vrcp.pop %v6835
      %v6896 = vmul.f32 1.0, %v6895
      %v6897 = vrcp.pop %v6836
      %v6898 = vmul.f32 1.0, %v6897
      %v6899 = vrcp.pop %v6837
      %v6900 = vmul.f32 1.0, %v6899
      %v6901 = vrcp.pop %v6838
      %v6902 = vmul.f32 1.0, %v6901
      %v6903 = vmul.f32 %v6840, %v353
      %v6904 = vmul.f32 %v6842, %v354
      %v6905 = vmul.f32 %v6844, %v355
      %v6906 = vmul.f32 %v6846, %v356
      %v6907 = vmul.f32 %v6848, %v357
      %v6908 = vmul.f32 %v6850, %v358
      %v6909 = vmul.f32 %v6852, %v359
      %v6910 = vmul.f32 %v6854, %v360
      %v6911 = vmul.f32 %v6856, %v361
      %v6912 = vmul.f32 %v6858, %v362
      %v6913 = vmul.f32 %v6860, %v363
      %v6914 = vmul.f32 %v6862, %v364
      %v6915 = vmul.f32 %v6864, %v365
      %v6916 = vmul.f32 %v6866, %v366
      %v6917 = vmul.f32 %v6868, %v367
      %v6918 = vmul.f32 %v6870, %v368
      %v6919 = vmul.f32 %v6872, %v369
      %v6920 = vmul.f32 %v6874, %v370
      %v6921 = vmul.f32 %v6876, %v371
      %v6922 = vmul.f32 %v6878, %v372
      %v6923 = vmul.f32 %v6880, %v373
      %v6924 = vmul.f32 %v6882, %v374
      %v6925 = vmul.f32 %v6884, %v375
      %v6926 = vmul.f32 %v6886, %v376
      %v6927 = vmul.f32 %v6888, %v377
      %v6928 = vmul.f32 %v6890, %v378
      %v6929 = vmul.f32 %v6892, %v379
      %v6930 = vmul.f32 %v6894, %v380
      %v6931 = vmul.f32 %v6896, %v381
      %v6932 = vmul.f32 %v6898, %v382
      %v6933 = vmul.f32 %v6900, %v383
      %v6934 = vmul.f32 %v6902, %v384
      %v6935 = vld [vmem:[%s7] sm:$0xf]
      %v6937 = vsel %vm417, %v6903, 0
      %v6940 = vsel %vm417, %v6904, 0
      %v6943 = vsel %vm417, %v6905, 0
      %v6946 = vsel %vm417, %v6906, 0
      %v6949 = vsel %vm417, %v6907, 0
      %v6952 = vsel %vm417, %v6908, 0
      %v6955 = vsel %vm417, %v6909, 0
      %v6958 = vsel %vm417, %v6910, 0
      %v6961 = vsel %vm417, %v6911, 0
      %v6964 = vsel %vm417, %v6912, 0
      %v6967 = vsel %vm417, %v6913, 0
      %v6970 = vsel %vm417, %v6914, 0
      %v6973 = vsel %vm417, %v6915, 0
      %v6976 = vsel %vm417, %v6916, 0
      %v6979 = vsel %vm417, %v6917, 0
      %v6982 = vsel %vm417, %v6918, 0
      %v6985 = vsel %vm417, %v6919, 0
      %v6988 = vsel %vm417, %v6920, 0
      %v6991 = vsel %vm417, %v6921, 0
      %v6994 = vsel %vm417, %v6922, 0
      %v6997 = vsel %vm417, %v6923, 0
      %v7000 = vsel %vm417, %v6924, 0
      %v7003 = vsel %vm417, %v6925, 0
      %v7006 = vsel %vm417, %v6926, 0
      %v7009 = vsel %vm417, %v6927, 0
      %v7012 = vsel %vm417, %v6928, 0
      %v7015 = vsel %vm417, %v6929, 0
      %v7018 = vsel %vm417, %v6930, 0
      %v7021 = vsel %vm417, %v6931, 0
      %v7024 = vsel %vm417, %v6932, 0
      %v7027 = vsel %vm417, %v6933, 0
      %v7030 = vsel %vm417, %v6934, 0
      %v7033 = vsel %vm2756, %v6935, 0
      %7035 = vmatprep.subr.mxu0 0.0
      %7036 = vmatpush1.msra.mxu0 %v7033
      %7037 = vmatprep.subr.mxu0 0.0
      %7038 = vmatpush1.msra.mxu0 0.0
      %7039 = vmatprep.subr.mxu0 0.0
      %7040 = vmatpush1.msra.mxu0 0.0
      %7041 = vmatprep.subr.mxu0 0.0
      %7042 = vmatpush1.msra.mxu0 0.0
      %7043 = vmatprep.subr.mxu0 0.0
      %7044 = vmatpush1.msra.mxu0 0.0
      %7045 = vmatprep.subr.mxu0 0.0
      %7046 = vmatpush1.msra.mxu0 0.0
      %7047 = vmatprep.subr.mxu0 0.0
      %7048 = vmatpush1.msra.mxu0 0.0
      %7049 = vmatprep.subr.mxu0 0.0
      %7050 = vmatpush1.msra.mxu0 0.0
      %7051 = vmatprep.subr.mxu0 0.0
      %7052 = vmatpush1.msra.mxu0 0.0
      %7053 = vmatprep.subr.mxu0 0.0
      %7054 = vmatpush1.msra.mxu0 0.0
      %7055 = vmatprep.subr.mxu0 0.0
      %7056 = vmatpush1.msra.mxu0 0.0
      %7057 = vmatprep.subr.mxu0 0.0
      %7058 = vmatpush1.msra.mxu0 0.0
      %7059 = vmatprep.subr.mxu0 0.0
      %7060 = vmatpush1.msra.mxu0 0.0
      %7061 = vmatprep.subr.mxu0 0.0
      %7062 = vmatpush1.msra.mxu0 0.0
      %7063 = vmatprep.subr.mxu0 0.0
      %7064 = vmatpush1.msra.mxu0 0.0
      %7065 = vmatprep.subr.mxu0 0.0
      %7066 = vmatpush1.msra.mxu0 0.0
      %7067 = vmatprep.subr.mxu0 0.0
      %7068 = vmatpush1.msra.mxu0 0.0
      %7069 = vmatprep.subr.mxu0 0.0
      %7070 = vmatpush1.msra.mxu0 0.0
      %7071 = vmatprep.subr.mxu0 0.0
      %7072 = vmatpush1.msra.mxu0 0.0
      %7073 = vmatprep.subr.mxu0 0.0
      %7074 = vmatpush1.msra.mxu0 0.0
      %7075 = vmatprep.subr.mxu0 0.0
      %7076 = vmatpush1.msra.mxu0 0.0
      %7077 = vmatprep.subr.mxu0 0.0
      %7078 = vmatpush1.msra.mxu0 0.0
      %7079 = vmatprep.subr.mxu0 0.0
      %7080 = vmatpush1.msra.mxu0 0.0
      %7081 = vmatprep.subr.mxu0 0.0
      %7082 = vmatpush1.msra.mxu0 0.0
      %7083 = vmatprep.subr.mxu0 0.0
      %7084 = vmatpush1.msra.mxu0 0.0
      %7085 = vmatprep.subr.mxu0 0.0
      %7086 = vmatpush1.msra.mxu0 0.0
      %7087 = vmatprep.subr.mxu0 0.0
      %7088 = vmatpush1.msra.mxu0 0.0
      %7089 = vmatprep.subr.mxu0 0.0
      %7090 = vmatpush1.msra.mxu0 0.0
      %7091 = vmatprep.subr.mxu0 0.0
      %7092 = vmatpush1.msra.mxu0 0.0
      %7093 = vmatprep.subr.mxu0 0.0
      %7094 = vmatpush1.msra.mxu0 0.0
      %7095 = vmatprep.subr.mxu0 0.0
      %7096 = vmatpush1.msra.mxu0 0.0
      %7097 = vmatprep.subr.mxu0 0.0
      %7098 = vmatpush1.msra.mxu0 0.0
      %7099 = vmatprep.mubr.f32.mxu0 0.0
      %7100 = vmatmul.mubr.f32.gmra.mrb[0].mxu0 %v6937
      %v7101 = vpop.f32.mrb[0].mxu0
      %v7102 = vadd.f32 0.0, %v7101
      %v7103 = vpop.f32.mrb[0].mxu0
      %7104 = vmatprep.mubr.f32.mxu0 0.0
      %7105 = vmatmul.mubr.f32.gmra.mrb[0].mxu0 %v6940
      %v7106 = vpop.f32.mrb[0].mxu0
      %v7107 = vadd.f32 0.0, %v7106
      %v7108 = vpop.f32.mrb[0].mxu0
      %7109 = vmatprep.mubr.f32.mxu0 0.0
      %7110 = vmatmul.mubr.f32.gmra.mrb[0].mxu0 %v6943
      %v7111 = vpop.f32.mrb[0].mxu0
      %v7112 = vadd.f32 0.0, %v7111
      %v7113 = vpop.f32.mrb[0].mxu0
      %7114 = vmatprep.mubr.f32.mxu0 0.0
      %7115 = vmatmul.mubr.f32.gmra.mrb[0].mxu0 %v6946
      %v7116 = vpop.f32.mrb[0].mxu0
      %v7117 = vadd.f32 0.0, %v7116
      %v7118 = vpop.f32.mrb[0].mxu0
      %7119 = vmatprep.mubr.f32.mxu0 0.0
      %7120 = vmatmul.mubr.f32.gmra.mrb[0].mxu0 %v6949
      %v7121 = vpop.f32.mrb[0].mxu0
      %v7122 = vadd.f32 0.0, %v7121
      %v7123 = vpop.f32.mrb[0].mxu0
      %7124 = vmatprep.mubr.f32.mxu0 0.0
      %7125 = vmatmul.mubr.f32.gmra.mrb[0].mxu0 %v6952
      %v7126 = vpop.f32.mrb[0].mxu0
      %v7127 = vadd.f32 0.0, %v7126
      %v7128 = vpop.f32.mrb[0].mxu0
      %7129 = vmatprep.mubr.f32.mxu0 0.0
      %7130 = vmatmul.mubr.f32.gmra.mrb[0].mxu0 %v6955
      %v7131 = vpop.f32.mrb[0].mxu0
      %v7132 = vadd.f32 0.0, %v7131
      %v7133 = vpop.f32.mrb[0].mxu0
      %7134 = vmatprep.mubr.f32.mxu0 0.0
      %7135 = vmatmul.mubr.f32.gmra.mrb[0].mxu0 %v6958
      %v7136 = vpop.f32.mrb[0].mxu0
      %v7137 = vadd.f32 0.0, %v7136
      %v7138 = vpop.f32.mrb[0].mxu0
      %7139 = vmatprep.mubr.f32.mxu0 0.0
      %7140 = vmatmul.mubr.f32.gmra.mrb[0].mxu0 %v6961
      %v7141 = vpop.f32.mrb[0].mxu0
      %v7142 = vadd.f32 0.0, %v7141
      %v7143 = vpop.f32.mrb[0].mxu0
      %7144 = vmatprep.mubr.f32.mxu0 0.0
      %7145 = vmatmul.mubr.f32.gmra.mrb[0].mxu0 %v6964
      %v7146 = vpop.f32.mrb[0].mxu0
      %v7147 = vadd.f32 0.0, %v7146
      %v7148 = vpop.f32.mrb[0].mxu0
      %7149 = vmatprep.mubr.f32.mxu0 0.0
      %7150 = vmatmul.mubr.f32.gmra.mrb[0].mxu0 %v6967
      %v7151 = vpop.f32.mrb[0].mxu0
      %v7152 = vadd.f32 0.0, %v7151
      %v7153 = vpop.f32.mrb[0].mxu0
      %7154 = vmatprep.mubr.f32.mxu0 0.0
      %7155 = vmatmul.mubr.f32.gmra.mrb[0].mxu0 %v6970
      %v7156 = vpop.f32.mrb[0].mxu0
      %v7157 = vadd.f32 0.0, %v7156
      %v7158 = vpop.f32.mrb[0].mxu0
      %7159 = vmatprep.mubr.f32.mxu0 0.0
      %7160 = vmatmul.mubr.f32.gmra.mrb[0].mxu0 %v6973
      %v7161 = vpop.f32.mrb[0].mxu0
      %v7162 = vadd.f32 0.0, %v7161
      %v7163 = vpop.f32.mrb[0].mxu0
      %7164 = vmatprep.mubr.f32.mxu0 0.0
      %7165 = vmatmul.mubr.f32.gmra.mrb[0].mxu0 %v6976
      %v7166 = vpop.f32.mrb[0].mxu0
      %v7167 = vadd.f32 0.0, %v7166
      %v7168 = vpop.f32.mrb[0].mxu0
      %7169 = vmatprep.mubr.f32.mxu0 0.0
      %7170 = vmatmul.mubr.f32.gmra.mrb[0].mxu0 %v6979
      %v7171 = vpop.f32.mrb[0].mxu0
      %v7172 = vadd.f32 0.0, %v7171
      %v7173 = vpop.f32.mrb[0].mxu0
      %7174 = vmatprep.mubr.f32.mxu0 0.0
      %7175 = vmatmul.mubr.f32.gmra.mrb[0].mxu0 %v6982
      %v7176 = vpop.f32.mrb[0].mxu0
      %v7177 = vadd.f32 0.0, %v7176
      %v7178 = vpop.f32.mrb[0].mxu0
      %7179 = vmatprep.mubr.f32.mxu0 0.0
      %7180 = vmatmul.mubr.f32.gmra.mrb[0].mxu0 %v6985
      %v7181 = vpop.f32.mrb[0].mxu0
      %v7182 = vadd.f32 0.0, %v7181
      %v7183 = vpop.f32.mrb[0].mxu0
      %7184 = vmatprep.mubr.f32.mxu0 0.0
      %7185 = vmatmul.mubr.f32.gmra.mrb[0].mxu0 %v6988
      %v7186 = vpop.f32.mrb[0].mxu0
      %v7187 = vadd.f32 0.0, %v7186
      %v7188 = vpop.f32.mrb[0].mxu0
      %7189 = vmatprep.mubr.f32.mxu0 0.0
      %7190 = vmatmul.mubr.f32.gmra.mrb[0].mxu0 %v6991
      %v7191 = vpop.f32.mrb[0].mxu0
      %v7192 = vadd.f32 0.0, %v7191
      %v7193 = vpop.f32.mrb[0].mxu0
      %7194 = vmatprep.mubr.f32.mxu0 0.0
      %7195 = vmatmul.mubr.f32.gmra.mrb[0].mxu0 %v6994
      %v7196 = vpop.f32.mrb[0].mxu0
      %v7197 = vadd.f32 0.0, %v7196
      %v7198 = vpop.f32.mrb[0].mxu0
      %7199 = vmatprep.mubr.f32.mxu0 0.0
      %7200 = vmatmul.mubr.f32.gmra.mrb[0].mxu0 %v6997
      %v7201 = vpop.f32.mrb[0].mxu0
      %v7202 = vadd.f32 0.0, %v7201
      %v7203 = vpop.f32.mrb[0].mxu0
      %7204 = vmatprep.mubr.f32.mxu0 0.0
      %7205 = vmatmul.mubr.f32.gmra.mrb[0].mxu0 %v7000
      %v7206 = vpop.f32.mrb[0].mxu0
      %v7207 = vadd.f32 0.0, %v7206
      %v7208 = vpop.f32.mrb[0].mxu0
      %7209 = vmatprep.mubr.f32.mxu0 0.0
      %7210 = vmatmul.mubr.f32.gmra.mrb[0].mxu0 %v7003
      %v7211 = vpop.f32.mrb[0].mxu0
      %v7212 = vadd.f32 0.0, %v7211
      %v7213 = vpop.f32.mrb[0].mxu0
      %7214 = vmatprep.mubr.f32.mxu0 0.0
      %7215 = vmatmul.mubr.f32.gmra.mrb[0].mxu0 %v7006
      %v7216 = vpop.f32.mrb[0].mxu0
      %v7217 = vadd.f32 0.0, %v7216
      %v7218 = vpop.f32.mrb[0].mxu0
      %7219 = vmatprep.mubr.f32.mxu0 0.0
      %7220 = vmatmul.mubr.f32.gmra.mrb[0].mxu0 %v7009
      %v7221 = vpop.f32.mrb[0].mxu0
      %v7222 = vadd.f32 0.0, %v7221
      %v7223 = vpop.f32.mrb[0].mxu0
      %7224 = vmatprep.mubr.f32.mxu0 0.0
      %7225 = vmatmul.mubr.f32.gmra.mrb[0].mxu0 %v7012
      %v7226 = vpop.f32.mrb[0].mxu0
      %v7227 = vadd.f32 0.0, %v7226
      %v7228 = vpop.f32.mrb[0].mxu0
      %7229 = vmatprep.mubr.f32.mxu0 0.0
      %7230 = vmatmul.mubr.f32.gmra.mrb[0].mxu0 %v7015
      %v7231 = vpop.f32.mrb[0].mxu0
      %v7232 = vadd.f32 0.0, %v7231
      %v7233 = vpop.f32.mrb[0].mxu0
      %7234 = vmatprep.mubr.f32.mxu0 0.0
      %7235 = vmatmul.mubr.f32.gmra.mrb[0].mxu0 %v7018
      %v7236 = vpop.f32.mrb[0].mxu0
      %v7237 = vadd.f32 0.0, %v7236
      %v7238 = vpop.f32.mrb[0].mxu0
      %7239 = vmatprep.mubr.f32.mxu0 0.0
      %7240 = vmatmul.mubr.f32.gmra.mrb[0].mxu0 %v7021
      %v7241 = vpop.f32.mrb[0].mxu0
      %v7242 = vadd.f32 0.0, %v7241
      %v7243 = vpop.f32.mrb[0].mxu0
      %7244 = vmatprep.mubr.f32.mxu0 0.0
      %7245 = vmatmul.mubr.f32.gmra.mrb[0].mxu0 %v7024
      %v7246 = vpop.f32.mrb[0].mxu0
      %v7247 = vadd.f32 0.0, %v7246
      %v7248 = vpop.f32.mrb[0].mxu0
      %7249 = vmatprep.mubr.f32.mxu0 0.0
      %7250 = vmatmul.mubr.f32.gmra.mrb[0].mxu0 %v7027
      %v7251 = vpop.f32.mrb[0].mxu0
      %v7252 = vadd.f32 0.0, %v7251
      %v7253 = vpop.f32.mrb[0].mxu0
      %7254 = vmatprep.mubr.f32.mxu0 0.0
      %7255 = vmatmul.mubr.f32.gmra.mrb[0].mxu0 %v7030
      %v7256 = vpop.f32.mrb[0].mxu0
      %v7257 = vadd.f32 0.0, %v7256
      %v7258 = vpop.f32.mrb[0].mxu0
      %7259 = vdwg.mxu0
      %v7260 = vld [vmem:[%s8 + $0xa] sm:$0x1]
      %v7261 = vlaneseq
      %v7262 = vshrl.u32 %v7261, 7
      %v7263 = vsub.s32 0, %v7262
      %v7264 = vrot.slane %v7260, %v7263
      %v7265 = vmul.f32 %v7102, %v7264
      %v7266 = vmul.f32 %v7107, %v7264
      %v7267 = vmul.f32 %v7112, %v7264
      %v7268 = vmul.f32 %v7117, %v7264
      %v7269 = vmul.f32 %v7122, %v7264
      %v7270 = vmul.f32 %v7127, %v7264
      %v7271 = vmul.f32 %v7132, %v7264
      %v7272 = vmul.f32 %v7137, %v7264
      %v7273 = vmul.f32 %v7142, %v7264
      %v7274 = vmul.f32 %v7147, %v7264
      %v7275 = vmul.f32 %v7152, %v7264
      %v7276 = vmul.f32 %v7157, %v7264
      %v7277 = vmul.f32 %v7162, %v7264
      %v7278 = vmul.f32 %v7167, %v7264
      %v7279 = vmul.f32 %v7172, %v7264
      %v7280 = vmul.f32 %v7177, %v7264
      %v7281 = vmul.f32 %v7182, %v7264
      %v7282 = vmul.f32 %v7187, %v7264
      %v7283 = vmul.f32 %v7192, %v7264
      %v7284 = vmul.f32 %v7197, %v7264
      %v7285 = vmul.f32 %v7202, %v7264
      %v7286 = vmul.f32 %v7207, %v7264
      %v7287 = vmul.f32 %v7212, %v7264
      %v7288 = vmul.f32 %v7217, %v7264
      %v7289 = vmul.f32 %v7222, %v7264
      %v7290 = vmul.f32 %v7227, %v7264
      %v7291 = vmul.f32 %v7232, %v7264
      %v7292 = vmul.f32 %v7237, %v7264
      %v7293 = vmul.f32 %v7242, %v7264
      %v7294 = vmul.f32 %v7247, %v7264
      %v7295 = vmul.f32 %v7252, %v7264
      %v7296 = vmul.f32 %v7257, %v7264
      %v7297 = vld [vmem:[%s8 + $0xb] sm:$0x1]
      %v7298 = vlaneseq
      %v7299 = vshrl.u32 %v7298, 7
      %v7300 = vsub.s32 0, %v7299
      %v7301 = vrot.slane %v7297, %v7300
      %v7302 = vadd.f32 %v7265, %v7301
      %v7303 = vadd.f32 %v7266, %v7301
      %v7304 = vadd.f32 %v7267, %v7301
      %v7305 = vadd.f32 %v7268, %v7301
      %v7306 = vadd.f32 %v7269, %v7301
      %v7307 = vadd.f32 %v7270, %v7301
      %v7308 = vadd.f32 %v7271, %v7301
      %v7309 = vadd.f32 %v7272, %v7301
      %v7310 = vadd.f32 %v7273, %v7301
      %v7311 = vadd.f32 %v7274, %v7301
      %v7312 = vadd.f32 %v7275, %v7301
      %v7313 = vadd.f32 %v7276, %v7301
      %v7314 = vadd.f32 %v7277, %v7301
      %v7315 = vadd.f32 %v7278, %v7301
      %v7316 = vadd.f32 %v7279, %v7301
      %v7317 = vadd.f32 %v7280, %v7301
      %v7318 = vadd.f32 %v7281, %v7301
      %v7319 = vadd.f32 %v7282, %v7301
      %v7320 = vadd.f32 %v7283, %v7301
      %v7321 = vadd.f32 %v7284, %v7301
      %v7322 = vadd.f32 %v7285, %v7301
      %v7323 = vadd.f32 %v7286, %v7301
      %v7324 = vadd.f32 %v7287, %v7301
      %v7325 = vadd.f32 %v7288, %v7301
      %v7326 = vadd.f32 %v7289, %v7301
      %v7327 = vadd.f32 %v7290, %v7301
      %v7328 = vadd.f32 %v7291, %v7301
      %v7329 = vadd.f32 %v7292, %v7301
      %v7330 = vadd.f32 %v7293, %v7301
      %v7331 = vadd.f32 %v7294, %v7301
      %v7332 = vadd.f32 %v7295, %v7301
      %v7333 = vadd.f32 %v7296, %v7301
      %7334 = vst.msk [vmem:[%s352] sm:$0xff] %vm417, %v7302
      %7335 = vst.msk [vmem:[%s352 + $0x8] sm:$0xff] %vm417, %v7303
      %7336 = vst.msk [vmem:[%s352 + $0x10] sm:$0xff] %vm417, %v7304
      %7337 = vst.msk [vmem:[%s352 + $0x18] sm:$0xff] %vm417, %v7305
      %7338 = vst.msk [vmem:[%s352 + $0x20] sm:$0xff] %vm417, %v7306
      %7339 = vst.msk [vmem:[%s352 + $0x28] sm:$0xff] %vm417, %v7307
      %7340 = vst.msk [vmem:[%s352 + $0x30] sm:$0xff] %vm417, %v7308
      %7341 = vst.msk [vmem:[%s352 + $0x38] sm:$0xff] %vm417, %v7309
      %7342 = vst.msk [vmem:[%s352 + $0x40] sm:$0xff] %vm417, %v7310
      %7343 = vst.msk [vmem:[%s352 + $0x48] sm:$0xff] %vm417, %v7311
      %7344 = vst.msk [vmem:[%s352 + $0x50] sm:$0xff] %vm417, %v7312
      %7345 = vst.msk [vmem:[%s352 + $0x58] sm:$0xff] %vm417, %v7313
      %7346 = vst.msk [vmem:[%s352 + $0x60] sm:$0xff] %vm417, %v7314
      %7347 = vst.msk [vmem:[%s352 + $0x68] sm:$0xff] %vm417, %v7315
      %7348 = vst.msk [vmem:[%s352 + $0x70] sm:$0xff] %vm417, %v7316
      %7349 = vst.msk [vmem:[%s352 + $0x78] sm:$0xff] %vm417, %v7317
      %7350 = vst.msk [vmem:[%s352 + $0x80] sm:$0xff] %vm417, %v7318
      %7351 = vst.msk [vmem:[%s352 + $0x88] sm:$0xff] %vm417, %v7319
      %7352 = vst.msk [vmem:[%s352 + $0x90] sm:$0xff] %vm417, %v7320
      %7353 = vst.msk [vmem:[%s352 + $0x98] sm:$0xff] %vm417, %v7321
      %7354 = vst.msk [vmem:[%s352 + $0xa0] sm:$0xff] %vm417, %v7322
      %7355 = vst.msk [vmem:[%s352 + $0xa8] sm:$0xff] %vm417, %v7323
      %7356 = vst.msk [vmem:[%s352 + $0xb0] sm:$0xff] %vm417, %v7324
      %7357 = vst.msk [vmem:[%s352 + $0xb8] sm:$0xff] %vm417, %v7325
      %7358 = vst.msk [vmem:[%s352 + $0xc0] sm:$0xff] %vm417, %v7326
      %7359 = vst.msk [vmem:[%s352 + $0xc8] sm:$0xff] %vm417, %v7327
      %7360 = vst.msk [vmem:[%s352 + $0xd0] sm:$0xff] %vm417, %v7328
      %7361 = vst.msk [vmem:[%s352 + $0xd8] sm:$0xff] %vm417, %v7329
      %7362 = vst.msk [vmem:[%s352 + $0xe0] sm:$0xff] %vm417, %v7330
      %7363 = vst.msk [vmem:[%s352 + $0xe8] sm:$0xff] %vm417, %v7331
      %7364 = vst.msk [vmem:[%s352 + $0xf0] sm:$0xff] %vm417, %v7332
      %7365 = vst.msk [vmem:[%s352 + $0xf8] sm:$0xff] %vm417, %v7333
      %p7366 = scmp.lt.s32.totalorder %s20, 1
      %s7367 = scalar_select %p7366, %s20, 1
      %s7368 = smul.addr %s7367, 32
      %s7369 = smul.addr %s7368, 8
      %s7370 = scalar_lea.vmem %s9, %s7369
      // Predicated region
      $region57: #{multiscale_gated_attn_forward.1} parent=55 // pred_check
        %p7371 = pneg %p237
      $region58: #{multiscale_gated_attn_forward.1} parent=55 // pred_check_branch
        %7373 = sbr.rel (%p7371) target = $region60
      $region59: #{multiscale_gated_attn_forward.1} parent=55 // pred_region
        _
      $region60: #{multiscale_gated_attn_forward.1} parent=55 // pred_fallthru
        _
    $region56: #{multiscale_gated_attn_forward.1} parent=5 // pred_fallthru
      _
    %p7374 = scmp.le.s32.totalorder 2, %s15
    // Predicated region
    $region61: #{multiscale_gated_attn_forward.1} parent=5 // pred_check
      %p7375 = pneg %p7374
    $region62: #{multiscale_gated_attn_forward.1} parent=5 // pred_check_branch
      %7377 = sbr.rel (%p7375) target = $region64
    $region63: #{multiscale_gated_attn_forward.1} parent=5 // pred_region
      %s7378 = ssub.s32 %s15, 2
      // Predicated region
      $region65: #{multiscale_gated_attn_forward.1} parent=63 // pred_check
        %p7379 = pneg %p243
      $region66: #{multiscale_gated_attn_forward.1} parent=63 // pred_check_branch
        %7381 = sbr.rel (%p7379) target = $region68
      $region67: #{multiscale_gated_attn_forward.1} parent=63 // pred_region
        %p7382 = scmp.lt.s32.totalorder %s21, 1
        %s7383 = scalar_select %p7382, %s21, 1
        %s7384 = smul.addr %s7383, 32
        %s7385 = smul.addr %s7384, 8
        %s7386 = scalar_lea.vmem %s9, %s7385
      $region68: #{multiscale_gated_attn_forward.1} parent=63 // pred_fallthru
        _
    $region64: #{multiscale_gated_attn_forward.1} parent=5 // pred_fallthru
      _
  $region6: #{multiscale_gated_attn_forward.1} parent=0 // loop_footer
    %s19 = sadd.s32 1, %s15
  $region7: #{multiscale_gated_attn_forward.1} parent=0 // loop_footer_branch
    %14 = sbr.rel target = $region3
  $region8: #{multiscale_gated_attn_forward.1} parent=0 // loop_exit
    _

</llo_original>
